<compile_context>
chip_gen: v7x
topology: tpu7x:2x2x1
jax: 0.10.0
libtpu: 0.0.40
codegen_flags: <defaults>
</compile_context>

<pallas_src>
import jax
import jax.numpy as jnp
from jax.experimental import pallas as pl
from jax.experimental.pallas import tpu as pltpu

H = W = 14
HP = WP = 16            # zero-padded spatial extent used by the in-kernel conv
QP = HP * WP            # 256 padded flat positions per batch element
P = H * W               # 196 valid positions
OUTPAD = 128            # lane-dense output width


def boxhead_kernel(x_ref, w3_ref, b3_ref, w1_ref, b1_ref, w2_ref,
                   wstk_ref, s_ref, ones_ref, bias_ref, out_ref):
    # x_ref   : (R, Cin)  f32   R = bblk*256, rows = (elem, padded 16x16 flat pos)
    # w3_ref  : (9, Cin, 128) bf16  per-tap 3x3 conv weights (BN1 folded)
    # b3_ref  : (1, 128)  f32
    # w1_ref  : (128, 128) bf16 (cols 64..127 zero), b1_ref (1,128) f32 (BN2 folded)
    # w2_ref  : (128, OUT*16) bf16  64->16 conv weight replicated OUT times
    # wstk_ref: (256, OUT*16) f32   fused FC weights, zero at invalid positions
    # s_ref   : (bblk, R) bf16      0/1 segment-sum matrix
    # ones_ref: (OUT*16, 128) f32   lane-group-sum matrix
    # bias_ref: (1, 128)  f32
    # out_ref : (1, bblk, 128) f32
    bblk = s_ref.shape[0]
    x = x_ref[...]                                        # (R, Cin) f32

    def tap(shift):
        # rows shifted "up" by `shift`: result[r] = x[(r + shift) % R].
        # Wrapped / cross-element rows only land on positions whose fused-FC
        # weights are zero, so those values are never used.
        if shift == 0:
            return x
        return jnp.concatenate([x[shift:], x[:shift]], axis=0)

    # ---- stage 1: 3x3 conv (BN1 folded) as 9 shifted K=Cin MXU dots + ReLU ----
    acc = None
    for t in range(9):
        shift = (t // 3) * WP + (t % 3)                   # ky*16 + kx
        contrib = jnp.dot(tap(shift).astype(jnp.bfloat16), w3_ref[t],
                          preferred_element_type=jnp.float32)
        acc = contrib if acc is None else acc + contrib
    h1 = jnp.maximum(acc + b3_ref[...], 0.0)              # (R, 128) f32

    # ---- stage 2: 1x1 conv 128->64 (BN2 folded, zero-padded to 128 lanes) ----
    h2 = jnp.dot(h1.astype(jnp.bfloat16), w1_ref[...],
                 preferred_element_type=jnp.float32)
    h2 = jnp.maximum(h2 + b1_ref[...], 0.0)               # (R, 128) f32

    # ---- stage 3: 64->16 conv (replicated OUT x along lanes) + fused FC ----
    c3t = jnp.dot(h2.astype(jnp.bfloat16), w2_ref[...],
                  preferred_element_type=jnp.float32)     # (R, OUT*16)
    wstk = wstk_ref[...]
    wq = jnp.concatenate([wstk] * bblk, axis=0) if bblk > 1 else wstk
    prod = (c3t * wq).astype(jnp.bfloat16)                # (R, OUT*16)
    segv = jnp.dot(s_ref[...], prod,
                   preferred_element_type=jnp.float32)    # (bblk, OUT*16)
    out = jnp.dot(segv, ones_ref[...],
                  preferred_element_type=jnp.float32) + bias_ref[...]  # (bblk,128)
    out_ref[0] = out


def _choose_block(n, cin, out_c):
    # Largest batch block whose working set fits a conservative VMEM budget,
    # while keeping >=2 grid steps (megacore / v7x's two TensorCores).
    budget = 20 * 1024 * 1024
    for b in (64, 32, 16, 8, 4, 2, 1):
        if b > n:
            continue
        if n >= 2 and pl.cdiv(n, b) < 2:
            continue
        r = b * QP
        est = (2 * (r * cin * 4 + b * OUTPAD * 4)         # double-buffered x / out
               + 9 * cin * 128 * 2 + 128 * 128 * 2        # conv weights
               + 128 * out_c * 16 * 2                     # w2big
               + QP * out_c * 16 * 4                      # fused FC weight (un-tiled)
               + b * r * 2                                # segment matrix
               + 6 * r * 128 * 4)                         # in-kernel temporaries
        if est <= budget:
            return b
    return 1


def boxhead_forward(x_nchw, params):
    n, cin, hh, ww = x_nchw.shape
    assert (hh, ww) == (H, W)
    out_c = params['bfc'].shape[-1]
    oc16 = out_c * 16

    # ---- XLA-side prep: BN0 + ReLU, NHWC, zero-pad to 16x16 (no im2col) ----
    x = jnp.transpose(x_nchw, (0, 2, 3, 1)).astype(jnp.float32)
    h0 = jnp.maximum(x * params['s0'][0] + params['t0'][0], 0.0)
    h0p = jnp.pad(h0, ((0, 0), (1, 1), (1, 1), (0, 0)))            # (N,16,16,C)

    # ---- batch blocking ----
    bblk = _choose_block(n, cin, out_c)
    n_pad = pl.cdiv(n, bblk) * bblk
    if n_pad != n:
        h0p = jnp.pad(h0p, ((0, n_pad - n), (0, 0), (0, 0), (0, 0)))
    grid = n_pad // bblk
    rows = bblk * QP
    x2d = h0p.reshape(n_pad * QP, cin)                             # f32, compact

    # ---- fold BNs into conv weights ----
    w3f = (params['w3'] * params['s1']).reshape(9, cin, 128).astype(jnp.bfloat16)
    b3f = (params['b3'] * params['s1'] + params['t1']).astype(jnp.float32)
    w1p = jnp.pad(params['w1'] * params['s2'], ((0, 0), (0, 64))).astype(jnp.bfloat16)
    b1p = jnp.pad(params['b1'] * params['s2'] + params['t2'],
                  ((0, 0), (0, 64))).astype(jnp.float32)
    w2p = jnp.pad(params['w2'], ((0, 64), (0, 0)))                 # (128,16)
    w2big = jnp.tile(w2p, (1, out_c)).astype(jnp.bfloat16)         # (128, OUT*16)

    # fused FC weights laid out over the padded 16x16 grid (zero at invalid q)
    q = jnp.arange(QP)
    qi, qj = q // WP, q % WP
    valid = (qi < H) & (qj < W)
    pidx = jnp.where(valid, qi * W + qj, 0)
    wfc_q = jnp.where(valid[:, None, None], params['wfc'][pidx], 0.0)  # (256,16,OUT)
    wstk = jnp.transpose(wfc_q, (0, 2, 1)).reshape(QP, oc16).astype(jnp.float32)

    sseg = (jnp.arange(rows)[None, :] // QP ==
            jnp.arange(bblk)[:, None]).astype(jnp.bfloat16)        # (bblk, rows)
    ones_bd = jnp.repeat(jnp.eye(out_c, OUTPAD, dtype=jnp.float32), 16, axis=0)
    bias_pad = jnp.zeros((1, OUTPAD), jnp.float32).at[:, :out_c].set(
        params['bfc'] +
        jnp.einsum('c,pco->o', params['b2'][0], params['wfc'])[None, :])

    weights = (w3f, b3f, w1p, b1p, w2big, wstk, sseg, ones_bd, bias_pad)

    def _full_spec(a):
        nd = a.ndim
        return pl.BlockSpec(a.shape, lambda i, _n=nd: (0,) * _n)

    out3 = pl.pallas_call(
        boxhead_kernel,
        out_shape=jax.ShapeDtypeStruct((grid, bblk, OUTPAD), jnp.float32),
        grid_spec=pltpu.PrefetchScalarGridSpec(
            num_scalar_prefetch=0,
            grid=(grid,),
            in_specs=[pl.BlockSpec((rows, cin), lambda i: (i, 0))] +
                     [_full_spec(w) for w in weights],
            out_specs=pl.BlockSpec((1, bblk, OUTPAD), lambda i: (i, 0, 0))),
        compiler_params=pltpu.CompilerParams(
            dimension_semantics=("parallel",),
            vmem_limit_bytes=40 * 1024 * 1024),
    )(x2d, *weights)
    return out3.reshape(n_pad, OUTPAD)[:n, :out_c]


def init_params(key, in_channels, out_channels=4):
    eps = 1e-5
    keys = iter(jax.random.split(key, 24))

    def bn(c):
        g = jax.random.uniform(next(keys), (c,), jnp.float32, 0.5, 1.5)
        b = 0.1 * jax.random.normal(next(keys), (c,), jnp.float32)
        m = 0.1 * jax.random.normal(next(keys), (c,), jnp.float32)
        v = jax.random.uniform(next(keys), (c,), jnp.float32, 0.5, 1.5)
        scale = g / jnp.sqrt(v + eps)
        shift = b - m * scale
        return scale.reshape(1, c), shift.reshape(1, c)

    def conv_w(k, shape, fan_in):
        return jax.random.normal(k, shape, jnp.float32) / jnp.sqrt(float(fan_in))

    s0, t0 = bn(in_channels)
    s1, t1 = bn(128)
    s2, t2 = bn(64)
    w3 = conv_w(next(keys), (3, 3, in_channels, 128), 9 * in_channels)
    b3 = 0.05 * jax.random.normal(next(keys), (1, 128), jnp.float32)
    w1 = conv_w(next(keys), (128, 64), 128)
    b1 = 0.05 * jax.random.normal(next(keys), (1, 64), jnp.float32)
    w2 = conv_w(next(keys), (64, 16), 64)
    b2 = 0.05 * jax.random.normal(next(keys), (1, 16), jnp.float32)
    wfc = conv_w(next(keys), (P, 16, out_channels), P * 16)
    bfc = 0.05 * jax.random.normal(next(keys), (1, out_channels), jnp.float32)
    return dict(s0=s0, t0=t0, w3=w3, b3=b3, s1=s1, t1=t1, w1=w1, b1=b1,
                s2=s2, t2=t2, w2=w2, b2=b2, wfc=wfc, bfc=bfc)


def boxhead_ref(x_nchw, p):
    # Pure-JAX (non-Pallas) f32 reference of the same semantics, NHWC.
    x = jnp.transpose(x_nchw, (0, 2, 3, 1)).astype(jnp.float32)
    h0 = jnp.maximum(x * p['s0'][0] + p['t0'][0], 0.0)
    h0p = jnp.pad(h0, ((0, 0), (1, 1), (1, 1), (0, 0)))
    acc = jnp.zeros(x.shape[:3] + (128,), jnp.float32)
    for ky in range(3):
        for kx in range(3):
            acc = acc + jnp.einsum('nhwc,co->nhwo',
                                   h0p[:, ky:ky + H, kx:kx + W, :], p['w3'][ky, kx])
    c1 = acc + p['b3'][0]
    h1 = jnp.maximum(c1 * p['s1'][0] + p['t1'][0], 0.0)
    c2 = jnp.einsum('nhwc,co->nhwo', h1, p['w1']) + p['b1'][0]
    h2 = jnp.maximum(c2 * p['s2'][0] + p['t2'][0], 0.0)
    c3 = jnp.einsum('nhwc,co->nhwo', h2, p['w2']) + p['b2'][0]
    c3_flat = c3.reshape(c3.shape[0], P, 16)
    return jnp.einsum('npc,pco->no', c3_flat, p['wfc']) + p['bfc'][0]


if __name__ == "__main__":
    key = jax.random.PRNGKey(0)
    kx, kp = jax.random.split(key)
    N, CIN, OUT = 8, 8, 4
    x = jax.random.normal(kx, (N, CIN, H, W), jnp.float32)
    params = init_params(kp, CIN, out_channels=OUT)

    fwd = jax.jit(boxhead_forward)
    out = jax.block_until_ready(fwd(x, params))
    assert out.shape == (N, OUT)

    ref = boxhead_ref(x, params)
    if not jnp.allclose(out, ref, rtol=2e-2, atol=2e-2):
        raise AssertionError(f"mismatch:\nkernel={out}\nref={ref}")
    print("KERNEL_OK")
</pallas_src>

<mosaic_0001>
module attributes {stable_mosaic.version = 11 : i64} {
  func.func @boxhead_kernel(%arg0: i32, %arg1: memref<1024x8xf32, #tpu.memory_space<vmem>>, %arg2: memref<9x8x128xbf16, #tpu.memory_space<vmem>>, %arg3: memref<1x128xf32, #tpu.memory_space<vmem>>, %arg4: memref<128x128xbf16, #tpu.memory_space<vmem>>, %arg5: memref<1x128xf32, #tpu.memory_space<vmem>>, %arg6: memref<128x64xbf16, #tpu.memory_space<vmem>>, %arg7: memref<256x64xf32, #tpu.memory_space<vmem>>, %arg8: memref<4x1024xbf16, #tpu.memory_space<vmem>>, %arg9: memref<64x128xf32, #tpu.memory_space<vmem>>, %arg10: memref<1x128xf32, #tpu.memory_space<vmem>>, %arg11: memref<1x4x128xf32, #tpu.memory_space<vmem>>) attributes {dimension_semantics = [#tpu.dimension_semantics<parallel>], iteration_bounds = array<i64: 2>, scalar_prefetch = 0 : i64, scratch_operands = 0 : i64, tpu.core_type = #tpu.core_type<tc>, window_params = [{transform_indices = @transform_0, window_bounds = array<i64: 1024, 8>}, {pipeline_mode = #tpu.pipeline_mode<synchronous>, transform_indices = @transform_1, window_bounds = array<i64: 9, 8, 128>}, {pipeline_mode = #tpu.pipeline_mode<synchronous>, transform_indices = @transform_2, window_bounds = array<i64: 1, 128>}, {pipeline_mode = #tpu.pipeline_mode<synchronous>, transform_indices = @transform_3, window_bounds = array<i64: 128, 128>}, {pipeline_mode = #tpu.pipeline_mode<synchronous>, transform_indices = @transform_4, window_bounds = array<i64: 1, 128>}, {pipeline_mode = #tpu.pipeline_mode<synchronous>, transform_indices = @transform_5, window_bounds = array<i64: 128, 64>}, {pipeline_mode = #tpu.pipeline_mode<synchronous>, transform_indices = @transform_6, window_bounds = array<i64: 256, 64>}, {pipeline_mode = #tpu.pipeline_mode<synchronous>, transform_indices = @transform_7, window_bounds = array<i64: 4, 1024>}, {pipeline_mode = #tpu.pipeline_mode<synchronous>, transform_indices = @transform_8, window_bounds = array<i64: 64, 128>}, {pipeline_mode = #tpu.pipeline_mode<synchronous>, transform_indices = @transform_9, window_bounds = array<i64: 1, 128>}, {transform_indices = @transform_10, window_bounds = array<i64: 1, 4, 128>}]} {
    %c0 = arith.constant 0 : index
    %c0_0 = arith.constant 0 : index
    %0 = vector.load %arg1[%c0, %c0_0] : memref<1024x8xf32, #tpu.memory_space<vmem>>, vector<1024x8xf32>
    %1 = arith.truncf %0 : vector<1024x8xf32> to vector<1024x8xbf16>
    %c0_1 = arith.constant 0 : index
    %c0_2 = arith.constant 0 : index
    %c0_3 = arith.constant 0 : index
    %2 = vector.load %arg2[%c0_1, %c0_2, %c0_3] : memref<9x8x128xbf16, #tpu.memory_space<vmem>>, vector<1x8x128xbf16>
    %3 = vector.shape_cast %2 : vector<1x8x128xbf16> to vector<8x128xbf16>
    %cst = arith.constant dense<0.000000e+00> : vector<1024x128xf32>
    %4 = tpu.matmul %1, %3, %cst {dimension_numbers = #tpu.dot_dimension_numbers<[1], [0], [0], [1], [0, 0, 1, 1], [], []>} : vector<1024x8xbf16>, vector<8x128xbf16>, vector<1024x128xf32> -> vector<1024x128xf32>
    %5 = vector.extract_strided_slice %0 {offsets = [1, 0], sizes = [1023, 8], strides = [1, 1]} : vector<1024x8xf32> to vector<1023x8xf32>
    %6 = vector.extract_strided_slice %0 {offsets = [0, 0], sizes = [1, 8], strides = [1, 1]} : vector<1024x8xf32> to vector<1x8xf32>
    %7 = tpu.concatenate %5, %6 in 0 : vector<1023x8xf32>, vector<1x8xf32> -> vector<1024x8xf32>
    %8 = arith.truncf %7 : vector<1024x8xf32> to vector<1024x8xbf16>
    %c1 = arith.constant 1 : index
    %c0_4 = arith.constant 0 : index
    %c0_5 = arith.constant 0 : index
    %9 = vector.load %arg2[%c1, %c0_4, %c0_5] : memref<9x8x128xbf16, #tpu.memory_space<vmem>>, vector<1x8x128xbf16>
    %10 = vector.shape_cast %9 : vector<1x8x128xbf16> to vector<8x128xbf16>
    %cst_6 = arith.constant dense<0.000000e+00> : vector<1024x128xf32>
    %11 = tpu.matmul %8, %10, %cst_6 {dimension_numbers = #tpu.dot_dimension_numbers<[1], [0], [0], [1], [0, 0, 1, 1], [], []>} : vector<1024x8xbf16>, vector<8x128xbf16>, vector<1024x128xf32> -> vector<1024x128xf32>
    %12 = arith.addf %4, %11 : vector<1024x128xf32>
    %13 = vector.extract_strided_slice %0 {offsets = [2, 0], sizes = [1022, 8], strides = [1, 1]} : vector<1024x8xf32> to vector<1022x8xf32>
    %14 = vector.extract_strided_slice %0 {offsets = [0, 0], sizes = [2, 8], strides = [1, 1]} : vector<1024x8xf32> to vector<2x8xf32>
    %15 = tpu.concatenate %13, %14 in 0 : vector<1022x8xf32>, vector<2x8xf32> -> vector<1024x8xf32>
    %16 = arith.truncf %15 : vector<1024x8xf32> to vector<1024x8xbf16>
    %c2 = arith.constant 2 : index
    %c0_7 = arith.constant 0 : index
    %c0_8 = arith.constant 0 : index
    %17 = vector.load %arg2[%c2, %c0_7, %c0_8] : memref<9x8x128xbf16, #tpu.memory_space<vmem>>, vector<1x8x128xbf16>
    %18 = vector.shape_cast %17 : vector<1x8x128xbf16> to vector<8x128xbf16>
    %cst_9 = arith.constant dense<0.000000e+00> : vector<1024x128xf32>
    %19 = tpu.matmul %16, %18, %cst_9 {dimension_numbers = #tpu.dot_dimension_numbers<[1], [0], [0], [1], [0, 0, 1, 1], [], []>} : vector<1024x8xbf16>, vector<8x128xbf16>, vector<1024x128xf32> -> vector<1024x128xf32>
    %20 = arith.addf %12, %19 : vector<1024x128xf32>
    %21 = vector.extract_strided_slice %0 {offsets = [16, 0], sizes = [1008, 8], strides = [1, 1]} : vector<1024x8xf32> to vector<1008x8xf32>
    %22 = vector.extract_strided_slice %0 {offsets = [0, 0], sizes = [16, 8], strides = [1, 1]} : vector<1024x8xf32> to vector<16x8xf32>
    %23 = tpu.concatenate %21, %22 in 0 : vector<1008x8xf32>, vector<16x8xf32> -> vector<1024x8xf32>
    %24 = arith.truncf %23 : vector<1024x8xf32> to vector<1024x8xbf16>
    %c3 = arith.constant 3 : index
    %c0_10 = arith.constant 0 : index
    %c0_11 = arith.constant 0 : index
    %25 = vector.load %arg2[%c3, %c0_10, %c0_11] : memref<9x8x128xbf16, #tpu.memory_space<vmem>>, vector<1x8x128xbf16>
    %26 = vector.shape_cast %25 : vector<1x8x128xbf16> to vector<8x128xbf16>
    %cst_12 = arith.constant dense<0.000000e+00> : vector<1024x128xf32>
    %27 = tpu.matmul %24, %26, %cst_12 {dimension_numbers = #tpu.dot_dimension_numbers<[1], [0], [0], [1], [0, 0, 1, 1], [], []>} : vector<1024x8xbf16>, vector<8x128xbf16>, vector<1024x128xf32> -> vector<1024x128xf32>
    %28 = arith.addf %20, %27 : vector<1024x128xf32>
    %29 = vector.extract_strided_slice %0 {offsets = [17, 0], sizes = [1007, 8], strides = [1, 1]} : vector<1024x8xf32> to vector<1007x8xf32>
    %30 = vector.extract_strided_slice %0 {offsets = [0, 0], sizes = [17, 8], strides = [1, 1]} : vector<1024x8xf32> to vector<17x8xf32>
    %31 = tpu.concatenate %29, %30 in 0 : vector<1007x8xf32>, vector<17x8xf32> -> vector<1024x8xf32>
    %32 = arith.truncf %31 : vector<1024x8xf32> to vector<1024x8xbf16>
    %c4 = arith.constant 4 : index
    %c0_13 = arith.constant 0 : index
    %c0_14 = arith.constant 0 : index
    %33 = vector.load %arg2[%c4, %c0_13, %c0_14] : memref<9x8x128xbf16, #tpu.memory_space<vmem>>, vector<1x8x128xbf16>
    %34 = vector.shape_cast %33 : vector<1x8x128xbf16> to vector<8x128xbf16>
    %cst_15 = arith.constant dense<0.000000e+00> : vector<1024x128xf32>
    %35 = tpu.matmul %32, %34, %cst_15 {dimension_numbers = #tpu.dot_dimension_numbers<[1], [0], [0], [1], [0, 0, 1, 1], [], []>} : vector<1024x8xbf16>, vector<8x128xbf16>, vector<1024x128xf32> -> vector<1024x128xf32>
    %36 = arith.addf %28, %35 : vector<1024x128xf32>
    %37 = vector.extract_strided_slice %0 {offsets = [18, 0], sizes = [1006, 8], strides = [1, 1]} : vector<1024x8xf32> to vector<1006x8xf32>
    %38 = vector.extract_strided_slice %0 {offsets = [0, 0], sizes = [18, 8], strides = [1, 1]} : vector<1024x8xf32> to vector<18x8xf32>
    %39 = tpu.concatenate %37, %38 in 0 : vector<1006x8xf32>, vector<18x8xf32> -> vector<1024x8xf32>
    %40 = arith.truncf %39 : vector<1024x8xf32> to vector<1024x8xbf16>
    %c5 = arith.constant 5 : index
    %c0_16 = arith.constant 0 : index
    %c0_17 = arith.constant 0 : index
    %41 = vector.load %arg2[%c5, %c0_16, %c0_17] : memref<9x8x128xbf16, #tpu.memory_space<vmem>>, vector<1x8x128xbf16>
    %42 = vector.shape_cast %41 : vector<1x8x128xbf16> to vector<8x128xbf16>
    %cst_18 = arith.constant dense<0.000000e+00> : vector<1024x128xf32>
    %43 = tpu.matmul %40, %42, %cst_18 {dimension_numbers = #tpu.dot_dimension_numbers<[1], [0], [0], [1], [0, 0, 1, 1], [], []>} : vector<1024x8xbf16>, vector<8x128xbf16>, vector<1024x128xf32> -> vector<1024x128xf32>
    %44 = arith.addf %36, %43 : vector<1024x128xf32>
    %45 = vector.extract_strided_slice %0 {offsets = [32, 0], sizes = [992, 8], strides = [1, 1]} : vector<1024x8xf32> to vector<992x8xf32>
    %46 = vector.extract_strided_slice %0 {offsets = [0, 0], sizes = [32, 8], strides = [1, 1]} : vector<1024x8xf32> to vector<32x8xf32>
    %47 = tpu.concatenate %45, %46 in 0 : vector<992x8xf32>, vector<32x8xf32> -> vector<1024x8xf32>
    %48 = arith.truncf %47 : vector<1024x8xf32> to vector<1024x8xbf16>
    %c6 = arith.constant 6 : index
    %c0_19 = arith.constant 0 : index
    %c0_20 = arith.constant 0 : index
    %49 = vector.load %arg2[%c6, %c0_19, %c0_20] : memref<9x8x128xbf16, #tpu.memory_space<vmem>>, vector<1x8x128xbf16>
    %50 = vector.shape_cast %49 : vector<1x8x128xbf16> to vector<8x128xbf16>
    %cst_21 = arith.constant dense<0.000000e+00> : vector<1024x128xf32>
    %51 = tpu.matmul %48, %50, %cst_21 {dimension_numbers = #tpu.dot_dimension_numbers<[1], [0], [0], [1], [0, 0, 1, 1], [], []>} : vector<1024x8xbf16>, vector<8x128xbf16>, vector<1024x128xf32> -> vector<1024x128xf32>
    %52 = arith.addf %44, %51 : vector<1024x128xf32>
    %53 = vector.extract_strided_slice %0 {offsets = [33, 0], sizes = [991, 8], strides = [1, 1]} : vector<1024x8xf32> to vector<991x8xf32>
    %54 = vector.extract_strided_slice %0 {offsets = [0, 0], sizes = [33, 8], strides = [1, 1]} : vector<1024x8xf32> to vector<33x8xf32>
    %55 = tpu.concatenate %53, %54 in 0 : vector<991x8xf32>, vector<33x8xf32> -> vector<1024x8xf32>
    %56 = arith.truncf %55 : vector<1024x8xf32> to vector<1024x8xbf16>
    %c7 = arith.constant 7 : index
    %c0_22 = arith.constant 0 : index
    %c0_23 = arith.constant 0 : index
    %57 = vector.load %arg2[%c7, %c0_22, %c0_23] : memref<9x8x128xbf16, #tpu.memory_space<vmem>>, vector<1x8x128xbf16>
    %58 = vector.shape_cast %57 : vector<1x8x128xbf16> to vector<8x128xbf16>
    %cst_24 = arith.constant dense<0.000000e+00> : vector<1024x128xf32>
    %59 = tpu.matmul %56, %58, %cst_24 {dimension_numbers = #tpu.dot_dimension_numbers<[1], [0], [0], [1], [0, 0, 1, 1], [], []>} : vector<1024x8xbf16>, vector<8x128xbf16>, vector<1024x128xf32> -> vector<1024x128xf32>
    %60 = arith.addf %52, %59 : vector<1024x128xf32>
    %61 = vector.extract_strided_slice %0 {offsets = [34, 0], sizes = [990, 8], strides = [1, 1]} : vector<1024x8xf32> to vector<990x8xf32>
    %62 = vector.extract_strided_slice %0 {offsets = [0, 0], sizes = [34, 8], strides = [1, 1]} : vector<1024x8xf32> to vector<34x8xf32>
    %63 = tpu.concatenate %61, %62 in 0 : vector<990x8xf32>, vector<34x8xf32> -> vector<1024x8xf32>
    %64 = arith.truncf %63 : vector<1024x8xf32> to vector<1024x8xbf16>
    %c8 = arith.constant 8 : index
    %c0_25 = arith.constant 0 : index
    %c0_26 = arith.constant 0 : index
    %65 = vector.load %arg2[%c8, %c0_25, %c0_26] : memref<9x8x128xbf16, #tpu.memory_space<vmem>>, vector<1x8x128xbf16>
    %66 = vector.shape_cast %65 : vector<1x8x128xbf16> to vector<8x128xbf16>
    %cst_27 = arith.constant dense<0.000000e+00> : vector<1024x128xf32>
    %67 = tpu.matmul %64, %66, %cst_27 {dimension_numbers = #tpu.dot_dimension_numbers<[1], [0], [0], [1], [0, 0, 1, 1], [], []>} : vector<1024x8xbf16>, vector<8x128xbf16>, vector<1024x128xf32> -> vector<1024x128xf32>
    %68 = arith.addf %60, %67 : vector<1024x128xf32>
    %c0_28 = arith.constant 0 : index
    %c0_29 = arith.constant 0 : index
    %69 = vector.load %arg3[%c0_28, %c0_29] : memref<1x128xf32, #tpu.memory_space<vmem>>, vector<1x128xf32>
    %70 = vector.broadcast %69 : vector<1x128xf32> to vector<1024x128xf32>
    %71 = arith.addf %68, %70 : vector<1024x128xf32>
    %cst_30 = arith.constant 0.000000e+00 : f32
    %72 = vector.broadcast %cst_30 : f32 to vector<1024x128xf32>
    %73 = arith.maximumf %71, %72 : vector<1024x128xf32>
    %74 = arith.truncf %73 : vector<1024x128xf32> to vector<1024x128xbf16>
    %c0_31 = arith.constant 0 : index
    %c0_32 = arith.constant 0 : index
    %75 = vector.load %arg4[%c0_31, %c0_32] : memref<128x128xbf16, #tpu.memory_space<vmem>>, vector<128x128xbf16>
    %cst_33 = arith.constant dense<0.000000e+00> : vector<1024x128xf32>
    %76 = tpu.matmul %74, %75, %cst_33 {dimension_numbers = #tpu.dot_dimension_numbers<[1], [0], [0], [1], [0, 0, 1, 1], [], []>} : vector<1024x128xbf16>, vector<128x128xbf16>, vector<1024x128xf32> -> vector<1024x128xf32>
    %c0_34 = arith.constant 0 : index
    %c0_35 = arith.constant 0 : index
    %77 = vector.load %arg5[%c0_34, %c0_35] : memref<1x128xf32, #tpu.memory_space<vmem>>, vector<1x128xf32>
    %78 = vector.broadcast %77 : vector<1x128xf32> to vector<1024x128xf32>
    %79 = arith.addf %76, %78 : vector<1024x128xf32>
    %cst_36 = arith.constant 0.000000e+00 : f32
    %80 = vector.broadcast %cst_36 : f32 to vector<1024x128xf32>
    %81 = arith.maximumf %79, %80 : vector<1024x128xf32>
    %82 = arith.truncf %81 : vector<1024x128xf32> to vector<1024x128xbf16>
    %c0_37 = arith.constant 0 : index
    %c0_38 = arith.constant 0 : index
    %83 = vector.load %arg6[%c0_37, %c0_38] : memref<128x64xbf16, #tpu.memory_space<vmem>>, vector<128x64xbf16>
    %cst_39 = arith.constant dense<0.000000e+00> : vector<1024x64xf32>
    %84 = tpu.matmul %82, %83, %cst_39 {dimension_numbers = #tpu.dot_dimension_numbers<[1], [0], [0], [1], [0, 0, 1, 1], [], []>} : vector<1024x128xbf16>, vector<128x64xbf16>, vector<1024x64xf32> -> vector<1024x64xf32>
    %c0_40 = arith.constant 0 : index
    %c0_41 = arith.constant 0 : index
    %85 = vector.load %arg7[%c0_40, %c0_41] : memref<256x64xf32, #tpu.memory_space<vmem>>, vector<256x64xf32>
    %86 = tpu.concatenate %85, %85, %85, %85 in 0 : vector<256x64xf32>, vector<256x64xf32>, vector<256x64xf32>, vector<256x64xf32> -> vector<1024x64xf32>
    %87 = arith.mulf %84, %86 : vector<1024x64xf32>
    %88 = arith.truncf %87 : vector<1024x64xf32> to vector<1024x64xbf16>
    %c0_42 = arith.constant 0 : index
    %c0_43 = arith.constant 0 : index
    %89 = vector.load %arg8[%c0_42, %c0_43] : memref<4x1024xbf16, #tpu.memory_space<vmem>>, vector<4x1024xbf16>
    %cst_44 = arith.constant dense<0.000000e+00> : vector<4x64xf32>
    %90 = tpu.matmul %89, %88, %cst_44 {dimension_numbers = #tpu.dot_dimension_numbers<[1], [0], [0], [1], [0, 0, 1, 1], [], []>} : vector<4x1024xbf16>, vector<1024x64xbf16>, vector<4x64xf32> -> vector<4x64xf32>
    %c0_45 = arith.constant 0 : index
    %c0_46 = arith.constant 0 : index
    %91 = vector.load %arg9[%c0_45, %c0_46] : memref<64x128xf32, #tpu.memory_space<vmem>>, vector<64x128xf32>
    %cst_47 = arith.constant dense<0.000000e+00> : vector<4x128xf32>
    %92 = tpu.matmul %90, %91, %cst_47 {dimension_numbers = #tpu.dot_dimension_numbers<[1], [0], [0], [1], [0, 0, 1, 1], [], []>} : vector<4x64xf32>, vector<64x128xf32>, vector<4x128xf32> -> vector<4x128xf32>
    %c0_48 = arith.constant 0 : index
    %c0_49 = arith.constant 0 : index
    %93 = vector.load %arg10[%c0_48, %c0_49] : memref<1x128xf32, #tpu.memory_space<vmem>>, vector<1x128xf32>
    %94 = vector.broadcast %93 : vector<1x128xf32> to vector<4x128xf32>
    %95 = arith.addf %92, %94 : vector<4x128xf32>
    %c0_50 = arith.constant 0 : index
    %c0_51 = arith.constant 0 : index
    %c0_52 = arith.constant 0 : index
    %96 = vector.load %arg11[%c0_50, %c0_51, %c0_52] : memref<1x4x128xf32, #tpu.memory_space<vmem>>, vector<1x4x128xf32>
    %97 = vector.shape_cast %96 : vector<1x4x128xf32> to vector<4x128xf32>
    %98 = vector.shape_cast %95 : vector<4x128xf32> to vector<1x4x128xf32>
    tpu.vector_store %arg11[%c0_50, %c0_51, %c0_52], %98 {strides = array<i32>} : memref<1x4x128xf32, #tpu.memory_space<vmem>>, vector<1x4x128xf32>,
    return
  }
  func.func @transform_0(%arg0: i32) -> (i32, i32) {
    %c0_i32 = arith.constant 0 : i32
    %c0_i32_0 = arith.constant 0 : i32
    return %arg0, %c0_i32 : i32, i32
  }
  func.func @transform_1(%arg0: i32) -> (i32, i32, i32) {
    %c0_i32 = arith.constant 0 : i32
    %c0_i32_0 = arith.constant 0 : i32
    %c0_i32_1 = arith.constant 0 : i32
    %c0_i32_2 = arith.constant 0 : i32
    return %c0_i32, %c0_i32_0, %c0_i32_1 : i32, i32, i32
  }
  func.func @transform_2(%arg0: i32) -> (i32, i32) {
    %c0_i32 = arith.constant 0 : i32
    %c0_i32_0 = arith.constant 0 : i32
    %c0_i32_1 = arith.constant 0 : i32
    return %c0_i32, %c0_i32_0 : i32, i32
  }
  func.func @transform_3(%arg0: i32) -> (i32, i32) {
    %c0_i32 = arith.constant 0 : i32
    %c0_i32_0 = arith.constant 0 : i32
    %c0_i32_1 = arith.constant 0 : i32
    return %c0_i32, %c0_i32_0 : i32, i32
  }
  func.func @transform_4(%arg0: i32) -> (i32, i32) {
    %c0_i32 = arith.constant 0 : i32
    %c0_i32_0 = arith.constant 0 : i32
    %c0_i32_1 = arith.constant 0 : i32
    return %c0_i32, %c0_i32_0 : i32, i32
  }
  func.func @transform_5(%arg0: i32) -> (i32, i32) {
    %c0_i32 = arith.constant 0 : i32
    %c0_i32_0 = arith.constant 0 : i32
    %c0_i32_1 = arith.constant 0 : i32
    return %c0_i32, %c0_i32_0 : i32, i32
  }
  func.func @transform_6(%arg0: i32) -> (i32, i32) {
    %c0_i32 = arith.constant 0 : i32
    %c0_i32_0 = arith.constant 0 : i32
    %c0_i32_1 = arith.constant 0 : i32
    return %c0_i32, %c0_i32_0 : i32, i32
  }
  func.func @transform_7(%arg0: i32) -> (i32, i32) {
    %c0_i32 = arith.constant 0 : i32
    %c0_i32_0 = arith.constant 0 : i32
    %c0_i32_1 = arith.constant 0 : i32
    return %c0_i32, %c0_i32_0 : i32, i32
  }
  func.func @transform_8(%arg0: i32) -> (i32, i32) {
    %c0_i32 = arith.constant 0 : i32
    %c0_i32_0 = arith.constant 0 : i32
    %c0_i32_1 = arith.constant 0 : i32
    return %c0_i32, %c0_i32_0 : i32, i32
  }
  func.func @transform_9(%arg0: i32) -> (i32, i32) {
    %c0_i32 = arith.constant 0 : i32
    %c0_i32_0 = arith.constant 0 : i32
    %c0_i32_1 = arith.constant 0 : i32
    return %c0_i32, %c0_i32_0 : i32, i32
  }
  func.func @transform_10(%arg0: i32) -> (i32, i32, i32) {
    %c0_i32 = arith.constant 0 : i32
    %c0_i32_0 = arith.constant 0 : i32
    %c0_i32_1 = arith.constant 0 : i32
    return %arg0, %c0_i32, %c0_i32_0 : i32, i32, i32
  }
}

</mosaic_0001>

<llo_original>
// kernel: boxhead_forward.1
$region0: #{boxhead_forward.1}
  #allocation0 [shape = 'u32[]', space=smem, size = 0x4, offset = 0x4, fixed_abs, tag = 'smem constant byte address 0x4 - core index']
  #allocation1 [shape = 'u32[144,128]{1,0:T(1,128)}', space=vmem, size = 0x12000, scoped, tag = 'internal scratch']
  %s0 = inlined_call_operand.vmem [shape: f32[2048,8], index: 0, kind: input, shape index: {}]
  %s1 = inlined_call_operand.vmem [shape: bf16[9,8,128], index: 1, kind: input, shape index: {}]
  %s2 = inlined_call_operand.vmem [shape: f32[1,128], index: 2, kind: input, shape index: {}]
  %s3 = inlined_call_operand.vmem [shape: bf16[128,128], index: 3, kind: input, shape index: {}]
  %s4 = inlined_call_operand.vmem [shape: f32[1,128], index: 4, kind: input, shape index: {}]
  %s5 = inlined_call_operand.vmem [shape: bf16[128,64], index: 5, kind: input, shape index: {}]
  %s6 = inlined_call_operand.vmem [shape: f32[256,64], index: 6, kind: input, shape index: {}]
  %s7 = inlined_call_operand.vmem [shape: bf16[4,1024], index: 7, kind: input, shape index: {}]
  %s8 = inlined_call_operand.vmem [shape: f32[64,128], index: 8, kind: input, shape index: {}]
  %s9 = inlined_call_operand.vmem [shape: f32[1,128], index: 9, kind: input, shape index: {}]
  %s10 = inlined_call_operand.vmem [shape: f32[2,4,128], index: 10, kind: output, shape index: {}]
  %s11 = sld [smem:[#allocation0]]
  $region73: #{boxhead_forward.1} parent=0
    _
  %s13 = ssub.s32 1, %s11
  %s14 = scalar_select 0, %s13, %s11
  loop: start=0, step=1, limit=4
  $region2: #{boxhead_forward.1} parent=0 // loop_pre_header
    _
  $region3: #{boxhead_forward.1} parent=0 // loop_header
    %s16 = sphi 0, %s20
    %p17 = scmp.ge.s32.totalorder %s16, 4
    %s26 = sphi 0, %s28
    %s29 = sphi 0, %s26
    %s30 = sphi 0, %s29
    %s46 = sphi 0, %s30
    %s50 = sphi 0, %s50
    %s52 = sphi 0, %s50
    %s53 = sphi 0, %s52
    %s67 = sphi 0, %s53
    %s71 = sphi 0, %s71
    %s73 = sphi 0, %s71
    %s74 = sphi 0, %s73
    %s88 = sphi 0, %s74
    %s92 = sphi 0, %s92
    %s94 = sphi 0, %s92
    %s95 = sphi 0, %s94
    %s109 = sphi 0, %s95
    %s113 = sphi 0, %s113
    %s115 = sphi 0, %s113
    %s116 = sphi 0, %s115
    %s130 = sphi 0, %s116
    %s134 = sphi 0, %s134
    %s136 = sphi 0, %s134
    %s137 = sphi 0, %s136
    %s151 = sphi 0, %s137
    %s155 = sphi 0, %s155
    %s157 = sphi 0, %s155
    %s158 = sphi 0, %s157
    %s172 = sphi 0, %s158
    %s176 = sphi 0, %s176
    %s178 = sphi 0, %s176
    %s179 = sphi 0, %s178
    %s193 = sphi 0, %s179
    %s197 = sphi 0, %s197
    %s199 = sphi 0, %s197
    %s200 = sphi 0, %s199
    %s214 = sphi 0, %s200
    %s218 = sphi 0, %s218
    %s220 = sphi 0, %s218
    %s221 = sphi 0, %s220
    %s235 = sphi 0, %s221
    %s241 = sphi 0, %s243
    %s244 = sphi 0, %s241
    %s245 = sphi 0, %s244
    %s261 = sphi 0, %s245
  $region4: #{boxhead_forward.1} parent=0 // loop_header_branch
    %19 = sbr.rel (%p17) target = $region8
  $region5: #{boxhead_forward.1} parent=0 // loop_body
    %s21 = ssub.s32 %s16, 1
    %s22 = ssub.s32 %s16, 2
    %s23 = sadd.s32 %s16, 1
    %s24 = ssub.s32 %s16, %s23
    %p25 = scmp.eq.s32.totalorder %s24, 0
    %s27 = sadd.s32 %s26, 1
    %s28 = scalar_select %p25, %s26, %s27
    %p31 = pneg %p25
    %p32 = scmp.eq.s32.totalorder %s16, 1
    %p33 = por %p31, %p32
    %p34 = scmp.ne.s32.totalorder %s26, %s29
    %p35 = scmp.eq.s32.totalorder %s16, 0
    %p36 = por %p34, %p35
    %p37 = scmp.ne.s32.totalorder %s26, %s29
    %p38 = scmp.eq.s32.totalorder %s21, 1
    %p39 = por %p37, %p38
    %p40 = scmp.ne.s32.totalorder %s29, %s30
    %p41 = scmp.eq.s32.totalorder %s21, 0
    %p42 = por %p40, %p41
    %p43 = scmp.ne.s32.totalorder %s29, %s30
    %p44 = scmp.eq.s32.totalorder %s22, 1
    %p45 = por %p43, %p44
    %p47 = scmp.ne.s32.totalorder %s30, %s46
    %p48 = scmp.eq.s32.totalorder %s22, 0
    %p49 = por %p47, %p48
    %s51 = sadd.s32 %s50, 1
    %p54 = scmp.eq.s32.totalorder %s16, 1
    %p55 = scmp.ne.s32.totalorder %s50, %s52
    %p56 = scmp.eq.s32.totalorder %s16, 0
    %p57 = por %p55, %p56
    %p58 = scmp.ne.s32.totalorder %s50, %s52
    %p59 = scmp.eq.s32.totalorder %s21, 1
    %p60 = por %p58, %p59
    %p61 = scmp.ne.s32.totalorder %s52, %s53
    %p62 = scmp.eq.s32.totalorder %s21, 0
    %p63 = por %p61, %p62
    %p64 = scmp.ne.s32.totalorder %s52, %s53
    %p65 = scmp.eq.s32.totalorder %s22, 1
    %p66 = por %p64, %p65
    %p68 = scmp.ne.s32.totalorder %s53, %s67
    %p69 = scmp.eq.s32.totalorder %s22, 0
    %p70 = por %p68, %p69
    %s72 = sadd.s32 %s71, 1
    %p75 = scmp.eq.s32.totalorder %s16, 1
    %p76 = scmp.ne.s32.totalorder %s71, %s73
    %p77 = scmp.eq.s32.totalorder %s16, 0
    %p78 = por %p76, %p77
    %p79 = scmp.ne.s32.totalorder %s71, %s73
    %p80 = scmp.eq.s32.totalorder %s21, 1
    %p81 = por %p79, %p80
    %p82 = scmp.ne.s32.totalorder %s73, %s74
    %p83 = scmp.eq.s32.totalorder %s21, 0
    %p84 = por %p82, %p83
    %p85 = scmp.ne.s32.totalorder %s73, %s74
    %p86 = scmp.eq.s32.totalorder %s22, 1
    %p87 = por %p85, %p86
    %p89 = scmp.ne.s32.totalorder %s74, %s88
    %p90 = scmp.eq.s32.totalorder %s22, 0
    %p91 = por %p89, %p90
    %s93 = sadd.s32 %s92, 1
    %p96 = scmp.eq.s32.totalorder %s16, 1
    %p97 = scmp.ne.s32.totalorder %s92, %s94
    %p98 = scmp.eq.s32.totalorder %s16, 0
    %p99 = por %p97, %p98
    %p100 = scmp.ne.s32.totalorder %s92, %s94
    %p101 = scmp.eq.s32.totalorder %s21, 1
    %p102 = por %p100, %p101
    %p103 = scmp.ne.s32.totalorder %s94, %s95
    %p104 = scmp.eq.s32.totalorder %s21, 0
    %p105 = por %p103, %p104
    %p106 = scmp.ne.s32.totalorder %s94, %s95
    %p107 = scmp.eq.s32.totalorder %s22, 1
    %p108 = por %p106, %p107
    %p110 = scmp.ne.s32.totalorder %s95, %s109
    %p111 = scmp.eq.s32.totalorder %s22, 0
    %p112 = por %p110, %p111
    %s114 = sadd.s32 %s113, 1
    %p117 = scmp.eq.s32.totalorder %s16, 1
    %p118 = scmp.ne.s32.totalorder %s113, %s115
    %p119 = scmp.eq.s32.totalorder %s16, 0
    %p120 = por %p118, %p119
    %p121 = scmp.ne.s32.totalorder %s113, %s115
    %p122 = scmp.eq.s32.totalorder %s21, 1
    %p123 = por %p121, %p122
    %p124 = scmp.ne.s32.totalorder %s115, %s116
    %p125 = scmp.eq.s32.totalorder %s21, 0
    %p126 = por %p124, %p125
    %p127 = scmp.ne.s32.totalorder %s115, %s116
    %p128 = scmp.eq.s32.totalorder %s22, 1
    %p129 = por %p127, %p128
    %p131 = scmp.ne.s32.totalorder %s116, %s130
    %p132 = scmp.eq.s32.totalorder %s22, 0
    %p133 = por %p131, %p132
    %s135 = sadd.s32 %s134, 1
    %p138 = scmp.eq.s32.totalorder %s16, 1
    %p139 = scmp.ne.s32.totalorder %s134, %s136
    %p140 = scmp.eq.s32.totalorder %s16, 0
    %p141 = por %p139, %p140
    %p142 = scmp.ne.s32.totalorder %s134, %s136
    %p143 = scmp.eq.s32.totalorder %s21, 1
    %p144 = por %p142, %p143
    %p145 = scmp.ne.s32.totalorder %s136, %s137
    %p146 = scmp.eq.s32.totalorder %s21, 0
    %p147 = por %p145, %p146
    %p148 = scmp.ne.s32.totalorder %s136, %s137
    %p149 = scmp.eq.s32.totalorder %s22, 1
    %p150 = por %p148, %p149
    %p152 = scmp.ne.s32.totalorder %s137, %s151
    %p153 = scmp.eq.s32.totalorder %s22, 0
    %p154 = por %p152, %p153
    %s156 = sadd.s32 %s155, 1
    %p159 = scmp.eq.s32.totalorder %s16, 1
    %p160 = scmp.ne.s32.totalorder %s155, %s157
    %p161 = scmp.eq.s32.totalorder %s16, 0
    %p162 = por %p160, %p161
    %p163 = scmp.ne.s32.totalorder %s155, %s157
    %p164 = scmp.eq.s32.totalorder %s21, 1
    %p165 = por %p163, %p164
    %p166 = scmp.ne.s32.totalorder %s157, %s158
    %p167 = scmp.eq.s32.totalorder %s21, 0
    %p168 = por %p166, %p167
    %p169 = scmp.ne.s32.totalorder %s157, %s158
    %p170 = scmp.eq.s32.totalorder %s22, 1
    %p171 = por %p169, %p170
    %p173 = scmp.ne.s32.totalorder %s158, %s172
    %p174 = scmp.eq.s32.totalorder %s22, 0
    %p175 = por %p173, %p174
    %s177 = sadd.s32 %s176, 1
    %p180 = scmp.eq.s32.totalorder %s16, 1
    %p181 = scmp.ne.s32.totalorder %s176, %s178
    %p182 = scmp.eq.s32.totalorder %s16, 0
    %p183 = por %p181, %p182
    %p184 = scmp.ne.s32.totalorder %s176, %s178
    %p185 = scmp.eq.s32.totalorder %s21, 1
    %p186 = por %p184, %p185
    %p187 = scmp.ne.s32.totalorder %s178, %s179
    %p188 = scmp.eq.s32.totalorder %s21, 0
    %p189 = por %p187, %p188
    %p190 = scmp.ne.s32.totalorder %s178, %s179
    %p191 = scmp.eq.s32.totalorder %s22, 1
    %p192 = por %p190, %p191
    %p194 = scmp.ne.s32.totalorder %s179, %s193
    %p195 = scmp.eq.s32.totalorder %s22, 0
    %p196 = por %p194, %p195
    %s198 = sadd.s32 %s197, 1
    %p201 = scmp.eq.s32.totalorder %s16, 1
    %p202 = scmp.ne.s32.totalorder %s197, %s199
    %p203 = scmp.eq.s32.totalorder %s16, 0
    %p204 = por %p202, %p203
    %p205 = scmp.ne.s32.totalorder %s197, %s199
    %p206 = scmp.eq.s32.totalorder %s21, 1
    %p207 = por %p205, %p206
    %p208 = scmp.ne.s32.totalorder %s199, %s200
    %p209 = scmp.eq.s32.totalorder %s21, 0
    %p210 = por %p208, %p209
    %p211 = scmp.ne.s32.totalorder %s199, %s200
    %p212 = scmp.eq.s32.totalorder %s22, 1
    %p213 = por %p211, %p212
    %p215 = scmp.ne.s32.totalorder %s200, %s214
    %p216 = scmp.eq.s32.totalorder %s22, 0
    %p217 = por %p215, %p216
    %s219 = sadd.s32 %s218, 1
    %p222 = scmp.eq.s32.totalorder %s16, 1
    %p223 = scmp.ne.s32.totalorder %s218, %s220
    %p224 = scmp.eq.s32.totalorder %s16, 0
    %p225 = por %p223, %p224
    %p226 = scmp.ne.s32.totalorder %s218, %s220
    %p227 = scmp.eq.s32.totalorder %s21, 1
    %p228 = por %p226, %p227
    %p229 = scmp.ne.s32.totalorder %s220, %s221
    %p230 = scmp.eq.s32.totalorder %s21, 0
    %p231 = por %p229, %p230
    %p232 = scmp.ne.s32.totalorder %s220, %s221
    %p233 = scmp.eq.s32.totalorder %s22, 1
    %p234 = por %p232, %p233
    %p236 = scmp.ne.s32.totalorder %s221, %s235
    %p237 = scmp.eq.s32.totalorder %s22, 0
    %p238 = por %p236, %p237
    %s239 = ssub.s32 %s16, %s23
    %p240 = scmp.eq.s32.totalorder %s239, 0
    %s242 = sadd.s32 %s241, 1
    %s243 = scalar_select %p240, %s241, %s242
    %p246 = pneg %p240
    %p247 = scmp.eq.s32.totalorder %s16, 1
    %p248 = por %p246, %p247
    %p249 = scmp.ne.s32.totalorder %s241, %s244
    %p250 = scmp.eq.s32.totalorder %s16, 0
    %p251 = por %p249, %p250
    %p252 = scmp.ne.s32.totalorder %s241, %s244
    %p253 = scmp.eq.s32.totalorder %s21, 1
    %p254 = por %p252, %p253
    %p255 = scmp.ne.s32.totalorder %s244, %s245
    %p256 = scmp.eq.s32.totalorder %s21, 0
    %p257 = por %p255, %p256
    %p258 = scmp.ne.s32.totalorder %s244, %s245
    %p259 = scmp.eq.s32.totalorder %s22, 1
    %p260 = por %p258, %p259
    %p262 = scmp.ne.s32.totalorder %s245, %s261
    %p263 = scmp.eq.s32.totalorder %s22, 0
    %p264 = por %p262, %p263
    %p265 = scmp.le.s32.totalorder 1, %s16
    %p266 = scmp.lt.s32.totalorder %s16, 3
    %p267 = pnand %p265, %p266
    %p268 = pneg %p267
    // Predicated region
    $region9: #{boxhead_forward.1} parent=5 // pred_check
      _
    $region10: #{boxhead_forward.1} parent=5 // pred_check_branch
      %270 = sbr.rel (%p267) target = $region12
    $region11: #{boxhead_forward.1} parent=5 // pred_region
      %s271 = ssub.s32 %s16, 1
      // Predicated region
      $region13: #{boxhead_forward.1} parent=11 // pred_check
        %p272 = pneg %p63
      $region14: #{boxhead_forward.1} parent=11 // pred_check_branch
        %274 = sbr.rel (%p272) target = $region16
      $region15: #{boxhead_forward.1} parent=11 // pred_region
        _
      $region16: #{boxhead_forward.1} parent=11 // pred_fallthru
        _
      // Predicated region
      $region17: #{boxhead_forward.1} parent=11 // pred_check
        %p275 = pneg %p84
      $region18: #{boxhead_forward.1} parent=11 // pred_check_branch
        %277 = sbr.rel (%p275) target = $region20
      $region19: #{boxhead_forward.1} parent=11 // pred_region
        _
      $region20: #{boxhead_forward.1} parent=11 // pred_fallthru
        _
      // Predicated region
      $region21: #{boxhead_forward.1} parent=11 // pred_check
        %p278 = pneg %p105
      $region22: #{boxhead_forward.1} parent=11 // pred_check_branch
        %280 = sbr.rel (%p278) target = $region24
      $region23: #{boxhead_forward.1} parent=11 // pred_region
        _
      $region24: #{boxhead_forward.1} parent=11 // pred_fallthru
        _
      // Predicated region
      $region25: #{boxhead_forward.1} parent=11 // pred_check
        %p281 = pneg %p126
      $region26: #{boxhead_forward.1} parent=11 // pred_check_branch
        %283 = sbr.rel (%p281) target = $region28
      $region27: #{boxhead_forward.1} parent=11 // pred_region
        _
      $region28: #{boxhead_forward.1} parent=11 // pred_fallthru
        _
      // Predicated region
      $region29: #{boxhead_forward.1} parent=11 // pred_check
        %p284 = pneg %p147
      $region30: #{boxhead_forward.1} parent=11 // pred_check_branch
        %286 = sbr.rel (%p284) target = $region32
      $region31: #{boxhead_forward.1} parent=11 // pred_region
        _
      $region32: #{boxhead_forward.1} parent=11 // pred_fallthru
        _
      // Predicated region
      $region33: #{boxhead_forward.1} parent=11 // pred_check
        %p287 = pneg %p168
      $region34: #{boxhead_forward.1} parent=11 // pred_check_branch
        %289 = sbr.rel (%p287) target = $region36
      $region35: #{boxhead_forward.1} parent=11 // pred_region
        _
      $region36: #{boxhead_forward.1} parent=11 // pred_fallthru
        _
      // Predicated region
      $region37: #{boxhead_forward.1} parent=11 // pred_check
        %p290 = pneg %p189
      $region38: #{boxhead_forward.1} parent=11 // pred_check_branch
        %292 = sbr.rel (%p290) target = $region40
      $region39: #{boxhead_forward.1} parent=11 // pred_region
        _
      $region40: #{boxhead_forward.1} parent=11 // pred_fallthru
        _
      // Predicated region
      $region41: #{boxhead_forward.1} parent=11 // pred_check
        %p293 = pneg %p210
      $region42: #{boxhead_forward.1} parent=11 // pred_check_branch
        %295 = sbr.rel (%p293) target = $region44
      $region43: #{boxhead_forward.1} parent=11 // pred_region
        _
      $region44: #{boxhead_forward.1} parent=11 // pred_fallthru
        _
      // Predicated region
      $region45: #{boxhead_forward.1} parent=11 // pred_check
        %p296 = pneg %p231
      $region46: #{boxhead_forward.1} parent=11 // pred_check_branch
        %298 = sbr.rel (%p296) target = $region48
      $region47: #{boxhead_forward.1} parent=11 // pred_region
        _
      $region48: #{boxhead_forward.1} parent=11 // pred_fallthru
        _
    $region12: #{boxhead_forward.1} parent=5 // pred_fallthru
      _
    %p299 = scmp.lt.s32.totalorder %s16, 2
    // Predicated region
    $region49: #{boxhead_forward.1} parent=5 // pred_check
      %p300 = pneg %p299
    $region50: #{boxhead_forward.1} parent=5 // pred_check_branch
      %302 = sbr.rel (%p300) target = $region52
    $region51: #{boxhead_forward.1} parent=5 // pred_region
      // Predicated region
      $region53: #{boxhead_forward.1} parent=51 // pred_check
        %p303 = pneg %p36
      $region54: #{boxhead_forward.1} parent=51 // pred_check_branch
        %305 = sbr.rel (%p303) target = $region56
      $region55: #{boxhead_forward.1} parent=51 // pred_region
        %s306 = smul.u32 128, %s16
        %p307 = scmp.lt.s32.totalorder %s306, 255
        %s308 = scalar_select %p307, %s306, 255
        %s309 = smul.addr %s308, 8
        %s310 = scalar_lea.vmem %s0, %s309
        %s311 = smul.u32 128, %s16
      $region56: #{boxhead_forward.1} parent=51 // pred_fallthru
        _
    $region52: #{boxhead_forward.1} parent=5 // pred_fallthru
      _
    %p312 = scmp.le.s32.totalorder 1, %s16
    %p313 = scmp.lt.s32.totalorder %s16, 3
    %p314 = pnand %p312, %p313
    %p315 = pneg %p314
    // Predicated region
    $region57: #{boxhead_forward.1} parent=5 // pred_check
      _
    $region58: #{boxhead_forward.1} parent=5 // pred_check_branch
      %317 = sbr.rel (%p314) target = $region60
    $region59: #{boxhead_forward.1} parent=5 // pred_region
      %s318 = ssub.s32 %s16, 1
      %s319 = smul.u32 128, %s21
      %p320 = scmp.lt.s32.totalorder %s319, 255
      %s321 = scalar_select %p320, %s319, 255
      %s322 = smul.addr %s321, 8
      %s323 = scalar_lea.vmem %s0, %s322
      %p324 = pneg %p42
      %p325 = pneg %p39
      %p326 = pneg %p63
      %p327 = pneg %p60
      %p328 = pneg %p84
      %p329 = pneg %p81
      %p330 = pneg %p105
      %p331 = pneg %p102
      %p332 = pneg %p126
      %p333 = pneg %p123
      %p334 = pneg %p147
      %p335 = pneg %p144
      %p336 = pneg %p168
      %p337 = pneg %p165
      %p338 = pneg %p189
      %p339 = pneg %p186
      %p340 = pneg %p210
      %p341 = pneg %p207
      %p342 = pneg %p231
      %p343 = pneg %p228
      %p344 = pneg %p257
      %p345 = pneg %p254
      %p346 = scmp.lt.s32.totalorder %s21, 1
      %s347 = scalar_select %p346, %s21, 1
      %s348 = smul.addr %s347, 4
      %s349 = scalar_lea.vmem %s10, %s348
      %s350 = smul.u32 128, %s21
      %p351 = scmp.lt.s32.totalorder %s350, 255
      %s352 = scalar_select %p351, %s350, 255
      %s353 = smul.addr %s352, 8
      %s354 = scalar_lea.vmem %s0, %s353
      %s355 = smul.u32 128, %s21
      %p356 = scmp.lt.s32.totalorder %s21, 1
      %s357 = scalar_select %p356, %s21, 1
      %s358 = smul.addr %s357, 4
      %s359 = scalar_lea.vmem %s10, %s358
      %v361 = vld [vmem:[%s354] sm:$0xff]
      %v362 = vld [vmem:[%s354 + $0x8] sm:$0xff]
      %v363 = vld [vmem:[%s354 + $0x10] sm:$0xff]
      %v364 = vld [vmem:[%s354 + $0x18] sm:$0xff]
      %v365 = vld [vmem:[%s354 + $0x20] sm:$0xff]
      %v366 = vld [vmem:[%s354 + $0x28] sm:$0xff]
      %v367 = vld [vmem:[%s354 + $0x30] sm:$0xff]
      %v368 = vld [vmem:[%s354 + $0x38] sm:$0xff]
      %v369 = vld [vmem:[%s354 + $0x40] sm:$0xff]
      %v370 = vld [vmem:[%s354 + $0x48] sm:$0xff]
      %v371 = vld [vmem:[%s354 + $0x50] sm:$0xff]
      %v372 = vld [vmem:[%s354 + $0x58] sm:$0xff]
      %v373 = vld [vmem:[%s354 + $0x60] sm:$0xff]
      %v374 = vld [vmem:[%s354 + $0x68] sm:$0xff]
      %v375 = vld [vmem:[%s354 + $0x70] sm:$0xff]
      %v376 = vld [vmem:[%s354 + $0x78] sm:$0xff]
      %v377 = vld [vmem:[%s354 + $0x80] sm:$0xff]
      %v378 = vld [vmem:[%s354 + $0x88] sm:$0xff]
      %v379 = vld [vmem:[%s354 + $0x90] sm:$0xff]
      %v380 = vld [vmem:[%s354 + $0x98] sm:$0xff]
      %v381 = vld [vmem:[%s354 + $0xa0] sm:$0xff]
      %v382 = vld [vmem:[%s354 + $0xa8] sm:$0xff]
      %v383 = vld [vmem:[%s354 + $0xb0] sm:$0xff]
      %v384 = vld [vmem:[%s354 + $0xb8] sm:$0xff]
      %v385 = vld [vmem:[%s354 + $0xc0] sm:$0xff]
      %v386 = vld [vmem:[%s354 + $0xc8] sm:$0xff]
      %v387 = vld [vmem:[%s354 + $0xd0] sm:$0xff]
      %v388 = vld [vmem:[%s354 + $0xd8] sm:$0xff]
      %v389 = vld [vmem:[%s354 + $0xe0] sm:$0xff]
      %v390 = vld [vmem:[%s354 + $0xe8] sm:$0xff]
      %v391 = vld [vmem:[%s354 + $0xf0] sm:$0xff]
      %v392 = vld [vmem:[%s354 + $0xf8] sm:$0xff]
      %v393 = vld [vmem:[%s354 + $0x100] sm:$0xff]
      %v394 = vld [vmem:[%s354 + $0x108] sm:$0xff]
      %v395 = vld [vmem:[%s354 + $0x110] sm:$0xff]
      %v396 = vld [vmem:[%s354 + $0x118] sm:$0xff]
      %v397 = vld [vmem:[%s354 + $0x120] sm:$0xff]
      %v398 = vld [vmem:[%s354 + $0x128] sm:$0xff]
      %v399 = vld [vmem:[%s354 + $0x130] sm:$0xff]
      %v400 = vld [vmem:[%s354 + $0x138] sm:$0xff]
      %v401 = vld [vmem:[%s354 + $0x140] sm:$0xff]
      %v402 = vld [vmem:[%s354 + $0x148] sm:$0xff]
      %v403 = vld [vmem:[%s354 + $0x150] sm:$0xff]
      %v404 = vld [vmem:[%s354 + $0x158] sm:$0xff]
      %v405 = vld [vmem:[%s354 + $0x160] sm:$0xff]
      %v406 = vld [vmem:[%s354 + $0x168] sm:$0xff]
      %v407 = vld [vmem:[%s354 + $0x170] sm:$0xff]
      %v408 = vld [vmem:[%s354 + $0x178] sm:$0xff]
      %v409 = vld [vmem:[%s354 + $0x180] sm:$0xff]
      %v410 = vld [vmem:[%s354 + $0x188] sm:$0xff]
      %v411 = vld [vmem:[%s354 + $0x190] sm:$0xff]
      %v412 = vld [vmem:[%s354 + $0x198] sm:$0xff]
      %v413 = vld [vmem:[%s354 + $0x1a0] sm:$0xff]
      %v414 = vld [vmem:[%s354 + $0x1a8] sm:$0xff]
      %v415 = vld [vmem:[%s354 + $0x1b0] sm:$0xff]
      %v416 = vld [vmem:[%s354 + $0x1b8] sm:$0xff]
      %v417 = vld [vmem:[%s354 + $0x1c0] sm:$0xff]
      %v418 = vld [vmem:[%s354 + $0x1c8] sm:$0xff]
      %v419 = vld [vmem:[%s354 + $0x1d0] sm:$0xff]
      %v420 = vld [vmem:[%s354 + $0x1d8] sm:$0xff]
      %v421 = vld [vmem:[%s354 + $0x1e0] sm:$0xff]
      %v422 = vld [vmem:[%s354 + $0x1e8] sm:$0xff]
      %v423 = vld [vmem:[%s354 + $0x1f0] sm:$0xff]
      %v424 = vld [vmem:[%s354 + $0x1f8] sm:$0xff]
      %v425 = vld [vmem:[%s354 + $0x200] sm:$0xff]
      %v426 = vld [vmem:[%s354 + $0x208] sm:$0xff]
      %v427 = vld [vmem:[%s354 + $0x210] sm:$0xff]
      %v428 = vld [vmem:[%s354 + $0x218] sm:$0xff]
      %v429 = vld [vmem:[%s354 + $0x220] sm:$0xff]
      %v430 = vld [vmem:[%s354 + $0x228] sm:$0xff]
      %v431 = vld [vmem:[%s354 + $0x230] sm:$0xff]
      %v432 = vld [vmem:[%s354 + $0x238] sm:$0xff]
      %v433 = vld [vmem:[%s354 + $0x240] sm:$0xff]
      %v434 = vld [vmem:[%s354 + $0x248] sm:$0xff]
      %v435 = vld [vmem:[%s354 + $0x250] sm:$0xff]
      %v436 = vld [vmem:[%s354 + $0x258] sm:$0xff]
      %v437 = vld [vmem:[%s354 + $0x260] sm:$0xff]
      %v438 = vld [vmem:[%s354 + $0x268] sm:$0xff]
      %v439 = vld [vmem:[%s354 + $0x270] sm:$0xff]
      %v440 = vld [vmem:[%s354 + $0x278] sm:$0xff]
      %v441 = vld [vmem:[%s354 + $0x280] sm:$0xff]
      %v442 = vld [vmem:[%s354 + $0x288] sm:$0xff]
      %v443 = vld [vmem:[%s354 + $0x290] sm:$0xff]
      %v444 = vld [vmem:[%s354 + $0x298] sm:$0xff]
      %v445 = vld [vmem:[%s354 + $0x2a0] sm:$0xff]
      %v446 = vld [vmem:[%s354 + $0x2a8] sm:$0xff]
      %v447 = vld [vmem:[%s354 + $0x2b0] sm:$0xff]
      %v448 = vld [vmem:[%s354 + $0x2b8] sm:$0xff]
      %v449 = vld [vmem:[%s354 + $0x2c0] sm:$0xff]
      %v450 = vld [vmem:[%s354 + $0x2c8] sm:$0xff]
      %v451 = vld [vmem:[%s354 + $0x2d0] sm:$0xff]
      %v452 = vld [vmem:[%s354 + $0x2d8] sm:$0xff]
      %v453 = vld [vmem:[%s354 + $0x2e0] sm:$0xff]
      %v454 = vld [vmem:[%s354 + $0x2e8] sm:$0xff]
      %v455 = vld [vmem:[%s354 + $0x2f0] sm:$0xff]
      %v456 = vld [vmem:[%s354 + $0x2f8] sm:$0xff]
      %v457 = vld [vmem:[%s354 + $0x300] sm:$0xff]
      %v458 = vld [vmem:[%s354 + $0x308] sm:$0xff]
      %v459 = vld [vmem:[%s354 + $0x310] sm:$0xff]
      %v460 = vld [vmem:[%s354 + $0x318] sm:$0xff]
      %v461 = vld [vmem:[%s354 + $0x320] sm:$0xff]
      %v462 = vld [vmem:[%s354 + $0x328] sm:$0xff]
      %v463 = vld [vmem:[%s354 + $0x330] sm:$0xff]
      %v464 = vld [vmem:[%s354 + $0x338] sm:$0xff]
      %v465 = vld [vmem:[%s354 + $0x340] sm:$0xff]
      %v466 = vld [vmem:[%s354 + $0x348] sm:$0xff]
      %v467 = vld [vmem:[%s354 + $0x350] sm:$0xff]
      %v468 = vld [vmem:[%s354 + $0x358] sm:$0xff]
      %v469 = vld [vmem:[%s354 + $0x360] sm:$0xff]
      %v470 = vld [vmem:[%s354 + $0x368] sm:$0xff]
      %v471 = vld [vmem:[%s354 + $0x370] sm:$0xff]
      %v472 = vld [vmem:[%s354 + $0x378] sm:$0xff]
      %v473 = vld [vmem:[%s354 + $0x380] sm:$0xff]
      %v474 = vld [vmem:[%s354 + $0x388] sm:$0xff]
      %v475 = vld [vmem:[%s354 + $0x390] sm:$0xff]
      %v476 = vld [vmem:[%s354 + $0x398] sm:$0xff]
      %v477 = vld [vmem:[%s354 + $0x3a0] sm:$0xff]
      %v478 = vld [vmem:[%s354 + $0x3a8] sm:$0xff]
      %v479 = vld [vmem:[%s354 + $0x3b0] sm:$0xff]
      %v480 = vld [vmem:[%s354 + $0x3b8] sm:$0xff]
      %v481 = vld [vmem:[%s354 + $0x3c0] sm:$0xff]
      %v482 = vld [vmem:[%s354 + $0x3c8] sm:$0xff]
      %v483 = vld [vmem:[%s354 + $0x3d0] sm:$0xff]
      %v484 = vld [vmem:[%s354 + $0x3d8] sm:$0xff]
      %v485 = vld [vmem:[%s354 + $0x3e0] sm:$0xff]
      %v486 = vld [vmem:[%s354 + $0x3e8] sm:$0xff]
      %v487 = vld [vmem:[%s354 + $0x3f0] sm:$0xff]
      %v488 = vld [vmem:[%s354 + $0x3f8] sm:$0xff]
      %v489 = vpack.c.bf16 %v362, %v361
      %v490 = vpack.c.bf16 %v364, %v363
      %v491 = vpack.c.bf16 %v366, %v365
      %v492 = vpack.c.bf16 %v368, %v367
      %v493 = vpack.c.bf16 %v370, %v369
      %v494 = vpack.c.bf16 %v372, %v371
      %v495 = vpack.c.bf16 %v374, %v373
      %v496 = vpack.c.bf16 %v376, %v375
      %v497 = vpack.c.bf16 %v378, %v377
      %v498 = vpack.c.bf16 %v380, %v379
      %v499 = vpack.c.bf16 %v382, %v381
      %v500 = vpack.c.bf16 %v384, %v383
      %v501 = vpack.c.bf16 %v386, %v385
      %v502 = vpack.c.bf16 %v388, %v387
      %v503 = vpack.c.bf16 %v390, %v389
      %v504 = vpack.c.bf16 %v392, %v391
      %v505 = vpack.c.bf16 %v394, %v393
      %v506 = vpack.c.bf16 %v396, %v395
      %v507 = vpack.c.bf16 %v398, %v397
      %v508 = vpack.c.bf16 %v400, %v399
      %v509 = vpack.c.bf16 %v402, %v401
      %v510 = vpack.c.bf16 %v404, %v403
      %v511 = vpack.c.bf16 %v406, %v405
      %v512 = vpack.c.bf16 %v408, %v407
      %v513 = vpack.c.bf16 %v410, %v409
      %v514 = vpack.c.bf16 %v412, %v411
      %v515 = vpack.c.bf16 %v414, %v413
      %v516 = vpack.c.bf16 %v416, %v415
      %v517 = vpack.c.bf16 %v418, %v417
      %v518 = vpack.c.bf16 %v420, %v419
      %v519 = vpack.c.bf16 %v422, %v421
      %v520 = vpack.c.bf16 %v424, %v423
      %v521 = vpack.c.bf16 %v426, %v425
      %v522 = vpack.c.bf16 %v428, %v427
      %v523 = vpack.c.bf16 %v430, %v429
      %v524 = vpack.c.bf16 %v432, %v431
      %v525 = vpack.c.bf16 %v434, %v433
      %v526 = vpack.c.bf16 %v436, %v435
      %v527 = vpack.c.bf16 %v438, %v437
      %v528 = vpack.c.bf16 %v440, %v439
      %v529 = vpack.c.bf16 %v442, %v441
      %v530 = vpack.c.bf16 %v444, %v443
      %v531 = vpack.c.bf16 %v446, %v445
      %v532 = vpack.c.bf16 %v448, %v447
      %v533 = vpack.c.bf16 %v450, %v449
      %v534 = vpack.c.bf16 %v452, %v451
      %v535 = vpack.c.bf16 %v454, %v453
      %v536 = vpack.c.bf16 %v456, %v455
      %v537 = vpack.c.bf16 %v458, %v457
      %v538 = vpack.c.bf16 %v460, %v459
      %v539 = vpack.c.bf16 %v462, %v461
      %v540 = vpack.c.bf16 %v464, %v463
      %v541 = vpack.c.bf16 %v466, %v465
      %v542 = vpack.c.bf16 %v468, %v467
      %v543 = vpack.c.bf16 %v470, %v469
      %v544 = vpack.c.bf16 %v472, %v471
      %v545 = vpack.c.bf16 %v474, %v473
      %v546 = vpack.c.bf16 %v476, %v475
      %v547 = vpack.c.bf16 %v478, %v477
      %v548 = vpack.c.bf16 %v480, %v479
      %v549 = vpack.c.bf16 %v482, %v481
      %v550 = vpack.c.bf16 %v484, %v483
      %v551 = vpack.c.bf16 %v486, %v485
      %v552 = vpack.c.bf16 %v488, %v487
      %v553 = vld [vmem:[%s1] sm:$0xf]
      %vm682 = vcmask 1046528
      %v683 = vrot.slane %v361, 1
      %v684 = vrot.slane %v362, 1
      %v685 = vsel %vm682, %v683, %v684
      %v686 = vrot.slane %v363, 1
      %v687 = vsel %vm682, %v684, %v686
      %v688 = vrot.slane %v364, 1
      %v689 = vsel %vm682, %v686, %v688
      %v690 = vrot.slane %v365, 1
      %v691 = vsel %vm682, %v688, %v690
      %v692 = vrot.slane %v366, 1
      %v693 = vsel %vm682, %v690, %v692
      %v694 = vrot.slane %v367, 1
      %v695 = vsel %vm682, %v692, %v694
      %v696 = vrot.slane %v368, 1
      %v697 = vsel %vm682, %v694, %v696
      %v698 = vrot.slane %v369, 1
      %v699 = vsel %vm682, %v696, %v698
      %v700 = vrot.slane %v370, 1
      %v701 = vsel %vm682, %v698, %v700
      %v702 = vrot.slane %v371, 1
      %v703 = vsel %vm682, %v700, %v702
      %v704 = vrot.slane %v372, 1
      %v705 = vsel %vm682, %v702, %v704
      %v706 = vrot.slane %v373, 1
      %v707 = vsel %vm682, %v704, %v706
      %v708 = vrot.slane %v374, 1
      %v709 = vsel %vm682, %v706, %v708
      %v710 = vrot.slane %v375, 1
      %v711 = vsel %vm682, %v708, %v710
      %v712 = vrot.slane %v376, 1
      %v713 = vsel %vm682, %v710, %v712
      %v714 = vrot.slane %v377, 1
      %v715 = vsel %vm682, %v712, %v714
      %v716 = vrot.slane %v378, 1
      %v717 = vsel %vm682, %v714, %v716
      %v718 = vrot.slane %v379, 1
      %v719 = vsel %vm682, %v716, %v718
      %v720 = vrot.slane %v380, 1
      %v721 = vsel %vm682, %v718, %v720
      %v722 = vrot.slane %v381, 1
      %v723 = vsel %vm682, %v720, %v722
      %v724 = vrot.slane %v382, 1
      %v725 = vsel %vm682, %v722, %v724
      %v726 = vrot.slane %v383, 1
      %v727 = vsel %vm682, %v724, %v726
      %v728 = vrot.slane %v384, 1
      %v729 = vsel %vm682, %v726, %v728
      %v730 = vrot.slane %v385, 1
      %v731 = vsel %vm682, %v728, %v730
      %v732 = vrot.slane %v386, 1
      %v733 = vsel %vm682, %v730, %v732
      %v734 = vrot.slane %v387, 1
      %v735 = vsel %vm682, %v732, %v734
      %v736 = vrot.slane %v388, 1
      %v737 = vsel %vm682, %v734, %v736
      %v738 = vrot.slane %v389, 1
      %v739 = vsel %vm682, %v736, %v738
      %v740 = vrot.slane %v390, 1
      %v741 = vsel %vm682, %v738, %v740
      %v742 = vrot.slane %v391, 1
      %v743 = vsel %vm682, %v740, %v742
      %v744 = vrot.slane %v392, 1
      %v745 = vsel %vm682, %v742, %v744
      %v746 = vrot.slane %v393, 1
      %v747 = vsel %vm682, %v744, %v746
      %v748 = vrot.slane %v394, 1
      %v749 = vsel %vm682, %v746, %v748
      %v750 = vrot.slane %v395, 1
      %v751 = vsel %vm682, %v748, %v750
      %v752 = vrot.slane %v396, 1
      %v753 = vsel %vm682, %v750, %v752
      %v754 = vrot.slane %v397, 1
      %v755 = vsel %vm682, %v752, %v754
      %v756 = vrot.slane %v398, 1
      %v757 = vsel %vm682, %v754, %v756
      %v758 = vrot.slane %v399, 1
      %v759 = vsel %vm682, %v756, %v758
      %v760 = vrot.slane %v400, 1
      %v761 = vsel %vm682, %v758, %v760
      %v762 = vrot.slane %v401, 1
      %v763 = vsel %vm682, %v760, %v762
      %v764 = vrot.slane %v402, 1
      %v765 = vsel %vm682, %v762, %v764
      %v766 = vrot.slane %v403, 1
      %v767 = vsel %vm682, %v764, %v766
      %v768 = vrot.slane %v404, 1
      %v769 = vsel %vm682, %v766, %v768
      %v770 = vrot.slane %v405, 1
      %v771 = vsel %vm682, %v768, %v770
      %v772 = vrot.slane %v406, 1
      %v773 = vsel %vm682, %v770, %v772
      %v774 = vrot.slane %v407, 1
      %v775 = vsel %vm682, %v772, %v774
      %v776 = vrot.slane %v408, 1
      %v777 = vsel %vm682, %v774, %v776
      %v778 = vrot.slane %v409, 1
      %v779 = vsel %vm682, %v776, %v778
      %v780 = vrot.slane %v410, 1
      %v781 = vsel %vm682, %v778, %v780
      %v782 = vrot.slane %v411, 1
      %v783 = vsel %vm682, %v780, %v782
      %v784 = vrot.slane %v412, 1
      %v785 = vsel %vm682, %v782, %v784
      %v786 = vrot.slane %v413, 1
      %v787 = vsel %vm682, %v784, %v786
      %v788 = vrot.slane %v414, 1
      %v789 = vsel %vm682, %v786, %v788
      %v790 = vrot.slane %v415, 1
      %v791 = vsel %vm682, %v788, %v790
      %v792 = vrot.slane %v416, 1
      %v793 = vsel %vm682, %v790, %v792
      %v794 = vrot.slane %v417, 1
      %v795 = vsel %vm682, %v792, %v794
      %v796 = vrot.slane %v418, 1
      %v797 = vsel %vm682, %v794, %v796
      %v798 = vrot.slane %v419, 1
      %v799 = vsel %vm682, %v796, %v798
      %v800 = vrot.slane %v420, 1
      %v801 = vsel %vm682, %v798, %v800
      %v802 = vrot.slane %v421, 1
      %v803 = vsel %vm682, %v800, %v802
      %v804 = vrot.slane %v422, 1
      %v805 = vsel %vm682, %v802, %v804
      %v806 = vrot.slane %v423, 1
      %v807 = vsel %vm682, %v804, %v806
      %v808 = vrot.slane %v424, 1
      %v809 = vsel %vm682, %v806, %v808
      %v810 = vrot.slane %v425, 1
      %v811 = vsel %vm682, %v808, %v810
      %v812 = vrot.slane %v426, 1
      %v813 = vsel %vm682, %v810, %v812
      %v814 = vrot.slane %v427, 1
      %v815 = vsel %vm682, %v812, %v814
      %v816 = vrot.slane %v428, 1
      %v817 = vsel %vm682, %v814, %v816
      %v818 = vrot.slane %v429, 1
      %v819 = vsel %vm682, %v816, %v818
      %v820 = vrot.slane %v430, 1
      %v821 = vsel %vm682, %v818, %v820
      %v822 = vrot.slane %v431, 1
      %v823 = vsel %vm682, %v820, %v822
      %v824 = vrot.slane %v432, 1
      %v825 = vsel %vm682, %v822, %v824
      %v826 = vrot.slane %v433, 1
      %v827 = vsel %vm682, %v824, %v826
      %v828 = vrot.slane %v434, 1
      %v829 = vsel %vm682, %v826, %v828
      %v830 = vrot.slane %v435, 1
      %v831 = vsel %vm682, %v828, %v830
      %v832 = vrot.slane %v436, 1
      %v833 = vsel %vm682, %v830, %v832
      %v834 = vrot.slane %v437, 1
      %v835 = vsel %vm682, %v832, %v834
      %v836 = vrot.slane %v438, 1
      %v837 = vsel %vm682, %v834, %v836
      %v838 = vrot.slane %v439, 1
      %v839 = vsel %vm682, %v836, %v838
      %v840 = vrot.slane %v440, 1
      %v841 = vsel %vm682, %v838, %v840
      %v842 = vrot.slane %v441, 1
      %v843 = vsel %vm682, %v840, %v842
      %v844 = vrot.slane %v442, 1
      %v845 = vsel %vm682, %v842, %v844
      %v846 = vrot.slane %v443, 1
      %v847 = vsel %vm682, %v844, %v846
      %v848 = vrot.slane %v444, 1
      %v849 = vsel %vm682, %v846, %v848
      %v850 = vrot.slane %v445, 1
      %v851 = vsel %vm682, %v848, %v850
      %v852 = vrot.slane %v446, 1
      %v853 = vsel %vm682, %v850, %v852
      %v854 = vrot.slane %v447, 1
      %v855 = vsel %vm682, %v852, %v854
      %v856 = vrot.slane %v448, 1
      %v857 = vsel %vm682, %v854, %v856
      %v858 = vrot.slane %v449, 1
      %v859 = vsel %vm682, %v856, %v858
      %v860 = vrot.slane %v450, 1
      %v861 = vsel %vm682, %v858, %v860
      %v862 = vrot.slane %v451, 1
      %v863 = vsel %vm682, %v860, %v862
      %v864 = vrot.slane %v452, 1
      %v865 = vsel %vm682, %v862, %v864
      %v866 = vrot.slane %v453, 1
      %v867 = vsel %vm682, %v864, %v866
      %v868 = vrot.slane %v454, 1
      %v869 = vsel %vm682, %v866, %v868
      %v870 = vrot.slane %v455, 1
      %v871 = vsel %vm682, %v868, %v870
      %v872 = vrot.slane %v456, 1
      %v873 = vsel %vm682, %v870, %v872
      %v874 = vrot.slane %v457, 1
      %v875 = vsel %vm682, %v872, %v874
      %v876 = vrot.slane %v458, 1
      %v877 = vsel %vm682, %v874, %v876
      %v878 = vrot.slane %v459, 1
      %v879 = vsel %vm682, %v876, %v878
      %v880 = vrot.slane %v460, 1
      %v881 = vsel %vm682, %v878, %v880
      %v882 = vrot.slane %v461, 1
      %v883 = vsel %vm682, %v880, %v882
      %v884 = vrot.slane %v462, 1
      %v885 = vsel %vm682, %v882, %v884
      %v886 = vrot.slane %v463, 1
      %v887 = vsel %vm682, %v884, %v886
      %v888 = vrot.slane %v464, 1
      %v889 = vsel %vm682, %v886, %v888
      %v890 = vrot.slane %v465, 1
      %v891 = vsel %vm682, %v888, %v890
      %v892 = vrot.slane %v466, 1
      %v893 = vsel %vm682, %v890, %v892
      %v894 = vrot.slane %v467, 1
      %v895 = vsel %vm682, %v892, %v894
      %v896 = vrot.slane %v468, 1
      %v897 = vsel %vm682, %v894, %v896
      %v898 = vrot.slane %v469, 1
      %v899 = vsel %vm682, %v896, %v898
      %v900 = vrot.slane %v470, 1
      %v901 = vsel %vm682, %v898, %v900
      %v902 = vrot.slane %v471, 1
      %v903 = vsel %vm682, %v900, %v902
      %v904 = vrot.slane %v472, 1
      %v905 = vsel %vm682, %v902, %v904
      %v906 = vrot.slane %v473, 1
      %v907 = vsel %vm682, %v904, %v906
      %v908 = vrot.slane %v474, 1
      %v909 = vsel %vm682, %v906, %v908
      %v910 = vrot.slane %v475, 1
      %v911 = vsel %vm682, %v908, %v910
      %v912 = vrot.slane %v476, 1
      %v913 = vsel %vm682, %v910, %v912
      %v914 = vrot.slane %v477, 1
      %v915 = vsel %vm682, %v912, %v914
      %v916 = vrot.slane %v478, 1
      %v917 = vsel %vm682, %v914, %v916
      %v918 = vrot.slane %v479, 1
      %v919 = vsel %vm682, %v916, %v918
      %v920 = vrot.slane %v480, 1
      %v921 = vsel %vm682, %v918, %v920
      %v922 = vrot.slane %v481, 1
      %v923 = vsel %vm682, %v920, %v922
      %v924 = vrot.slane %v482, 1
      %v925 = vsel %vm682, %v922, %v924
      %v926 = vrot.slane %v483, 1
      %v927 = vsel %vm682, %v924, %v926
      %v928 = vrot.slane %v484, 1
      %v929 = vsel %vm682, %v926, %v928
      %v930 = vrot.slane %v485, 1
      %v931 = vsel %vm682, %v928, %v930
      %v932 = vrot.slane %v486, 1
      %v933 = vsel %vm682, %v930, %v932
      %v934 = vrot.slane %v487, 1
      %v935 = vsel %vm682, %v932, %v934
      %v936 = vrot.slane %v488, 1
      %v937 = vsel %vm682, %v934, %v936
      %v1067 = vsel %vm682, %v936, %v683
      %v1068 = vpack.c.bf16 %v687, %v685
      %v1069 = vpack.c.bf16 %v691, %v689
      %v1070 = vpack.c.bf16 %v695, %v693
      %v1071 = vpack.c.bf16 %v699, %v697
      %v1072 = vpack.c.bf16 %v703, %v701
      %v1073 = vpack.c.bf16 %v707, %v705
      %v1074 = vpack.c.bf16 %v711, %v709
      %v1075 = vpack.c.bf16 %v715, %v713
      %v1076 = vpack.c.bf16 %v719, %v717
      %v1077 = vpack.c.bf16 %v723, %v721
      %v1078 = vpack.c.bf16 %v727, %v725
      %v1079 = vpack.c.bf16 %v731, %v729
      %v1080 = vpack.c.bf16 %v735, %v733
      %v1081 = vpack.c.bf16 %v739, %v737
      %v1082 = vpack.c.bf16 %v743, %v741
      %v1083 = vpack.c.bf16 %v747, %v745
      %v1084 = vpack.c.bf16 %v751, %v749
      %v1085 = vpack.c.bf16 %v755, %v753
      %v1086 = vpack.c.bf16 %v759, %v757
      %v1087 = vpack.c.bf16 %v763, %v761
      %v1088 = vpack.c.bf16 %v767, %v765
      %v1089 = vpack.c.bf16 %v771, %v769
      %v1090 = vpack.c.bf16 %v775, %v773
      %v1091 = vpack.c.bf16 %v779, %v777
      %v1092 = vpack.c.bf16 %v783, %v781
      %v1093 = vpack.c.bf16 %v787, %v785
      %v1094 = vpack.c.bf16 %v791, %v789
      %v1095 = vpack.c.bf16 %v795, %v793
      %v1096 = vpack.c.bf16 %v799, %v797
      %v1097 = vpack.c.bf16 %v803, %v801
      %v1098 = vpack.c.bf16 %v807, %v805
      %v1099 = vpack.c.bf16 %v811, %v809
      %v1100 = vpack.c.bf16 %v815, %v813
      %v1101 = vpack.c.bf16 %v819, %v817
      %v1102 = vpack.c.bf16 %v823, %v821
      %v1103 = vpack.c.bf16 %v827, %v825
      %v1104 = vpack.c.bf16 %v831, %v829
      %v1105 = vpack.c.bf16 %v835, %v833
      %v1106 = vpack.c.bf16 %v839, %v837
      %v1107 = vpack.c.bf16 %v843, %v841
      %v1108 = vpack.c.bf16 %v847, %v845
      %v1109 = vpack.c.bf16 %v851, %v849
      %v1110 = vpack.c.bf16 %v855, %v853
      %v1111 = vpack.c.bf16 %v859, %v857
      %v1112 = vpack.c.bf16 %v863, %v861
      %v1113 = vpack.c.bf16 %v867, %v865
      %v1114 = vpack.c.bf16 %v871, %v869
      %v1115 = vpack.c.bf16 %v875, %v873
      %v1116 = vpack.c.bf16 %v879, %v877
      %v1117 = vpack.c.bf16 %v883, %v881
      %v1118 = vpack.c.bf16 %v887, %v885
      %v1119 = vpack.c.bf16 %v891, %v889
      %v1120 = vpack.c.bf16 %v895, %v893
      %v1121 = vpack.c.bf16 %v899, %v897
      %v1122 = vpack.c.bf16 %v903, %v901
      %v1123 = vpack.c.bf16 %v907, %v905
      %v1124 = vpack.c.bf16 %v911, %v909
      %v1125 = vpack.c.bf16 %v915, %v913
      %v1126 = vpack.c.bf16 %v919, %v917
      %v1127 = vpack.c.bf16 %v923, %v921
      %v1128 = vpack.c.bf16 %v927, %v925
      %v1129 = vpack.c.bf16 %v931, %v929
      %v1130 = vpack.c.bf16 %v935, %v933
      %v1131 = vpack.c.bf16 %v1067, %v937
      %s1132 = scalar_lea.vmem %s1, 4
      %v1133 = vld [vmem:[%s1132] sm:$0xf]
      %vm1134 = vcmask 64512
      %v1136 = vsel %vm1134, %v1068, 0
      %v1139 = vsel %vm1134, %v1069, 0
      %v1142 = vsel %vm1134, %v1070, 0
      %v1145 = vsel %vm1134, %v1071, 0
      %v1148 = vsel %vm1134, %v1072, 0
      %v1151 = vsel %vm1134, %v1073, 0
      %v1154 = vsel %vm1134, %v1074, 0
      %v1157 = vsel %vm1134, %v1075, 0
      %v1160 = vsel %vm1134, %v1076, 0
      %v1163 = vsel %vm1134, %v1077, 0
      %v1166 = vsel %vm1134, %v1078, 0
      %v1169 = vsel %vm1134, %v1079, 0
      %v1172 = vsel %vm1134, %v1080, 0
      %v1175 = vsel %vm1134, %v1081, 0
      %v1178 = vsel %vm1134, %v1082, 0
      %v1181 = vsel %vm1134, %v1083, 0
      %v1184 = vsel %vm1134, %v1084, 0
      %v1187 = vsel %vm1134, %v1085, 0
      %v1190 = vsel %vm1134, %v1086, 0
      %v1193 = vsel %vm1134, %v1087, 0
      %v1196 = vsel %vm1134, %v1088, 0
      %v1199 = vsel %vm1134, %v1089, 0
      %v1202 = vsel %vm1134, %v1090, 0
      %v1205 = vsel %vm1134, %v1091, 0
      %v1208 = vsel %vm1134, %v1092, 0
      %v1211 = vsel %vm1134, %v1093, 0
      %v1214 = vsel %vm1134, %v1094, 0
      %v1217 = vsel %vm1134, %v1095, 0
      %v1220 = vsel %vm1134, %v1096, 0
      %v1223 = vsel %vm1134, %v1097, 0
      %v1226 = vsel %vm1134, %v1098, 0
      %v1229 = vsel %vm1134, %v1099, 0
      %v1232 = vsel %vm1134, %v1100, 0
      %v1235 = vsel %vm1134, %v1101, 0
      %v1238 = vsel %vm1134, %v1102, 0
      %v1241 = vsel %vm1134, %v1103, 0
      %v1244 = vsel %vm1134, %v1104, 0
      %v1247 = vsel %vm1134, %v1105, 0
      %v1250 = vsel %vm1134, %v1106, 0
      %v1253 = vsel %vm1134, %v1107, 0
      %v1256 = vsel %vm1134, %v1108, 0
      %v1259 = vsel %vm1134, %v1109, 0
      %v1262 = vsel %vm1134, %v1110, 0
      %v1265 = vsel %vm1134, %v1111, 0
      %v1268 = vsel %vm1134, %v1112, 0
      %v1271 = vsel %vm1134, %v1113, 0
      %v1274 = vsel %vm1134, %v1114, 0
      %v1277 = vsel %vm1134, %v1115, 0
      %v1280 = vsel %vm1134, %v1116, 0
      %v1283 = vsel %vm1134, %v1117, 0
      %v1286 = vsel %vm1134, %v1118, 0
      %v1289 = vsel %vm1134, %v1119, 0
      %v1292 = vsel %vm1134, %v1120, 0
      %v1295 = vsel %vm1134, %v1121, 0
      %v1298 = vsel %vm1134, %v1122, 0
      %v1301 = vsel %vm1134, %v1123, 0
      %v1304 = vsel %vm1134, %v1124, 0
      %v1307 = vsel %vm1134, %v1125, 0
      %v1310 = vsel %vm1134, %v1126, 0
      %v1313 = vsel %vm1134, %v1127, 0
      %v1316 = vsel %vm1134, %v1128, 0
      %v1319 = vsel %vm1134, %v1129, 0
      %v1322 = vsel %vm1134, %v1130, 0
      %v1325 = vsel %vm1134, %v1131, 0
      %vm1327 = vcmask 1043456
      %v1329 = vsel %vm1327, %v1133, 0
      %1331 = vmatprep.subr.bf16.mxu0 0
      %1332 = vmatpush1.bf16.msra.mxu0 %v1329
      %1333 = vmatprep.subr.bf16.mxu0 0
      %1334 = vmatpush1.bf16.msra.mxu0 0
      %1335 = vmatprep.subr.bf16.mxu0 0
      %1336 = vmatpush1.bf16.msra.mxu0 0
      %1337 = vmatprep.subr.bf16.mxu0 0
      %1338 = vmatpush1.bf16.msra.mxu0 0
      %1339 = vmatprep.subr.bf16.mxu0 0
      %1340 = vmatpush1.bf16.msra.mxu0 0
      %1341 = vmatprep.subr.bf16.mxu0 0
      %1342 = vmatpush1.bf16.msra.mxu0 0
      %1343 = vmatprep.subr.bf16.mxu0 0
      %1344 = vmatpush1.bf16.msra.mxu0 0
      %1345 = vmatprep.subr.bf16.mxu0 0
      %1346 = vmatpush1.bf16.msra.mxu0 0
      %1347 = vmatprep.subr.bf16.mxu0 0
      %1348 = vmatpush1.bf16.msra.mxu0 0
      %1349 = vmatprep.subr.bf16.mxu0 0
      %1350 = vmatpush1.bf16.msra.mxu0 0
      %1351 = vmatprep.subr.bf16.mxu0 0
      %1352 = vmatpush1.bf16.msra.mxu0 0
      %1353 = vmatprep.subr.bf16.mxu0 0
      %1354 = vmatpush1.bf16.msra.mxu0 0
      %1355 = vmatprep.subr.bf16.mxu0 0
      %1356 = vmatpush1.bf16.msra.mxu0 0
      %1357 = vmatprep.subr.bf16.mxu0 0
      %1358 = vmatpush1.bf16.msra.mxu0 0
      %1359 = vmatprep.subr.bf16.mxu0 0
      %1360 = vmatpush1.bf16.msra.mxu0 0
      %1361 = vmatprep.subr.bf16.mxu0 0
      %1362 = vmatpush1.bf16.msra.mxu0 0
      %1363 = vmatprep.mubr.bf16.mxu0 0
      %1364 = vmatmul.mubr.bf16.gmra.mrb[0].mxu0 %v1136
      %v1365 = vpop.f32.mrb[0].mxu0
      %v1366 = vadd.f32 0.0, %v1365
      %v1367 = vpop.f32.mrb[0].mxu0
      %v1368 = vpop.f32.mrb[0].mxu0
      %v1369 = vadd.f32 0.0, %v1368
      %v1370 = vpop.f32.mrb[0].mxu0
      %1371 = vmatprep.mubr.bf16.mxu0 0
      %1372 = vmatmul.mubr.bf16.gmra.mrb[0].mxu0 %v1139
      %v1373 = vpop.f32.mrb[0].mxu0
      %v1374 = vadd.f32 0.0, %v1373
      %v1375 = vpop.f32.mrb[0].mxu0
      %v1376 = vpop.f32.mrb[0].mxu0
      %v1377 = vadd.f32 0.0, %v1376
      %v1378 = vpop.f32.mrb[0].mxu0
      %1379 = vmatprep.mubr.bf16.mxu0 0
      %1380 = vmatmul.mubr.bf16.gmra.mrb[0].mxu0 %v1142
      %v1381 = vpop.f32.mrb[0].mxu0
      %v1382 = vadd.f32 0.0, %v1381
      %v1383 = vpop.f32.mrb[0].mxu0
      %v1384 = vpop.f32.mrb[0].mxu0
      %v1385 = vadd.f32 0.0, %v1384
      %v1386 = vpop.f32.mrb[0].mxu0
      %1387 = vmatprep.mubr.bf16.mxu0 0
      %1388 = vmatmul.mubr.bf16.gmra.mrb[0].mxu0 %v1145
      %v1389 = vpop.f32.mrb[0].mxu0
      %v1390 = vadd.f32 0.0, %v1389
      %v1391 = vpop.f32.mrb[0].mxu0
      %v1392 = vpop.f32.mrb[0].mxu0
      %v1393 = vadd.f32 0.0, %v1392
      %v1394 = vpop.f32.mrb[0].mxu0
      %1395 = vmatprep.mubr.bf16.mxu0 0
      %1396 = vmatmul.mubr.bf16.gmra.mrb[0].mxu0 %v1148
      %v1397 = vpop.f32.mrb[0].mxu0
      %v1398 = vadd.f32 0.0, %v1397
      %v1399 = vpop.f32.mrb[0].mxu0
      %v1400 = vpop.f32.mrb[0].mxu0
      %v1401 = vadd.f32 0.0, %v1400
      %v1402 = vpop.f32.mrb[0].mxu0
      %1403 = vmatprep.mubr.bf16.mxu0 0
      %1404 = vmatmul.mubr.bf16.gmra.mrb[0].mxu0 %v1151
      %v1405 = vpop.f32.mrb[0].mxu0
      %v1406 = vadd.f32 0.0, %v1405
      %v1407 = vpop.f32.mrb[0].mxu0
      %v1408 = vpop.f32.mrb[0].mxu0
      %v1409 = vadd.f32 0.0, %v1408
      %v1410 = vpop.f32.mrb[0].mxu0
      %1411 = vmatprep.mubr.bf16.mxu0 0
      %1412 = vmatmul.mubr.bf16.gmra.mrb[0].mxu0 %v1154
      %v1413 = vpop.f32.mrb[0].mxu0
      %v1414 = vadd.f32 0.0, %v1413
      %v1415 = vpop.f32.mrb[0].mxu0
      %v1416 = vpop.f32.mrb[0].mxu0
      %v1417 = vadd.f32 0.0, %v1416
      %v1418 = vpop.f32.mrb[0].mxu0
      %1419 = vmatprep.mubr.bf16.mxu0 0
      %1420 = vmatmul.mubr.bf16.gmra.mrb[0].mxu0 %v1157
      %v1421 = vpop.f32.mrb[0].mxu0
      %v1422 = vadd.f32 0.0, %v1421
      %v1423 = vpop.f32.mrb[0].mxu0
      %v1424 = vpop.f32.mrb[0].mxu0
      %v1425 = vadd.f32 0.0, %v1424
      %v1426 = vpop.f32.mrb[0].mxu0
      %1427 = vmatprep.mubr.bf16.mxu0 0
      %1428 = vmatmul.mubr.bf16.gmra.mrb[0].mxu0 %v1160
      %v1429 = vpop.f32.mrb[0].mxu0
      %v1430 = vadd.f32 0.0, %v1429
      %v1431 = vpop.f32.mrb[0].mxu0
      %v1432 = vpop.f32.mrb[0].mxu0
      %v1433 = vadd.f32 0.0, %v1432
      %v1434 = vpop.f32.mrb[0].mxu0
      %1435 = vmatprep.mubr.bf16.mxu0 0
      %1436 = vmatmul.mubr.bf16.gmra.mrb[0].mxu0 %v1163
      %v1437 = vpop.f32.mrb[0].mxu0
      %v1438 = vadd.f32 0.0, %v1437
      %v1439 = vpop.f32.mrb[0].mxu0
      %v1440 = vpop.f32.mrb[0].mxu0
      %v1441 = vadd.f32 0.0, %v1440
      %v1442 = vpop.f32.mrb[0].mxu0
      %1443 = vmatprep.mubr.bf16.mxu0 0
      %1444 = vmatmul.mubr.bf16.gmra.mrb[0].mxu0 %v1166
      %v1445 = vpop.f32.mrb[0].mxu0
      %v1446 = vadd.f32 0.0, %v1445
      %v1447 = vpop.f32.mrb[0].mxu0
      %v1448 = vpop.f32.mrb[0].mxu0
      %v1449 = vadd.f32 0.0, %v1448
      %v1450 = vpop.f32.mrb[0].mxu0
      %1451 = vmatprep.mubr.bf16.mxu0 0
      %1452 = vmatmul.mubr.bf16.gmra.mrb[0].mxu0 %v1169
      %v1453 = vpop.f32.mrb[0].mxu0
      %v1454 = vadd.f32 0.0, %v1453
      %v1455 = vpop.f32.mrb[0].mxu0
      %v1456 = vpop.f32.mrb[0].mxu0
      %v1457 = vadd.f32 0.0, %v1456
      %v1458 = vpop.f32.mrb[0].mxu0
      %1459 = vmatprep.mubr.bf16.mxu0 0
      %1460 = vmatmul.mubr.bf16.gmra.mrb[0].mxu0 %v1172
      %v1461 = vpop.f32.mrb[0].mxu0
      %v1462 = vadd.f32 0.0, %v1461
      %v1463 = vpop.f32.mrb[0].mxu0
      %v1464 = vpop.f32.mrb[0].mxu0
      %v1465 = vadd.f32 0.0, %v1464
      %v1466 = vpop.f32.mrb[0].mxu0
      %1467 = vmatprep.mubr.bf16.mxu0 0
      %1468 = vmatmul.mubr.bf16.gmra.mrb[0].mxu0 %v1175
      %v1469 = vpop.f32.mrb[0].mxu0
      %v1470 = vadd.f32 0.0, %v1469
      %v1471 = vpop.f32.mrb[0].mxu0
      %v1472 = vpop.f32.mrb[0].mxu0
      %v1473 = vadd.f32 0.0, %v1472
      %v1474 = vpop.f32.mrb[0].mxu0
      %1475 = vmatprep.mubr.bf16.mxu0 0
      %1476 = vmatmul.mubr.bf16.gmra.mrb[0].mxu0 %v1178
      %v1477 = vpop.f32.mrb[0].mxu0
      %v1478 = vadd.f32 0.0, %v1477
      %v1479 = vpop.f32.mrb[0].mxu0
      %v1480 = vpop.f32.mrb[0].mxu0
      %v1481 = vadd.f32 0.0, %v1480
      %v1482 = vpop.f32.mrb[0].mxu0
      %1483 = vmatprep.mubr.bf16.mxu0 0
      %1484 = vmatmul.mubr.bf16.gmra.mrb[0].mxu0 %v1181
      %v1485 = vpop.f32.mrb[0].mxu0
      %v1486 = vadd.f32 0.0, %v1485
      %v1487 = vpop.f32.mrb[0].mxu0
      %v1488 = vpop.f32.mrb[0].mxu0
      %v1489 = vadd.f32 0.0, %v1488
      %v1490 = vpop.f32.mrb[0].mxu0
      %1491 = vmatprep.mubr.bf16.mxu0 0
      %1492 = vmatmul.mubr.bf16.gmra.mrb[0].mxu0 %v1184
      %v1493 = vpop.f32.mrb[0].mxu0
      %v1494 = vadd.f32 0.0, %v1493
      %v1495 = vpop.f32.mrb[0].mxu0
      %v1496 = vpop.f32.mrb[0].mxu0
      %v1497 = vadd.f32 0.0, %v1496
      %v1498 = vpop.f32.mrb[0].mxu0
      %1499 = vmatprep.mubr.bf16.mxu0 0
      %1500 = vmatmul.mubr.bf16.gmra.mrb[0].mxu0 %v1187
      %v1501 = vpop.f32.mrb[0].mxu0
      %v1502 = vadd.f32 0.0, %v1501
      %v1503 = vpop.f32.mrb[0].mxu0
      %v1504 = vpop.f32.mrb[0].mxu0
      %v1505 = vadd.f32 0.0, %v1504
      %v1506 = vpop.f32.mrb[0].mxu0
      %1507 = vmatprep.mubr.bf16.mxu0 0
      %1508 = vmatmul.mubr.bf16.gmra.mrb[0].mxu0 %v1190
      %v1509 = vpop.f32.mrb[0].mxu0
      %v1510 = vadd.f32 0.0, %v1509
      %v1511 = vpop.f32.mrb[0].mxu0
      %v1512 = vpop.f32.mrb[0].mxu0
      %v1513 = vadd.f32 0.0, %v1512
      %v1514 = vpop.f32.mrb[0].mxu0
      %1515 = vmatprep.mubr.bf16.mxu0 0
      %1516 = vmatmul.mubr.bf16.gmra.mrb[0].mxu0 %v1193
      %v1517 = vpop.f32.mrb[0].mxu0
      %v1518 = vadd.f32 0.0, %v1517
      %v1519 = vpop.f32.mrb[0].mxu0
      %v1520 = vpop.f32.mrb[0].mxu0
      %v1521 = vadd.f32 0.0, %v1520
      %v1522 = vpop.f32.mrb[0].mxu0
      %1523 = vmatprep.mubr.bf16.mxu0 0
      %1524 = vmatmul.mubr.bf16.gmra.mrb[0].mxu0 %v1196
      %v1525 = vpop.f32.mrb[0].mxu0
      %v1526 = vadd.f32 0.0, %v1525
      %v1527 = vpop.f32.mrb[0].mxu0
      %v1528 = vpop.f32.mrb[0].mxu0
      %v1529 = vadd.f32 0.0, %v1528
      %v1530 = vpop.f32.mrb[0].mxu0
      %1531 = vmatprep.mubr.bf16.mxu0 0
      %1532 = vmatmul.mubr.bf16.gmra.mrb[0].mxu0 %v1199
      %v1533 = vpop.f32.mrb[0].mxu0
      %v1534 = vadd.f32 0.0, %v1533
      %v1535 = vpop.f32.mrb[0].mxu0
      %v1536 = vpop.f32.mrb[0].mxu0
      %v1537 = vadd.f32 0.0, %v1536
      %v1538 = vpop.f32.mrb[0].mxu0
      %1539 = vmatprep.mubr.bf16.mxu0 0
      %1540 = vmatmul.mubr.bf16.gmra.mrb[0].mxu0 %v1202
      %v1541 = vpop.f32.mrb[0].mxu0
      %v1542 = vadd.f32 0.0, %v1541
      %v1543 = vpop.f32.mrb[0].mxu0
      %v1544 = vpop.f32.mrb[0].mxu0
      %v1545 = vadd.f32 0.0, %v1544
      %v1546 = vpop.f32.mrb[0].mxu0
      %1547 = vmatprep.mubr.bf16.mxu0 0
      %1548 = vmatmul.mubr.bf16.gmra.mrb[0].mxu0 %v1205
      %v1549 = vpop.f32.mrb[0].mxu0
      %v1550 = vadd.f32 0.0, %v1549
      %v1551 = vpop.f32.mrb[0].mxu0
      %v1552 = vpop.f32.mrb[0].mxu0
      %v1553 = vadd.f32 0.0, %v1552
      %v1554 = vpop.f32.mrb[0].mxu0
      %1555 = vmatprep.mubr.bf16.mxu0 0
      %1556 = vmatmul.mubr.bf16.gmra.mrb[0].mxu0 %v1208
      %v1557 = vpop.f32.mrb[0].mxu0
      %v1558 = vadd.f32 0.0, %v1557
      %v1559 = vpop.f32.mrb[0].mxu0
      %v1560 = vpop.f32.mrb[0].mxu0
      %v1561 = vadd.f32 0.0, %v1560
      %v1562 = vpop.f32.mrb[0].mxu0
      %1563 = vmatprep.mubr.bf16.mxu0 0
      %1564 = vmatmul.mubr.bf16.gmra.mrb[0].mxu0 %v1211
      %v1565 = vpop.f32.mrb[0].mxu0
      %v1566 = vadd.f32 0.0, %v1565
      %v1567 = vpop.f32.mrb[0].mxu0
      %v1568 = vpop.f32.mrb[0].mxu0
      %v1569 = vadd.f32 0.0, %v1568
      %v1570 = vpop.f32.mrb[0].mxu0
      %1571 = vmatprep.mubr.bf16.mxu0 0
      %1572 = vmatmul.mubr.bf16.gmra.mrb[0].mxu0 %v1214
      %v1573 = vpop.f32.mrb[0].mxu0
      %v1574 = vadd.f32 0.0, %v1573
      %v1575 = vpop.f32.mrb[0].mxu0
      %v1576 = vpop.f32.mrb[0].mxu0
      %v1577 = vadd.f32 0.0, %v1576
      %v1578 = vpop.f32.mrb[0].mxu0
      %1579 = vmatprep.mubr.bf16.mxu0 0
      %1580 = vmatmul.mubr.bf16.gmra.mrb[0].mxu0 %v1217
      %v1581 = vpop.f32.mrb[0].mxu0
      %v1582 = vadd.f32 0.0, %v1581
      %v1583 = vpop.f32.mrb[0].mxu0
      %v1584 = vpop.f32.mrb[0].mxu0
      %v1585 = vadd.f32 0.0, %v1584
      %v1586 = vpop.f32.mrb[0].mxu0
      %1587 = vmatprep.mubr.bf16.mxu0 0
      %1588 = vmatmul.mubr.bf16.gmra.mrb[0].mxu0 %v1220
      %v1589 = vpop.f32.mrb[0].mxu0
      %v1590 = vadd.f32 0.0, %v1589
      %v1591 = vpop.f32.mrb[0].mxu0
      %v1592 = vpop.f32.mrb[0].mxu0
      %v1593 = vadd.f32 0.0, %v1592
      %v1594 = vpop.f32.mrb[0].mxu0
      %1595 = vmatprep.mubr.bf16.mxu0 0
      %1596 = vmatmul.mubr.bf16.gmra.mrb[0].mxu0 %v1223
      %v1597 = vpop.f32.mrb[0].mxu0
      %v1598 = vadd.f32 0.0, %v1597
      %v1599 = vpop.f32.mrb[0].mxu0
      %v1600 = vpop.f32.mrb[0].mxu0
      %v1601 = vadd.f32 0.0, %v1600
      %v1602 = vpop.f32.mrb[0].mxu0
      %1603 = vmatprep.mubr.bf16.mxu0 0
      %1604 = vmatmul.mubr.bf16.gmra.mrb[0].mxu0 %v1226
      %v1605 = vpop.f32.mrb[0].mxu0
      %v1606 = vadd.f32 0.0, %v1605
      %v1607 = vpop.f32.mrb[0].mxu0
      %v1608 = vpop.f32.mrb[0].mxu0
      %v1609 = vadd.f32 0.0, %v1608
      %v1610 = vpop.f32.mrb[0].mxu0
      %1611 = vmatprep.mubr.bf16.mxu0 0
      %1612 = vmatmul.mubr.bf16.gmra.mrb[0].mxu0 %v1229
      %v1613 = vpop.f32.mrb[0].mxu0
      %v1614 = vadd.f32 0.0, %v1613
      %v1615 = vpop.f32.mrb[0].mxu0
      %v1616 = vpop.f32.mrb[0].mxu0
      %v1617 = vadd.f32 0.0, %v1616
      %v1618 = vpop.f32.mrb[0].mxu0
      %1619 = vmatprep.mubr.bf16.mxu0 0
      %1620 = vmatmul.mubr.bf16.gmra.mrb[0].mxu0 %v1232
      %v1621 = vpop.f32.mrb[0].mxu0
      %v1622 = vadd.f32 0.0, %v1621
      %v1623 = vpop.f32.mrb[0].mxu0
      %v1624 = vpop.f32.mrb[0].mxu0
      %v1625 = vadd.f32 0.0, %v1624
      %v1626 = vpop.f32.mrb[0].mxu0
      %1627 = vmatprep.mubr.bf16.mxu0 0
      %1628 = vmatmul.mubr.bf16.gmra.mrb[0].mxu0 %v1235
      %v1629 = vpop.f32.mrb[0].mxu0
      %v1630 = vadd.f32 0.0, %v1629
      %v1631 = vpop.f32.mrb[0].mxu0
      %v1632 = vpop.f32.mrb[0].mxu0
      %v1633 = vadd.f32 0.0, %v1632
      %v1634 = vpop.f32.mrb[0].mxu0
      %1635 = vmatprep.mubr.bf16.mxu0 0
      %1636 = vmatmul.mubr.bf16.gmra.mrb[0].mxu0 %v1238
      %v1637 = vpop.f32.mrb[0].mxu0
      %v1638 = vadd.f32 0.0, %v1637
      %v1639 = vpop.f32.mrb[0].mxu0
      %v1640 = vpop.f32.mrb[0].mxu0
      %v1641 = vadd.f32 0.0, %v1640
      %v1642 = vpop.f32.mrb[0].mxu0
      %1643 = vmatprep.mubr.bf16.mxu0 0
      %1644 = vmatmul.mubr.bf16.gmra.mrb[0].mxu0 %v1241
      %v1645 = vpop.f32.mrb[0].mxu0
      %v1646 = vadd.f32 0.0, %v1645
      %v1647 = vpop.f32.mrb[0].mxu0
      %v1648 = vpop.f32.mrb[0].mxu0
      %v1649 = vadd.f32 0.0, %v1648
      %v1650 = vpop.f32.mrb[0].mxu0
      %1651 = vmatprep.mubr.bf16.mxu0 0
      %1652 = vmatmul.mubr.bf16.gmra.mrb[0].mxu0 %v1244
      %v1653 = vpop.f32.mrb[0].mxu0
      %v1654 = vadd.f32 0.0, %v1653
      %v1655 = vpop.f32.mrb[0].mxu0
      %v1656 = vpop.f32.mrb[0].mxu0
      %v1657 = vadd.f32 0.0, %v1656
      %v1658 = vpop.f32.mrb[0].mxu0
      %1659 = vmatprep.mubr.bf16.mxu0 0
      %1660 = vmatmul.mubr.bf16.gmra.mrb[0].mxu0 %v1247
      %v1661 = vpop.f32.mrb[0].mxu0
      %v1662 = vadd.f32 0.0, %v1661
      %v1663 = vpop.f32.mrb[0].mxu0
      %v1664 = vpop.f32.mrb[0].mxu0
      %v1665 = vadd.f32 0.0, %v1664
      %v1666 = vpop.f32.mrb[0].mxu0
      %1667 = vmatprep.mubr.bf16.mxu0 0
      %1668 = vmatmul.mubr.bf16.gmra.mrb[0].mxu0 %v1250
      %v1669 = vpop.f32.mrb[0].mxu0
      %v1670 = vadd.f32 0.0, %v1669
      %v1671 = vpop.f32.mrb[0].mxu0
      %v1672 = vpop.f32.mrb[0].mxu0
      %v1673 = vadd.f32 0.0, %v1672
      %v1674 = vpop.f32.mrb[0].mxu0
      %1675 = vmatprep.mubr.bf16.mxu0 0
      %1676 = vmatmul.mubr.bf16.gmra.mrb[0].mxu0 %v1253
      %v1677 = vpop.f32.mrb[0].mxu0
      %v1678 = vadd.f32 0.0, %v1677
      %v1679 = vpop.f32.mrb[0].mxu0
      %v1680 = vpop.f32.mrb[0].mxu0
      %v1681 = vadd.f32 0.0, %v1680
      %v1682 = vpop.f32.mrb[0].mxu0
      %1683 = vmatprep.mubr.bf16.mxu0 0
      %1684 = vmatmul.mubr.bf16.gmra.mrb[0].mxu0 %v1256
      %v1685 = vpop.f32.mrb[0].mxu0
      %v1686 = vadd.f32 0.0, %v1685
      %v1687 = vpop.f32.mrb[0].mxu0
      %v1688 = vpop.f32.mrb[0].mxu0
      %v1689 = vadd.f32 0.0, %v1688
      %v1690 = vpop.f32.mrb[0].mxu0
      %1691 = vmatprep.mubr.bf16.mxu0 0
      %1692 = vmatmul.mubr.bf16.gmra.mrb[0].mxu0 %v1259
      %v1693 = vpop.f32.mrb[0].mxu0
      %v1694 = vadd.f32 0.0, %v1693
      %v1695 = vpop.f32.mrb[0].mxu0
      %v1696 = vpop.f32.mrb[0].mxu0
      %v1697 = vadd.f32 0.0, %v1696
      %v1698 = vpop.f32.mrb[0].mxu0
      %1699 = vmatprep.mubr.bf16.mxu0 0
      %1700 = vmatmul.mubr.bf16.gmra.mrb[0].mxu0 %v1262
      %v1701 = vpop.f32.mrb[0].mxu0
      %v1702 = vadd.f32 0.0, %v1701
      %v1703 = vpop.f32.mrb[0].mxu0
      %v1704 = vpop.f32.mrb[0].mxu0
      %v1705 = vadd.f32 0.0, %v1704
      %v1706 = vpop.f32.mrb[0].mxu0
      %1707 = vmatprep.mubr.bf16.mxu0 0
      %1708 = vmatmul.mubr.bf16.gmra.mrb[0].mxu0 %v1265
      %v1709 = vpop.f32.mrb[0].mxu0
      %v1710 = vadd.f32 0.0, %v1709
      %v1711 = vpop.f32.mrb[0].mxu0
      %v1712 = vpop.f32.mrb[0].mxu0
      %v1713 = vadd.f32 0.0, %v1712
      %v1714 = vpop.f32.mrb[0].mxu0
      %1715 = vmatprep.mubr.bf16.mxu0 0
      %1716 = vmatmul.mubr.bf16.gmra.mrb[0].mxu0 %v1268
      %v1717 = vpop.f32.mrb[0].mxu0
      %v1718 = vadd.f32 0.0, %v1717
      %v1719 = vpop.f32.mrb[0].mxu0
      %v1720 = vpop.f32.mrb[0].mxu0
      %v1721 = vadd.f32 0.0, %v1720
      %v1722 = vpop.f32.mrb[0].mxu0
      %1723 = vmatprep.mubr.bf16.mxu0 0
      %1724 = vmatmul.mubr.bf16.gmra.mrb[0].mxu0 %v1271
      %v1725 = vpop.f32.mrb[0].mxu0
      %v1726 = vadd.f32 0.0, %v1725
      %v1727 = vpop.f32.mrb[0].mxu0
      %v1728 = vpop.f32.mrb[0].mxu0
      %v1729 = vadd.f32 0.0, %v1728
      %v1730 = vpop.f32.mrb[0].mxu0
      %1731 = vmatprep.mubr.bf16.mxu0 0
      %1732 = vmatmul.mubr.bf16.gmra.mrb[0].mxu0 %v1274
      %v1733 = vpop.f32.mrb[0].mxu0
      %v1734 = vadd.f32 0.0, %v1733
      %v1735 = vpop.f32.mrb[0].mxu0
      %v1736 = vpop.f32.mrb[0].mxu0
      %v1737 = vadd.f32 0.0, %v1736
      %v1738 = vpop.f32.mrb[0].mxu0
      %1739 = vmatprep.mubr.bf16.mxu0 0
      %1740 = vmatmul.mubr.bf16.gmra.mrb[0].mxu0 %v1277
      %v1741 = vpop.f32.mrb[0].mxu0
      %v1742 = vadd.f32 0.0, %v1741
      %v1743 = vpop.f32.mrb[0].mxu0
      %v1744 = vpop.f32.mrb[0].mxu0
      %v1745 = vadd.f32 0.0, %v1744
      %v1746 = vpop.f32.mrb[0].mxu0
      %1747 = vmatprep.mubr.bf16.mxu0 0
      %1748 = vmatmul.mubr.bf16.gmra.mrb[0].mxu0 %v1280
      %v1749 = vpop.f32.mrb[0].mxu0
      %v1750 = vadd.f32 0.0, %v1749
      %v1751 = vpop.f32.mrb[0].mxu0
      %v1752 = vpop.f32.mrb[0].mxu0
      %v1753 = vadd.f32 0.0, %v1752
      %v1754 = vpop.f32.mrb[0].mxu0
      %1755 = vmatprep.mubr.bf16.mxu0 0
      %1756 = vmatmul.mubr.bf16.gmra.mrb[0].mxu0 %v1283
      %v1757 = vpop.f32.mrb[0].mxu0
      %v1758 = vadd.f32 0.0, %v1757
      %v1759 = vpop.f32.mrb[0].mxu0
      %v1760 = vpop.f32.mrb[0].mxu0
      %v1761 = vadd.f32 0.0, %v1760
      %v1762 = vpop.f32.mrb[0].mxu0
      %1763 = vmatprep.mubr.bf16.mxu0 0
      %1764 = vmatmul.mubr.bf16.gmra.mrb[0].mxu0 %v1286
      %v1765 = vpop.f32.mrb[0].mxu0
      %v1766 = vadd.f32 0.0, %v1765
      %v1767 = vpop.f32.mrb[0].mxu0
      %v1768 = vpop.f32.mrb[0].mxu0
      %v1769 = vadd.f32 0.0, %v1768
      %v1770 = vpop.f32.mrb[0].mxu0
      %1771 = vmatprep.mubr.bf16.mxu0 0
      %1772 = vmatmul.mubr.bf16.gmra.mrb[0].mxu0 %v1289
      %v1773 = vpop.f32.mrb[0].mxu0
      %v1774 = vadd.f32 0.0, %v1773
      %v1775 = vpop.f32.mrb[0].mxu0
      %v1776 = vpop.f32.mrb[0].mxu0
      %v1777 = vadd.f32 0.0, %v1776
      %v1778 = vpop.f32.mrb[0].mxu0
      %1779 = vmatprep.mubr.bf16.mxu0 0
      %1780 = vmatmul.mubr.bf16.gmra.mrb[0].mxu0 %v1292
      %v1781 = vpop.f32.mrb[0].mxu0
      %v1782 = vadd.f32 0.0, %v1781
      %v1783 = vpop.f32.mrb[0].mxu0
      %v1784 = vpop.f32.mrb[0].mxu0
      %v1785 = vadd.f32 0.0, %v1784
      %v1786 = vpop.f32.mrb[0].mxu0
      %1787 = vmatprep.mubr.bf16.mxu0 0
      %1788 = vmatmul.mubr.bf16.gmra.mrb[0].mxu0 %v1295
      %v1789 = vpop.f32.mrb[0].mxu0
      %v1790 = vadd.f32 0.0, %v1789
      %v1791 = vpop.f32.mrb[0].mxu0
      %v1792 = vpop.f32.mrb[0].mxu0
      %v1793 = vadd.f32 0.0, %v1792
      %v1794 = vpop.f32.mrb[0].mxu0
      %1795 = vmatprep.mubr.bf16.mxu0 0
      %1796 = vmatmul.mubr.bf16.gmra.mrb[0].mxu0 %v1298
      %v1797 = vpop.f32.mrb[0].mxu0
      %v1798 = vadd.f32 0.0, %v1797
      %v1799 = vpop.f32.mrb[0].mxu0
      %v1800 = vpop.f32.mrb[0].mxu0
      %v1801 = vadd.f32 0.0, %v1800
      %v1802 = vpop.f32.mrb[0].mxu0
      %1803 = vmatprep.mubr.bf16.mxu0 0
      %1804 = vmatmul.mubr.bf16.gmra.mrb[0].mxu0 %v1301
      %v1805 = vpop.f32.mrb[0].mxu0
      %v1806 = vadd.f32 0.0, %v1805
      %v1807 = vpop.f32.mrb[0].mxu0
      %v1808 = vpop.f32.mrb[0].mxu0
      %v1809 = vadd.f32 0.0, %v1808
      %v1810 = vpop.f32.mrb[0].mxu0
      %1811 = vmatprep.mubr.bf16.mxu0 0
      %1812 = vmatmul.mubr.bf16.gmra.mrb[0].mxu0 %v1304
      %v1813 = vpop.f32.mrb[0].mxu0
      %v1814 = vadd.f32 0.0, %v1813
      %v1815 = vpop.f32.mrb[0].mxu0
      %v1816 = vpop.f32.mrb[0].mxu0
      %v1817 = vadd.f32 0.0, %v1816
      %v1818 = vpop.f32.mrb[0].mxu0
      %1819 = vmatprep.mubr.bf16.mxu0 0
      %1820 = vmatmul.mubr.bf16.gmra.mrb[0].mxu0 %v1307
      %v1821 = vpop.f32.mrb[0].mxu0
      %v1822 = vadd.f32 0.0, %v1821
      %v1823 = vpop.f32.mrb[0].mxu0
      %v1824 = vpop.f32.mrb[0].mxu0
      %v1825 = vadd.f32 0.0, %v1824
      %v1826 = vpop.f32.mrb[0].mxu0
      %1827 = vmatprep.mubr.bf16.mxu0 0
      %1828 = vmatmul.mubr.bf16.gmra.mrb[0].mxu0 %v1310
      %v1829 = vpop.f32.mrb[0].mxu0
      %v1830 = vadd.f32 0.0, %v1829
      %v1831 = vpop.f32.mrb[0].mxu0
      %v1832 = vpop.f32.mrb[0].mxu0
      %v1833 = vadd.f32 0.0, %v1832
      %v1834 = vpop.f32.mrb[0].mxu0
      %1835 = vmatprep.mubr.bf16.mxu0 0
      %1836 = vmatmul.mubr.bf16.gmra.mrb[0].mxu0 %v1313
      %v1837 = vpop.f32.mrb[0].mxu0
      %v1838 = vadd.f32 0.0, %v1837
      %v1839 = vpop.f32.mrb[0].mxu0
      %v1840 = vpop.f32.mrb[0].mxu0
      %v1841 = vadd.f32 0.0, %v1840
      %v1842 = vpop.f32.mrb[0].mxu0
      %1843 = vmatprep.mubr.bf16.mxu0 0
      %1844 = vmatmul.mubr.bf16.gmra.mrb[0].mxu0 %v1316
      %v1845 = vpop.f32.mrb[0].mxu0
      %v1846 = vadd.f32 0.0, %v1845
      %v1847 = vpop.f32.mrb[0].mxu0
      %v1848 = vpop.f32.mrb[0].mxu0
      %v1849 = vadd.f32 0.0, %v1848
      %v1850 = vpop.f32.mrb[0].mxu0
      %1851 = vmatprep.mubr.bf16.mxu0 0
      %1852 = vmatmul.mubr.bf16.gmra.mrb[0].mxu0 %v1319
      %v1853 = vpop.f32.mrb[0].mxu0
      %v1854 = vadd.f32 0.0, %v1853
      %v1855 = vpop.f32.mrb[0].mxu0
      %v1856 = vpop.f32.mrb[0].mxu0
      %v1857 = vadd.f32 0.0, %v1856
      %v1858 = vpop.f32.mrb[0].mxu0
      %1859 = vmatprep.mubr.bf16.mxu0 0
      %1860 = vmatmul.mubr.bf16.gmra.mrb[0].mxu0 %v1322
      %v1861 = vpop.f32.mrb[0].mxu0
      %v1862 = vadd.f32 0.0, %v1861
      %v1863 = vpop.f32.mrb[0].mxu0
      %v1864 = vpop.f32.mrb[0].mxu0
      %v1865 = vadd.f32 0.0, %v1864
      %v1866 = vpop.f32.mrb[0].mxu0
      %1867 = vmatprep.mubr.bf16.mxu0 0
      %1868 = vmatmul.mubr.bf16.gmra.mrb[0].mxu0 %v1325
      %v1869 = vpop.f32.mrb[0].mxu0
      %v1870 = vadd.f32 0.0, %v1869
      %v1871 = vpop.f32.mrb[0].mxu0
      %v1872 = vpop.f32.mrb[0].mxu0
      %v1873 = vadd.f32 0.0, %v1872
      %v1874 = vpop.f32.mrb[0].mxu0
      %1875 = vdwg.mxu0
      %v1877 = vsel %vm1134, %v489, 0
      %v1880 = vsel %vm1134, %v490, 0
      %v1883 = vsel %vm1134, %v491, 0
      %v1886 = vsel %vm1134, %v492, 0
      %v1889 = vsel %vm1134, %v493, 0
      %v1892 = vsel %vm1134, %v494, 0
      %v1895 = vsel %vm1134, %v495, 0
      %v1898 = vsel %vm1134, %v496, 0
      %v1901 = vsel %vm1134, %v497, 0
      %v1904 = vsel %vm1134, %v498, 0
      %v1907 = vsel %vm1134, %v499, 0
      %v1910 = vsel %vm1134, %v500, 0
      %v1913 = vsel %vm1134, %v501, 0
      %v1916 = vsel %vm1134, %v502, 0
      %v1919 = vsel %vm1134, %v503, 0
      %v1922 = vsel %vm1134, %v504, 0
      %v1925 = vsel %vm1134, %v505, 0
      %v1928 = vsel %vm1134, %v506, 0
      %v1931 = vsel %vm1134, %v507, 0
      %v1934 = vsel %vm1134, %v508, 0
      %v1937 = vsel %vm1134, %v509, 0
      %v1940 = vsel %vm1134, %v510, 0
      %v1943 = vsel %vm1134, %v511, 0
      %v1946 = vsel %vm1134, %v512, 0
      %v1949 = vsel %vm1134, %v513, 0
      %v1952 = vsel %vm1134, %v514, 0
      %v1955 = vsel %vm1134, %v515, 0
      %v1958 = vsel %vm1134, %v516, 0
      %v1961 = vsel %vm1134, %v517, 0
      %v1964 = vsel %vm1134, %v518, 0
      %v1967 = vsel %vm1134, %v519, 0
      %v1970 = vsel %vm1134, %v520, 0
      %v1973 = vsel %vm1134, %v521, 0
      %v1976 = vsel %vm1134, %v522, 0
      %v1979 = vsel %vm1134, %v523, 0
      %v1982 = vsel %vm1134, %v524, 0
      %v1985 = vsel %vm1134, %v525, 0
      %v1988 = vsel %vm1134, %v526, 0
      %v1991 = vsel %vm1134, %v527, 0
      %v1994 = vsel %vm1134, %v528, 0
      %v1997 = vsel %vm1134, %v529, 0
      %v2000 = vsel %vm1134, %v530, 0
      %v2003 = vsel %vm1134, %v531, 0
      %v2006 = vsel %vm1134, %v532, 0
      %v2009 = vsel %vm1134, %v533, 0
      %v2012 = vsel %vm1134, %v534, 0
      %v2015 = vsel %vm1134, %v535, 0
      %v2018 = vsel %vm1134, %v536, 0
      %v2021 = vsel %vm1134, %v537, 0
      %v2024 = vsel %vm1134, %v538, 0
      %v2027 = vsel %vm1134, %v539, 0
      %v2030 = vsel %vm1134, %v540, 0
      %v2033 = vsel %vm1134, %v541, 0
      %v2036 = vsel %vm1134, %v542, 0
      %v2039 = vsel %vm1134, %v543, 0
      %v2042 = vsel %vm1134, %v544, 0
      %v2045 = vsel %vm1134, %v545, 0
      %v2048 = vsel %vm1134, %v546, 0
      %v2051 = vsel %vm1134, %v547, 0
      %v2054 = vsel %vm1134, %v548, 0
      %v2057 = vsel %vm1134, %v549, 0
      %v2060 = vsel %vm1134, %v550, 0
      %v2063 = vsel %vm1134, %v551, 0
      %v2066 = vsel %vm1134, %v552, 0
      %v2069 = vsel %vm1327, %v553, 0
      %2071 = vmatprep.subr.bf16.mxu0 0
      %2072 = vmatpush1.bf16.msra.mxu0 %v2069
      %2073 = vmatprep.subr.bf16.mxu0 0
      %2074 = vmatpush1.bf16.msra.mxu0 0
      %2075 = vmatprep.subr.bf16.mxu0 0
      %2076 = vmatpush1.bf16.msra.mxu0 0
      %2077 = vmatprep.subr.bf16.mxu0 0
      %2078 = vmatpush1.bf16.msra.mxu0 0
      %2079 = vmatprep.subr.bf16.mxu0 0
      %2080 = vmatpush1.bf16.msra.mxu0 0
      %2081 = vmatprep.subr.bf16.mxu0 0
      %2082 = vmatpush1.bf16.msra.mxu0 0
      %2083 = vmatprep.subr.bf16.mxu0 0
      %2084 = vmatpush1.bf16.msra.mxu0 0
      %2085 = vmatprep.subr.bf16.mxu0 0
      %2086 = vmatpush1.bf16.msra.mxu0 0
      %2087 = vmatprep.subr.bf16.mxu0 0
      %2088 = vmatpush1.bf16.msra.mxu0 0
      %2089 = vmatprep.subr.bf16.mxu0 0
      %2090 = vmatpush1.bf16.msra.mxu0 0
      %2091 = vmatprep.subr.bf16.mxu0 0
      %2092 = vmatpush1.bf16.msra.mxu0 0
      %2093 = vmatprep.subr.bf16.mxu0 0
      %2094 = vmatpush1.bf16.msra.mxu0 0
      %2095 = vmatprep.subr.bf16.mxu0 0
      %2096 = vmatpush1.bf16.msra.mxu0 0
      %2097 = vmatprep.subr.bf16.mxu0 0
      %2098 = vmatpush1.bf16.msra.mxu0 0
      %2099 = vmatprep.subr.bf16.mxu0 0
      %2100 = vmatpush1.bf16.msra.mxu0 0
      %2101 = vmatprep.subr.bf16.mxu0 0
      %2102 = vmatpush1.bf16.msra.mxu0 0
      %2103 = vmatprep.mubr.bf16.mxu0 0
      %2104 = vmatmul.mubr.bf16.gmra.mrb[0].mxu0 %v1877
      %v2105 = vpop.f32.mrb[0].mxu0
      %v2106 = vadd.f32 %v1366, %v2105
      %v2107 = vpop.f32.mrb[0].mxu0
      %v2108 = vpop.f32.mrb[0].mxu0
      %v2109 = vadd.f32 %v1369, %v2108
      %v2110 = vpop.f32.mrb[0].mxu0
      %2111 = vmatprep.mubr.bf16.mxu0 0
      %2112 = vmatmul.mubr.bf16.gmra.mrb[0].mxu0 %v1880
      %v2113 = vpop.f32.mrb[0].mxu0
      %v2114 = vadd.f32 %v1374, %v2113
      %v2115 = vpop.f32.mrb[0].mxu0
      %v2116 = vpop.f32.mrb[0].mxu0
      %v2117 = vadd.f32 %v1377, %v2116
      %v2118 = vpop.f32.mrb[0].mxu0
      %2119 = vmatprep.mubr.bf16.mxu0 0
      %2120 = vmatmul.mubr.bf16.gmra.mrb[0].mxu0 %v1883
      %v2121 = vpop.f32.mrb[0].mxu0
      %v2122 = vadd.f32 %v1382, %v2121
      %v2123 = vpop.f32.mrb[0].mxu0
      %v2124 = vpop.f32.mrb[0].mxu0
      %v2125 = vadd.f32 %v1385, %v2124
      %v2126 = vpop.f32.mrb[0].mxu0
      %2127 = vmatprep.mubr.bf16.mxu0 0
      %2128 = vmatmul.mubr.bf16.gmra.mrb[0].mxu0 %v1886
      %v2129 = vpop.f32.mrb[0].mxu0
      %v2130 = vadd.f32 %v1390, %v2129
      %v2131 = vpop.f32.mrb[0].mxu0
      %v2132 = vpop.f32.mrb[0].mxu0
      %v2133 = vadd.f32 %v1393, %v2132
      %v2134 = vpop.f32.mrb[0].mxu0
      %2135 = vmatprep.mubr.bf16.mxu0 0
      %2136 = vmatmul.mubr.bf16.gmra.mrb[0].mxu0 %v1889
      %v2137 = vpop.f32.mrb[0].mxu0
      %v2138 = vadd.f32 %v1398, %v2137
      %v2139 = vpop.f32.mrb[0].mxu0
      %v2140 = vpop.f32.mrb[0].mxu0
      %v2141 = vadd.f32 %v1401, %v2140
      %v2142 = vpop.f32.mrb[0].mxu0
      %2143 = vmatprep.mubr.bf16.mxu0 0
      %2144 = vmatmul.mubr.bf16.gmra.mrb[0].mxu0 %v1892
      %v2145 = vpop.f32.mrb[0].mxu0
      %v2146 = vadd.f32 %v1406, %v2145
      %v2147 = vpop.f32.mrb[0].mxu0
      %v2148 = vpop.f32.mrb[0].mxu0
      %v2149 = vadd.f32 %v1409, %v2148
      %v2150 = vpop.f32.mrb[0].mxu0
      %2151 = vmatprep.mubr.bf16.mxu0 0
      %2152 = vmatmul.mubr.bf16.gmra.mrb[0].mxu0 %v1895
      %v2153 = vpop.f32.mrb[0].mxu0
      %v2154 = vadd.f32 %v1414, %v2153
      %v2155 = vpop.f32.mrb[0].mxu0
      %v2156 = vpop.f32.mrb[0].mxu0
      %v2157 = vadd.f32 %v1417, %v2156
      %v2158 = vpop.f32.mrb[0].mxu0
      %2159 = vmatprep.mubr.bf16.mxu0 0
      %2160 = vmatmul.mubr.bf16.gmra.mrb[0].mxu0 %v1898
      %v2161 = vpop.f32.mrb[0].mxu0
      %v2162 = vadd.f32 %v1422, %v2161
      %v2163 = vpop.f32.mrb[0].mxu0
      %v2164 = vpop.f32.mrb[0].mxu0
      %v2165 = vadd.f32 %v1425, %v2164
      %v2166 = vpop.f32.mrb[0].mxu0
      %2167 = vmatprep.mubr.bf16.mxu0 0
      %2168 = vmatmul.mubr.bf16.gmra.mrb[0].mxu0 %v1901
      %v2169 = vpop.f32.mrb[0].mxu0
      %v2170 = vadd.f32 %v1430, %v2169
      %v2171 = vpop.f32.mrb[0].mxu0
      %v2172 = vpop.f32.mrb[0].mxu0
      %v2173 = vadd.f32 %v1433, %v2172
      %v2174 = vpop.f32.mrb[0].mxu0
      %2175 = vmatprep.mubr.bf16.mxu0 0
      %2176 = vmatmul.mubr.bf16.gmra.mrb[0].mxu0 %v1904
      %v2177 = vpop.f32.mrb[0].mxu0
      %v2178 = vadd.f32 %v1438, %v2177
      %v2179 = vpop.f32.mrb[0].mxu0
      %v2180 = vpop.f32.mrb[0].mxu0
      %v2181 = vadd.f32 %v1441, %v2180
      %v2182 = vpop.f32.mrb[0].mxu0
      %2183 = vmatprep.mubr.bf16.mxu0 0
      %2184 = vmatmul.mubr.bf16.gmra.mrb[0].mxu0 %v1907
      %v2185 = vpop.f32.mrb[0].mxu0
      %v2186 = vadd.f32 %v1446, %v2185
      %v2187 = vpop.f32.mrb[0].mxu0
      %v2188 = vpop.f32.mrb[0].mxu0
      %v2189 = vadd.f32 %v1449, %v2188
      %v2190 = vpop.f32.mrb[0].mxu0
      %2191 = vmatprep.mubr.bf16.mxu0 0
      %2192 = vmatmul.mubr.bf16.gmra.mrb[0].mxu0 %v1910
      %v2193 = vpop.f32.mrb[0].mxu0
      %v2194 = vadd.f32 %v1454, %v2193
      %v2195 = vpop.f32.mrb[0].mxu0
      %v2196 = vpop.f32.mrb[0].mxu0
      %v2197 = vadd.f32 %v1457, %v2196
      %v2198 = vpop.f32.mrb[0].mxu0
      %2199 = vmatprep.mubr.bf16.mxu0 0
      %2200 = vmatmul.mubr.bf16.gmra.mrb[0].mxu0 %v1913
      %v2201 = vpop.f32.mrb[0].mxu0
      %v2202 = vadd.f32 %v1462, %v2201
      %v2203 = vpop.f32.mrb[0].mxu0
      %v2204 = vpop.f32.mrb[0].mxu0
      %v2205 = vadd.f32 %v1465, %v2204
      %v2206 = vpop.f32.mrb[0].mxu0
      %2207 = vmatprep.mubr.bf16.mxu0 0
      %2208 = vmatmul.mubr.bf16.gmra.mrb[0].mxu0 %v1916
      %v2209 = vpop.f32.mrb[0].mxu0
      %v2210 = vadd.f32 %v1470, %v2209
      %v2211 = vpop.f32.mrb[0].mxu0
      %v2212 = vpop.f32.mrb[0].mxu0
      %v2213 = vadd.f32 %v1473, %v2212
      %v2214 = vpop.f32.mrb[0].mxu0
      %2215 = vmatprep.mubr.bf16.mxu0 0
      %2216 = vmatmul.mubr.bf16.gmra.mrb[0].mxu0 %v1919
      %v2217 = vpop.f32.mrb[0].mxu0
      %v2218 = vadd.f32 %v1478, %v2217
      %v2219 = vpop.f32.mrb[0].mxu0
      %v2220 = vpop.f32.mrb[0].mxu0
      %v2221 = vadd.f32 %v1481, %v2220
      %v2222 = vpop.f32.mrb[0].mxu0
      %2223 = vmatprep.mubr.bf16.mxu0 0
      %2224 = vmatmul.mubr.bf16.gmra.mrb[0].mxu0 %v1922
      %v2225 = vpop.f32.mrb[0].mxu0
      %v2226 = vadd.f32 %v1486, %v2225
      %v2227 = vpop.f32.mrb[0].mxu0
      %v2228 = vpop.f32.mrb[0].mxu0
      %v2229 = vadd.f32 %v1489, %v2228
      %v2230 = vpop.f32.mrb[0].mxu0
      %2231 = vmatprep.mubr.bf16.mxu0 0
      %2232 = vmatmul.mubr.bf16.gmra.mrb[0].mxu0 %v1925
      %v2233 = vpop.f32.mrb[0].mxu0
      %v2234 = vadd.f32 %v1494, %v2233
      %v2235 = vpop.f32.mrb[0].mxu0
      %v2236 = vpop.f32.mrb[0].mxu0
      %v2237 = vadd.f32 %v1497, %v2236
      %v2238 = vpop.f32.mrb[0].mxu0
      %2239 = vmatprep.mubr.bf16.mxu0 0
      %2240 = vmatmul.mubr.bf16.gmra.mrb[0].mxu0 %v1928
      %v2241 = vpop.f32.mrb[0].mxu0
      %v2242 = vadd.f32 %v1502, %v2241
      %v2243 = vpop.f32.mrb[0].mxu0
      %v2244 = vpop.f32.mrb[0].mxu0
      %v2245 = vadd.f32 %v1505, %v2244
      %v2246 = vpop.f32.mrb[0].mxu0
      %2247 = vmatprep.mubr.bf16.mxu0 0
      %2248 = vmatmul.mubr.bf16.gmra.mrb[0].mxu0 %v1931
      %v2249 = vpop.f32.mrb[0].mxu0
      %v2250 = vadd.f32 %v1510, %v2249
      %v2251 = vpop.f32.mrb[0].mxu0
      %v2252 = vpop.f32.mrb[0].mxu0
      %v2253 = vadd.f32 %v1513, %v2252
      %v2254 = vpop.f32.mrb[0].mxu0
      %2255 = vmatprep.mubr.bf16.mxu0 0
      %2256 = vmatmul.mubr.bf16.gmra.mrb[0].mxu0 %v1934
      %v2257 = vpop.f32.mrb[0].mxu0
      %v2258 = vadd.f32 %v1518, %v2257
      %v2259 = vpop.f32.mrb[0].mxu0
      %v2260 = vpop.f32.mrb[0].mxu0
      %v2261 = vadd.f32 %v1521, %v2260
      %v2262 = vpop.f32.mrb[0].mxu0
      %2263 = vmatprep.mubr.bf16.mxu0 0
      %2264 = vmatmul.mubr.bf16.gmra.mrb[0].mxu0 %v1937
      %v2265 = vpop.f32.mrb[0].mxu0
      %v2266 = vadd.f32 %v1526, %v2265
      %v2267 = vpop.f32.mrb[0].mxu0
      %v2268 = vpop.f32.mrb[0].mxu0
      %v2269 = vadd.f32 %v1529, %v2268
      %v2270 = vpop.f32.mrb[0].mxu0
      %2271 = vmatprep.mubr.bf16.mxu0 0
      %2272 = vmatmul.mubr.bf16.gmra.mrb[0].mxu0 %v1940
      %v2273 = vpop.f32.mrb[0].mxu0
      %v2274 = vadd.f32 %v1534, %v2273
      %v2275 = vpop.f32.mrb[0].mxu0
      %v2276 = vpop.f32.mrb[0].mxu0
      %v2277 = vadd.f32 %v1537, %v2276
      %v2278 = vpop.f32.mrb[0].mxu0
      %2279 = vmatprep.mubr.bf16.mxu0 0
      %2280 = vmatmul.mubr.bf16.gmra.mrb[0].mxu0 %v1943
      %v2281 = vpop.f32.mrb[0].mxu0
      %v2282 = vadd.f32 %v1542, %v2281
      %v2283 = vpop.f32.mrb[0].mxu0
      %v2284 = vpop.f32.mrb[0].mxu0
      %v2285 = vadd.f32 %v1545, %v2284
      %v2286 = vpop.f32.mrb[0].mxu0
      %2287 = vmatprep.mubr.bf16.mxu0 0
      %2288 = vmatmul.mubr.bf16.gmra.mrb[0].mxu0 %v1946
      %v2289 = vpop.f32.mrb[0].mxu0
      %v2290 = vadd.f32 %v1550, %v2289
      %v2291 = vpop.f32.mrb[0].mxu0
      %v2292 = vpop.f32.mrb[0].mxu0
      %v2293 = vadd.f32 %v1553, %v2292
      %v2294 = vpop.f32.mrb[0].mxu0
      %2295 = vmatprep.mubr.bf16.mxu0 0
      %2296 = vmatmul.mubr.bf16.gmra.mrb[0].mxu0 %v1949
      %v2297 = vpop.f32.mrb[0].mxu0
      %v2298 = vadd.f32 %v1558, %v2297
      %v2299 = vpop.f32.mrb[0].mxu0
      %v2300 = vpop.f32.mrb[0].mxu0
      %v2301 = vadd.f32 %v1561, %v2300
      %v2302 = vpop.f32.mrb[0].mxu0
      %2303 = vmatprep.mubr.bf16.mxu0 0
      %2304 = vmatmul.mubr.bf16.gmra.mrb[0].mxu0 %v1952
      %v2305 = vpop.f32.mrb[0].mxu0
      %v2306 = vadd.f32 %v1566, %v2305
      %v2307 = vpop.f32.mrb[0].mxu0
      %v2308 = vpop.f32.mrb[0].mxu0
      %v2309 = vadd.f32 %v1569, %v2308
      %v2310 = vpop.f32.mrb[0].mxu0
      %2311 = vmatprep.mubr.bf16.mxu0 0
      %2312 = vmatmul.mubr.bf16.gmra.mrb[0].mxu0 %v1955
      %v2313 = vpop.f32.mrb[0].mxu0
      %v2314 = vadd.f32 %v1574, %v2313
      %v2315 = vpop.f32.mrb[0].mxu0
      %v2316 = vpop.f32.mrb[0].mxu0
      %v2317 = vadd.f32 %v1577, %v2316
      %v2318 = vpop.f32.mrb[0].mxu0
      %2319 = vmatprep.mubr.bf16.mxu0 0
      %2320 = vmatmul.mubr.bf16.gmra.mrb[0].mxu0 %v1958
      %v2321 = vpop.f32.mrb[0].mxu0
      %v2322 = vadd.f32 %v1582, %v2321
      %v2323 = vpop.f32.mrb[0].mxu0
      %v2324 = vpop.f32.mrb[0].mxu0
      %v2325 = vadd.f32 %v1585, %v2324
      %v2326 = vpop.f32.mrb[0].mxu0
      %2327 = vmatprep.mubr.bf16.mxu0 0
      %2328 = vmatmul.mubr.bf16.gmra.mrb[0].mxu0 %v1961
      %v2329 = vpop.f32.mrb[0].mxu0
      %v2330 = vadd.f32 %v1590, %v2329
      %v2331 = vpop.f32.mrb[0].mxu0
      %v2332 = vpop.f32.mrb[0].mxu0
      %v2333 = vadd.f32 %v1593, %v2332
      %v2334 = vpop.f32.mrb[0].mxu0
      %2335 = vmatprep.mubr.bf16.mxu0 0
      %2336 = vmatmul.mubr.bf16.gmra.mrb[0].mxu0 %v1964
      %v2337 = vpop.f32.mrb[0].mxu0
      %v2338 = vadd.f32 %v1598, %v2337
      %v2339 = vpop.f32.mrb[0].mxu0
      %v2340 = vpop.f32.mrb[0].mxu0
      %v2341 = vadd.f32 %v1601, %v2340
      %v2342 = vpop.f32.mrb[0].mxu0
      %2343 = vmatprep.mubr.bf16.mxu0 0
      %2344 = vmatmul.mubr.bf16.gmra.mrb[0].mxu0 %v1967
      %v2345 = vpop.f32.mrb[0].mxu0
      %v2346 = vadd.f32 %v1606, %v2345
      %v2347 = vpop.f32.mrb[0].mxu0
      %v2348 = vpop.f32.mrb[0].mxu0
      %v2349 = vadd.f32 %v1609, %v2348
      %v2350 = vpop.f32.mrb[0].mxu0
      %2351 = vmatprep.mubr.bf16.mxu0 0
      %2352 = vmatmul.mubr.bf16.gmra.mrb[0].mxu0 %v1970
      %v2353 = vpop.f32.mrb[0].mxu0
      %v2354 = vadd.f32 %v1614, %v2353
      %v2355 = vpop.f32.mrb[0].mxu0
      %v2356 = vpop.f32.mrb[0].mxu0
      %v2357 = vadd.f32 %v1617, %v2356
      %v2358 = vpop.f32.mrb[0].mxu0
      %2359 = vmatprep.mubr.bf16.mxu0 0
      %2360 = vmatmul.mubr.bf16.gmra.mrb[0].mxu0 %v1973
      %v2361 = vpop.f32.mrb[0].mxu0
      %v2362 = vadd.f32 %v1622, %v2361
      %v2363 = vpop.f32.mrb[0].mxu0
      %v2364 = vpop.f32.mrb[0].mxu0
      %v2365 = vadd.f32 %v1625, %v2364
      %v2366 = vpop.f32.mrb[0].mxu0
      %2367 = vmatprep.mubr.bf16.mxu0 0
      %2368 = vmatmul.mubr.bf16.gmra.mrb[0].mxu0 %v1976
      %v2369 = vpop.f32.mrb[0].mxu0
      %v2370 = vadd.f32 %v1630, %v2369
      %v2371 = vpop.f32.mrb[0].mxu0
      %v2372 = vpop.f32.mrb[0].mxu0
      %v2373 = vadd.f32 %v1633, %v2372
      %v2374 = vpop.f32.mrb[0].mxu0
      %2375 = vmatprep.mubr.bf16.mxu0 0
      %2376 = vmatmul.mubr.bf16.gmra.mrb[0].mxu0 %v1979
      %v2377 = vpop.f32.mrb[0].mxu0
      %v2378 = vadd.f32 %v1638, %v2377
      %v2379 = vpop.f32.mrb[0].mxu0
      %v2380 = vpop.f32.mrb[0].mxu0
      %v2381 = vadd.f32 %v1641, %v2380
      %v2382 = vpop.f32.mrb[0].mxu0
      %2383 = vmatprep.mubr.bf16.mxu0 0
      %2384 = vmatmul.mubr.bf16.gmra.mrb[0].mxu0 %v1982
      %v2385 = vpop.f32.mrb[0].mxu0
      %v2386 = vadd.f32 %v1646, %v2385
      %v2387 = vpop.f32.mrb[0].mxu0
      %v2388 = vpop.f32.mrb[0].mxu0
      %v2389 = vadd.f32 %v1649, %v2388
      %v2390 = vpop.f32.mrb[0].mxu0
      %2391 = vmatprep.mubr.bf16.mxu0 0
      %2392 = vmatmul.mubr.bf16.gmra.mrb[0].mxu0 %v1985
      %v2393 = vpop.f32.mrb[0].mxu0
      %v2394 = vadd.f32 %v1654, %v2393
      %v2395 = vpop.f32.mrb[0].mxu0
      %v2396 = vpop.f32.mrb[0].mxu0
      %v2397 = vadd.f32 %v1657, %v2396
      %v2398 = vpop.f32.mrb[0].mxu0
      %2399 = vmatprep.mubr.bf16.mxu0 0
      %2400 = vmatmul.mubr.bf16.gmra.mrb[0].mxu0 %v1988
      %v2401 = vpop.f32.mrb[0].mxu0
      %v2402 = vadd.f32 %v1662, %v2401
      %v2403 = vpop.f32.mrb[0].mxu0
      %v2404 = vpop.f32.mrb[0].mxu0
      %v2405 = vadd.f32 %v1665, %v2404
      %v2406 = vpop.f32.mrb[0].mxu0
      %2407 = vmatprep.mubr.bf16.mxu0 0
      %2408 = vmatmul.mubr.bf16.gmra.mrb[0].mxu0 %v1991
      %v2409 = vpop.f32.mrb[0].mxu0
      %v2410 = vadd.f32 %v1670, %v2409
      %v2411 = vpop.f32.mrb[0].mxu0
      %v2412 = vpop.f32.mrb[0].mxu0
      %v2413 = vadd.f32 %v1673, %v2412
      %v2414 = vpop.f32.mrb[0].mxu0
      %2415 = vmatprep.mubr.bf16.mxu0 0
      %2416 = vmatmul.mubr.bf16.gmra.mrb[0].mxu0 %v1994
      %v2417 = vpop.f32.mrb[0].mxu0
      %v2418 = vadd.f32 %v1678, %v2417
      %v2419 = vpop.f32.mrb[0].mxu0
      %v2420 = vpop.f32.mrb[0].mxu0
      %v2421 = vadd.f32 %v1681, %v2420
      %v2422 = vpop.f32.mrb[0].mxu0
      %2423 = vmatprep.mubr.bf16.mxu0 0
      %2424 = vmatmul.mubr.bf16.gmra.mrb[0].mxu0 %v1997
      %v2425 = vpop.f32.mrb[0].mxu0
      %v2426 = vadd.f32 %v1686, %v2425
      %v2427 = vpop.f32.mrb[0].mxu0
      %v2428 = vpop.f32.mrb[0].mxu0
      %v2429 = vadd.f32 %v1689, %v2428
      %v2430 = vpop.f32.mrb[0].mxu0
      %2431 = vmatprep.mubr.bf16.mxu0 0
      %2432 = vmatmul.mubr.bf16.gmra.mrb[0].mxu0 %v2000
      %v2433 = vpop.f32.mrb[0].mxu0
      %v2434 = vadd.f32 %v1694, %v2433
      %v2435 = vpop.f32.mrb[0].mxu0
      %v2436 = vpop.f32.mrb[0].mxu0
      %v2437 = vadd.f32 %v1697, %v2436
      %v2438 = vpop.f32.mrb[0].mxu0
      %2439 = vmatprep.mubr.bf16.mxu0 0
      %2440 = vmatmul.mubr.bf16.gmra.mrb[0].mxu0 %v2003
      %v2441 = vpop.f32.mrb[0].mxu0
      %v2442 = vadd.f32 %v1702, %v2441
      %v2443 = vpop.f32.mrb[0].mxu0
      %v2444 = vpop.f32.mrb[0].mxu0
      %v2445 = vadd.f32 %v1705, %v2444
      %v2446 = vpop.f32.mrb[0].mxu0
      %2447 = vmatprep.mubr.bf16.mxu0 0
      %2448 = vmatmul.mubr.bf16.gmra.mrb[0].mxu0 %v2006
      %v2449 = vpop.f32.mrb[0].mxu0
      %v2450 = vadd.f32 %v1710, %v2449
      %v2451 = vpop.f32.mrb[0].mxu0
      %v2452 = vpop.f32.mrb[0].mxu0
      %v2453 = vadd.f32 %v1713, %v2452
      %v2454 = vpop.f32.mrb[0].mxu0
      %2455 = vmatprep.mubr.bf16.mxu0 0
      %2456 = vmatmul.mubr.bf16.gmra.mrb[0].mxu0 %v2009
      %v2457 = vpop.f32.mrb[0].mxu0
      %v2458 = vadd.f32 %v1718, %v2457
      %v2459 = vpop.f32.mrb[0].mxu0
      %v2460 = vpop.f32.mrb[0].mxu0
      %v2461 = vadd.f32 %v1721, %v2460
      %v2462 = vpop.f32.mrb[0].mxu0
      %2463 = vmatprep.mubr.bf16.mxu0 0
      %2464 = vmatmul.mubr.bf16.gmra.mrb[0].mxu0 %v2012
      %v2465 = vpop.f32.mrb[0].mxu0
      %v2466 = vadd.f32 %v1726, %v2465
      %v2467 = vpop.f32.mrb[0].mxu0
      %v2468 = vpop.f32.mrb[0].mxu0
      %v2469 = vadd.f32 %v1729, %v2468
      %v2470 = vpop.f32.mrb[0].mxu0
      %2471 = vmatprep.mubr.bf16.mxu0 0
      %2472 = vmatmul.mubr.bf16.gmra.mrb[0].mxu0 %v2015
      %v2473 = vpop.f32.mrb[0].mxu0
      %v2474 = vadd.f32 %v1734, %v2473
      %v2475 = vpop.f32.mrb[0].mxu0
      %v2476 = vpop.f32.mrb[0].mxu0
      %v2477 = vadd.f32 %v1737, %v2476
      %v2478 = vpop.f32.mrb[0].mxu0
      %2479 = vmatprep.mubr.bf16.mxu0 0
      %2480 = vmatmul.mubr.bf16.gmra.mrb[0].mxu0 %v2018
      %v2481 = vpop.f32.mrb[0].mxu0
      %v2482 = vadd.f32 %v1742, %v2481
      %v2483 = vpop.f32.mrb[0].mxu0
      %v2484 = vpop.f32.mrb[0].mxu0
      %v2485 = vadd.f32 %v1745, %v2484
      %v2486 = vpop.f32.mrb[0].mxu0
      %2487 = vmatprep.mubr.bf16.mxu0 0
      %2488 = vmatmul.mubr.bf16.gmra.mrb[0].mxu0 %v2021
      %v2489 = vpop.f32.mrb[0].mxu0
      %v2490 = vadd.f32 %v1750, %v2489
      %v2491 = vpop.f32.mrb[0].mxu0
      %v2492 = vpop.f32.mrb[0].mxu0
      %v2493 = vadd.f32 %v1753, %v2492
      %v2494 = vpop.f32.mrb[0].mxu0
      %2495 = vmatprep.mubr.bf16.mxu0 0
      %2496 = vmatmul.mubr.bf16.gmra.mrb[0].mxu0 %v2024
      %v2497 = vpop.f32.mrb[0].mxu0
      %v2498 = vadd.f32 %v1758, %v2497
      %v2499 = vpop.f32.mrb[0].mxu0
      %v2500 = vpop.f32.mrb[0].mxu0
      %v2501 = vadd.f32 %v1761, %v2500
      %v2502 = vpop.f32.mrb[0].mxu0
      %2503 = vmatprep.mubr.bf16.mxu0 0
      %2504 = vmatmul.mubr.bf16.gmra.mrb[0].mxu0 %v2027
      %v2505 = vpop.f32.mrb[0].mxu0
      %v2506 = vadd.f32 %v1766, %v2505
      %v2507 = vpop.f32.mrb[0].mxu0
      %v2508 = vpop.f32.mrb[0].mxu0
      %v2509 = vadd.f32 %v1769, %v2508
      %v2510 = vpop.f32.mrb[0].mxu0
      %2511 = vmatprep.mubr.bf16.mxu0 0
      %2512 = vmatmul.mubr.bf16.gmra.mrb[0].mxu0 %v2030
      %v2513 = vpop.f32.mrb[0].mxu0
      %v2514 = vadd.f32 %v1774, %v2513
      %v2515 = vpop.f32.mrb[0].mxu0
      %v2516 = vpop.f32.mrb[0].mxu0
      %v2517 = vadd.f32 %v1777, %v2516
      %v2518 = vpop.f32.mrb[0].mxu0
      %2519 = vmatprep.mubr.bf16.mxu0 0
      %2520 = vmatmul.mubr.bf16.gmra.mrb[0].mxu0 %v2033
      %v2521 = vpop.f32.mrb[0].mxu0
      %v2522 = vadd.f32 %v1782, %v2521
      %v2523 = vpop.f32.mrb[0].mxu0
      %v2524 = vpop.f32.mrb[0].mxu0
      %v2525 = vadd.f32 %v1785, %v2524
      %v2526 = vpop.f32.mrb[0].mxu0
      %2527 = vmatprep.mubr.bf16.mxu0 0
      %2528 = vmatmul.mubr.bf16.gmra.mrb[0].mxu0 %v2036
      %v2529 = vpop.f32.mrb[0].mxu0
      %v2530 = vadd.f32 %v1790, %v2529
      %v2531 = vpop.f32.mrb[0].mxu0
      %v2532 = vpop.f32.mrb[0].mxu0
      %v2533 = vadd.f32 %v1793, %v2532
      %v2534 = vpop.f32.mrb[0].mxu0
      %2535 = vmatprep.mubr.bf16.mxu0 0
      %2536 = vmatmul.mubr.bf16.gmra.mrb[0].mxu0 %v2039
      %v2537 = vpop.f32.mrb[0].mxu0
      %v2538 = vadd.f32 %v1798, %v2537
      %v2539 = vpop.f32.mrb[0].mxu0
      %v2540 = vpop.f32.mrb[0].mxu0
      %v2541 = vadd.f32 %v1801, %v2540
      %v2542 = vpop.f32.mrb[0].mxu0
      %2543 = vmatprep.mubr.bf16.mxu0 0
      %2544 = vmatmul.mubr.bf16.gmra.mrb[0].mxu0 %v2042
      %v2545 = vpop.f32.mrb[0].mxu0
      %v2546 = vadd.f32 %v1806, %v2545
      %v2547 = vpop.f32.mrb[0].mxu0
      %v2548 = vpop.f32.mrb[0].mxu0
      %v2549 = vadd.f32 %v1809, %v2548
      %v2550 = vpop.f32.mrb[0].mxu0
      %2551 = vmatprep.mubr.bf16.mxu0 0
      %2552 = vmatmul.mubr.bf16.gmra.mrb[0].mxu0 %v2045
      %v2553 = vpop.f32.mrb[0].mxu0
      %v2554 = vadd.f32 %v1814, %v2553
      %v2555 = vpop.f32.mrb[0].mxu0
      %v2556 = vpop.f32.mrb[0].mxu0
      %v2557 = vadd.f32 %v1817, %v2556
      %v2558 = vpop.f32.mrb[0].mxu0
      %2559 = vmatprep.mubr.bf16.mxu0 0
      %2560 = vmatmul.mubr.bf16.gmra.mrb[0].mxu0 %v2048
      %v2561 = vpop.f32.mrb[0].mxu0
      %v2562 = vadd.f32 %v1822, %v2561
      %v2563 = vpop.f32.mrb[0].mxu0
      %v2564 = vpop.f32.mrb[0].mxu0
      %v2565 = vadd.f32 %v1825, %v2564
      %v2566 = vpop.f32.mrb[0].mxu0
      %2567 = vmatprep.mubr.bf16.mxu0 0
      %2568 = vmatmul.mubr.bf16.gmra.mrb[0].mxu0 %v2051
      %v2569 = vpop.f32.mrb[0].mxu0
      %v2570 = vadd.f32 %v1830, %v2569
      %v2571 = vpop.f32.mrb[0].mxu0
      %v2572 = vpop.f32.mrb[0].mxu0
      %v2573 = vadd.f32 %v1833, %v2572
      %v2574 = vpop.f32.mrb[0].mxu0
      %2575 = vmatprep.mubr.bf16.mxu0 0
      %2576 = vmatmul.mubr.bf16.gmra.mrb[0].mxu0 %v2054
      %v2577 = vpop.f32.mrb[0].mxu0
      %v2578 = vadd.f32 %v1838, %v2577
      %v2579 = vpop.f32.mrb[0].mxu0
      %v2580 = vpop.f32.mrb[0].mxu0
      %v2581 = vadd.f32 %v1841, %v2580
      %v2582 = vpop.f32.mrb[0].mxu0
      %2583 = vmatprep.mubr.bf16.mxu0 0
      %2584 = vmatmul.mubr.bf16.gmra.mrb[0].mxu0 %v2057
      %v2585 = vpop.f32.mrb[0].mxu0
      %v2586 = vadd.f32 %v1846, %v2585
      %v2587 = vpop.f32.mrb[0].mxu0
      %v2588 = vpop.f32.mrb[0].mxu0
      %v2589 = vadd.f32 %v1849, %v2588
      %v2590 = vpop.f32.mrb[0].mxu0
      %2591 = vmatprep.mubr.bf16.mxu0 0
      %2592 = vmatmul.mubr.bf16.gmra.mrb[0].mxu0 %v2060
      %v2593 = vpop.f32.mrb[0].mxu0
      %v2594 = vadd.f32 %v1854, %v2593
      %v2595 = vpop.f32.mrb[0].mxu0
      %v2596 = vpop.f32.mrb[0].mxu0
      %v2597 = vadd.f32 %v1857, %v2596
      %v2598 = vpop.f32.mrb[0].mxu0
      %2599 = vmatprep.mubr.bf16.mxu0 0
      %2600 = vmatmul.mubr.bf16.gmra.mrb[0].mxu0 %v2063
      %v2601 = vpop.f32.mrb[0].mxu0
      %v2602 = vadd.f32 %v1862, %v2601
      %v2603 = vpop.f32.mrb[0].mxu0
      %v2604 = vpop.f32.mrb[0].mxu0
      %v2605 = vadd.f32 %v1865, %v2604
      %v2606 = vpop.f32.mrb[0].mxu0
      %2607 = vmatprep.mubr.bf16.mxu0 0
      %2608 = vmatmul.mubr.bf16.gmra.mrb[0].mxu0 %v2066
      %v2609 = vpop.f32.mrb[0].mxu0
      %v2610 = vadd.f32 %v1870, %v2609
      %v2611 = vpop.f32.mrb[0].mxu0
      %v2612 = vpop.f32.mrb[0].mxu0
      %v2613 = vadd.f32 %v1873, %v2612
      %v2614 = vpop.f32.mrb[0].mxu0
      %2615 = vdwg.mxu0
      %vm2616 = vcmask 1045504
      %v2617 = vrot.slane %v361, 2
      %v2618 = vrot.slane %v362, 2
      %v2619 = vsel %vm2616, %v2617, %v2618
      %v2620 = vrot.slane %v363, 2
      %v2621 = vsel %vm2616, %v2618, %v2620
      %v2622 = vrot.slane %v364, 2
      %v2623 = vsel %vm2616, %v2620, %v2622
      %v2624 = vrot.slane %v365, 2
      %v2625 = vsel %vm2616, %v2622, %v2624
      %v2626 = vrot.slane %v366, 2
      %v2627 = vsel %vm2616, %v2624, %v2626
      %v2628 = vrot.slane %v367, 2
      %v2629 = vsel %vm2616, %v2626, %v2628
      %v2630 = vrot.slane %v368, 2
      %v2631 = vsel %vm2616, %v2628, %v2630
      %v2632 = vrot.slane %v369, 2
      %v2633 = vsel %vm2616, %v2630, %v2632
      %v2634 = vrot.slane %v370, 2
      %v2635 = vsel %vm2616, %v2632, %v2634
      %v2636 = vrot.slane %v371, 2
      %v2637 = vsel %vm2616, %v2634, %v2636
      %v2638 = vrot.slane %v372, 2
      %v2639 = vsel %vm2616, %v2636, %v2638
      %v2640 = vrot.slane %v373, 2
      %v2641 = vsel %vm2616, %v2638, %v2640
      %v2642 = vrot.slane %v374, 2
      %v2643 = vsel %vm2616, %v2640, %v2642
      %v2644 = vrot.slane %v375, 2
      %v2645 = vsel %vm2616, %v2642, %v2644
      %v2646 = vrot.slane %v376, 2
      %v2647 = vsel %vm2616, %v2644, %v2646
      %v2648 = vrot.slane %v377, 2
      %v2649 = vsel %vm2616, %v2646, %v2648
      %v2650 = vrot.slane %v378, 2
      %v2651 = vsel %vm2616, %v2648, %v2650
      %v2652 = vrot.slane %v379, 2
      %v2653 = vsel %vm2616, %v2650, %v2652
      %v2654 = vrot.slane %v380, 2
      %v2655 = vsel %vm2616, %v2652, %v2654
      %v2656 = vrot.slane %v381, 2
      %v2657 = vsel %vm2616, %v2654, %v2656
      %v2658 = vrot.slane %v382, 2
      %v2659 = vsel %vm2616, %v2656, %v2658
      %v2660 = vrot.slane %v383, 2
      %v2661 = vsel %vm2616, %v2658, %v2660
      %v2662 = vrot.slane %v384, 2
      %v2663 = vsel %vm2616, %v2660, %v2662
      %v2664 = vrot.slane %v385, 2
      %v2665 = vsel %vm2616, %v2662, %v2664
      %v2666 = vrot.slane %v386, 2
      %v2667 = vsel %vm2616, %v2664, %v2666
      %v2668 = vrot.slane %v387, 2
      %v2669 = vsel %vm2616, %v2666, %v2668
      %v2670 = vrot.slane %v388, 2
      %v2671 = vsel %vm2616, %v2668, %v2670
      %v2672 = vrot.slane %v389, 2
      %v2673 = vsel %vm2616, %v2670, %v2672
      %v2674 = vrot.slane %v390, 2
      %v2675 = vsel %vm2616, %v2672, %v2674
      %v2676 = vrot.slane %v391, 2
      %v2677 = vsel %vm2616, %v2674, %v2676
      %v2678 = vrot.slane %v392, 2
      %v2679 = vsel %vm2616, %v2676, %v2678
      %v2680 = vrot.slane %v393, 2
      %v2681 = vsel %vm2616, %v2678, %v2680
      %v2682 = vrot.slane %v394, 2
      %v2683 = vsel %vm2616, %v2680, %v2682
      %v2684 = vrot.slane %v395, 2
      %v2685 = vsel %vm2616, %v2682, %v2684
      %v2686 = vrot.slane %v396, 2
      %v2687 = vsel %vm2616, %v2684, %v2686
      %v2688 = vrot.slane %v397, 2
      %v2689 = vsel %vm2616, %v2686, %v2688
      %v2690 = vrot.slane %v398, 2
      %v2691 = vsel %vm2616, %v2688, %v2690
      %v2692 = vrot.slane %v399, 2
      %v2693 = vsel %vm2616, %v2690, %v2692
      %v2694 = vrot.slane %v400, 2
      %v2695 = vsel %vm2616, %v2692, %v2694
      %v2696 = vrot.slane %v401, 2
      %v2697 = vsel %vm2616, %v2694, %v2696
      %v2698 = vrot.slane %v402, 2
      %v2699 = vsel %vm2616, %v2696, %v2698
      %v2700 = vrot.slane %v403, 2
      %v2701 = vsel %vm2616, %v2698, %v2700
      %v2702 = vrot.slane %v404, 2
      %v2703 = vsel %vm2616, %v2700, %v2702
      %v2704 = vrot.slane %v405, 2
      %v2705 = vsel %vm2616, %v2702, %v2704
      %v2706 = vrot.slane %v406, 2
      %v2707 = vsel %vm2616, %v2704, %v2706
      %v2708 = vrot.slane %v407, 2
      %v2709 = vsel %vm2616, %v2706, %v2708
      %v2710 = vrot.slane %v408, 2
      %v2711 = vsel %vm2616, %v2708, %v2710
      %v2712 = vrot.slane %v409, 2
      %v2713 = vsel %vm2616, %v2710, %v2712
      %v2714 = vrot.slane %v410, 2
      %v2715 = vsel %vm2616, %v2712, %v2714
      %v2716 = vrot.slane %v411, 2
      %v2717 = vsel %vm2616, %v2714, %v2716
      %v2718 = vrot.slane %v412, 2
      %v2719 = vsel %vm2616, %v2716, %v2718
      %v2720 = vrot.slane %v413, 2
      %v2721 = vsel %vm2616, %v2718, %v2720
      %v2722 = vrot.slane %v414, 2
      %v2723 = vsel %vm2616, %v2720, %v2722
      %v2724 = vrot.slane %v415, 2
      %v2725 = vsel %vm2616, %v2722, %v2724
      %v2726 = vrot.slane %v416, 2
      %v2727 = vsel %vm2616, %v2724, %v2726
      %v2728 = vrot.slane %v417, 2
      %v2729 = vsel %vm2616, %v2726, %v2728
      %v2730 = vrot.slane %v418, 2
      %v2731 = vsel %vm2616, %v2728, %v2730
      %v2732 = vrot.slane %v419, 2
      %v2733 = vsel %vm2616, %v2730, %v2732
      %v2734 = vrot.slane %v420, 2
      %v2735 = vsel %vm2616, %v2732, %v2734
      %v2736 = vrot.slane %v421, 2
      %v2737 = vsel %vm2616, %v2734, %v2736
      %v2738 = vrot.slane %v422, 2
      %v2739 = vsel %vm2616, %v2736, %v2738
      %v2740 = vrot.slane %v423, 2
      %v2741 = vsel %vm2616, %v2738, %v2740
      %v2742 = vrot.slane %v424, 2
      %v2743 = vsel %vm2616, %v2740, %v2742
      %v2744 = vrot.slane %v425, 2
      %v2745 = vsel %vm2616, %v2742, %v2744
      %v2746 = vrot.slane %v426, 2
      %v2747 = vsel %vm2616, %v2744, %v2746
      %v2748 = vrot.slane %v427, 2
      %v2749 = vsel %vm2616, %v2746, %v2748
      %v2750 = vrot.slane %v428, 2
      %v2751 = vsel %vm2616, %v2748, %v2750
      %v2752 = vrot.slane %v429, 2
      %v2753 = vsel %vm2616, %v2750, %v2752
      %v2754 = vrot.slane %v430, 2
      %v2755 = vsel %vm2616, %v2752, %v2754
      %v2756 = vrot.slane %v431, 2
      %v2757 = vsel %vm2616, %v2754, %v2756
      %v2758 = vrot.slane %v432, 2
      %v2759 = vsel %vm2616, %v2756, %v2758
      %v2760 = vrot.slane %v433, 2
      %v2761 = vsel %vm2616, %v2758, %v2760
      %v2762 = vrot.slane %v434, 2
      %v2763 = vsel %vm2616, %v2760, %v2762
      %v2764 = vrot.slane %v435, 2
      %v2765 = vsel %vm2616, %v2762, %v2764
      %v2766 = vrot.slane %v436, 2
      %v2767 = vsel %vm2616, %v2764, %v2766
      %v2768 = vrot.slane %v437, 2
      %v2769 = vsel %vm2616, %v2766, %v2768
      %v2770 = vrot.slane %v438, 2
      %v2771 = vsel %vm2616, %v2768, %v2770
      %v2772 = vrot.slane %v439, 2
      %v2773 = vsel %vm2616, %v2770, %v2772
      %v2774 = vrot.slane %v440, 2
      %v2775 = vsel %vm2616, %v2772, %v2774
      %v2776 = vrot.slane %v441, 2
      %v2777 = vsel %vm2616, %v2774, %v2776
      %v2778 = vrot.slane %v442, 2
      %v2779 = vsel %vm2616, %v2776, %v2778
      %v2780 = vrot.slane %v443, 2
      %v2781 = vsel %vm2616, %v2778, %v2780
      %v2782 = vrot.slane %v444, 2
      %v2783 = vsel %vm2616, %v2780, %v2782
      %v2784 = vrot.slane %v445, 2
      %v2785 = vsel %vm2616, %v2782, %v2784
      %v2786 = vrot.slane %v446, 2
      %v2787 = vsel %vm2616, %v2784, %v2786
      %v2788 = vrot.slane %v447, 2
      %v2789 = vsel %vm2616, %v2786, %v2788
      %v2790 = vrot.slane %v448, 2
      %v2791 = vsel %vm2616, %v2788, %v2790
      %v2792 = vrot.slane %v449, 2
      %v2793 = vsel %vm2616, %v2790, %v2792
      %v2794 = vrot.slane %v450, 2
      %v2795 = vsel %vm2616, %v2792, %v2794
      %v2796 = vrot.slane %v451, 2
      %v2797 = vsel %vm2616, %v2794, %v2796
      %v2798 = vrot.slane %v452, 2
      %v2799 = vsel %vm2616, %v2796, %v2798
      %v2800 = vrot.slane %v453, 2
      %v2801 = vsel %vm2616, %v2798, %v2800
      %v2802 = vrot.slane %v454, 2
      %v2803 = vsel %vm2616, %v2800, %v2802
      %v2804 = vrot.slane %v455, 2
      %v2805 = vsel %vm2616, %v2802, %v2804
      %v2806 = vrot.slane %v456, 2
      %v2807 = vsel %vm2616, %v2804, %v2806
      %v2808 = vrot.slane %v457, 2
      %v2809 = vsel %vm2616, %v2806, %v2808
      %v2810 = vrot.slane %v458, 2
      %v2811 = vsel %vm2616, %v2808, %v2810
      %v2812 = vrot.slane %v459, 2
      %v2813 = vsel %vm2616, %v2810, %v2812
      %v2814 = vrot.slane %v460, 2
      %v2815 = vsel %vm2616, %v2812, %v2814
      %v2816 = vrot.slane %v461, 2
      %v2817 = vsel %vm2616, %v2814, %v2816
      %v2818 = vrot.slane %v462, 2
      %v2819 = vsel %vm2616, %v2816, %v2818
      %v2820 = vrot.slane %v463, 2
      %v2821 = vsel %vm2616, %v2818, %v2820
      %v2822 = vrot.slane %v464, 2
      %v2823 = vsel %vm2616, %v2820, %v2822
      %v2824 = vrot.slane %v465, 2
      %v2825 = vsel %vm2616, %v2822, %v2824
      %v2826 = vrot.slane %v466, 2
      %v2827 = vsel %vm2616, %v2824, %v2826
      %v2828 = vrot.slane %v467, 2
      %v2829 = vsel %vm2616, %v2826, %v2828
      %v2830 = vrot.slane %v468, 2
      %v2831 = vsel %vm2616, %v2828, %v2830
      %v2832 = vrot.slane %v469, 2
      %v2833 = vsel %vm2616, %v2830, %v2832
      %v2834 = vrot.slane %v470, 2
      %v2835 = vsel %vm2616, %v2832, %v2834
      %v2836 = vrot.slane %v471, 2
      %v2837 = vsel %vm2616, %v2834, %v2836
      %v2838 = vrot.slane %v472, 2
      %v2839 = vsel %vm2616, %v2836, %v2838
      %v2840 = vrot.slane %v473, 2
      %v2841 = vsel %vm2616, %v2838, %v2840
      %v2842 = vrot.slane %v474, 2
      %v2843 = vsel %vm2616, %v2840, %v2842
      %v2844 = vrot.slane %v475, 2
      %v2845 = vsel %vm2616, %v2842, %v2844
      %v2846 = vrot.slane %v476, 2
      %v2847 = vsel %vm2616, %v2844, %v2846
      %v2848 = vrot.slane %v477, 2
      %v2849 = vsel %vm2616, %v2846, %v2848
      %v2850 = vrot.slane %v478, 2
      %v2851 = vsel %vm2616, %v2848, %v2850
      %v2852 = vrot.slane %v479, 2
      %v2853 = vsel %vm2616, %v2850, %v2852
      %v2854 = vrot.slane %v480, 2
      %v2855 = vsel %vm2616, %v2852, %v2854
      %v2856 = vrot.slane %v481, 2
      %v2857 = vsel %vm2616, %v2854, %v2856
      %v2858 = vrot.slane %v482, 2
      %v2859 = vsel %vm2616, %v2856, %v2858
      %v2860 = vrot.slane %v483, 2
      %v2861 = vsel %vm2616, %v2858, %v2860
      %v2862 = vrot.slane %v484, 2
      %v2863 = vsel %vm2616, %v2860, %v2862
      %v2864 = vrot.slane %v485, 2
      %v2865 = vsel %vm2616, %v2862, %v2864
      %v2866 = vrot.slane %v486, 2
      %v2867 = vsel %vm2616, %v2864, %v2866
      %v2868 = vrot.slane %v487, 2
      %v2869 = vsel %vm2616, %v2866, %v2868
      %v2870 = vrot.slane %v488, 2
      %v2871 = vsel %vm2616, %v2868, %v2870
      %v3001 = vsel %vm2616, %v2870, %v2617
      %v3002 = vpack.c.bf16 %v2621, %v2619
      %v3003 = vpack.c.bf16 %v2625, %v2623
      %v3004 = vpack.c.bf16 %v2629, %v2627
      %v3005 = vpack.c.bf16 %v2633, %v2631
      %v3006 = vpack.c.bf16 %v2637, %v2635
      %v3007 = vpack.c.bf16 %v2641, %v2639
      %v3008 = vpack.c.bf16 %v2645, %v2643
      %v3009 = vpack.c.bf16 %v2649, %v2647
      %v3010 = vpack.c.bf16 %v2653, %v2651
      %v3011 = vpack.c.bf16 %v2657, %v2655
      %v3012 = vpack.c.bf16 %v2661, %v2659
      %v3013 = vpack.c.bf16 %v2665, %v2663
      %v3014 = vpack.c.bf16 %v2669, %v2667
      %v3015 = vpack.c.bf16 %v2673, %v2671
      %v3016 = vpack.c.bf16 %v2677, %v2675
      %v3017 = vpack.c.bf16 %v2681, %v2679
      %v3018 = vpack.c.bf16 %v2685, %v2683
      %v3019 = vpack.c.bf16 %v2689, %v2687
      %v3020 = vpack.c.bf16 %v2693, %v2691
      %v3021 = vpack.c.bf16 %v2697, %v2695
      %v3022 = vpack.c.bf16 %v2701, %v2699
      %v3023 = vpack.c.bf16 %v2705, %v2703
      %v3024 = vpack.c.bf16 %v2709, %v2707
      %v3025 = vpack.c.bf16 %v2713, %v2711
      %v3026 = vpack.c.bf16 %v2717, %v2715
      %v3027 = vpack.c.bf16 %v2721, %v2719
      %v3028 = vpack.c.bf16 %v2725, %v2723
      %v3029 = vpack.c.bf16 %v2729, %v2727
      %v3030 = vpack.c.bf16 %v2733, %v2731
      %v3031 = vpack.c.bf16 %v2737, %v2735
      %v3032 = vpack.c.bf16 %v2741, %v2739
      %v3033 = vpack.c.bf16 %v2745, %v2743
      %v3034 = vpack.c.bf16 %v2749, %v2747
      %v3035 = vpack.c.bf16 %v2753, %v2751
      %v3036 = vpack.c.bf16 %v2757, %v2755
      %v3037 = vpack.c.bf16 %v2761, %v2759
      %v3038 = vpack.c.bf16 %v2765, %v2763
      %v3039 = vpack.c.bf16 %v2769, %v2767
      %v3040 = vpack.c.bf16 %v2773, %v2771
      %v3041 = vpack.c.bf16 %v2777, %v2775
      %v3042 = vpack.c.bf16 %v2781, %v2779
      %v3043 = vpack.c.bf16 %v2785, %v2783
      %v3044 = vpack.c.bf16 %v2789, %v2787
      %v3045 = vpack.c.bf16 %v2793, %v2791
      %v3046 = vpack.c.bf16 %v2797, %v2795
      %v3047 = vpack.c.bf16 %v2801, %v2799
      %v3048 = vpack.c.bf16 %v2805, %v2803
      %v3049 = vpack.c.bf16 %v2809, %v2807
      %v3050 = vpack.c.bf16 %v2813, %v2811
      %v3051 = vpack.c.bf16 %v2817, %v2815
      %v3052 = vpack.c.bf16 %v2821, %v2819
      %v3053 = vpack.c.bf16 %v2825, %v2823
      %v3054 = vpack.c.bf16 %v2829, %v2827
      %v3055 = vpack.c.bf16 %v2833, %v2831
      %v3056 = vpack.c.bf16 %v2837, %v2835
      %v3057 = vpack.c.bf16 %v2841, %v2839
      %v3058 = vpack.c.bf16 %v2845, %v2843
      %v3059 = vpack.c.bf16 %v2849, %v2847
      %v3060 = vpack.c.bf16 %v2853, %v2851
      %v3061 = vpack.c.bf16 %v2857, %v2855
      %v3062 = vpack.c.bf16 %v2861, %v2859
      %v3063 = vpack.c.bf16 %v2865, %v2863
      %v3064 = vpack.c.bf16 %v2869, %v2867
      %v3065 = vpack.c.bf16 %v3001, %v2871
      %s3066 = scalar_lea.vmem %s1, 8
      %v3067 = vld [vmem:[%s3066] sm:$0xf]
      %v3069 = vsel %vm1134, %v3002, 0
      %v3072 = vsel %vm1134, %v3003, 0
      %v3075 = vsel %vm1134, %v3004, 0
      %v3078 = vsel %vm1134, %v3005, 0
      %v3081 = vsel %vm1134, %v3006, 0
      %v3084 = vsel %vm1134, %v3007, 0
      %v3087 = vsel %vm1134, %v3008, 0
      %v3090 = vsel %vm1134, %v3009, 0
      %v3093 = vsel %vm1134, %v3010, 0
      %v3096 = vsel %vm1134, %v3011, 0
      %v3099 = vsel %vm1134, %v3012, 0
      %v3102 = vsel %vm1134, %v3013, 0
      %v3105 = vsel %vm1134, %v3014, 0
      %v3108 = vsel %vm1134, %v3015, 0
      %v3111 = vsel %vm1134, %v3016, 0
      %v3114 = vsel %vm1134, %v3017, 0
      %v3117 = vsel %vm1134, %v3018, 0
      %v3120 = vsel %vm1134, %v3019, 0
      %v3123 = vsel %vm1134, %v3020, 0
      %v3126 = vsel %vm1134, %v3021, 0
      %v3129 = vsel %vm1134, %v3022, 0
      %v3132 = vsel %vm1134, %v3023, 0
      %v3135 = vsel %vm1134, %v3024, 0
      %v3138 = vsel %vm1134, %v3025, 0
      %v3141 = vsel %vm1134, %v3026, 0
      %v3144 = vsel %vm1134, %v3027, 0
      %v3147 = vsel %vm1134, %v3028, 0
      %v3150 = vsel %vm1134, %v3029, 0
      %v3153 = vsel %vm1134, %v3030, 0
      %v3156 = vsel %vm1134, %v3031, 0
      %v3159 = vsel %vm1134, %v3032, 0
      %v3162 = vsel %vm1134, %v3033, 0
      %v3165 = vsel %vm1134, %v3034, 0
      %v3168 = vsel %vm1134, %v3035, 0
      %v3171 = vsel %vm1134, %v3036, 0
      %v3174 = vsel %vm1134, %v3037, 0
      %v3177 = vsel %vm1134, %v3038, 0
      %v3180 = vsel %vm1134, %v3039, 0
      %v3183 = vsel %vm1134, %v3040, 0
      %v3186 = vsel %vm1134, %v3041, 0
      %v3189 = vsel %vm1134, %v3042, 0
      %v3192 = vsel %vm1134, %v3043, 0
      %v3195 = vsel %vm1134, %v3044, 0
      %v3198 = vsel %vm1134, %v3045, 0
      %v3201 = vsel %vm1134, %v3046, 0
      %v3204 = vsel %vm1134, %v3047, 0
      %v3207 = vsel %vm1134, %v3048, 0
      %v3210 = vsel %vm1134, %v3049, 0
      %v3213 = vsel %vm1134, %v3050, 0
      %v3216 = vsel %vm1134, %v3051, 0
      %v3219 = vsel %vm1134, %v3052, 0
      %v3222 = vsel %vm1134, %v3053, 0
      %v3225 = vsel %vm1134, %v3054, 0
      %v3228 = vsel %vm1134, %v3055, 0
      %v3231 = vsel %vm1134, %v3056, 0
      %v3234 = vsel %vm1134, %v3057, 0
      %v3237 = vsel %vm1134, %v3058, 0
      %v3240 = vsel %vm1134, %v3059, 0
      %v3243 = vsel %vm1134, %v3060, 0
      %v3246 = vsel %vm1134, %v3061, 0
      %v3249 = vsel %vm1134, %v3062, 0
      %v3252 = vsel %vm1134, %v3063, 0
      %v3255 = vsel %vm1134, %v3064, 0
      %v3258 = vsel %vm1134, %v3065, 0
      %v3261 = vsel %vm1327, %v3067, 0
      %3263 = vmatprep.subr.bf16.mxu0 0
      %3264 = vmatpush1.bf16.msra.mxu0 %v3261
      %3265 = vmatprep.subr.bf16.mxu0 0
      %3266 = vmatpush1.bf16.msra.mxu0 0
      %3267 = vmatprep.subr.bf16.mxu0 0
      %3268 = vmatpush1.bf16.msra.mxu0 0
      %3269 = vmatprep.subr.bf16.mxu0 0
      %3270 = vmatpush1.bf16.msra.mxu0 0
      %3271 = vmatprep.subr.bf16.mxu0 0
      %3272 = vmatpush1.bf16.msra.mxu0 0
      %3273 = vmatprep.subr.bf16.mxu0 0
      %3274 = vmatpush1.bf16.msra.mxu0 0
      %3275 = vmatprep.subr.bf16.mxu0 0
      %3276 = vmatpush1.bf16.msra.mxu0 0
      %3277 = vmatprep.subr.bf16.mxu0 0
      %3278 = vmatpush1.bf16.msra.mxu0 0
      %3279 = vmatprep.subr.bf16.mxu0 0
      %3280 = vmatpush1.bf16.msra.mxu0 0
      %3281 = vmatprep.subr.bf16.mxu0 0
      %3282 = vmatpush1.bf16.msra.mxu0 0
      %3283 = vmatprep.subr.bf16.mxu0 0
      %3284 = vmatpush1.bf16.msra.mxu0 0
      %3285 = vmatprep.subr.bf16.mxu0 0
      %3286 = vmatpush1.bf16.msra.mxu0 0
      %3287 = vmatprep.subr.bf16.mxu0 0
      %3288 = vmatpush1.bf16.msra.mxu0 0
      %3289 = vmatprep.subr.bf16.mxu0 0
      %3290 = vmatpush1.bf16.msra.mxu0 0
      %3291 = vmatprep.subr.bf16.mxu0 0
      %3292 = vmatpush1.bf16.msra.mxu0 0
      %3293 = vmatprep.subr.bf16.mxu0 0
      %3294 = vmatpush1.bf16.msra.mxu0 0
      %3295 = vmatprep.mubr.bf16.mxu0 0
      %3296 = vmatmul.mubr.bf16.gmra.mrb[0].mxu0 %v3069
      %v3297 = vpop.f32.mrb[0].mxu0
      %v3298 = vadd.f32 0.0, %v3297
      %v3299 = vpop.f32.mrb[0].mxu0
      %v3300 = vpop.f32.mrb[0].mxu0
      %v3301 = vadd.f32 0.0, %v3300
      %v3302 = vpop.f32.mrb[0].mxu0
      %3303 = vmatprep.mubr.bf16.mxu0 0
      %3304 = vmatmul.mubr.bf16.gmra.mrb[0].mxu0 %v3072
      %v3305 = vpop.f32.mrb[0].mxu0
      %v3306 = vadd.f32 0.0, %v3305
      %v3307 = vpop.f32.mrb[0].mxu0
      %v3308 = vpop.f32.mrb[0].mxu0
      %v3309 = vadd.f32 0.0, %v3308
      %v3310 = vpop.f32.mrb[0].mxu0
      %3311 = vmatprep.mubr.bf16.mxu0 0
      %3312 = vmatmul.mubr.bf16.gmra.mrb[0].mxu0 %v3075
      %v3313 = vpop.f32.mrb[0].mxu0
      %v3314 = vadd.f32 0.0, %v3313
      %v3315 = vpop.f32.mrb[0].mxu0
      %v3316 = vpop.f32.mrb[0].mxu0
      %v3317 = vadd.f32 0.0, %v3316
      %v3318 = vpop.f32.mrb[0].mxu0
      %3319 = vmatprep.mubr.bf16.mxu0 0
      %3320 = vmatmul.mubr.bf16.gmra.mrb[0].mxu0 %v3078
      %v3321 = vpop.f32.mrb[0].mxu0
      %v3322 = vadd.f32 0.0, %v3321
      %v3323 = vpop.f32.mrb[0].mxu0
      %v3324 = vpop.f32.mrb[0].mxu0
      %v3325 = vadd.f32 0.0, %v3324
      %v3326 = vpop.f32.mrb[0].mxu0
      %3327 = vmatprep.mubr.bf16.mxu0 0
      %3328 = vmatmul.mubr.bf16.gmra.mrb[0].mxu0 %v3081
      %v3329 = vpop.f32.mrb[0].mxu0
      %v3330 = vadd.f32 0.0, %v3329
      %v3331 = vpop.f32.mrb[0].mxu0
      %v3332 = vpop.f32.mrb[0].mxu0
      %v3333 = vadd.f32 0.0, %v3332
      %v3334 = vpop.f32.mrb[0].mxu0
      %3335 = vmatprep.mubr.bf16.mxu0 0
      %3336 = vmatmul.mubr.bf16.gmra.mrb[0].mxu0 %v3084
      %v3337 = vpop.f32.mrb[0].mxu0
      %v3338 = vadd.f32 0.0, %v3337
      %v3339 = vpop.f32.mrb[0].mxu0
      %v3340 = vpop.f32.mrb[0].mxu0
      %v3341 = vadd.f32 0.0, %v3340
      %v3342 = vpop.f32.mrb[0].mxu0
      %3343 = vmatprep.mubr.bf16.mxu0 0
      %3344 = vmatmul.mubr.bf16.gmra.mrb[0].mxu0 %v3087
      %v3345 = vpop.f32.mrb[0].mxu0
      %v3346 = vadd.f32 0.0, %v3345
      %v3347 = vpop.f32.mrb[0].mxu0
      %v3348 = vpop.f32.mrb[0].mxu0
      %v3349 = vadd.f32 0.0, %v3348
      %v3350 = vpop.f32.mrb[0].mxu0
      %3351 = vmatprep.mubr.bf16.mxu0 0
      %3352 = vmatmul.mubr.bf16.gmra.mrb[0].mxu0 %v3090
      %v3353 = vpop.f32.mrb[0].mxu0
      %v3354 = vadd.f32 0.0, %v3353
      %v3355 = vpop.f32.mrb[0].mxu0
      %v3356 = vpop.f32.mrb[0].mxu0
      %v3357 = vadd.f32 0.0, %v3356
      %v3358 = vpop.f32.mrb[0].mxu0
      %3359 = vmatprep.mubr.bf16.mxu0 0
      %3360 = vmatmul.mubr.bf16.gmra.mrb[0].mxu0 %v3093
      %v3361 = vpop.f32.mrb[0].mxu0
      %v3362 = vadd.f32 0.0, %v3361
      %v3363 = vpop.f32.mrb[0].mxu0
      %v3364 = vpop.f32.mrb[0].mxu0
      %v3365 = vadd.f32 0.0, %v3364
      %v3366 = vpop.f32.mrb[0].mxu0
      %3367 = vmatprep.mubr.bf16.mxu0 0
      %3368 = vmatmul.mubr.bf16.gmra.mrb[0].mxu0 %v3096
      %v3369 = vpop.f32.mrb[0].mxu0
      %v3370 = vadd.f32 0.0, %v3369
      %v3371 = vpop.f32.mrb[0].mxu0
      %v3372 = vpop.f32.mrb[0].mxu0
      %v3373 = vadd.f32 0.0, %v3372
      %v3374 = vpop.f32.mrb[0].mxu0
      %3375 = vmatprep.mubr.bf16.mxu0 0
      %3376 = vmatmul.mubr.bf16.gmra.mrb[0].mxu0 %v3099
      %v3377 = vpop.f32.mrb[0].mxu0
      %v3378 = vadd.f32 0.0, %v3377
      %v3379 = vpop.f32.mrb[0].mxu0
      %v3380 = vpop.f32.mrb[0].mxu0
      %v3381 = vadd.f32 0.0, %v3380
      %v3382 = vpop.f32.mrb[0].mxu0
      %3383 = vmatprep.mubr.bf16.mxu0 0
      %3384 = vmatmul.mubr.bf16.gmra.mrb[0].mxu0 %v3102
      %v3385 = vpop.f32.mrb[0].mxu0
      %v3386 = vadd.f32 0.0, %v3385
      %v3387 = vpop.f32.mrb[0].mxu0
      %v3388 = vpop.f32.mrb[0].mxu0
      %v3389 = vadd.f32 0.0, %v3388
      %v3390 = vpop.f32.mrb[0].mxu0
      %3391 = vmatprep.mubr.bf16.mxu0 0
      %3392 = vmatmul.mubr.bf16.gmra.mrb[0].mxu0 %v3105
      %v3393 = vpop.f32.mrb[0].mxu0
      %v3394 = vadd.f32 0.0, %v3393
      %v3395 = vpop.f32.mrb[0].mxu0
      %v3396 = vpop.f32.mrb[0].mxu0
      %v3397 = vadd.f32 0.0, %v3396
      %v3398 = vpop.f32.mrb[0].mxu0
      %3399 = vmatprep.mubr.bf16.mxu0 0
      %3400 = vmatmul.mubr.bf16.gmra.mrb[0].mxu0 %v3108
      %v3401 = vpop.f32.mrb[0].mxu0
      %v3402 = vadd.f32 0.0, %v3401
      %v3403 = vpop.f32.mrb[0].mxu0
      %v3404 = vpop.f32.mrb[0].mxu0
      %v3405 = vadd.f32 0.0, %v3404
      %v3406 = vpop.f32.mrb[0].mxu0
      %3407 = vmatprep.mubr.bf16.mxu0 0
      %3408 = vmatmul.mubr.bf16.gmra.mrb[0].mxu0 %v3111
      %v3409 = vpop.f32.mrb[0].mxu0
      %v3410 = vadd.f32 0.0, %v3409
      %v3411 = vpop.f32.mrb[0].mxu0
      %v3412 = vpop.f32.mrb[0].mxu0
      %v3413 = vadd.f32 0.0, %v3412
      %v3414 = vpop.f32.mrb[0].mxu0
      %3415 = vmatprep.mubr.bf16.mxu0 0
      %3416 = vmatmul.mubr.bf16.gmra.mrb[0].mxu0 %v3114
      %v3417 = vpop.f32.mrb[0].mxu0
      %v3418 = vadd.f32 0.0, %v3417
      %v3419 = vpop.f32.mrb[0].mxu0
      %v3420 = vpop.f32.mrb[0].mxu0
      %v3421 = vadd.f32 0.0, %v3420
      %v3422 = vpop.f32.mrb[0].mxu0
      %3423 = vmatprep.mubr.bf16.mxu0 0
      %3424 = vmatmul.mubr.bf16.gmra.mrb[0].mxu0 %v3117
      %v3425 = vpop.f32.mrb[0].mxu0
      %v3426 = vadd.f32 0.0, %v3425
      %v3427 = vpop.f32.mrb[0].mxu0
      %v3428 = vpop.f32.mrb[0].mxu0
      %v3429 = vadd.f32 0.0, %v3428
      %v3430 = vpop.f32.mrb[0].mxu0
      %3431 = vmatprep.mubr.bf16.mxu0 0
      %3432 = vmatmul.mubr.bf16.gmra.mrb[0].mxu0 %v3120
      %v3433 = vpop.f32.mrb[0].mxu0
      %v3434 = vadd.f32 0.0, %v3433
      %v3435 = vpop.f32.mrb[0].mxu0
      %v3436 = vpop.f32.mrb[0].mxu0
      %v3437 = vadd.f32 0.0, %v3436
      %v3438 = vpop.f32.mrb[0].mxu0
      %3439 = vmatprep.mubr.bf16.mxu0 0
      %3440 = vmatmul.mubr.bf16.gmra.mrb[0].mxu0 %v3123
      %v3441 = vpop.f32.mrb[0].mxu0
      %v3442 = vadd.f32 0.0, %v3441
      %v3443 = vpop.f32.mrb[0].mxu0
      %v3444 = vpop.f32.mrb[0].mxu0
      %v3445 = vadd.f32 0.0, %v3444
      %v3446 = vpop.f32.mrb[0].mxu0
      %3447 = vmatprep.mubr.bf16.mxu0 0
      %3448 = vmatmul.mubr.bf16.gmra.mrb[0].mxu0 %v3126
      %v3449 = vpop.f32.mrb[0].mxu0
      %v3450 = vadd.f32 0.0, %v3449
      %v3451 = vpop.f32.mrb[0].mxu0
      %v3452 = vpop.f32.mrb[0].mxu0
      %v3453 = vadd.f32 0.0, %v3452
      %v3454 = vpop.f32.mrb[0].mxu0
      %3455 = vmatprep.mubr.bf16.mxu0 0
      %3456 = vmatmul.mubr.bf16.gmra.mrb[0].mxu0 %v3129
      %v3457 = vpop.f32.mrb[0].mxu0
      %v3458 = vadd.f32 0.0, %v3457
      %v3459 = vpop.f32.mrb[0].mxu0
      %v3460 = vpop.f32.mrb[0].mxu0
      %v3461 = vadd.f32 0.0, %v3460
      %v3462 = vpop.f32.mrb[0].mxu0
      %3463 = vmatprep.mubr.bf16.mxu0 0
      %3464 = vmatmul.mubr.bf16.gmra.mrb[0].mxu0 %v3132
      %v3465 = vpop.f32.mrb[0].mxu0
      %v3466 = vadd.f32 0.0, %v3465
      %v3467 = vpop.f32.mrb[0].mxu0
      %v3468 = vpop.f32.mrb[0].mxu0
      %v3469 = vadd.f32 0.0, %v3468
      %v3470 = vpop.f32.mrb[0].mxu0
      %3471 = vmatprep.mubr.bf16.mxu0 0
      %3472 = vmatmul.mubr.bf16.gmra.mrb[0].mxu0 %v3135
      %v3473 = vpop.f32.mrb[0].mxu0
      %v3474 = vadd.f32 0.0, %v3473
      %v3475 = vpop.f32.mrb[0].mxu0
      %v3476 = vpop.f32.mrb[0].mxu0
      %v3477 = vadd.f32 0.0, %v3476
      %v3478 = vpop.f32.mrb[0].mxu0
      %3479 = vmatprep.mubr.bf16.mxu0 0
      %3480 = vmatmul.mubr.bf16.gmra.mrb[0].mxu0 %v3138
      %v3481 = vpop.f32.mrb[0].mxu0
      %v3482 = vadd.f32 0.0, %v3481
      %v3483 = vpop.f32.mrb[0].mxu0
      %v3484 = vpop.f32.mrb[0].mxu0
      %v3485 = vadd.f32 0.0, %v3484
      %v3486 = vpop.f32.mrb[0].mxu0
      %3487 = vmatprep.mubr.bf16.mxu0 0
      %3488 = vmatmul.mubr.bf16.gmra.mrb[0].mxu0 %v3141
      %v3489 = vpop.f32.mrb[0].mxu0
      %v3490 = vadd.f32 0.0, %v3489
      %v3491 = vpop.f32.mrb[0].mxu0
      %v3492 = vpop.f32.mrb[0].mxu0
      %v3493 = vadd.f32 0.0, %v3492
      %v3494 = vpop.f32.mrb[0].mxu0
      %3495 = vmatprep.mubr.bf16.mxu0 0
      %3496 = vmatmul.mubr.bf16.gmra.mrb[0].mxu0 %v3144
      %v3497 = vpop.f32.mrb[0].mxu0
      %v3498 = vadd.f32 0.0, %v3497
      %v3499 = vpop.f32.mrb[0].mxu0
      %v3500 = vpop.f32.mrb[0].mxu0
      %v3501 = vadd.f32 0.0, %v3500
      %v3502 = vpop.f32.mrb[0].mxu0
      %3503 = vmatprep.mubr.bf16.mxu0 0
      %3504 = vmatmul.mubr.bf16.gmra.mrb[0].mxu0 %v3147
      %v3505 = vpop.f32.mrb[0].mxu0
      %v3506 = vadd.f32 0.0, %v3505
      %v3507 = vpop.f32.mrb[0].mxu0
      %v3508 = vpop.f32.mrb[0].mxu0
      %v3509 = vadd.f32 0.0, %v3508
      %v3510 = vpop.f32.mrb[0].mxu0
      %3511 = vmatprep.mubr.bf16.mxu0 0
      %3512 = vmatmul.mubr.bf16.gmra.mrb[0].mxu0 %v3150
      %v3513 = vpop.f32.mrb[0].mxu0
      %v3514 = vadd.f32 0.0, %v3513
      %v3515 = vpop.f32.mrb[0].mxu0
      %v3516 = vpop.f32.mrb[0].mxu0
      %v3517 = vadd.f32 0.0, %v3516
      %v3518 = vpop.f32.mrb[0].mxu0
      %3519 = vmatprep.mubr.bf16.mxu0 0
      %3520 = vmatmul.mubr.bf16.gmra.mrb[0].mxu0 %v3153
      %v3521 = vpop.f32.mrb[0].mxu0
      %v3522 = vadd.f32 0.0, %v3521
      %v3523 = vpop.f32.mrb[0].mxu0
      %v3524 = vpop.f32.mrb[0].mxu0
      %v3525 = vadd.f32 0.0, %v3524
      %v3526 = vpop.f32.mrb[0].mxu0
      %3527 = vmatprep.mubr.bf16.mxu0 0
      %3528 = vmatmul.mubr.bf16.gmra.mrb[0].mxu0 %v3156
      %v3529 = vpop.f32.mrb[0].mxu0
      %v3530 = vadd.f32 0.0, %v3529
      %v3531 = vpop.f32.mrb[0].mxu0
      %v3532 = vpop.f32.mrb[0].mxu0
      %v3533 = vadd.f32 0.0, %v3532
      %v3534 = vpop.f32.mrb[0].mxu0
      %3535 = vmatprep.mubr.bf16.mxu0 0
      %3536 = vmatmul.mubr.bf16.gmra.mrb[0].mxu0 %v3159
      %v3537 = vpop.f32.mrb[0].mxu0
      %v3538 = vadd.f32 0.0, %v3537
      %v3539 = vpop.f32.mrb[0].mxu0
      %v3540 = vpop.f32.mrb[0].mxu0
      %v3541 = vadd.f32 0.0, %v3540
      %v3542 = vpop.f32.mrb[0].mxu0
      %3543 = vmatprep.mubr.bf16.mxu0 0
      %3544 = vmatmul.mubr.bf16.gmra.mrb[0].mxu0 %v3162
      %v3545 = vpop.f32.mrb[0].mxu0
      %v3546 = vadd.f32 0.0, %v3545
      %v3547 = vpop.f32.mrb[0].mxu0
      %v3548 = vpop.f32.mrb[0].mxu0
      %v3549 = vadd.f32 0.0, %v3548
      %v3550 = vpop.f32.mrb[0].mxu0
      %3551 = vmatprep.mubr.bf16.mxu0 0
      %3552 = vmatmul.mubr.bf16.gmra.mrb[0].mxu0 %v3165
      %v3553 = vpop.f32.mrb[0].mxu0
      %v3554 = vadd.f32 0.0, %v3553
      %v3555 = vpop.f32.mrb[0].mxu0
      %v3556 = vpop.f32.mrb[0].mxu0
      %v3557 = vadd.f32 0.0, %v3556
      %v3558 = vpop.f32.mrb[0].mxu0
      %3559 = vmatprep.mubr.bf16.mxu0 0
      %3560 = vmatmul.mubr.bf16.gmra.mrb[0].mxu0 %v3168
      %v3561 = vpop.f32.mrb[0].mxu0
      %v3562 = vadd.f32 0.0, %v3561
      %v3563 = vpop.f32.mrb[0].mxu0
      %v3564 = vpop.f32.mrb[0].mxu0
      %v3565 = vadd.f32 0.0, %v3564
      %v3566 = vpop.f32.mrb[0].mxu0
      %3567 = vmatprep.mubr.bf16.mxu0 0
      %3568 = vmatmul.mubr.bf16.gmra.mrb[0].mxu0 %v3171
      %v3569 = vpop.f32.mrb[0].mxu0
      %v3570 = vadd.f32 0.0, %v3569
      %v3571 = vpop.f32.mrb[0].mxu0
      %v3572 = vpop.f32.mrb[0].mxu0
      %v3573 = vadd.f32 0.0, %v3572
      %v3574 = vpop.f32.mrb[0].mxu0
      %3575 = vmatprep.mubr.bf16.mxu0 0
      %3576 = vmatmul.mubr.bf16.gmra.mrb[0].mxu0 %v3174
      %v3577 = vpop.f32.mrb[0].mxu0
      %v3578 = vadd.f32 0.0, %v3577
      %v3579 = vpop.f32.mrb[0].mxu0
      %v3580 = vpop.f32.mrb[0].mxu0
      %v3581 = vadd.f32 0.0, %v3580
      %v3582 = vpop.f32.mrb[0].mxu0
      %3583 = vmatprep.mubr.bf16.mxu0 0
      %3584 = vmatmul.mubr.bf16.gmra.mrb[0].mxu0 %v3177
      %v3585 = vpop.f32.mrb[0].mxu0
      %v3586 = vadd.f32 0.0, %v3585
      %v3587 = vpop.f32.mrb[0].mxu0
      %v3588 = vpop.f32.mrb[0].mxu0
      %v3589 = vadd.f32 0.0, %v3588
      %v3590 = vpop.f32.mrb[0].mxu0
      %3591 = vmatprep.mubr.bf16.mxu0 0
      %3592 = vmatmul.mubr.bf16.gmra.mrb[0].mxu0 %v3180
      %v3593 = vpop.f32.mrb[0].mxu0
      %v3594 = vadd.f32 0.0, %v3593
      %v3595 = vpop.f32.mrb[0].mxu0
      %v3596 = vpop.f32.mrb[0].mxu0
      %v3597 = vadd.f32 0.0, %v3596
      %v3598 = vpop.f32.mrb[0].mxu0
      %3599 = vmatprep.mubr.bf16.mxu0 0
      %3600 = vmatmul.mubr.bf16.gmra.mrb[0].mxu0 %v3183
      %v3601 = vpop.f32.mrb[0].mxu0
      %v3602 = vadd.f32 0.0, %v3601
      %v3603 = vpop.f32.mrb[0].mxu0
      %v3604 = vpop.f32.mrb[0].mxu0
      %v3605 = vadd.f32 0.0, %v3604
      %v3606 = vpop.f32.mrb[0].mxu0
      %3607 = vmatprep.mubr.bf16.mxu0 0
      %3608 = vmatmul.mubr.bf16.gmra.mrb[0].mxu0 %v3186
      %v3609 = vpop.f32.mrb[0].mxu0
      %v3610 = vadd.f32 0.0, %v3609
      %v3611 = vpop.f32.mrb[0].mxu0
      %v3612 = vpop.f32.mrb[0].mxu0
      %v3613 = vadd.f32 0.0, %v3612
      %v3614 = vpop.f32.mrb[0].mxu0
      %3615 = vmatprep.mubr.bf16.mxu0 0
      %3616 = vmatmul.mubr.bf16.gmra.mrb[0].mxu0 %v3189
      %v3617 = vpop.f32.mrb[0].mxu0
      %v3618 = vadd.f32 0.0, %v3617
      %v3619 = vpop.f32.mrb[0].mxu0
      %v3620 = vpop.f32.mrb[0].mxu0
      %v3621 = vadd.f32 0.0, %v3620
      %v3622 = vpop.f32.mrb[0].mxu0
      %3623 = vmatprep.mubr.bf16.mxu0 0
      %3624 = vmatmul.mubr.bf16.gmra.mrb[0].mxu0 %v3192
      %v3625 = vpop.f32.mrb[0].mxu0
      %v3626 = vadd.f32 0.0, %v3625
      %v3627 = vpop.f32.mrb[0].mxu0
      %v3628 = vpop.f32.mrb[0].mxu0
      %v3629 = vadd.f32 0.0, %v3628
      %v3630 = vpop.f32.mrb[0].mxu0
      %3631 = vmatprep.mubr.bf16.mxu0 0
      %3632 = vmatmul.mubr.bf16.gmra.mrb[0].mxu0 %v3195
      %v3633 = vpop.f32.mrb[0].mxu0
      %v3634 = vadd.f32 0.0, %v3633
      %v3635 = vpop.f32.mrb[0].mxu0
      %v3636 = vpop.f32.mrb[0].mxu0
      %v3637 = vadd.f32 0.0, %v3636
      %v3638 = vpop.f32.mrb[0].mxu0
      %3639 = vmatprep.mubr.bf16.mxu0 0
      %3640 = vmatmul.mubr.bf16.gmra.mrb[0].mxu0 %v3198
      %v3641 = vpop.f32.mrb[0].mxu0
      %v3642 = vadd.f32 0.0, %v3641
      %v3643 = vpop.f32.mrb[0].mxu0
      %v3644 = vpop.f32.mrb[0].mxu0
      %v3645 = vadd.f32 0.0, %v3644
      %v3646 = vpop.f32.mrb[0].mxu0
      %3647 = vmatprep.mubr.bf16.mxu0 0
      %3648 = vmatmul.mubr.bf16.gmra.mrb[0].mxu0 %v3201
      %v3649 = vpop.f32.mrb[0].mxu0
      %v3650 = vadd.f32 0.0, %v3649
      %v3651 = vpop.f32.mrb[0].mxu0
      %v3652 = vpop.f32.mrb[0].mxu0
      %v3653 = vadd.f32 0.0, %v3652
      %v3654 = vpop.f32.mrb[0].mxu0
      %3655 = vmatprep.mubr.bf16.mxu0 0
      %3656 = vmatmul.mubr.bf16.gmra.mrb[0].mxu0 %v3204
      %v3657 = vpop.f32.mrb[0].mxu0
      %v3658 = vadd.f32 0.0, %v3657
      %v3659 = vpop.f32.mrb[0].mxu0
      %v3660 = vpop.f32.mrb[0].mxu0
      %v3661 = vadd.f32 0.0, %v3660
      %v3662 = vpop.f32.mrb[0].mxu0
      %3663 = vmatprep.mubr.bf16.mxu0 0
      %3664 = vmatmul.mubr.bf16.gmra.mrb[0].mxu0 %v3207
      %v3665 = vpop.f32.mrb[0].mxu0
      %v3666 = vadd.f32 0.0, %v3665
      %v3667 = vpop.f32.mrb[0].mxu0
      %v3668 = vpop.f32.mrb[0].mxu0
      %v3669 = vadd.f32 0.0, %v3668
      %v3670 = vpop.f32.mrb[0].mxu0
      %3671 = vmatprep.mubr.bf16.mxu0 0
      %3672 = vmatmul.mubr.bf16.gmra.mrb[0].mxu0 %v3210
      %v3673 = vpop.f32.mrb[0].mxu0
      %v3674 = vadd.f32 0.0, %v3673
      %v3675 = vpop.f32.mrb[0].mxu0
      %v3676 = vpop.f32.mrb[0].mxu0
      %v3677 = vadd.f32 0.0, %v3676
      %v3678 = vpop.f32.mrb[0].mxu0
      %3679 = vmatprep.mubr.bf16.mxu0 0
      %3680 = vmatmul.mubr.bf16.gmra.mrb[0].mxu0 %v3213
      %v3681 = vpop.f32.mrb[0].mxu0
      %v3682 = vadd.f32 0.0, %v3681
      %v3683 = vpop.f32.mrb[0].mxu0
      %v3684 = vpop.f32.mrb[0].mxu0
      %v3685 = vadd.f32 0.0, %v3684
      %v3686 = vpop.f32.mrb[0].mxu0
      %3687 = vmatprep.mubr.bf16.mxu0 0
      %3688 = vmatmul.mubr.bf16.gmra.mrb[0].mxu0 %v3216
      %v3689 = vpop.f32.mrb[0].mxu0
      %v3690 = vadd.f32 0.0, %v3689
      %v3691 = vpop.f32.mrb[0].mxu0
      %v3692 = vpop.f32.mrb[0].mxu0
      %v3693 = vadd.f32 0.0, %v3692
      %v3694 = vpop.f32.mrb[0].mxu0
      %3695 = vmatprep.mubr.bf16.mxu0 0
      %3696 = vmatmul.mubr.bf16.gmra.mrb[0].mxu0 %v3219
      %v3697 = vpop.f32.mrb[0].mxu0
      %v3698 = vadd.f32 0.0, %v3697
      %v3699 = vpop.f32.mrb[0].mxu0
      %v3700 = vpop.f32.mrb[0].mxu0
      %v3701 = vadd.f32 0.0, %v3700
      %v3702 = vpop.f32.mrb[0].mxu0
      %3703 = vmatprep.mubr.bf16.mxu0 0
      %3704 = vmatmul.mubr.bf16.gmra.mrb[0].mxu0 %v3222
      %v3705 = vpop.f32.mrb[0].mxu0
      %v3706 = vadd.f32 0.0, %v3705
      %v3707 = vpop.f32.mrb[0].mxu0
      %v3708 = vpop.f32.mrb[0].mxu0
      %v3709 = vadd.f32 0.0, %v3708
      %v3710 = vpop.f32.mrb[0].mxu0
      %3711 = vmatprep.mubr.bf16.mxu0 0
      %3712 = vmatmul.mubr.bf16.gmra.mrb[0].mxu0 %v3225
      %v3713 = vpop.f32.mrb[0].mxu0
      %v3714 = vadd.f32 0.0, %v3713
      %v3715 = vpop.f32.mrb[0].mxu0
      %v3716 = vpop.f32.mrb[0].mxu0
      %v3717 = vadd.f32 0.0, %v3716
      %v3718 = vpop.f32.mrb[0].mxu0
      %3719 = vmatprep.mubr.bf16.mxu0 0
      %3720 = vmatmul.mubr.bf16.gmra.mrb[0].mxu0 %v3228
      %v3721 = vpop.f32.mrb[0].mxu0
      %v3722 = vadd.f32 0.0, %v3721
      %v3723 = vpop.f32.mrb[0].mxu0
      %v3724 = vpop.f32.mrb[0].mxu0
      %v3725 = vadd.f32 0.0, %v3724
      %v3726 = vpop.f32.mrb[0].mxu0
      %3727 = vmatprep.mubr.bf16.mxu0 0
      %3728 = vmatmul.mubr.bf16.gmra.mrb[0].mxu0 %v3231
      %v3729 = vpop.f32.mrb[0].mxu0
      %v3730 = vadd.f32 0.0, %v3729
      %v3731 = vpop.f32.mrb[0].mxu0
      %v3732 = vpop.f32.mrb[0].mxu0
      %v3733 = vadd.f32 0.0, %v3732
      %v3734 = vpop.f32.mrb[0].mxu0
      %3735 = vmatprep.mubr.bf16.mxu0 0
      %3736 = vmatmul.mubr.bf16.gmra.mrb[0].mxu0 %v3234
      %v3737 = vpop.f32.mrb[0].mxu0
      %v3738 = vadd.f32 0.0, %v3737
      %v3739 = vpop.f32.mrb[0].mxu0
      %v3740 = vpop.f32.mrb[0].mxu0
      %v3741 = vadd.f32 0.0, %v3740
      %v3742 = vpop.f32.mrb[0].mxu0
      %3743 = vmatprep.mubr.bf16.mxu0 0
      %3744 = vmatmul.mubr.bf16.gmra.mrb[0].mxu0 %v3237
      %v3745 = vpop.f32.mrb[0].mxu0
      %v3746 = vadd.f32 0.0, %v3745
      %v3747 = vpop.f32.mrb[0].mxu0
      %v3748 = vpop.f32.mrb[0].mxu0
      %v3749 = vadd.f32 0.0, %v3748
      %v3750 = vpop.f32.mrb[0].mxu0
      %3751 = vmatprep.mubr.bf16.mxu0 0
      %3752 = vmatmul.mubr.bf16.gmra.mrb[0].mxu0 %v3240
      %v3753 = vpop.f32.mrb[0].mxu0
      %v3754 = vadd.f32 0.0, %v3753
      %v3755 = vpop.f32.mrb[0].mxu0
      %v3756 = vpop.f32.mrb[0].mxu0
      %v3757 = vadd.f32 0.0, %v3756
      %v3758 = vpop.f32.mrb[0].mxu0
      %3759 = vmatprep.mubr.bf16.mxu0 0
      %3760 = vmatmul.mubr.bf16.gmra.mrb[0].mxu0 %v3243
      %v3761 = vpop.f32.mrb[0].mxu0
      %v3762 = vadd.f32 0.0, %v3761
      %v3763 = vpop.f32.mrb[0].mxu0
      %v3764 = vpop.f32.mrb[0].mxu0
      %v3765 = vadd.f32 0.0, %v3764
      %v3766 = vpop.f32.mrb[0].mxu0
      %3767 = vmatprep.mubr.bf16.mxu0 0
      %3768 = vmatmul.mubr.bf16.gmra.mrb[0].mxu0 %v3246
      %v3769 = vpop.f32.mrb[0].mxu0
      %v3770 = vadd.f32 0.0, %v3769
      %v3771 = vpop.f32.mrb[0].mxu0
      %v3772 = vpop.f32.mrb[0].mxu0
      %v3773 = vadd.f32 0.0, %v3772
      %v3774 = vpop.f32.mrb[0].mxu0
      %3775 = vmatprep.mubr.bf16.mxu0 0
      %3776 = vmatmul.mubr.bf16.gmra.mrb[0].mxu0 %v3249
      %v3777 = vpop.f32.mrb[0].mxu0
      %v3778 = vadd.f32 0.0, %v3777
      %v3779 = vpop.f32.mrb[0].mxu0
      %v3780 = vpop.f32.mrb[0].mxu0
      %v3781 = vadd.f32 0.0, %v3780
      %v3782 = vpop.f32.mrb[0].mxu0
      %3783 = vmatprep.mubr.bf16.mxu0 0
      %3784 = vmatmul.mubr.bf16.gmra.mrb[0].mxu0 %v3252
      %v3785 = vpop.f32.mrb[0].mxu0
      %v3786 = vadd.f32 0.0, %v3785
      %v3787 = vpop.f32.mrb[0].mxu0
      %v3788 = vpop.f32.mrb[0].mxu0
      %v3789 = vadd.f32 0.0, %v3788
      %v3790 = vpop.f32.mrb[0].mxu0
      %3791 = vmatprep.mubr.bf16.mxu0 0
      %3792 = vmatmul.mubr.bf16.gmra.mrb[0].mxu0 %v3255
      %v3793 = vpop.f32.mrb[0].mxu0
      %v3794 = vadd.f32 0.0, %v3793
      %v3795 = vpop.f32.mrb[0].mxu0
      %v3796 = vpop.f32.mrb[0].mxu0
      %v3797 = vadd.f32 0.0, %v3796
      %v3798 = vpop.f32.mrb[0].mxu0
      %3799 = vmatprep.mubr.bf16.mxu0 0
      %3800 = vmatmul.mubr.bf16.gmra.mrb[0].mxu0 %v3258
      %v3801 = vpop.f32.mrb[0].mxu0
      %v3802 = vadd.f32 0.0, %v3801
      %v3803 = vpop.f32.mrb[0].mxu0
      %v3804 = vpop.f32.mrb[0].mxu0
      %v3805 = vadd.f32 0.0, %v3804
      %v3806 = vpop.f32.mrb[0].mxu0
      %3807 = vdwg.mxu0
      %v3808 = vadd.f32 %v2106, %v3298
      %v3809 = vadd.f32 %v2109, %v3301
      %v3810 = vadd.f32 %v2114, %v3306
      %v3811 = vadd.f32 %v2117, %v3309
      %v3812 = vadd.f32 %v2122, %v3314
      %v3813 = vadd.f32 %v2125, %v3317
      %v3814 = vadd.f32 %v2130, %v3322
      %v3815 = vadd.f32 %v2133, %v3325
      %v3816 = vadd.f32 %v2138, %v3330
      %v3817 = vadd.f32 %v2141, %v3333
      %v3818 = vadd.f32 %v2146, %v3338
      %v3819 = vadd.f32 %v2149, %v3341
      %v3820 = vadd.f32 %v2154, %v3346
      %v3821 = vadd.f32 %v2157, %v3349
      %v3822 = vadd.f32 %v2162, %v3354
      %v3823 = vadd.f32 %v2165, %v3357
      %v3824 = vadd.f32 %v2170, %v3362
      %v3825 = vadd.f32 %v2173, %v3365
      %v3826 = vadd.f32 %v2178, %v3370
      %v3827 = vadd.f32 %v2181, %v3373
      %v3828 = vadd.f32 %v2186, %v3378
      %v3829 = vadd.f32 %v2189, %v3381
      %v3830 = vadd.f32 %v2194, %v3386
      %v3831 = vadd.f32 %v2197, %v3389
      %v3832 = vadd.f32 %v2202, %v3394
      %v3833 = vadd.f32 %v2205, %v3397
      %v3834 = vadd.f32 %v2210, %v3402
      %v3835 = vadd.f32 %v2213, %v3405
      %v3836 = vadd.f32 %v2218, %v3410
      %v3837 = vadd.f32 %v2221, %v3413
      %v3838 = vadd.f32 %v2226, %v3418
      %v3839 = vadd.f32 %v2229, %v3421
      %v3840 = vadd.f32 %v2234, %v3426
      %v3841 = vadd.f32 %v2237, %v3429
      %v3842 = vadd.f32 %v2242, %v3434
      %v3843 = vadd.f32 %v2245, %v3437
      %v3844 = vadd.f32 %v2250, %v3442
      %v3845 = vadd.f32 %v2253, %v3445
      %v3846 = vadd.f32 %v2258, %v3450
      %v3847 = vadd.f32 %v2261, %v3453
      %v3848 = vadd.f32 %v2266, %v3458
      %v3849 = vadd.f32 %v2269, %v3461
      %v3850 = vadd.f32 %v2274, %v3466
      %v3851 = vadd.f32 %v2277, %v3469
      %v3852 = vadd.f32 %v2282, %v3474
      %v3853 = vadd.f32 %v2285, %v3477
      %v3854 = vadd.f32 %v2290, %v3482
      %v3855 = vadd.f32 %v2293, %v3485
      %v3856 = vadd.f32 %v2298, %v3490
      %v3857 = vadd.f32 %v2301, %v3493
      %v3858 = vadd.f32 %v2306, %v3498
      %v3859 = vadd.f32 %v2309, %v3501
      %v3860 = vadd.f32 %v2314, %v3506
      %v3861 = vadd.f32 %v2317, %v3509
      %v3862 = vadd.f32 %v2322, %v3514
      %v3863 = vadd.f32 %v2325, %v3517
      %v3864 = vadd.f32 %v2330, %v3522
      %v3865 = vadd.f32 %v2333, %v3525
      %v3866 = vadd.f32 %v2338, %v3530
      %v3867 = vadd.f32 %v2341, %v3533
      %v3868 = vadd.f32 %v2346, %v3538
      %v3869 = vadd.f32 %v2349, %v3541
      %v3870 = vadd.f32 %v2354, %v3546
      %v3871 = vadd.f32 %v2357, %v3549
      %v3872 = vadd.f32 %v2362, %v3554
      %v3873 = vadd.f32 %v2365, %v3557
      %v3874 = vadd.f32 %v2370, %v3562
      %v3875 = vadd.f32 %v2373, %v3565
      %v3876 = vadd.f32 %v2378, %v3570
      %v3877 = vadd.f32 %v2381, %v3573
      %v3878 = vadd.f32 %v2386, %v3578
      %v3879 = vadd.f32 %v2389, %v3581
      %v3880 = vadd.f32 %v2394, %v3586
      %v3881 = vadd.f32 %v2397, %v3589
      %v3882 = vadd.f32 %v2402, %v3594
      %v3883 = vadd.f32 %v2405, %v3597
      %v3884 = vadd.f32 %v2410, %v3602
      %v3885 = vadd.f32 %v2413, %v3605
      %v3886 = vadd.f32 %v2418, %v3610
      %v3887 = vadd.f32 %v2421, %v3613
      %v3888 = vadd.f32 %v2426, %v3618
      %v3889 = vadd.f32 %v2429, %v3621
      %v3890 = vadd.f32 %v2434, %v3626
      %v3891 = vadd.f32 %v2437, %v3629
      %v3892 = vadd.f32 %v2442, %v3634
      %v3893 = vadd.f32 %v2445, %v3637
      %v3894 = vadd.f32 %v2450, %v3642
      %v3895 = vadd.f32 %v2453, %v3645
      %v3896 = vadd.f32 %v2458, %v3650
      %v3897 = vadd.f32 %v2461, %v3653
      %v3898 = vadd.f32 %v2466, %v3658
      %v3899 = vadd.f32 %v2469, %v3661
      %v3900 = vadd.f32 %v2474, %v3666
      %v3901 = vadd.f32 %v2477, %v3669
      %v3902 = vadd.f32 %v2482, %v3674
      %v3903 = vadd.f32 %v2485, %v3677
      %v3904 = vadd.f32 %v2490, %v3682
      %v3905 = vadd.f32 %v2493, %v3685
      %v3906 = vadd.f32 %v2498, %v3690
      %v3907 = vadd.f32 %v2501, %v3693
      %v3908 = vadd.f32 %v2506, %v3698
      %v3909 = vadd.f32 %v2509, %v3701
      %v3910 = vadd.f32 %v2514, %v3706
      %v3911 = vadd.f32 %v2517, %v3709
      %v3912 = vadd.f32 %v2522, %v3714
      %v3913 = vadd.f32 %v2525, %v3717
      %v3914 = vadd.f32 %v2530, %v3722
      %v3915 = vadd.f32 %v2533, %v3725
      %v3916 = vadd.f32 %v2538, %v3730
      %v3917 = vadd.f32 %v2541, %v3733
      %v3918 = vadd.f32 %v2546, %v3738
      %v3919 = vadd.f32 %v2549, %v3741
      %v3920 = vadd.f32 %v2554, %v3746
      %v3921 = vadd.f32 %v2557, %v3749
      %v3922 = vadd.f32 %v2562, %v3754
      %v3923 = vadd.f32 %v2565, %v3757
      %v3924 = vadd.f32 %v2570, %v3762
      %v3925 = vadd.f32 %v2573, %v3765
      %v3926 = vadd.f32 %v2578, %v3770
      %v3927 = vadd.f32 %v2581, %v3773
      %v3928 = vadd.f32 %v2586, %v3778
      %v3929 = vadd.f32 %v2589, %v3781
      %v3930 = vadd.f32 %v2594, %v3786
      %v3931 = vadd.f32 %v2597, %v3789
      %v3932 = vadd.f32 %v2602, %v3794
      %v3933 = vadd.f32 %v2605, %v3797
      %v3934 = vadd.f32 %v2610, %v3802
      %v3935 = vadd.f32 %v2613, %v3805
      %s3936 = scalar_lea.vmem %s1, 12
      %v3937 = vld [vmem:[%s3936] sm:$0xf]
      %v3939 = vsel %vm1327, %v3937, 0
      %3941 = vmatprep.subr.bf16.mxu0 0
      %3942 = vmatpush1.bf16.msra.mxu0 %v3939
      %3943 = vmatprep.subr.bf16.mxu0 0
      %3944 = vmatpush1.bf16.msra.mxu0 0
      %3945 = vmatprep.subr.bf16.mxu0 0
      %3946 = vmatpush1.bf16.msra.mxu0 0
      %3947 = vmatprep.subr.bf16.mxu0 0
      %3948 = vmatpush1.bf16.msra.mxu0 0
      %3949 = vmatprep.subr.bf16.mxu0 0
      %3950 = vmatpush1.bf16.msra.mxu0 0
      %3951 = vmatprep.subr.bf16.mxu0 0
      %3952 = vmatpush1.bf16.msra.mxu0 0
      %3953 = vmatprep.subr.bf16.mxu0 0
      %3954 = vmatpush1.bf16.msra.mxu0 0
      %3955 = vmatprep.subr.bf16.mxu0 0
      %3956 = vmatpush1.bf16.msra.mxu0 0
      %3957 = vmatprep.subr.bf16.mxu0 0
      %3958 = vmatpush1.bf16.msra.mxu0 0
      %3959 = vmatprep.subr.bf16.mxu0 0
      %3960 = vmatpush1.bf16.msra.mxu0 0
      %3961 = vmatprep.subr.bf16.mxu0 0
      %3962 = vmatpush1.bf16.msra.mxu0 0
      %3963 = vmatprep.subr.bf16.mxu0 0
      %3964 = vmatpush1.bf16.msra.mxu0 0
      %3965 = vmatprep.subr.bf16.mxu0 0
      %3966 = vmatpush1.bf16.msra.mxu0 0
      %3967 = vmatprep.subr.bf16.mxu0 0
      %3968 = vmatpush1.bf16.msra.mxu0 0
      %3969 = vmatprep.subr.bf16.mxu0 0
      %3970 = vmatpush1.bf16.msra.mxu0 0
      %3971 = vmatprep.subr.bf16.mxu0 0
      %3972 = vmatpush1.bf16.msra.mxu0 0
      %3973 = vmatprep.mubr.bf16.mxu0 0
      %3974 = vmatmul.mubr.bf16.gmra.mrb[0].mxu0 %v1880
      %v3975 = vpop.f32.mrb[0].mxu0
      %v3976 = vadd.f32 0.0, %v3975
      %v3977 = vpop.f32.mrb[0].mxu0
      %v3978 = vpop.f32.mrb[0].mxu0
      %v3979 = vadd.f32 0.0, %v3978
      %v3980 = vpop.f32.mrb[0].mxu0
      %3981 = vmatprep.mubr.bf16.mxu0 0
      %3982 = vmatmul.mubr.bf16.gmra.mrb[0].mxu0 %v1883
      %v3983 = vpop.f32.mrb[0].mxu0
      %v3984 = vadd.f32 0.0, %v3983
      %v3985 = vpop.f32.mrb[0].mxu0
      %v3986 = vpop.f32.mrb[0].mxu0
      %v3987 = vadd.f32 0.0, %v3986
      %v3988 = vpop.f32.mrb[0].mxu0
      %3989 = vmatprep.mubr.bf16.mxu0 0
      %3990 = vmatmul.mubr.bf16.gmra.mrb[0].mxu0 %v1886
      %v3991 = vpop.f32.mrb[0].mxu0
      %v3992 = vadd.f32 0.0, %v3991
      %v3993 = vpop.f32.mrb[0].mxu0
      %v3994 = vpop.f32.mrb[0].mxu0
      %v3995 = vadd.f32 0.0, %v3994
      %v3996 = vpop.f32.mrb[0].mxu0
      %3997 = vmatprep.mubr.bf16.mxu0 0
      %3998 = vmatmul.mubr.bf16.gmra.mrb[0].mxu0 %v1889
      %v3999 = vpop.f32.mrb[0].mxu0
      %v4000 = vadd.f32 0.0, %v3999
      %v4001 = vpop.f32.mrb[0].mxu0
      %v4002 = vpop.f32.mrb[0].mxu0
      %v4003 = vadd.f32 0.0, %v4002
      %v4004 = vpop.f32.mrb[0].mxu0
      %4005 = vmatprep.mubr.bf16.mxu0 0
      %4006 = vmatmul.mubr.bf16.gmra.mrb[0].mxu0 %v1892
      %v4007 = vpop.f32.mrb[0].mxu0
      %v4008 = vadd.f32 0.0, %v4007
      %v4009 = vpop.f32.mrb[0].mxu0
      %v4010 = vpop.f32.mrb[0].mxu0
      %v4011 = vadd.f32 0.0, %v4010
      %v4012 = vpop.f32.mrb[0].mxu0
      %4013 = vmatprep.mubr.bf16.mxu0 0
      %4014 = vmatmul.mubr.bf16.gmra.mrb[0].mxu0 %v1895
      %v4015 = vpop.f32.mrb[0].mxu0
      %v4016 = vadd.f32 0.0, %v4015
      %v4017 = vpop.f32.mrb[0].mxu0
      %v4018 = vpop.f32.mrb[0].mxu0
      %v4019 = vadd.f32 0.0, %v4018
      %v4020 = vpop.f32.mrb[0].mxu0
      %4021 = vmatprep.mubr.bf16.mxu0 0
      %4022 = vmatmul.mubr.bf16.gmra.mrb[0].mxu0 %v1898
      %v4023 = vpop.f32.mrb[0].mxu0
      %v4024 = vadd.f32 0.0, %v4023
      %v4025 = vpop.f32.mrb[0].mxu0
      %v4026 = vpop.f32.mrb[0].mxu0
      %v4027 = vadd.f32 0.0, %v4026
      %v4028 = vpop.f32.mrb[0].mxu0
      %4029 = vmatprep.mubr.bf16.mxu0 0
      %4030 = vmatmul.mubr.bf16.gmra.mrb[0].mxu0 %v1901
      %v4031 = vpop.f32.mrb[0].mxu0
      %v4032 = vadd.f32 0.0, %v4031
      %v4033 = vpop.f32.mrb[0].mxu0
      %v4034 = vpop.f32.mrb[0].mxu0
      %v4035 = vadd.f32 0.0, %v4034
      %v4036 = vpop.f32.mrb[0].mxu0
      %4037 = vmatprep.mubr.bf16.mxu0 0
      %4038 = vmatmul.mubr.bf16.gmra.mrb[0].mxu0 %v1904
      %v4039 = vpop.f32.mrb[0].mxu0
      %v4040 = vadd.f32 0.0, %v4039
      %v4041 = vpop.f32.mrb[0].mxu0
      %v4042 = vpop.f32.mrb[0].mxu0
      %v4043 = vadd.f32 0.0, %v4042
      %v4044 = vpop.f32.mrb[0].mxu0
      %4045 = vmatprep.mubr.bf16.mxu0 0
      %4046 = vmatmul.mubr.bf16.gmra.mrb[0].mxu0 %v1907
      %v4047 = vpop.f32.mrb[0].mxu0
      %v4048 = vadd.f32 0.0, %v4047
      %v4049 = vpop.f32.mrb[0].mxu0
      %v4050 = vpop.f32.mrb[0].mxu0
      %v4051 = vadd.f32 0.0, %v4050
      %v4052 = vpop.f32.mrb[0].mxu0
      %4053 = vmatprep.mubr.bf16.mxu0 0
      %4054 = vmatmul.mubr.bf16.gmra.mrb[0].mxu0 %v1910
      %v4055 = vpop.f32.mrb[0].mxu0
      %v4056 = vadd.f32 0.0, %v4055
      %v4057 = vpop.f32.mrb[0].mxu0
      %v4058 = vpop.f32.mrb[0].mxu0
      %v4059 = vadd.f32 0.0, %v4058
      %v4060 = vpop.f32.mrb[0].mxu0
      %4061 = vmatprep.mubr.bf16.mxu0 0
      %4062 = vmatmul.mubr.bf16.gmra.mrb[0].mxu0 %v1913
      %v4063 = vpop.f32.mrb[0].mxu0
      %v4064 = vadd.f32 0.0, %v4063
      %v4065 = vpop.f32.mrb[0].mxu0
      %v4066 = vpop.f32.mrb[0].mxu0
      %v4067 = vadd.f32 0.0, %v4066
      %v4068 = vpop.f32.mrb[0].mxu0
      %4069 = vmatprep.mubr.bf16.mxu0 0
      %4070 = vmatmul.mubr.bf16.gmra.mrb[0].mxu0 %v1916
      %v4071 = vpop.f32.mrb[0].mxu0
      %v4072 = vadd.f32 0.0, %v4071
      %v4073 = vpop.f32.mrb[0].mxu0
      %v4074 = vpop.f32.mrb[0].mxu0
      %v4075 = vadd.f32 0.0, %v4074
      %v4076 = vpop.f32.mrb[0].mxu0
      %4077 = vmatprep.mubr.bf16.mxu0 0
      %4078 = vmatmul.mubr.bf16.gmra.mrb[0].mxu0 %v1919
      %v4079 = vpop.f32.mrb[0].mxu0
      %v4080 = vadd.f32 0.0, %v4079
      %v4081 = vpop.f32.mrb[0].mxu0
      %v4082 = vpop.f32.mrb[0].mxu0
      %v4083 = vadd.f32 0.0, %v4082
      %v4084 = vpop.f32.mrb[0].mxu0
      %4085 = vmatprep.mubr.bf16.mxu0 0
      %4086 = vmatmul.mubr.bf16.gmra.mrb[0].mxu0 %v1922
      %v4087 = vpop.f32.mrb[0].mxu0
      %v4088 = vadd.f32 0.0, %v4087
      %v4089 = vpop.f32.mrb[0].mxu0
      %v4090 = vpop.f32.mrb[0].mxu0
      %v4091 = vadd.f32 0.0, %v4090
      %v4092 = vpop.f32.mrb[0].mxu0
      %4093 = vmatprep.mubr.bf16.mxu0 0
      %4094 = vmatmul.mubr.bf16.gmra.mrb[0].mxu0 %v1925
      %v4095 = vpop.f32.mrb[0].mxu0
      %v4096 = vadd.f32 0.0, %v4095
      %v4097 = vpop.f32.mrb[0].mxu0
      %v4098 = vpop.f32.mrb[0].mxu0
      %v4099 = vadd.f32 0.0, %v4098
      %v4100 = vpop.f32.mrb[0].mxu0
      %4101 = vmatprep.mubr.bf16.mxu0 0
      %4102 = vmatmul.mubr.bf16.gmra.mrb[0].mxu0 %v1928
      %v4103 = vpop.f32.mrb[0].mxu0
      %v4104 = vadd.f32 0.0, %v4103
      %v4105 = vpop.f32.mrb[0].mxu0
      %v4106 = vpop.f32.mrb[0].mxu0
      %v4107 = vadd.f32 0.0, %v4106
      %v4108 = vpop.f32.mrb[0].mxu0
      %4109 = vmatprep.mubr.bf16.mxu0 0
      %4110 = vmatmul.mubr.bf16.gmra.mrb[0].mxu0 %v1931
      %v4111 = vpop.f32.mrb[0].mxu0
      %v4112 = vadd.f32 0.0, %v4111
      %v4113 = vpop.f32.mrb[0].mxu0
      %v4114 = vpop.f32.mrb[0].mxu0
      %v4115 = vadd.f32 0.0, %v4114
      %v4116 = vpop.f32.mrb[0].mxu0
      %4117 = vmatprep.mubr.bf16.mxu0 0
      %4118 = vmatmul.mubr.bf16.gmra.mrb[0].mxu0 %v1934
      %v4119 = vpop.f32.mrb[0].mxu0
      %v4120 = vadd.f32 0.0, %v4119
      %v4121 = vpop.f32.mrb[0].mxu0
      %v4122 = vpop.f32.mrb[0].mxu0
      %v4123 = vadd.f32 0.0, %v4122
      %v4124 = vpop.f32.mrb[0].mxu0
      %4125 = vmatprep.mubr.bf16.mxu0 0
      %4126 = vmatmul.mubr.bf16.gmra.mrb[0].mxu0 %v1937
      %v4127 = vpop.f32.mrb[0].mxu0
      %v4128 = vadd.f32 0.0, %v4127
      %v4129 = vpop.f32.mrb[0].mxu0
      %v4130 = vpop.f32.mrb[0].mxu0
      %v4131 = vadd.f32 0.0, %v4130
      %v4132 = vpop.f32.mrb[0].mxu0
      %4133 = vmatprep.mubr.bf16.mxu0 0
      %4134 = vmatmul.mubr.bf16.gmra.mrb[0].mxu0 %v1940
      %v4135 = vpop.f32.mrb[0].mxu0
      %v4136 = vadd.f32 0.0, %v4135
      %v4137 = vpop.f32.mrb[0].mxu0
      %v4138 = vpop.f32.mrb[0].mxu0
      %v4139 = vadd.f32 0.0, %v4138
      %v4140 = vpop.f32.mrb[0].mxu0
      %4141 = vmatprep.mubr.bf16.mxu0 0
      %4142 = vmatmul.mubr.bf16.gmra.mrb[0].mxu0 %v1943
      %v4143 = vpop.f32.mrb[0].mxu0
      %v4144 = vadd.f32 0.0, %v4143
      %v4145 = vpop.f32.mrb[0].mxu0
      %v4146 = vpop.f32.mrb[0].mxu0
      %v4147 = vadd.f32 0.0, %v4146
      %v4148 = vpop.f32.mrb[0].mxu0
      %4149 = vmatprep.mubr.bf16.mxu0 0
      %4150 = vmatmul.mubr.bf16.gmra.mrb[0].mxu0 %v1946
      %v4151 = vpop.f32.mrb[0].mxu0
      %v4152 = vadd.f32 0.0, %v4151
      %v4153 = vpop.f32.mrb[0].mxu0
      %v4154 = vpop.f32.mrb[0].mxu0
      %v4155 = vadd.f32 0.0, %v4154
      %v4156 = vpop.f32.mrb[0].mxu0
      %4157 = vmatprep.mubr.bf16.mxu0 0
      %4158 = vmatmul.mubr.bf16.gmra.mrb[0].mxu0 %v1949
      %v4159 = vpop.f32.mrb[0].mxu0
      %v4160 = vadd.f32 0.0, %v4159
      %v4161 = vpop.f32.mrb[0].mxu0
      %v4162 = vpop.f32.mrb[0].mxu0
      %v4163 = vadd.f32 0.0, %v4162
      %v4164 = vpop.f32.mrb[0].mxu0
      %4165 = vmatprep.mubr.bf16.mxu0 0
      %4166 = vmatmul.mubr.bf16.gmra.mrb[0].mxu0 %v1952
      %v4167 = vpop.f32.mrb[0].mxu0
      %v4168 = vadd.f32 0.0, %v4167
      %v4169 = vpop.f32.mrb[0].mxu0
      %v4170 = vpop.f32.mrb[0].mxu0
      %v4171 = vadd.f32 0.0, %v4170
      %v4172 = vpop.f32.mrb[0].mxu0
      %4173 = vmatprep.mubr.bf16.mxu0 0
      %4174 = vmatmul.mubr.bf16.gmra.mrb[0].mxu0 %v1955
      %v4175 = vpop.f32.mrb[0].mxu0
      %v4176 = vadd.f32 0.0, %v4175
      %v4177 = vpop.f32.mrb[0].mxu0
      %v4178 = vpop.f32.mrb[0].mxu0
      %v4179 = vadd.f32 0.0, %v4178
      %v4180 = vpop.f32.mrb[0].mxu0
      %4181 = vmatprep.mubr.bf16.mxu0 0
      %4182 = vmatmul.mubr.bf16.gmra.mrb[0].mxu0 %v1958
      %v4183 = vpop.f32.mrb[0].mxu0
      %v4184 = vadd.f32 0.0, %v4183
      %v4185 = vpop.f32.mrb[0].mxu0
      %v4186 = vpop.f32.mrb[0].mxu0
      %v4187 = vadd.f32 0.0, %v4186
      %v4188 = vpop.f32.mrb[0].mxu0
      %4189 = vmatprep.mubr.bf16.mxu0 0
      %4190 = vmatmul.mubr.bf16.gmra.mrb[0].mxu0 %v1961
      %v4191 = vpop.f32.mrb[0].mxu0
      %v4192 = vadd.f32 0.0, %v4191
      %v4193 = vpop.f32.mrb[0].mxu0
      %v4194 = vpop.f32.mrb[0].mxu0
      %v4195 = vadd.f32 0.0, %v4194
      %v4196 = vpop.f32.mrb[0].mxu0
      %4197 = vmatprep.mubr.bf16.mxu0 0
      %4198 = vmatmul.mubr.bf16.gmra.mrb[0].mxu0 %v1964
      %v4199 = vpop.f32.mrb[0].mxu0
      %v4200 = vadd.f32 0.0, %v4199
      %v4201 = vpop.f32.mrb[0].mxu0
      %v4202 = vpop.f32.mrb[0].mxu0
      %v4203 = vadd.f32 0.0, %v4202
      %v4204 = vpop.f32.mrb[0].mxu0
      %4205 = vmatprep.mubr.bf16.mxu0 0
      %4206 = vmatmul.mubr.bf16.gmra.mrb[0].mxu0 %v1967
      %v4207 = vpop.f32.mrb[0].mxu0
      %v4208 = vadd.f32 0.0, %v4207
      %v4209 = vpop.f32.mrb[0].mxu0
      %v4210 = vpop.f32.mrb[0].mxu0
      %v4211 = vadd.f32 0.0, %v4210
      %v4212 = vpop.f32.mrb[0].mxu0
      %4213 = vmatprep.mubr.bf16.mxu0 0
      %4214 = vmatmul.mubr.bf16.gmra.mrb[0].mxu0 %v1970
      %v4215 = vpop.f32.mrb[0].mxu0
      %v4216 = vadd.f32 0.0, %v4215
      %v4217 = vpop.f32.mrb[0].mxu0
      %v4218 = vpop.f32.mrb[0].mxu0
      %v4219 = vadd.f32 0.0, %v4218
      %v4220 = vpop.f32.mrb[0].mxu0
      %4221 = vmatprep.mubr.bf16.mxu0 0
      %4222 = vmatmul.mubr.bf16.gmra.mrb[0].mxu0 %v1973
      %v4223 = vpop.f32.mrb[0].mxu0
      %v4224 = vadd.f32 0.0, %v4223
      %v4225 = vpop.f32.mrb[0].mxu0
      %v4226 = vpop.f32.mrb[0].mxu0
      %v4227 = vadd.f32 0.0, %v4226
      %v4228 = vpop.f32.mrb[0].mxu0
      %4229 = vmatprep.mubr.bf16.mxu0 0
      %4230 = vmatmul.mubr.bf16.gmra.mrb[0].mxu0 %v1976
      %v4231 = vpop.f32.mrb[0].mxu0
      %v4232 = vadd.f32 0.0, %v4231
      %v4233 = vpop.f32.mrb[0].mxu0
      %v4234 = vpop.f32.mrb[0].mxu0
      %v4235 = vadd.f32 0.0, %v4234
      %v4236 = vpop.f32.mrb[0].mxu0
      %4237 = vmatprep.mubr.bf16.mxu0 0
      %4238 = vmatmul.mubr.bf16.gmra.mrb[0].mxu0 %v1979
      %v4239 = vpop.f32.mrb[0].mxu0
      %v4240 = vadd.f32 0.0, %v4239
      %v4241 = vpop.f32.mrb[0].mxu0
      %v4242 = vpop.f32.mrb[0].mxu0
      %v4243 = vadd.f32 0.0, %v4242
      %v4244 = vpop.f32.mrb[0].mxu0
      %4245 = vmatprep.mubr.bf16.mxu0 0
      %4246 = vmatmul.mubr.bf16.gmra.mrb[0].mxu0 %v1982
      %v4247 = vpop.f32.mrb[0].mxu0
      %v4248 = vadd.f32 0.0, %v4247
      %v4249 = vpop.f32.mrb[0].mxu0
      %v4250 = vpop.f32.mrb[0].mxu0
      %v4251 = vadd.f32 0.0, %v4250
      %v4252 = vpop.f32.mrb[0].mxu0
      %4253 = vmatprep.mubr.bf16.mxu0 0
      %4254 = vmatmul.mubr.bf16.gmra.mrb[0].mxu0 %v1985
      %v4255 = vpop.f32.mrb[0].mxu0
      %v4256 = vadd.f32 0.0, %v4255
      %v4257 = vpop.f32.mrb[0].mxu0
      %v4258 = vpop.f32.mrb[0].mxu0
      %v4259 = vadd.f32 0.0, %v4258
      %v4260 = vpop.f32.mrb[0].mxu0
      %4261 = vmatprep.mubr.bf16.mxu0 0
      %4262 = vmatmul.mubr.bf16.gmra.mrb[0].mxu0 %v1988
      %v4263 = vpop.f32.mrb[0].mxu0
      %v4264 = vadd.f32 0.0, %v4263
      %v4265 = vpop.f32.mrb[0].mxu0
      %v4266 = vpop.f32.mrb[0].mxu0
      %v4267 = vadd.f32 0.0, %v4266
      %v4268 = vpop.f32.mrb[0].mxu0
      %4269 = vmatprep.mubr.bf16.mxu0 0
      %4270 = vmatmul.mubr.bf16.gmra.mrb[0].mxu0 %v1991
      %v4271 = vpop.f32.mrb[0].mxu0
      %v4272 = vadd.f32 0.0, %v4271
      %v4273 = vpop.f32.mrb[0].mxu0
      %v4274 = vpop.f32.mrb[0].mxu0
      %v4275 = vadd.f32 0.0, %v4274
      %v4276 = vpop.f32.mrb[0].mxu0
      %4277 = vmatprep.mubr.bf16.mxu0 0
      %4278 = vmatmul.mubr.bf16.gmra.mrb[0].mxu0 %v1994
      %v4279 = vpop.f32.mrb[0].mxu0
      %v4280 = vadd.f32 0.0, %v4279
      %v4281 = vpop.f32.mrb[0].mxu0
      %v4282 = vpop.f32.mrb[0].mxu0
      %v4283 = vadd.f32 0.0, %v4282
      %v4284 = vpop.f32.mrb[0].mxu0
      %4285 = vmatprep.mubr.bf16.mxu0 0
      %4286 = vmatmul.mubr.bf16.gmra.mrb[0].mxu0 %v1997
      %v4287 = vpop.f32.mrb[0].mxu0
      %v4288 = vadd.f32 0.0, %v4287
      %v4289 = vpop.f32.mrb[0].mxu0
      %v4290 = vpop.f32.mrb[0].mxu0
      %v4291 = vadd.f32 0.0, %v4290
      %v4292 = vpop.f32.mrb[0].mxu0
      %4293 = vmatprep.mubr.bf16.mxu0 0
      %4294 = vmatmul.mubr.bf16.gmra.mrb[0].mxu0 %v2000
      %v4295 = vpop.f32.mrb[0].mxu0
      %v4296 = vadd.f32 0.0, %v4295
      %v4297 = vpop.f32.mrb[0].mxu0
      %v4298 = vpop.f32.mrb[0].mxu0
      %v4299 = vadd.f32 0.0, %v4298
      %v4300 = vpop.f32.mrb[0].mxu0
      %4301 = vmatprep.mubr.bf16.mxu0 0
      %4302 = vmatmul.mubr.bf16.gmra.mrb[0].mxu0 %v2003
      %v4303 = vpop.f32.mrb[0].mxu0
      %v4304 = vadd.f32 0.0, %v4303
      %v4305 = vpop.f32.mrb[0].mxu0
      %v4306 = vpop.f32.mrb[0].mxu0
      %v4307 = vadd.f32 0.0, %v4306
      %v4308 = vpop.f32.mrb[0].mxu0
      %4309 = vmatprep.mubr.bf16.mxu0 0
      %4310 = vmatmul.mubr.bf16.gmra.mrb[0].mxu0 %v2006
      %v4311 = vpop.f32.mrb[0].mxu0
      %v4312 = vadd.f32 0.0, %v4311
      %v4313 = vpop.f32.mrb[0].mxu0
      %v4314 = vpop.f32.mrb[0].mxu0
      %v4315 = vadd.f32 0.0, %v4314
      %v4316 = vpop.f32.mrb[0].mxu0
      %4317 = vmatprep.mubr.bf16.mxu0 0
      %4318 = vmatmul.mubr.bf16.gmra.mrb[0].mxu0 %v2009
      %v4319 = vpop.f32.mrb[0].mxu0
      %v4320 = vadd.f32 0.0, %v4319
      %v4321 = vpop.f32.mrb[0].mxu0
      %v4322 = vpop.f32.mrb[0].mxu0
      %v4323 = vadd.f32 0.0, %v4322
      %v4324 = vpop.f32.mrb[0].mxu0
      %4325 = vmatprep.mubr.bf16.mxu0 0
      %4326 = vmatmul.mubr.bf16.gmra.mrb[0].mxu0 %v2012
      %v4327 = vpop.f32.mrb[0].mxu0
      %v4328 = vadd.f32 0.0, %v4327
      %v4329 = vpop.f32.mrb[0].mxu0
      %v4330 = vpop.f32.mrb[0].mxu0
      %v4331 = vadd.f32 0.0, %v4330
      %v4332 = vpop.f32.mrb[0].mxu0
      %4333 = vmatprep.mubr.bf16.mxu0 0
      %4334 = vmatmul.mubr.bf16.gmra.mrb[0].mxu0 %v2015
      %v4335 = vpop.f32.mrb[0].mxu0
      %v4336 = vadd.f32 0.0, %v4335
      %v4337 = vpop.f32.mrb[0].mxu0
      %v4338 = vpop.f32.mrb[0].mxu0
      %v4339 = vadd.f32 0.0, %v4338
      %v4340 = vpop.f32.mrb[0].mxu0
      %4341 = vmatprep.mubr.bf16.mxu0 0
      %4342 = vmatmul.mubr.bf16.gmra.mrb[0].mxu0 %v2018
      %v4343 = vpop.f32.mrb[0].mxu0
      %v4344 = vadd.f32 0.0, %v4343
      %v4345 = vpop.f32.mrb[0].mxu0
      %v4346 = vpop.f32.mrb[0].mxu0
      %v4347 = vadd.f32 0.0, %v4346
      %v4348 = vpop.f32.mrb[0].mxu0
      %4349 = vmatprep.mubr.bf16.mxu0 0
      %4350 = vmatmul.mubr.bf16.gmra.mrb[0].mxu0 %v2021
      %v4351 = vpop.f32.mrb[0].mxu0
      %v4352 = vadd.f32 0.0, %v4351
      %v4353 = vpop.f32.mrb[0].mxu0
      %v4354 = vpop.f32.mrb[0].mxu0
      %v4355 = vadd.f32 0.0, %v4354
      %v4356 = vpop.f32.mrb[0].mxu0
      %4357 = vmatprep.mubr.bf16.mxu0 0
      %4358 = vmatmul.mubr.bf16.gmra.mrb[0].mxu0 %v2024
      %v4359 = vpop.f32.mrb[0].mxu0
      %v4360 = vadd.f32 0.0, %v4359
      %v4361 = vpop.f32.mrb[0].mxu0
      %v4362 = vpop.f32.mrb[0].mxu0
      %v4363 = vadd.f32 0.0, %v4362
      %v4364 = vpop.f32.mrb[0].mxu0
      %4365 = vmatprep.mubr.bf16.mxu0 0
      %4366 = vmatmul.mubr.bf16.gmra.mrb[0].mxu0 %v2027
      %v4367 = vpop.f32.mrb[0].mxu0
      %v4368 = vadd.f32 0.0, %v4367
      %v4369 = vpop.f32.mrb[0].mxu0
      %v4370 = vpop.f32.mrb[0].mxu0
      %v4371 = vadd.f32 0.0, %v4370
      %v4372 = vpop.f32.mrb[0].mxu0
      %4373 = vmatprep.mubr.bf16.mxu0 0
      %4374 = vmatmul.mubr.bf16.gmra.mrb[0].mxu0 %v2030
      %v4375 = vpop.f32.mrb[0].mxu0
      %v4376 = vadd.f32 0.0, %v4375
      %v4377 = vpop.f32.mrb[0].mxu0
      %v4378 = vpop.f32.mrb[0].mxu0
      %v4379 = vadd.f32 0.0, %v4378
      %v4380 = vpop.f32.mrb[0].mxu0
      %4381 = vmatprep.mubr.bf16.mxu0 0
      %4382 = vmatmul.mubr.bf16.gmra.mrb[0].mxu0 %v2033
      %v4383 = vpop.f32.mrb[0].mxu0
      %v4384 = vadd.f32 0.0, %v4383
      %v4385 = vpop.f32.mrb[0].mxu0
      %v4386 = vpop.f32.mrb[0].mxu0
      %v4387 = vadd.f32 0.0, %v4386
      %v4388 = vpop.f32.mrb[0].mxu0
      %4389 = vmatprep.mubr.bf16.mxu0 0
      %4390 = vmatmul.mubr.bf16.gmra.mrb[0].mxu0 %v2036
      %v4391 = vpop.f32.mrb[0].mxu0
      %v4392 = vadd.f32 0.0, %v4391
      %v4393 = vpop.f32.mrb[0].mxu0
      %v4394 = vpop.f32.mrb[0].mxu0
      %v4395 = vadd.f32 0.0, %v4394
      %v4396 = vpop.f32.mrb[0].mxu0
      %4397 = vmatprep.mubr.bf16.mxu0 0
      %4398 = vmatmul.mubr.bf16.gmra.mrb[0].mxu0 %v2039
      %v4399 = vpop.f32.mrb[0].mxu0
      %v4400 = vadd.f32 0.0, %v4399
      %v4401 = vpop.f32.mrb[0].mxu0
      %v4402 = vpop.f32.mrb[0].mxu0
      %v4403 = vadd.f32 0.0, %v4402
      %v4404 = vpop.f32.mrb[0].mxu0
      %4405 = vmatprep.mubr.bf16.mxu0 0
      %4406 = vmatmul.mubr.bf16.gmra.mrb[0].mxu0 %v2042
      %v4407 = vpop.f32.mrb[0].mxu0
      %v4408 = vadd.f32 0.0, %v4407
      %v4409 = vpop.f32.mrb[0].mxu0
      %v4410 = vpop.f32.mrb[0].mxu0
      %v4411 = vadd.f32 0.0, %v4410
      %v4412 = vpop.f32.mrb[0].mxu0
      %4413 = vmatprep.mubr.bf16.mxu0 0
      %4414 = vmatmul.mubr.bf16.gmra.mrb[0].mxu0 %v2045
      %v4415 = vpop.f32.mrb[0].mxu0
      %v4416 = vadd.f32 0.0, %v4415
      %v4417 = vpop.f32.mrb[0].mxu0
      %v4418 = vpop.f32.mrb[0].mxu0
      %v4419 = vadd.f32 0.0, %v4418
      %v4420 = vpop.f32.mrb[0].mxu0
      %4421 = vmatprep.mubr.bf16.mxu0 0
      %4422 = vmatmul.mubr.bf16.gmra.mrb[0].mxu0 %v2048
      %v4423 = vpop.f32.mrb[0].mxu0
      %v4424 = vadd.f32 0.0, %v4423
      %v4425 = vpop.f32.mrb[0].mxu0
      %v4426 = vpop.f32.mrb[0].mxu0
      %v4427 = vadd.f32 0.0, %v4426
      %v4428 = vpop.f32.mrb[0].mxu0
      %4429 = vmatprep.mubr.bf16.mxu0 0
      %4430 = vmatmul.mubr.bf16.gmra.mrb[0].mxu0 %v2051
      %v4431 = vpop.f32.mrb[0].mxu0
      %v4432 = vadd.f32 0.0, %v4431
      %v4433 = vpop.f32.mrb[0].mxu0
      %v4434 = vpop.f32.mrb[0].mxu0
      %v4435 = vadd.f32 0.0, %v4434
      %v4436 = vpop.f32.mrb[0].mxu0
      %4437 = vmatprep.mubr.bf16.mxu0 0
      %4438 = vmatmul.mubr.bf16.gmra.mrb[0].mxu0 %v2054
      %v4439 = vpop.f32.mrb[0].mxu0
      %v4440 = vadd.f32 0.0, %v4439
      %v4441 = vpop.f32.mrb[0].mxu0
      %v4442 = vpop.f32.mrb[0].mxu0
      %v4443 = vadd.f32 0.0, %v4442
      %v4444 = vpop.f32.mrb[0].mxu0
      %4445 = vmatprep.mubr.bf16.mxu0 0
      %4446 = vmatmul.mubr.bf16.gmra.mrb[0].mxu0 %v2057
      %v4447 = vpop.f32.mrb[0].mxu0
      %v4448 = vadd.f32 0.0, %v4447
      %v4449 = vpop.f32.mrb[0].mxu0
      %v4450 = vpop.f32.mrb[0].mxu0
      %v4451 = vadd.f32 0.0, %v4450
      %v4452 = vpop.f32.mrb[0].mxu0
      %4453 = vmatprep.mubr.bf16.mxu0 0
      %4454 = vmatmul.mubr.bf16.gmra.mrb[0].mxu0 %v2060
      %v4455 = vpop.f32.mrb[0].mxu0
      %v4456 = vadd.f32 0.0, %v4455
      %v4457 = vpop.f32.mrb[0].mxu0
      %v4458 = vpop.f32.mrb[0].mxu0
      %v4459 = vadd.f32 0.0, %v4458
      %v4460 = vpop.f32.mrb[0].mxu0
      %4461 = vmatprep.mubr.bf16.mxu0 0
      %4462 = vmatmul.mubr.bf16.gmra.mrb[0].mxu0 %v2063
      %v4463 = vpop.f32.mrb[0].mxu0
      %v4464 = vadd.f32 0.0, %v4463
      %v4465 = vpop.f32.mrb[0].mxu0
      %v4466 = vpop.f32.mrb[0].mxu0
      %v4467 = vadd.f32 0.0, %v4466
      %v4468 = vpop.f32.mrb[0].mxu0
      %4469 = vmatprep.mubr.bf16.mxu0 0
      %4470 = vmatmul.mubr.bf16.gmra.mrb[0].mxu0 %v2066
      %v4471 = vpop.f32.mrb[0].mxu0
      %v4472 = vadd.f32 0.0, %v4471
      %v4473 = vpop.f32.mrb[0].mxu0
      %v4474 = vpop.f32.mrb[0].mxu0
      %v4475 = vadd.f32 0.0, %v4474
      %v4476 = vpop.f32.mrb[0].mxu0
      %4477 = vmatprep.mubr.bf16.mxu0 0
      %4478 = vmatmul.mubr.bf16.gmra.mrb[0].mxu0 %v1877
      %v4479 = vpop.f32.mrb[0].mxu0
      %v4480 = vadd.f32 0.0, %v4479
      %v4481 = vpop.f32.mrb[0].mxu0
      %v4482 = vpop.f32.mrb[0].mxu0
      %v4483 = vadd.f32 0.0, %v4482
      %v4484 = vpop.f32.mrb[0].mxu0
      %4485 = vdwg.mxu0
      %v4486 = vadd.f32 %v3808, %v3976
      %v4487 = vadd.f32 %v3809, %v3979
      %v4488 = vadd.f32 %v3810, %v3984
      %v4489 = vadd.f32 %v3811, %v3987
      %v4490 = vadd.f32 %v3812, %v3992
      %v4491 = vadd.f32 %v3813, %v3995
      %v4492 = vadd.f32 %v3814, %v4000
      %v4493 = vadd.f32 %v3815, %v4003
      %v4494 = vadd.f32 %v3816, %v4008
      %v4495 = vadd.f32 %v3817, %v4011
      %v4496 = vadd.f32 %v3818, %v4016
      %v4497 = vadd.f32 %v3819, %v4019
      %v4498 = vadd.f32 %v3820, %v4024
      %v4499 = vadd.f32 %v3821, %v4027
      %v4500 = vadd.f32 %v3822, %v4032
      %v4501 = vadd.f32 %v3823, %v4035
      %v4502 = vadd.f32 %v3824, %v4040
      %v4503 = vadd.f32 %v3825, %v4043
      %v4504 = vadd.f32 %v3826, %v4048
      %v4505 = vadd.f32 %v3827, %v4051
      %v4506 = vadd.f32 %v3828, %v4056
      %v4507 = vadd.f32 %v3829, %v4059
      %v4508 = vadd.f32 %v3830, %v4064
      %v4509 = vadd.f32 %v3831, %v4067
      %v4510 = vadd.f32 %v3832, %v4072
      %v4511 = vadd.f32 %v3833, %v4075
      %v4512 = vadd.f32 %v3834, %v4080
      %v4513 = vadd.f32 %v3835, %v4083
      %v4514 = vadd.f32 %v3836, %v4088
      %v4515 = vadd.f32 %v3837, %v4091
      %v4516 = vadd.f32 %v3838, %v4096
      %v4517 = vadd.f32 %v3839, %v4099
      %v4518 = vadd.f32 %v3840, %v4104
      %v4519 = vadd.f32 %v3841, %v4107
      %v4520 = vadd.f32 %v3842, %v4112
      %v4521 = vadd.f32 %v3843, %v4115
      %v4522 = vadd.f32 %v3844, %v4120
      %v4523 = vadd.f32 %v3845, %v4123
      %v4524 = vadd.f32 %v3846, %v4128
      %v4525 = vadd.f32 %v3847, %v4131
      %v4526 = vadd.f32 %v3848, %v4136
      %v4527 = vadd.f32 %v3849, %v4139
      %v4528 = vadd.f32 %v3850, %v4144
      %v4529 = vadd.f32 %v3851, %v4147
      %v4530 = vadd.f32 %v3852, %v4152
      %v4531 = vadd.f32 %v3853, %v4155
      %v4532 = vadd.f32 %v3854, %v4160
      %v4533 = vadd.f32 %v3855, %v4163
      %v4534 = vadd.f32 %v3856, %v4168
      %v4535 = vadd.f32 %v3857, %v4171
      %v4536 = vadd.f32 %v3858, %v4176
      %v4537 = vadd.f32 %v3859, %v4179
      %v4538 = vadd.f32 %v3860, %v4184
      %v4539 = vadd.f32 %v3861, %v4187
      %v4540 = vadd.f32 %v3862, %v4192
      %v4541 = vadd.f32 %v3863, %v4195
      %v4542 = vadd.f32 %v3864, %v4200
      %v4543 = vadd.f32 %v3865, %v4203
      %v4544 = vadd.f32 %v3866, %v4208
      %v4545 = vadd.f32 %v3867, %v4211
      %v4546 = vadd.f32 %v3868, %v4216
      %v4547 = vadd.f32 %v3869, %v4219
      %v4548 = vadd.f32 %v3870, %v4224
      %v4549 = vadd.f32 %v3871, %v4227
      %v4550 = vadd.f32 %v3872, %v4232
      %v4551 = vadd.f32 %v3873, %v4235
      %v4552 = vadd.f32 %v3874, %v4240
      %v4553 = vadd.f32 %v3875, %v4243
      %v4554 = vadd.f32 %v3876, %v4248
      %v4555 = vadd.f32 %v3877, %v4251
      %v4556 = vadd.f32 %v3878, %v4256
      %v4557 = vadd.f32 %v3879, %v4259
      %v4558 = vadd.f32 %v3880, %v4264
      %v4559 = vadd.f32 %v3881, %v4267
      %v4560 = vadd.f32 %v3882, %v4272
      %v4561 = vadd.f32 %v3883, %v4275
      %v4562 = vadd.f32 %v3884, %v4280
      %v4563 = vadd.f32 %v3885, %v4283
      %v4564 = vadd.f32 %v3886, %v4288
      %v4565 = vadd.f32 %v3887, %v4291
      %v4566 = vadd.f32 %v3888, %v4296
      %v4567 = vadd.f32 %v3889, %v4299
      %v4568 = vadd.f32 %v3890, %v4304
      %v4569 = vadd.f32 %v3891, %v4307
      %v4570 = vadd.f32 %v3892, %v4312
      %v4571 = vadd.f32 %v3893, %v4315
      %v4572 = vadd.f32 %v3894, %v4320
      %v4573 = vadd.f32 %v3895, %v4323
      %v4574 = vadd.f32 %v3896, %v4328
      %v4575 = vadd.f32 %v3897, %v4331
      %v4576 = vadd.f32 %v3898, %v4336
      %v4577 = vadd.f32 %v3899, %v4339
      %v4578 = vadd.f32 %v3900, %v4344
      %v4579 = vadd.f32 %v3901, %v4347
      %v4580 = vadd.f32 %v3902, %v4352
      %v4581 = vadd.f32 %v3903, %v4355
      %v4582 = vadd.f32 %v3904, %v4360
      %v4583 = vadd.f32 %v3905, %v4363
      %v4584 = vadd.f32 %v3906, %v4368
      %v4585 = vadd.f32 %v3907, %v4371
      %v4586 = vadd.f32 %v3908, %v4376
      %v4587 = vadd.f32 %v3909, %v4379
      %v4588 = vadd.f32 %v3910, %v4384
      %v4589 = vadd.f32 %v3911, %v4387
      %v4590 = vadd.f32 %v3912, %v4392
      %v4591 = vadd.f32 %v3913, %v4395
      %v4592 = vadd.f32 %v3914, %v4400
      %v4593 = vadd.f32 %v3915, %v4403
      %v4594 = vadd.f32 %v3916, %v4408
      %v4595 = vadd.f32 %v3917, %v4411
      %v4596 = vadd.f32 %v3918, %v4416
      %v4597 = vadd.f32 %v3919, %v4419
      %v4598 = vadd.f32 %v3920, %v4424
      %v4599 = vadd.f32 %v3921, %v4427
      %v4600 = vadd.f32 %v3922, %v4432
      %v4601 = vadd.f32 %v3923, %v4435
      %v4602 = vadd.f32 %v3924, %v4440
      %v4603 = vadd.f32 %v3925, %v4443
      %v4604 = vadd.f32 %v3926, %v4448
      %v4605 = vadd.f32 %v3927, %v4451
      %v4606 = vadd.f32 %v3928, %v4456
      %v4607 = vadd.f32 %v3929, %v4459
      %v4608 = vadd.f32 %v3930, %v4464
      %v4609 = vadd.f32 %v3931, %v4467
      %v4610 = vadd.f32 %v3932, %v4472
      %v4611 = vadd.f32 %v3933, %v4475
      %v4612 = vadd.f32 %v3934, %v4480
      %v4613 = vadd.f32 %v3935, %v4483
      %s4614 = scalar_lea.vmem %s1, 16
      %v4615 = vld [vmem:[%s4614] sm:$0xf]
      %v4617 = vsel %vm1327, %v4615, 0
      %4619 = vmatprep.subr.bf16.mxu0 0
      %4620 = vmatpush1.bf16.msra.mxu0 %v4617
      %4621 = vmatprep.subr.bf16.mxu0 0
      %4622 = vmatpush1.bf16.msra.mxu0 0
      %4623 = vmatprep.subr.bf16.mxu0 0
      %4624 = vmatpush1.bf16.msra.mxu0 0
      %4625 = vmatprep.subr.bf16.mxu0 0
      %4626 = vmatpush1.bf16.msra.mxu0 0
      %4627 = vmatprep.subr.bf16.mxu0 0
      %4628 = vmatpush1.bf16.msra.mxu0 0
      %4629 = vmatprep.subr.bf16.mxu0 0
      %4630 = vmatpush1.bf16.msra.mxu0 0
      %4631 = vmatprep.subr.bf16.mxu0 0
      %4632 = vmatpush1.bf16.msra.mxu0 0
      %4633 = vmatprep.subr.bf16.mxu0 0
      %4634 = vmatpush1.bf16.msra.mxu0 0
      %4635 = vmatprep.subr.bf16.mxu0 0
      %4636 = vmatpush1.bf16.msra.mxu0 0
      %4637 = vmatprep.subr.bf16.mxu0 0
      %4638 = vmatpush1.bf16.msra.mxu0 0
      %4639 = vmatprep.subr.bf16.mxu0 0
      %4640 = vmatpush1.bf16.msra.mxu0 0
      %4641 = vmatprep.subr.bf16.mxu0 0
      %4642 = vmatpush1.bf16.msra.mxu0 0
      %4643 = vmatprep.subr.bf16.mxu0 0
      %4644 = vmatpush1.bf16.msra.mxu0 0
      %4645 = vmatprep.subr.bf16.mxu0 0
      %4646 = vmatpush1.bf16.msra.mxu0 0
      %4647 = vmatprep.subr.bf16.mxu0 0
      %4648 = vmatpush1.bf16.msra.mxu0 0
      %4649 = vmatprep.subr.bf16.mxu0 0
      %4650 = vmatpush1.bf16.msra.mxu0 0
      %4651 = vmatprep.mubr.bf16.mxu0 0
      %4652 = vmatmul.mubr.bf16.gmra.mrb[0].mxu0 %v1139
      %v4653 = vpop.f32.mrb[0].mxu0
      %v4654 = vadd.f32 0.0, %v4653
      %v4655 = vpop.f32.mrb[0].mxu0
      %v4656 = vpop.f32.mrb[0].mxu0
      %v4657 = vadd.f32 0.0, %v4656
      %v4658 = vpop.f32.mrb[0].mxu0
      %4659 = vmatprep.mubr.bf16.mxu0 0
      %4660 = vmatmul.mubr.bf16.gmra.mrb[0].mxu0 %v1142
      %v4661 = vpop.f32.mrb[0].mxu0
      %v4662 = vadd.f32 0.0, %v4661
      %v4663 = vpop.f32.mrb[0].mxu0
      %v4664 = vpop.f32.mrb[0].mxu0
      %v4665 = vadd.f32 0.0, %v4664
      %v4666 = vpop.f32.mrb[0].mxu0
      %4667 = vmatprep.mubr.bf16.mxu0 0
      %4668 = vmatmul.mubr.bf16.gmra.mrb[0].mxu0 %v1145
      %v4669 = vpop.f32.mrb[0].mxu0
      %v4670 = vadd.f32 0.0, %v4669
      %v4671 = vpop.f32.mrb[0].mxu0
      %v4672 = vpop.f32.mrb[0].mxu0
      %v4673 = vadd.f32 0.0, %v4672
      %v4674 = vpop.f32.mrb[0].mxu0
      %4675 = vmatprep.mubr.bf16.mxu0 0
      %4676 = vmatmul.mubr.bf16.gmra.mrb[0].mxu0 %v1148
      %v4677 = vpop.f32.mrb[0].mxu0
      %v4678 = vadd.f32 0.0, %v4677
      %v4679 = vpop.f32.mrb[0].mxu0
      %v4680 = vpop.f32.mrb[0].mxu0
      %v4681 = vadd.f32 0.0, %v4680
      %v4682 = vpop.f32.mrb[0].mxu0
      %4683 = vmatprep.mubr.bf16.mxu0 0
      %4684 = vmatmul.mubr.bf16.gmra.mrb[0].mxu0 %v1151
      %v4685 = vpop.f32.mrb[0].mxu0
      %v4686 = vadd.f32 0.0, %v4685
      %v4687 = vpop.f32.mrb[0].mxu0
      %v4688 = vpop.f32.mrb[0].mxu0
      %v4689 = vadd.f32 0.0, %v4688
      %v4690 = vpop.f32.mrb[0].mxu0
      %4691 = vmatprep.mubr.bf16.mxu0 0
      %4692 = vmatmul.mubr.bf16.gmra.mrb[0].mxu0 %v1154
      %v4693 = vpop.f32.mrb[0].mxu0
      %v4694 = vadd.f32 0.0, %v4693
      %v4695 = vpop.f32.mrb[0].mxu0
      %v4696 = vpop.f32.mrb[0].mxu0
      %v4697 = vadd.f32 0.0, %v4696
      %v4698 = vpop.f32.mrb[0].mxu0
      %4699 = vmatprep.mubr.bf16.mxu0 0
      %4700 = vmatmul.mubr.bf16.gmra.mrb[0].mxu0 %v1157
      %v4701 = vpop.f32.mrb[0].mxu0
      %v4702 = vadd.f32 0.0, %v4701
      %v4703 = vpop.f32.mrb[0].mxu0
      %v4704 = vpop.f32.mrb[0].mxu0
      %v4705 = vadd.f32 0.0, %v4704
      %v4706 = vpop.f32.mrb[0].mxu0
      %4707 = vmatprep.mubr.bf16.mxu0 0
      %4708 = vmatmul.mubr.bf16.gmra.mrb[0].mxu0 %v1160
      %v4709 = vpop.f32.mrb[0].mxu0
      %v4710 = vadd.f32 0.0, %v4709
      %v4711 = vpop.f32.mrb[0].mxu0
      %v4712 = vpop.f32.mrb[0].mxu0
      %v4713 = vadd.f32 0.0, %v4712
      %v4714 = vpop.f32.mrb[0].mxu0
      %4715 = vmatprep.mubr.bf16.mxu0 0
      %4716 = vmatmul.mubr.bf16.gmra.mrb[0].mxu0 %v1163
      %v4717 = vpop.f32.mrb[0].mxu0
      %v4718 = vadd.f32 0.0, %v4717
      %v4719 = vpop.f32.mrb[0].mxu0
      %v4720 = vpop.f32.mrb[0].mxu0
      %v4721 = vadd.f32 0.0, %v4720
      %v4722 = vpop.f32.mrb[0].mxu0
      %4723 = vmatprep.mubr.bf16.mxu0 0
      %4724 = vmatmul.mubr.bf16.gmra.mrb[0].mxu0 %v1166
      %v4725 = vpop.f32.mrb[0].mxu0
      %v4726 = vadd.f32 0.0, %v4725
      %v4727 = vpop.f32.mrb[0].mxu0
      %v4728 = vpop.f32.mrb[0].mxu0
      %v4729 = vadd.f32 0.0, %v4728
      %v4730 = vpop.f32.mrb[0].mxu0
      %4731 = vmatprep.mubr.bf16.mxu0 0
      %4732 = vmatmul.mubr.bf16.gmra.mrb[0].mxu0 %v1169
      %v4733 = vpop.f32.mrb[0].mxu0
      %v4734 = vadd.f32 0.0, %v4733
      %v4735 = vpop.f32.mrb[0].mxu0
      %v4736 = vpop.f32.mrb[0].mxu0
      %v4737 = vadd.f32 0.0, %v4736
      %v4738 = vpop.f32.mrb[0].mxu0
      %4739 = vmatprep.mubr.bf16.mxu0 0
      %4740 = vmatmul.mubr.bf16.gmra.mrb[0].mxu0 %v1172
      %v4741 = vpop.f32.mrb[0].mxu0
      %v4742 = vadd.f32 0.0, %v4741
      %v4743 = vpop.f32.mrb[0].mxu0
      %v4744 = vpop.f32.mrb[0].mxu0
      %v4745 = vadd.f32 0.0, %v4744
      %v4746 = vpop.f32.mrb[0].mxu0
      %4747 = vmatprep.mubr.bf16.mxu0 0
      %4748 = vmatmul.mubr.bf16.gmra.mrb[0].mxu0 %v1175
      %v4749 = vpop.f32.mrb[0].mxu0
      %v4750 = vadd.f32 0.0, %v4749
      %v4751 = vpop.f32.mrb[0].mxu0
      %v4752 = vpop.f32.mrb[0].mxu0
      %v4753 = vadd.f32 0.0, %v4752
      %v4754 = vpop.f32.mrb[0].mxu0
      %4755 = vmatprep.mubr.bf16.mxu0 0
      %4756 = vmatmul.mubr.bf16.gmra.mrb[0].mxu0 %v1178
      %v4757 = vpop.f32.mrb[0].mxu0
      %v4758 = vadd.f32 0.0, %v4757
      %v4759 = vpop.f32.mrb[0].mxu0
      %v4760 = vpop.f32.mrb[0].mxu0
      %v4761 = vadd.f32 0.0, %v4760
      %v4762 = vpop.f32.mrb[0].mxu0
      %4763 = vmatprep.mubr.bf16.mxu0 0
      %4764 = vmatmul.mubr.bf16.gmra.mrb[0].mxu0 %v1181
      %v4765 = vpop.f32.mrb[0].mxu0
      %v4766 = vadd.f32 0.0, %v4765
      %v4767 = vpop.f32.mrb[0].mxu0
      %v4768 = vpop.f32.mrb[0].mxu0
      %v4769 = vadd.f32 0.0, %v4768
      %v4770 = vpop.f32.mrb[0].mxu0
      %4771 = vmatprep.mubr.bf16.mxu0 0
      %4772 = vmatmul.mubr.bf16.gmra.mrb[0].mxu0 %v1184
      %v4773 = vpop.f32.mrb[0].mxu0
      %v4774 = vadd.f32 0.0, %v4773
      %v4775 = vpop.f32.mrb[0].mxu0
      %v4776 = vpop.f32.mrb[0].mxu0
      %v4777 = vadd.f32 0.0, %v4776
      %v4778 = vpop.f32.mrb[0].mxu0
      %4779 = vmatprep.mubr.bf16.mxu0 0
      %4780 = vmatmul.mubr.bf16.gmra.mrb[0].mxu0 %v1187
      %v4781 = vpop.f32.mrb[0].mxu0
      %v4782 = vadd.f32 0.0, %v4781
      %v4783 = vpop.f32.mrb[0].mxu0
      %v4784 = vpop.f32.mrb[0].mxu0
      %v4785 = vadd.f32 0.0, %v4784
      %v4786 = vpop.f32.mrb[0].mxu0
      %4787 = vmatprep.mubr.bf16.mxu0 0
      %4788 = vmatmul.mubr.bf16.gmra.mrb[0].mxu0 %v1190
      %v4789 = vpop.f32.mrb[0].mxu0
      %v4790 = vadd.f32 0.0, %v4789
      %v4791 = vpop.f32.mrb[0].mxu0
      %v4792 = vpop.f32.mrb[0].mxu0
      %v4793 = vadd.f32 0.0, %v4792
      %v4794 = vpop.f32.mrb[0].mxu0
      %4795 = vmatprep.mubr.bf16.mxu0 0
      %4796 = vmatmul.mubr.bf16.gmra.mrb[0].mxu0 %v1193
      %v4797 = vpop.f32.mrb[0].mxu0
      %v4798 = vadd.f32 0.0, %v4797
      %v4799 = vpop.f32.mrb[0].mxu0
      %v4800 = vpop.f32.mrb[0].mxu0
      %v4801 = vadd.f32 0.0, %v4800
      %v4802 = vpop.f32.mrb[0].mxu0
      %4803 = vmatprep.mubr.bf16.mxu0 0
      %4804 = vmatmul.mubr.bf16.gmra.mrb[0].mxu0 %v1196
      %v4805 = vpop.f32.mrb[0].mxu0
      %v4806 = vadd.f32 0.0, %v4805
      %v4807 = vpop.f32.mrb[0].mxu0
      %v4808 = vpop.f32.mrb[0].mxu0
      %v4809 = vadd.f32 0.0, %v4808
      %v4810 = vpop.f32.mrb[0].mxu0
      %4811 = vmatprep.mubr.bf16.mxu0 0
      %4812 = vmatmul.mubr.bf16.gmra.mrb[0].mxu0 %v1199
      %v4813 = vpop.f32.mrb[0].mxu0
      %v4814 = vadd.f32 0.0, %v4813
      %v4815 = vpop.f32.mrb[0].mxu0
      %v4816 = vpop.f32.mrb[0].mxu0
      %v4817 = vadd.f32 0.0, %v4816
      %v4818 = vpop.f32.mrb[0].mxu0
      %4819 = vmatprep.mubr.bf16.mxu0 0
      %4820 = vmatmul.mubr.bf16.gmra.mrb[0].mxu0 %v1202
      %v4821 = vpop.f32.mrb[0].mxu0
      %v4822 = vadd.f32 0.0, %v4821
      %v4823 = vpop.f32.mrb[0].mxu0
      %v4824 = vpop.f32.mrb[0].mxu0
      %v4825 = vadd.f32 0.0, %v4824
      %v4826 = vpop.f32.mrb[0].mxu0
      %4827 = vmatprep.mubr.bf16.mxu0 0
      %4828 = vmatmul.mubr.bf16.gmra.mrb[0].mxu0 %v1205
      %v4829 = vpop.f32.mrb[0].mxu0
      %v4830 = vadd.f32 0.0, %v4829
      %v4831 = vpop.f32.mrb[0].mxu0
      %v4832 = vpop.f32.mrb[0].mxu0
      %v4833 = vadd.f32 0.0, %v4832
      %v4834 = vpop.f32.mrb[0].mxu0
      %4835 = vmatprep.mubr.bf16.mxu0 0
      %4836 = vmatmul.mubr.bf16.gmra.mrb[0].mxu0 %v1208
      %v4837 = vpop.f32.mrb[0].mxu0
      %v4838 = vadd.f32 0.0, %v4837
      %v4839 = vpop.f32.mrb[0].mxu0
      %v4840 = vpop.f32.mrb[0].mxu0
      %v4841 = vadd.f32 0.0, %v4840
      %v4842 = vpop.f32.mrb[0].mxu0
      %4843 = vmatprep.mubr.bf16.mxu0 0
      %4844 = vmatmul.mubr.bf16.gmra.mrb[0].mxu0 %v1211
      %v4845 = vpop.f32.mrb[0].mxu0
      %v4846 = vadd.f32 0.0, %v4845
      %v4847 = vpop.f32.mrb[0].mxu0
      %v4848 = vpop.f32.mrb[0].mxu0
      %v4849 = vadd.f32 0.0, %v4848
      %v4850 = vpop.f32.mrb[0].mxu0
      %4851 = vmatprep.mubr.bf16.mxu0 0
      %4852 = vmatmul.mubr.bf16.gmra.mrb[0].mxu0 %v1214
      %v4853 = vpop.f32.mrb[0].mxu0
      %v4854 = vadd.f32 0.0, %v4853
      %v4855 = vpop.f32.mrb[0].mxu0
      %v4856 = vpop.f32.mrb[0].mxu0
      %v4857 = vadd.f32 0.0, %v4856
      %v4858 = vpop.f32.mrb[0].mxu0
      %4859 = vmatprep.mubr.bf16.mxu0 0
      %4860 = vmatmul.mubr.bf16.gmra.mrb[0].mxu0 %v1217
      %v4861 = vpop.f32.mrb[0].mxu0
      %v4862 = vadd.f32 0.0, %v4861
      %v4863 = vpop.f32.mrb[0].mxu0
      %v4864 = vpop.f32.mrb[0].mxu0
      %v4865 = vadd.f32 0.0, %v4864
      %v4866 = vpop.f32.mrb[0].mxu0
      %4867 = vmatprep.mubr.bf16.mxu0 0
      %4868 = vmatmul.mubr.bf16.gmra.mrb[0].mxu0 %v1220
      %v4869 = vpop.f32.mrb[0].mxu0
      %v4870 = vadd.f32 0.0, %v4869
      %v4871 = vpop.f32.mrb[0].mxu0
      %v4872 = vpop.f32.mrb[0].mxu0
      %v4873 = vadd.f32 0.0, %v4872
      %v4874 = vpop.f32.mrb[0].mxu0
      %4875 = vmatprep.mubr.bf16.mxu0 0
      %4876 = vmatmul.mubr.bf16.gmra.mrb[0].mxu0 %v1223
      %v4877 = vpop.f32.mrb[0].mxu0
      %v4878 = vadd.f32 0.0, %v4877
      %v4879 = vpop.f32.mrb[0].mxu0
      %v4880 = vpop.f32.mrb[0].mxu0
      %v4881 = vadd.f32 0.0, %v4880
      %v4882 = vpop.f32.mrb[0].mxu0
      %4883 = vmatprep.mubr.bf16.mxu0 0
      %4884 = vmatmul.mubr.bf16.gmra.mrb[0].mxu0 %v1226
      %v4885 = vpop.f32.mrb[0].mxu0
      %v4886 = vadd.f32 0.0, %v4885
      %v4887 = vpop.f32.mrb[0].mxu0
      %v4888 = vpop.f32.mrb[0].mxu0
      %v4889 = vadd.f32 0.0, %v4888
      %v4890 = vpop.f32.mrb[0].mxu0
      %4891 = vmatprep.mubr.bf16.mxu0 0
      %4892 = vmatmul.mubr.bf16.gmra.mrb[0].mxu0 %v1229
      %v4893 = vpop.f32.mrb[0].mxu0
      %v4894 = vadd.f32 0.0, %v4893
      %v4895 = vpop.f32.mrb[0].mxu0
      %v4896 = vpop.f32.mrb[0].mxu0
      %v4897 = vadd.f32 0.0, %v4896
      %v4898 = vpop.f32.mrb[0].mxu0
      %4899 = vmatprep.mubr.bf16.mxu0 0
      %4900 = vmatmul.mubr.bf16.gmra.mrb[0].mxu0 %v1232
      %v4901 = vpop.f32.mrb[0].mxu0
      %v4902 = vadd.f32 0.0, %v4901
      %v4903 = vpop.f32.mrb[0].mxu0
      %v4904 = vpop.f32.mrb[0].mxu0
      %v4905 = vadd.f32 0.0, %v4904
      %v4906 = vpop.f32.mrb[0].mxu0
      %4907 = vmatprep.mubr.bf16.mxu0 0
      %4908 = vmatmul.mubr.bf16.gmra.mrb[0].mxu0 %v1235
      %v4909 = vpop.f32.mrb[0].mxu0
      %v4910 = vadd.f32 0.0, %v4909
      %v4911 = vpop.f32.mrb[0].mxu0
      %v4912 = vpop.f32.mrb[0].mxu0
      %v4913 = vadd.f32 0.0, %v4912
      %v4914 = vpop.f32.mrb[0].mxu0
      %4915 = vmatprep.mubr.bf16.mxu0 0
      %4916 = vmatmul.mubr.bf16.gmra.mrb[0].mxu0 %v1238
      %v4917 = vpop.f32.mrb[0].mxu0
      %v4918 = vadd.f32 0.0, %v4917
      %v4919 = vpop.f32.mrb[0].mxu0
      %v4920 = vpop.f32.mrb[0].mxu0
      %v4921 = vadd.f32 0.0, %v4920
      %v4922 = vpop.f32.mrb[0].mxu0
      %4923 = vmatprep.mubr.bf16.mxu0 0
      %4924 = vmatmul.mubr.bf16.gmra.mrb[0].mxu0 %v1241
      %v4925 = vpop.f32.mrb[0].mxu0
      %v4926 = vadd.f32 0.0, %v4925
      %v4927 = vpop.f32.mrb[0].mxu0
      %v4928 = vpop.f32.mrb[0].mxu0
      %v4929 = vadd.f32 0.0, %v4928
      %v4930 = vpop.f32.mrb[0].mxu0
      %4931 = vmatprep.mubr.bf16.mxu0 0
      %4932 = vmatmul.mubr.bf16.gmra.mrb[0].mxu0 %v1244
      %v4933 = vpop.f32.mrb[0].mxu0
      %v4934 = vadd.f32 0.0, %v4933
      %v4935 = vpop.f32.mrb[0].mxu0
      %v4936 = vpop.f32.mrb[0].mxu0
      %v4937 = vadd.f32 0.0, %v4936
      %v4938 = vpop.f32.mrb[0].mxu0
      %4939 = vmatprep.mubr.bf16.mxu0 0
      %4940 = vmatmul.mubr.bf16.gmra.mrb[0].mxu0 %v1247
      %v4941 = vpop.f32.mrb[0].mxu0
      %v4942 = vadd.f32 0.0, %v4941
      %v4943 = vpop.f32.mrb[0].mxu0
      %v4944 = vpop.f32.mrb[0].mxu0
      %v4945 = vadd.f32 0.0, %v4944
      %v4946 = vpop.f32.mrb[0].mxu0
      %4947 = vmatprep.mubr.bf16.mxu0 0
      %4948 = vmatmul.mubr.bf16.gmra.mrb[0].mxu0 %v1250
      %v4949 = vpop.f32.mrb[0].mxu0
      %v4950 = vadd.f32 0.0, %v4949
      %v4951 = vpop.f32.mrb[0].mxu0
      %v4952 = vpop.f32.mrb[0].mxu0
      %v4953 = vadd.f32 0.0, %v4952
      %v4954 = vpop.f32.mrb[0].mxu0
      %4955 = vmatprep.mubr.bf16.mxu0 0
      %4956 = vmatmul.mubr.bf16.gmra.mrb[0].mxu0 %v1253
      %v4957 = vpop.f32.mrb[0].mxu0
      %v4958 = vadd.f32 0.0, %v4957
      %v4959 = vpop.f32.mrb[0].mxu0
      %v4960 = vpop.f32.mrb[0].mxu0
      %v4961 = vadd.f32 0.0, %v4960
      %v4962 = vpop.f32.mrb[0].mxu0
      %4963 = vmatprep.mubr.bf16.mxu0 0
      %4964 = vmatmul.mubr.bf16.gmra.mrb[0].mxu0 %v1256
      %v4965 = vpop.f32.mrb[0].mxu0
      %v4966 = vadd.f32 0.0, %v4965
      %v4967 = vpop.f32.mrb[0].mxu0
      %v4968 = vpop.f32.mrb[0].mxu0
      %v4969 = vadd.f32 0.0, %v4968
      %v4970 = vpop.f32.mrb[0].mxu0
      %4971 = vmatprep.mubr.bf16.mxu0 0
      %4972 = vmatmul.mubr.bf16.gmra.mrb[0].mxu0 %v1259
      %v4973 = vpop.f32.mrb[0].mxu0
      %v4974 = vadd.f32 0.0, %v4973
      %v4975 = vpop.f32.mrb[0].mxu0
      %v4976 = vpop.f32.mrb[0].mxu0
      %v4977 = vadd.f32 0.0, %v4976
      %v4978 = vpop.f32.mrb[0].mxu0
      %4979 = vmatprep.mubr.bf16.mxu0 0
      %4980 = vmatmul.mubr.bf16.gmra.mrb[0].mxu0 %v1262
      %v4981 = vpop.f32.mrb[0].mxu0
      %v4982 = vadd.f32 0.0, %v4981
      %v4983 = vpop.f32.mrb[0].mxu0
      %v4984 = vpop.f32.mrb[0].mxu0
      %v4985 = vadd.f32 0.0, %v4984
      %v4986 = vpop.f32.mrb[0].mxu0
      %4987 = vmatprep.mubr.bf16.mxu0 0
      %4988 = vmatmul.mubr.bf16.gmra.mrb[0].mxu0 %v1265
      %v4989 = vpop.f32.mrb[0].mxu0
      %v4990 = vadd.f32 0.0, %v4989
      %v4991 = vpop.f32.mrb[0].mxu0
      %v4992 = vpop.f32.mrb[0].mxu0
      %v4993 = vadd.f32 0.0, %v4992
      %v4994 = vpop.f32.mrb[0].mxu0
      %4995 = vmatprep.mubr.bf16.mxu0 0
      %4996 = vmatmul.mubr.bf16.gmra.mrb[0].mxu0 %v1268
      %v4997 = vpop.f32.mrb[0].mxu0
      %v4998 = vadd.f32 0.0, %v4997
      %v4999 = vpop.f32.mrb[0].mxu0
      %v5000 = vpop.f32.mrb[0].mxu0
      %v5001 = vadd.f32 0.0, %v5000
      %v5002 = vpop.f32.mrb[0].mxu0
      %5003 = vmatprep.mubr.bf16.mxu0 0
      %5004 = vmatmul.mubr.bf16.gmra.mrb[0].mxu0 %v1271
      %v5005 = vpop.f32.mrb[0].mxu0
      %v5006 = vadd.f32 0.0, %v5005
      %v5007 = vpop.f32.mrb[0].mxu0
      %v5008 = vpop.f32.mrb[0].mxu0
      %v5009 = vadd.f32 0.0, %v5008
      %v5010 = vpop.f32.mrb[0].mxu0
      %5011 = vmatprep.mubr.bf16.mxu0 0
      %5012 = vmatmul.mubr.bf16.gmra.mrb[0].mxu0 %v1274
      %v5013 = vpop.f32.mrb[0].mxu0
      %v5014 = vadd.f32 0.0, %v5013
      %v5015 = vpop.f32.mrb[0].mxu0
      %v5016 = vpop.f32.mrb[0].mxu0
      %v5017 = vadd.f32 0.0, %v5016
      %v5018 = vpop.f32.mrb[0].mxu0
      %5019 = vmatprep.mubr.bf16.mxu0 0
      %5020 = vmatmul.mubr.bf16.gmra.mrb[0].mxu0 %v1277
      %v5021 = vpop.f32.mrb[0].mxu0
      %v5022 = vadd.f32 0.0, %v5021
      %v5023 = vpop.f32.mrb[0].mxu0
      %v5024 = vpop.f32.mrb[0].mxu0
      %v5025 = vadd.f32 0.0, %v5024
      %v5026 = vpop.f32.mrb[0].mxu0
      %5027 = vmatprep.mubr.bf16.mxu0 0
      %5028 = vmatmul.mubr.bf16.gmra.mrb[0].mxu0 %v1280
      %v5029 = vpop.f32.mrb[0].mxu0
      %v5030 = vadd.f32 0.0, %v5029
      %v5031 = vpop.f32.mrb[0].mxu0
      %v5032 = vpop.f32.mrb[0].mxu0
      %v5033 = vadd.f32 0.0, %v5032
      %v5034 = vpop.f32.mrb[0].mxu0
      %5035 = vmatprep.mubr.bf16.mxu0 0
      %5036 = vmatmul.mubr.bf16.gmra.mrb[0].mxu0 %v1283
      %v5037 = vpop.f32.mrb[0].mxu0
      %v5038 = vadd.f32 0.0, %v5037
      %v5039 = vpop.f32.mrb[0].mxu0
      %v5040 = vpop.f32.mrb[0].mxu0
      %v5041 = vadd.f32 0.0, %v5040
      %v5042 = vpop.f32.mrb[0].mxu0
      %5043 = vmatprep.mubr.bf16.mxu0 0
      %5044 = vmatmul.mubr.bf16.gmra.mrb[0].mxu0 %v1286
      %v5045 = vpop.f32.mrb[0].mxu0
      %v5046 = vadd.f32 0.0, %v5045
      %v5047 = vpop.f32.mrb[0].mxu0
      %v5048 = vpop.f32.mrb[0].mxu0
      %v5049 = vadd.f32 0.0, %v5048
      %v5050 = vpop.f32.mrb[0].mxu0
      %5051 = vmatprep.mubr.bf16.mxu0 0
      %5052 = vmatmul.mubr.bf16.gmra.mrb[0].mxu0 %v1289
      %v5053 = vpop.f32.mrb[0].mxu0
      %v5054 = vadd.f32 0.0, %v5053
      %v5055 = vpop.f32.mrb[0].mxu0
      %v5056 = vpop.f32.mrb[0].mxu0
      %v5057 = vadd.f32 0.0, %v5056
      %v5058 = vpop.f32.mrb[0].mxu0
      %5059 = vmatprep.mubr.bf16.mxu0 0
      %5060 = vmatmul.mubr.bf16.gmra.mrb[0].mxu0 %v1292
      %v5061 = vpop.f32.mrb[0].mxu0
      %v5062 = vadd.f32 0.0, %v5061
      %v5063 = vpop.f32.mrb[0].mxu0
      %v5064 = vpop.f32.mrb[0].mxu0
      %v5065 = vadd.f32 0.0, %v5064
      %v5066 = vpop.f32.mrb[0].mxu0
      %5067 = vmatprep.mubr.bf16.mxu0 0
      %5068 = vmatmul.mubr.bf16.gmra.mrb[0].mxu0 %v1295
      %v5069 = vpop.f32.mrb[0].mxu0
      %v5070 = vadd.f32 0.0, %v5069
      %v5071 = vpop.f32.mrb[0].mxu0
      %v5072 = vpop.f32.mrb[0].mxu0
      %v5073 = vadd.f32 0.0, %v5072
      %v5074 = vpop.f32.mrb[0].mxu0
      %5075 = vmatprep.mubr.bf16.mxu0 0
      %5076 = vmatmul.mubr.bf16.gmra.mrb[0].mxu0 %v1298
      %v5077 = vpop.f32.mrb[0].mxu0
      %v5078 = vadd.f32 0.0, %v5077
      %v5079 = vpop.f32.mrb[0].mxu0
      %v5080 = vpop.f32.mrb[0].mxu0
      %v5081 = vadd.f32 0.0, %v5080
      %v5082 = vpop.f32.mrb[0].mxu0
      %5083 = vmatprep.mubr.bf16.mxu0 0
      %5084 = vmatmul.mubr.bf16.gmra.mrb[0].mxu0 %v1301
      %v5085 = vpop.f32.mrb[0].mxu0
      %v5086 = vadd.f32 0.0, %v5085
      %v5087 = vpop.f32.mrb[0].mxu0
      %v5088 = vpop.f32.mrb[0].mxu0
      %v5089 = vadd.f32 0.0, %v5088
      %v5090 = vpop.f32.mrb[0].mxu0
      %5091 = vmatprep.mubr.bf16.mxu0 0
      %5092 = vmatmul.mubr.bf16.gmra.mrb[0].mxu0 %v1304
      %v5093 = vpop.f32.mrb[0].mxu0
      %v5094 = vadd.f32 0.0, %v5093
      %v5095 = vpop.f32.mrb[0].mxu0
      %v5096 = vpop.f32.mrb[0].mxu0
      %v5097 = vadd.f32 0.0, %v5096
      %v5098 = vpop.f32.mrb[0].mxu0
      %5099 = vmatprep.mubr.bf16.mxu0 0
      %5100 = vmatmul.mubr.bf16.gmra.mrb[0].mxu0 %v1307
      %v5101 = vpop.f32.mrb[0].mxu0
      %v5102 = vadd.f32 0.0, %v5101
      %v5103 = vpop.f32.mrb[0].mxu0
      %v5104 = vpop.f32.mrb[0].mxu0
      %v5105 = vadd.f32 0.0, %v5104
      %v5106 = vpop.f32.mrb[0].mxu0
      %5107 = vmatprep.mubr.bf16.mxu0 0
      %5108 = vmatmul.mubr.bf16.gmra.mrb[0].mxu0 %v1310
      %v5109 = vpop.f32.mrb[0].mxu0
      %v5110 = vadd.f32 0.0, %v5109
      %v5111 = vpop.f32.mrb[0].mxu0
      %v5112 = vpop.f32.mrb[0].mxu0
      %v5113 = vadd.f32 0.0, %v5112
      %v5114 = vpop.f32.mrb[0].mxu0
      %5115 = vmatprep.mubr.bf16.mxu0 0
      %5116 = vmatmul.mubr.bf16.gmra.mrb[0].mxu0 %v1313
      %v5117 = vpop.f32.mrb[0].mxu0
      %v5118 = vadd.f32 0.0, %v5117
      %v5119 = vpop.f32.mrb[0].mxu0
      %v5120 = vpop.f32.mrb[0].mxu0
      %v5121 = vadd.f32 0.0, %v5120
      %v5122 = vpop.f32.mrb[0].mxu0
      %5123 = vmatprep.mubr.bf16.mxu0 0
      %5124 = vmatmul.mubr.bf16.gmra.mrb[0].mxu0 %v1316
      %v5125 = vpop.f32.mrb[0].mxu0
      %v5126 = vadd.f32 0.0, %v5125
      %v5127 = vpop.f32.mrb[0].mxu0
      %v5128 = vpop.f32.mrb[0].mxu0
      %v5129 = vadd.f32 0.0, %v5128
      %v5130 = vpop.f32.mrb[0].mxu0
      %5131 = vmatprep.mubr.bf16.mxu0 0
      %5132 = vmatmul.mubr.bf16.gmra.mrb[0].mxu0 %v1319
      %v5133 = vpop.f32.mrb[0].mxu0
      %v5134 = vadd.f32 0.0, %v5133
      %v5135 = vpop.f32.mrb[0].mxu0
      %v5136 = vpop.f32.mrb[0].mxu0
      %v5137 = vadd.f32 0.0, %v5136
      %v5138 = vpop.f32.mrb[0].mxu0
      %5139 = vmatprep.mubr.bf16.mxu0 0
      %5140 = vmatmul.mubr.bf16.gmra.mrb[0].mxu0 %v1322
      %v5141 = vpop.f32.mrb[0].mxu0
      %v5142 = vadd.f32 0.0, %v5141
      %v5143 = vpop.f32.mrb[0].mxu0
      %v5144 = vpop.f32.mrb[0].mxu0
      %v5145 = vadd.f32 0.0, %v5144
      %v5146 = vpop.f32.mrb[0].mxu0
      %5147 = vmatprep.mubr.bf16.mxu0 0
      %5148 = vmatmul.mubr.bf16.gmra.mrb[0].mxu0 %v1325
      %v5149 = vpop.f32.mrb[0].mxu0
      %v5150 = vadd.f32 0.0, %v5149
      %v5151 = vpop.f32.mrb[0].mxu0
      %v5152 = vpop.f32.mrb[0].mxu0
      %v5153 = vadd.f32 0.0, %v5152
      %v5154 = vpop.f32.mrb[0].mxu0
      %5155 = vmatprep.mubr.bf16.mxu0 0
      %5156 = vmatmul.mubr.bf16.gmra.mrb[0].mxu0 %v1136
      %v5157 = vpop.f32.mrb[0].mxu0
      %v5158 = vadd.f32 0.0, %v5157
      %v5159 = vpop.f32.mrb[0].mxu0
      %v5160 = vpop.f32.mrb[0].mxu0
      %v5161 = vadd.f32 0.0, %v5160
      %v5162 = vpop.f32.mrb[0].mxu0
      %5163 = vdwg.mxu0
      %v5164 = vadd.f32 %v4486, %v4654
      %v5165 = vadd.f32 %v4487, %v4657
      %v5166 = vadd.f32 %v4488, %v4662
      %v5167 = vadd.f32 %v4489, %v4665
      %v5168 = vadd.f32 %v4490, %v4670
      %v5169 = vadd.f32 %v4491, %v4673
      %v5170 = vadd.f32 %v4492, %v4678
      %v5171 = vadd.f32 %v4493, %v4681
      %v5172 = vadd.f32 %v4494, %v4686
      %v5173 = vadd.f32 %v4495, %v4689
      %v5174 = vadd.f32 %v4496, %v4694
      %v5175 = vadd.f32 %v4497, %v4697
      %v5176 = vadd.f32 %v4498, %v4702
      %v5177 = vadd.f32 %v4499, %v4705
      %v5178 = vadd.f32 %v4500, %v4710
      %v5179 = vadd.f32 %v4501, %v4713
      %v5180 = vadd.f32 %v4502, %v4718
      %v5181 = vadd.f32 %v4503, %v4721
      %v5182 = vadd.f32 %v4504, %v4726
      %v5183 = vadd.f32 %v4505, %v4729
      %v5184 = vadd.f32 %v4506, %v4734
      %v5185 = vadd.f32 %v4507, %v4737
      %v5186 = vadd.f32 %v4508, %v4742
      %v5187 = vadd.f32 %v4509, %v4745
      %v5188 = vadd.f32 %v4510, %v4750
      %v5189 = vadd.f32 %v4511, %v4753
      %v5190 = vadd.f32 %v4512, %v4758
      %v5191 = vadd.f32 %v4513, %v4761
      %v5192 = vadd.f32 %v4514, %v4766
      %v5193 = vadd.f32 %v4515, %v4769
      %v5194 = vadd.f32 %v4516, %v4774
      %v5195 = vadd.f32 %v4517, %v4777
      %v5196 = vadd.f32 %v4518, %v4782
      %v5197 = vadd.f32 %v4519, %v4785
      %v5198 = vadd.f32 %v4520, %v4790
      %v5199 = vadd.f32 %v4521, %v4793
      %v5200 = vadd.f32 %v4522, %v4798
      %v5201 = vadd.f32 %v4523, %v4801
      %v5202 = vadd.f32 %v4524, %v4806
      %v5203 = vadd.f32 %v4525, %v4809
      %v5204 = vadd.f32 %v4526, %v4814
      %v5205 = vadd.f32 %v4527, %v4817
      %v5206 = vadd.f32 %v4528, %v4822
      %v5207 = vadd.f32 %v4529, %v4825
      %v5208 = vadd.f32 %v4530, %v4830
      %v5209 = vadd.f32 %v4531, %v4833
      %v5210 = vadd.f32 %v4532, %v4838
      %v5211 = vadd.f32 %v4533, %v4841
      %v5212 = vadd.f32 %v4534, %v4846
      %v5213 = vadd.f32 %v4535, %v4849
      %v5214 = vadd.f32 %v4536, %v4854
      %v5215 = vadd.f32 %v4537, %v4857
      %v5216 = vadd.f32 %v4538, %v4862
      %v5217 = vadd.f32 %v4539, %v4865
      %v5218 = vadd.f32 %v4540, %v4870
      %v5219 = vadd.f32 %v4541, %v4873
      %v5220 = vadd.f32 %v4542, %v4878
      %v5221 = vadd.f32 %v4543, %v4881
      %v5222 = vadd.f32 %v4544, %v4886
      %v5223 = vadd.f32 %v4545, %v4889
      %v5224 = vadd.f32 %v4546, %v4894
      %v5225 = vadd.f32 %v4547, %v4897
      %v5226 = vadd.f32 %v4548, %v4902
      %v5227 = vadd.f32 %v4549, %v4905
      %v5228 = vadd.f32 %v4550, %v4910
      %v5229 = vadd.f32 %v4551, %v4913
      %v5230 = vadd.f32 %v4552, %v4918
      %v5231 = vadd.f32 %v4553, %v4921
      %v5232 = vadd.f32 %v4554, %v4926
      %v5233 = vadd.f32 %v4555, %v4929
      %v5234 = vadd.f32 %v4556, %v4934
      %v5235 = vadd.f32 %v4557, %v4937
      %v5236 = vadd.f32 %v4558, %v4942
      %v5237 = vadd.f32 %v4559, %v4945
      %v5238 = vadd.f32 %v4560, %v4950
      %v5239 = vadd.f32 %v4561, %v4953
      %v5240 = vadd.f32 %v4562, %v4958
      %v5241 = vadd.f32 %v4563, %v4961
      %v5242 = vadd.f32 %v4564, %v4966
      %v5243 = vadd.f32 %v4565, %v4969
      %v5244 = vadd.f32 %v4566, %v4974
      %v5245 = vadd.f32 %v4567, %v4977
      %v5246 = vadd.f32 %v4568, %v4982
      %v5247 = vadd.f32 %v4569, %v4985
      %v5248 = vadd.f32 %v4570, %v4990
      %v5249 = vadd.f32 %v4571, %v4993
      %v5250 = vadd.f32 %v4572, %v4998
      %v5251 = vadd.f32 %v4573, %v5001
      %v5252 = vadd.f32 %v4574, %v5006
      %v5253 = vadd.f32 %v4575, %v5009
      %v5254 = vadd.f32 %v4576, %v5014
      %v5255 = vadd.f32 %v4577, %v5017
      %v5256 = vadd.f32 %v4578, %v5022
      %v5257 = vadd.f32 %v4579, %v5025
      %v5258 = vadd.f32 %v4580, %v5030
      %v5259 = vadd.f32 %v4581, %v5033
      %v5260 = vadd.f32 %v4582, %v5038
      %v5261 = vadd.f32 %v4583, %v5041
      %v5262 = vadd.f32 %v4584, %v5046
      %v5263 = vadd.f32 %v4585, %v5049
      %v5264 = vadd.f32 %v4586, %v5054
      %v5265 = vadd.f32 %v4587, %v5057
      %v5266 = vadd.f32 %v4588, %v5062
      %v5267 = vadd.f32 %v4589, %v5065
      %v5268 = vadd.f32 %v4590, %v5070
      %v5269 = vadd.f32 %v4591, %v5073
      %v5270 = vadd.f32 %v4592, %v5078
      %v5271 = vadd.f32 %v4593, %v5081
      %v5272 = vadd.f32 %v4594, %v5086
      %v5273 = vadd.f32 %v4595, %v5089
      %v5274 = vadd.f32 %v4596, %v5094
      %v5275 = vadd.f32 %v4597, %v5097
      %v5276 = vadd.f32 %v4598, %v5102
      %v5277 = vadd.f32 %v4599, %v5105
      %v5278 = vadd.f32 %v4600, %v5110
      %v5279 = vadd.f32 %v4601, %v5113
      %v5280 = vadd.f32 %v4602, %v5118
      %v5281 = vadd.f32 %v4603, %v5121
      %v5282 = vadd.f32 %v4604, %v5126
      %v5283 = vadd.f32 %v4605, %v5129
      %v5284 = vadd.f32 %v4606, %v5134
      %v5285 = vadd.f32 %v4607, %v5137
      %v5286 = vadd.f32 %v4608, %v5142
      %v5287 = vadd.f32 %v4609, %v5145
      %v5288 = vadd.f32 %v4610, %v5150
      %v5289 = vadd.f32 %v4611, %v5153
      %v5290 = vadd.f32 %v4612, %v5158
      %v5291 = vadd.f32 %v4613, %v5161
      %s5292 = scalar_lea.vmem %s1, 20
      %v5293 = vld [vmem:[%s5292] sm:$0xf]
      %v5295 = vsel %vm1327, %v5293, 0
      %5297 = vmatprep.subr.bf16.mxu0 0
      %5298 = vmatpush1.bf16.msra.mxu0 %v5295
      %5299 = vmatprep.subr.bf16.mxu0 0
      %5300 = vmatpush1.bf16.msra.mxu0 0
      %5301 = vmatprep.subr.bf16.mxu0 0
      %5302 = vmatpush1.bf16.msra.mxu0 0
      %5303 = vmatprep.subr.bf16.mxu0 0
      %5304 = vmatpush1.bf16.msra.mxu0 0
      %5305 = vmatprep.subr.bf16.mxu0 0
      %5306 = vmatpush1.bf16.msra.mxu0 0
      %5307 = vmatprep.subr.bf16.mxu0 0
      %5308 = vmatpush1.bf16.msra.mxu0 0
      %5309 = vmatprep.subr.bf16.mxu0 0
      %5310 = vmatpush1.bf16.msra.mxu0 0
      %5311 = vmatprep.subr.bf16.mxu0 0
      %5312 = vmatpush1.bf16.msra.mxu0 0
      %5313 = vmatprep.subr.bf16.mxu0 0
      %5314 = vmatpush1.bf16.msra.mxu0 0
      %5315 = vmatprep.subr.bf16.mxu0 0
      %5316 = vmatpush1.bf16.msra.mxu0 0
      %5317 = vmatprep.subr.bf16.mxu0 0
      %5318 = vmatpush1.bf16.msra.mxu0 0
      %5319 = vmatprep.subr.bf16.mxu0 0
      %5320 = vmatpush1.bf16.msra.mxu0 0
      %5321 = vmatprep.subr.bf16.mxu0 0
      %5322 = vmatpush1.bf16.msra.mxu0 0
      %5323 = vmatprep.subr.bf16.mxu0 0
      %5324 = vmatpush1.bf16.msra.mxu0 0
      %5325 = vmatprep.subr.bf16.mxu0 0
      %5326 = vmatpush1.bf16.msra.mxu0 0
      %5327 = vmatprep.subr.bf16.mxu0 0
      %5328 = vmatpush1.bf16.msra.mxu0 0
      %5329 = vmatprep.mubr.bf16.mxu0 0
      %5330 = vmatmul.mubr.bf16.gmra.mrb[0].mxu0 %v3072
      %v5331 = vpop.f32.mrb[0].mxu0
      %v5332 = vadd.f32 0.0, %v5331
      %v5333 = vpop.f32.mrb[0].mxu0
      %v5334 = vpop.f32.mrb[0].mxu0
      %v5335 = vadd.f32 0.0, %v5334
      %v5336 = vpop.f32.mrb[0].mxu0
      %5337 = vmatprep.mubr.bf16.mxu0 0
      %5338 = vmatmul.mubr.bf16.gmra.mrb[0].mxu0 %v3075
      %v5339 = vpop.f32.mrb[0].mxu0
      %v5340 = vadd.f32 0.0, %v5339
      %v5341 = vpop.f32.mrb[0].mxu0
      %v5342 = vpop.f32.mrb[0].mxu0
      %v5343 = vadd.f32 0.0, %v5342
      %v5344 = vpop.f32.mrb[0].mxu0
      %5345 = vmatprep.mubr.bf16.mxu0 0
      %5346 = vmatmul.mubr.bf16.gmra.mrb[0].mxu0 %v3078
      %v5347 = vpop.f32.mrb[0].mxu0
      %v5348 = vadd.f32 0.0, %v5347
      %v5349 = vpop.f32.mrb[0].mxu0
      %v5350 = vpop.f32.mrb[0].mxu0
      %v5351 = vadd.f32 0.0, %v5350
      %v5352 = vpop.f32.mrb[0].mxu0
      %5353 = vmatprep.mubr.bf16.mxu0 0
      %5354 = vmatmul.mubr.bf16.gmra.mrb[0].mxu0 %v3081
      %v5355 = vpop.f32.mrb[0].mxu0
      %v5356 = vadd.f32 0.0, %v5355
      %v5357 = vpop.f32.mrb[0].mxu0
      %v5358 = vpop.f32.mrb[0].mxu0
      %v5359 = vadd.f32 0.0, %v5358
      %v5360 = vpop.f32.mrb[0].mxu0
      %5361 = vmatprep.mubr.bf16.mxu0 0
      %5362 = vmatmul.mubr.bf16.gmra.mrb[0].mxu0 %v3084
      %v5363 = vpop.f32.mrb[0].mxu0
      %v5364 = vadd.f32 0.0, %v5363
      %v5365 = vpop.f32.mrb[0].mxu0
      %v5366 = vpop.f32.mrb[0].mxu0
      %v5367 = vadd.f32 0.0, %v5366
      %v5368 = vpop.f32.mrb[0].mxu0
      %5369 = vmatprep.mubr.bf16.mxu0 0
      %5370 = vmatmul.mubr.bf16.gmra.mrb[0].mxu0 %v3087
      %v5371 = vpop.f32.mrb[0].mxu0
      %v5372 = vadd.f32 0.0, %v5371
      %v5373 = vpop.f32.mrb[0].mxu0
      %v5374 = vpop.f32.mrb[0].mxu0
      %v5375 = vadd.f32 0.0, %v5374
      %v5376 = vpop.f32.mrb[0].mxu0
      %5377 = vmatprep.mubr.bf16.mxu0 0
      %5378 = vmatmul.mubr.bf16.gmra.mrb[0].mxu0 %v3090
      %v5379 = vpop.f32.mrb[0].mxu0
      %v5380 = vadd.f32 0.0, %v5379
      %v5381 = vpop.f32.mrb[0].mxu0
      %v5382 = vpop.f32.mrb[0].mxu0
      %v5383 = vadd.f32 0.0, %v5382
      %v5384 = vpop.f32.mrb[0].mxu0
      %5385 = vmatprep.mubr.bf16.mxu0 0
      %5386 = vmatmul.mubr.bf16.gmra.mrb[0].mxu0 %v3093
      %v5387 = vpop.f32.mrb[0].mxu0
      %v5388 = vadd.f32 0.0, %v5387
      %v5389 = vpop.f32.mrb[0].mxu0
      %v5390 = vpop.f32.mrb[0].mxu0
      %v5391 = vadd.f32 0.0, %v5390
      %v5392 = vpop.f32.mrb[0].mxu0
      %5393 = vmatprep.mubr.bf16.mxu0 0
      %5394 = vmatmul.mubr.bf16.gmra.mrb[0].mxu0 %v3096
      %v5395 = vpop.f32.mrb[0].mxu0
      %v5396 = vadd.f32 0.0, %v5395
      %v5397 = vpop.f32.mrb[0].mxu0
      %v5398 = vpop.f32.mrb[0].mxu0
      %v5399 = vadd.f32 0.0, %v5398
      %v5400 = vpop.f32.mrb[0].mxu0
      %5401 = vmatprep.mubr.bf16.mxu0 0
      %5402 = vmatmul.mubr.bf16.gmra.mrb[0].mxu0 %v3099
      %v5403 = vpop.f32.mrb[0].mxu0
      %v5404 = vadd.f32 0.0, %v5403
      %v5405 = vpop.f32.mrb[0].mxu0
      %v5406 = vpop.f32.mrb[0].mxu0
      %v5407 = vadd.f32 0.0, %v5406
      %v5408 = vpop.f32.mrb[0].mxu0
      %5409 = vmatprep.mubr.bf16.mxu0 0
      %5410 = vmatmul.mubr.bf16.gmra.mrb[0].mxu0 %v3102
      %v5411 = vpop.f32.mrb[0].mxu0
      %v5412 = vadd.f32 0.0, %v5411
      %v5413 = vpop.f32.mrb[0].mxu0
      %v5414 = vpop.f32.mrb[0].mxu0
      %v5415 = vadd.f32 0.0, %v5414
      %v5416 = vpop.f32.mrb[0].mxu0
      %5417 = vmatprep.mubr.bf16.mxu0 0
      %5418 = vmatmul.mubr.bf16.gmra.mrb[0].mxu0 %v3105
      %v5419 = vpop.f32.mrb[0].mxu0
      %v5420 = vadd.f32 0.0, %v5419
      %v5421 = vpop.f32.mrb[0].mxu0
      %v5422 = vpop.f32.mrb[0].mxu0
      %v5423 = vadd.f32 0.0, %v5422
      %v5424 = vpop.f32.mrb[0].mxu0
      %5425 = vmatprep.mubr.bf16.mxu0 0
      %5426 = vmatmul.mubr.bf16.gmra.mrb[0].mxu0 %v3108
      %v5427 = vpop.f32.mrb[0].mxu0
      %v5428 = vadd.f32 0.0, %v5427
      %v5429 = vpop.f32.mrb[0].mxu0
      %v5430 = vpop.f32.mrb[0].mxu0
      %v5431 = vadd.f32 0.0, %v5430
      %v5432 = vpop.f32.mrb[0].mxu0
      %5433 = vmatprep.mubr.bf16.mxu0 0
      %5434 = vmatmul.mubr.bf16.gmra.mrb[0].mxu0 %v3111
      %v5435 = vpop.f32.mrb[0].mxu0
      %v5436 = vadd.f32 0.0, %v5435
      %v5437 = vpop.f32.mrb[0].mxu0
      %v5438 = vpop.f32.mrb[0].mxu0
      %v5439 = vadd.f32 0.0, %v5438
      %v5440 = vpop.f32.mrb[0].mxu0
      %5441 = vmatprep.mubr.bf16.mxu0 0
      %5442 = vmatmul.mubr.bf16.gmra.mrb[0].mxu0 %v3114
      %v5443 = vpop.f32.mrb[0].mxu0
      %v5444 = vadd.f32 0.0, %v5443
      %v5445 = vpop.f32.mrb[0].mxu0
      %v5446 = vpop.f32.mrb[0].mxu0
      %v5447 = vadd.f32 0.0, %v5446
      %v5448 = vpop.f32.mrb[0].mxu0
      %5449 = vmatprep.mubr.bf16.mxu0 0
      %5450 = vmatmul.mubr.bf16.gmra.mrb[0].mxu0 %v3117
      %v5451 = vpop.f32.mrb[0].mxu0
      %v5452 = vadd.f32 0.0, %v5451
      %v5453 = vpop.f32.mrb[0].mxu0
      %v5454 = vpop.f32.mrb[0].mxu0
      %v5455 = vadd.f32 0.0, %v5454
      %v5456 = vpop.f32.mrb[0].mxu0
      %5457 = vmatprep.mubr.bf16.mxu0 0
      %5458 = vmatmul.mubr.bf16.gmra.mrb[0].mxu0 %v3120
      %v5459 = vpop.f32.mrb[0].mxu0
      %v5460 = vadd.f32 0.0, %v5459
      %v5461 = vpop.f32.mrb[0].mxu0
      %v5462 = vpop.f32.mrb[0].mxu0
      %v5463 = vadd.f32 0.0, %v5462
      %v5464 = vpop.f32.mrb[0].mxu0
      %5465 = vmatprep.mubr.bf16.mxu0 0
      %5466 = vmatmul.mubr.bf16.gmra.mrb[0].mxu0 %v3123
      %v5467 = vpop.f32.mrb[0].mxu0
      %v5468 = vadd.f32 0.0, %v5467
      %v5469 = vpop.f32.mrb[0].mxu0
      %v5470 = vpop.f32.mrb[0].mxu0
      %v5471 = vadd.f32 0.0, %v5470
      %v5472 = vpop.f32.mrb[0].mxu0
      %5473 = vmatprep.mubr.bf16.mxu0 0
      %5474 = vmatmul.mubr.bf16.gmra.mrb[0].mxu0 %v3126
      %v5475 = vpop.f32.mrb[0].mxu0
      %v5476 = vadd.f32 0.0, %v5475
      %v5477 = vpop.f32.mrb[0].mxu0
      %v5478 = vpop.f32.mrb[0].mxu0
      %v5479 = vadd.f32 0.0, %v5478
      %v5480 = vpop.f32.mrb[0].mxu0
      %5481 = vmatprep.mubr.bf16.mxu0 0
      %5482 = vmatmul.mubr.bf16.gmra.mrb[0].mxu0 %v3129
      %v5483 = vpop.f32.mrb[0].mxu0
      %v5484 = vadd.f32 0.0, %v5483
      %v5485 = vpop.f32.mrb[0].mxu0
      %v5486 = vpop.f32.mrb[0].mxu0
      %v5487 = vadd.f32 0.0, %v5486
      %v5488 = vpop.f32.mrb[0].mxu0
      %5489 = vmatprep.mubr.bf16.mxu0 0
      %5490 = vmatmul.mubr.bf16.gmra.mrb[0].mxu0 %v3132
      %v5491 = vpop.f32.mrb[0].mxu0
      %v5492 = vadd.f32 0.0, %v5491
      %v5493 = vpop.f32.mrb[0].mxu0
      %v5494 = vpop.f32.mrb[0].mxu0
      %v5495 = vadd.f32 0.0, %v5494
      %v5496 = vpop.f32.mrb[0].mxu0
      %5497 = vmatprep.mubr.bf16.mxu0 0
      %5498 = vmatmul.mubr.bf16.gmra.mrb[0].mxu0 %v3135
      %v5499 = vpop.f32.mrb[0].mxu0
      %v5500 = vadd.f32 0.0, %v5499
      %v5501 = vpop.f32.mrb[0].mxu0
      %v5502 = vpop.f32.mrb[0].mxu0
      %v5503 = vadd.f32 0.0, %v5502
      %v5504 = vpop.f32.mrb[0].mxu0
      %5505 = vmatprep.mubr.bf16.mxu0 0
      %5506 = vmatmul.mubr.bf16.gmra.mrb[0].mxu0 %v3138
      %v5507 = vpop.f32.mrb[0].mxu0
      %v5508 = vadd.f32 0.0, %v5507
      %v5509 = vpop.f32.mrb[0].mxu0
      %v5510 = vpop.f32.mrb[0].mxu0
      %v5511 = vadd.f32 0.0, %v5510
      %v5512 = vpop.f32.mrb[0].mxu0
      %5513 = vmatprep.mubr.bf16.mxu0 0
      %5514 = vmatmul.mubr.bf16.gmra.mrb[0].mxu0 %v3141
      %v5515 = vpop.f32.mrb[0].mxu0
      %v5516 = vadd.f32 0.0, %v5515
      %v5517 = vpop.f32.mrb[0].mxu0
      %v5518 = vpop.f32.mrb[0].mxu0
      %v5519 = vadd.f32 0.0, %v5518
      %v5520 = vpop.f32.mrb[0].mxu0
      %5521 = vmatprep.mubr.bf16.mxu0 0
      %5522 = vmatmul.mubr.bf16.gmra.mrb[0].mxu0 %v3144
      %v5523 = vpop.f32.mrb[0].mxu0
      %v5524 = vadd.f32 0.0, %v5523
      %v5525 = vpop.f32.mrb[0].mxu0
      %v5526 = vpop.f32.mrb[0].mxu0
      %v5527 = vadd.f32 0.0, %v5526
      %v5528 = vpop.f32.mrb[0].mxu0
      %5529 = vmatprep.mubr.bf16.mxu0 0
      %5530 = vmatmul.mubr.bf16.gmra.mrb[0].mxu0 %v3147
      %v5531 = vpop.f32.mrb[0].mxu0
      %v5532 = vadd.f32 0.0, %v5531
      %v5533 = vpop.f32.mrb[0].mxu0
      %v5534 = vpop.f32.mrb[0].mxu0
      %v5535 = vadd.f32 0.0, %v5534
      %v5536 = vpop.f32.mrb[0].mxu0
      %5537 = vmatprep.mubr.bf16.mxu0 0
      %5538 = vmatmul.mubr.bf16.gmra.mrb[0].mxu0 %v3150
      %v5539 = vpop.f32.mrb[0].mxu0
      %v5540 = vadd.f32 0.0, %v5539
      %v5541 = vpop.f32.mrb[0].mxu0
      %v5542 = vpop.f32.mrb[0].mxu0
      %v5543 = vadd.f32 0.0, %v5542
      %v5544 = vpop.f32.mrb[0].mxu0
      %5545 = vmatprep.mubr.bf16.mxu0 0
      %5546 = vmatmul.mubr.bf16.gmra.mrb[0].mxu0 %v3153
      %v5547 = vpop.f32.mrb[0].mxu0
      %v5548 = vadd.f32 0.0, %v5547
      %v5549 = vpop.f32.mrb[0].mxu0
      %v5550 = vpop.f32.mrb[0].mxu0
      %v5551 = vadd.f32 0.0, %v5550
      %v5552 = vpop.f32.mrb[0].mxu0
      %5553 = vmatprep.mubr.bf16.mxu0 0
      %5554 = vmatmul.mubr.bf16.gmra.mrb[0].mxu0 %v3156
      %v5555 = vpop.f32.mrb[0].mxu0
      %v5556 = vadd.f32 0.0, %v5555
      %v5557 = vpop.f32.mrb[0].mxu0
      %v5558 = vpop.f32.mrb[0].mxu0
      %v5559 = vadd.f32 0.0, %v5558
      %v5560 = vpop.f32.mrb[0].mxu0
      %5561 = vmatprep.mubr.bf16.mxu0 0
      %5562 = vmatmul.mubr.bf16.gmra.mrb[0].mxu0 %v3159
      %v5563 = vpop.f32.mrb[0].mxu0
      %v5564 = vadd.f32 0.0, %v5563
      %v5565 = vpop.f32.mrb[0].mxu0
      %v5566 = vpop.f32.mrb[0].mxu0
      %v5567 = vadd.f32 0.0, %v5566
      %v5568 = vpop.f32.mrb[0].mxu0
      %5569 = vmatprep.mubr.bf16.mxu0 0
      %5570 = vmatmul.mubr.bf16.gmra.mrb[0].mxu0 %v3162
      %v5571 = vpop.f32.mrb[0].mxu0
      %v5572 = vadd.f32 0.0, %v5571
      %v5573 = vpop.f32.mrb[0].mxu0
      %v5574 = vpop.f32.mrb[0].mxu0
      %v5575 = vadd.f32 0.0, %v5574
      %v5576 = vpop.f32.mrb[0].mxu0
      %5577 = vmatprep.mubr.bf16.mxu0 0
      %5578 = vmatmul.mubr.bf16.gmra.mrb[0].mxu0 %v3165
      %v5579 = vpop.f32.mrb[0].mxu0
      %v5580 = vadd.f32 0.0, %v5579
      %v5581 = vpop.f32.mrb[0].mxu0
      %v5582 = vpop.f32.mrb[0].mxu0
      %v5583 = vadd.f32 0.0, %v5582
      %v5584 = vpop.f32.mrb[0].mxu0
      %5585 = vmatprep.mubr.bf16.mxu0 0
      %5586 = vmatmul.mubr.bf16.gmra.mrb[0].mxu0 %v3168
      %v5587 = vpop.f32.mrb[0].mxu0
      %v5588 = vadd.f32 0.0, %v5587
      %v5589 = vpop.f32.mrb[0].mxu0
      %v5590 = vpop.f32.mrb[0].mxu0
      %v5591 = vadd.f32 0.0, %v5590
      %v5592 = vpop.f32.mrb[0].mxu0
      %5593 = vmatprep.mubr.bf16.mxu0 0
      %5594 = vmatmul.mubr.bf16.gmra.mrb[0].mxu0 %v3171
      %v5595 = vpop.f32.mrb[0].mxu0
      %v5596 = vadd.f32 0.0, %v5595
      %v5597 = vpop.f32.mrb[0].mxu0
      %v5598 = vpop.f32.mrb[0].mxu0
      %v5599 = vadd.f32 0.0, %v5598
      %v5600 = vpop.f32.mrb[0].mxu0
      %5601 = vmatprep.mubr.bf16.mxu0 0
      %5602 = vmatmul.mubr.bf16.gmra.mrb[0].mxu0 %v3174
      %v5603 = vpop.f32.mrb[0].mxu0
      %v5604 = vadd.f32 0.0, %v5603
      %v5605 = vpop.f32.mrb[0].mxu0
      %v5606 = vpop.f32.mrb[0].mxu0
      %v5607 = vadd.f32 0.0, %v5606
      %v5608 = vpop.f32.mrb[0].mxu0
      %5609 = vmatprep.mubr.bf16.mxu0 0
      %5610 = vmatmul.mubr.bf16.gmra.mrb[0].mxu0 %v3177
      %v5611 = vpop.f32.mrb[0].mxu0
      %v5612 = vadd.f32 0.0, %v5611
      %v5613 = vpop.f32.mrb[0].mxu0
      %v5614 = vpop.f32.mrb[0].mxu0
      %v5615 = vadd.f32 0.0, %v5614
      %v5616 = vpop.f32.mrb[0].mxu0
      %5617 = vmatprep.mubr.bf16.mxu0 0
      %5618 = vmatmul.mubr.bf16.gmra.mrb[0].mxu0 %v3180
      %v5619 = vpop.f32.mrb[0].mxu0
      %v5620 = vadd.f32 0.0, %v5619
      %v5621 = vpop.f32.mrb[0].mxu0
      %v5622 = vpop.f32.mrb[0].mxu0
      %v5623 = vadd.f32 0.0, %v5622
      %v5624 = vpop.f32.mrb[0].mxu0
      %5625 = vmatprep.mubr.bf16.mxu0 0
      %5626 = vmatmul.mubr.bf16.gmra.mrb[0].mxu0 %v3183
      %v5627 = vpop.f32.mrb[0].mxu0
      %v5628 = vadd.f32 0.0, %v5627
      %v5629 = vpop.f32.mrb[0].mxu0
      %v5630 = vpop.f32.mrb[0].mxu0
      %v5631 = vadd.f32 0.0, %v5630
      %v5632 = vpop.f32.mrb[0].mxu0
      %5633 = vmatprep.mubr.bf16.mxu0 0
      %5634 = vmatmul.mubr.bf16.gmra.mrb[0].mxu0 %v3186
      %v5635 = vpop.f32.mrb[0].mxu0
      %v5636 = vadd.f32 0.0, %v5635
      %v5637 = vpop.f32.mrb[0].mxu0
      %v5638 = vpop.f32.mrb[0].mxu0
      %v5639 = vadd.f32 0.0, %v5638
      %v5640 = vpop.f32.mrb[0].mxu0
      %5641 = vmatprep.mubr.bf16.mxu0 0
      %5642 = vmatmul.mubr.bf16.gmra.mrb[0].mxu0 %v3189
      %v5643 = vpop.f32.mrb[0].mxu0
      %v5644 = vadd.f32 0.0, %v5643
      %v5645 = vpop.f32.mrb[0].mxu0
      %v5646 = vpop.f32.mrb[0].mxu0
      %v5647 = vadd.f32 0.0, %v5646
      %v5648 = vpop.f32.mrb[0].mxu0
      %5649 = vmatprep.mubr.bf16.mxu0 0
      %5650 = vmatmul.mubr.bf16.gmra.mrb[0].mxu0 %v3192
      %v5651 = vpop.f32.mrb[0].mxu0
      %v5652 = vadd.f32 0.0, %v5651
      %v5653 = vpop.f32.mrb[0].mxu0
      %v5654 = vpop.f32.mrb[0].mxu0
      %v5655 = vadd.f32 0.0, %v5654
      %v5656 = vpop.f32.mrb[0].mxu0
      %5657 = vmatprep.mubr.bf16.mxu0 0
      %5658 = vmatmul.mubr.bf16.gmra.mrb[0].mxu0 %v3195
      %v5659 = vpop.f32.mrb[0].mxu0
      %v5660 = vadd.f32 0.0, %v5659
      %v5661 = vpop.f32.mrb[0].mxu0
      %v5662 = vpop.f32.mrb[0].mxu0
      %v5663 = vadd.f32 0.0, %v5662
      %v5664 = vpop.f32.mrb[0].mxu0
      %5665 = vmatprep.mubr.bf16.mxu0 0
      %5666 = vmatmul.mubr.bf16.gmra.mrb[0].mxu0 %v3198
      %v5667 = vpop.f32.mrb[0].mxu0
      %v5668 = vadd.f32 0.0, %v5667
      %v5669 = vpop.f32.mrb[0].mxu0
      %v5670 = vpop.f32.mrb[0].mxu0
      %v5671 = vadd.f32 0.0, %v5670
      %v5672 = vpop.f32.mrb[0].mxu0
      %5673 = vmatprep.mubr.bf16.mxu0 0
      %5674 = vmatmul.mubr.bf16.gmra.mrb[0].mxu0 %v3201
      %v5675 = vpop.f32.mrb[0].mxu0
      %v5676 = vadd.f32 0.0, %v5675
      %v5677 = vpop.f32.mrb[0].mxu0
      %v5678 = vpop.f32.mrb[0].mxu0
      %v5679 = vadd.f32 0.0, %v5678
      %v5680 = vpop.f32.mrb[0].mxu0
      %5681 = vmatprep.mubr.bf16.mxu0 0
      %5682 = vmatmul.mubr.bf16.gmra.mrb[0].mxu0 %v3204
      %v5683 = vpop.f32.mrb[0].mxu0
      %v5684 = vadd.f32 0.0, %v5683
      %v5685 = vpop.f32.mrb[0].mxu0
      %v5686 = vpop.f32.mrb[0].mxu0
      %v5687 = vadd.f32 0.0, %v5686
      %v5688 = vpop.f32.mrb[0].mxu0
      %5689 = vmatprep.mubr.bf16.mxu0 0
      %5690 = vmatmul.mubr.bf16.gmra.mrb[0].mxu0 %v3207
      %v5691 = vpop.f32.mrb[0].mxu0
      %v5692 = vadd.f32 0.0, %v5691
      %v5693 = vpop.f32.mrb[0].mxu0
      %v5694 = vpop.f32.mrb[0].mxu0
      %v5695 = vadd.f32 0.0, %v5694
      %v5696 = vpop.f32.mrb[0].mxu0
      %5697 = vmatprep.mubr.bf16.mxu0 0
      %5698 = vmatmul.mubr.bf16.gmra.mrb[0].mxu0 %v3210
      %v5699 = vpop.f32.mrb[0].mxu0
      %v5700 = vadd.f32 0.0, %v5699
      %v5701 = vpop.f32.mrb[0].mxu0
      %v5702 = vpop.f32.mrb[0].mxu0
      %v5703 = vadd.f32 0.0, %v5702
      %v5704 = vpop.f32.mrb[0].mxu0
      %5705 = vmatprep.mubr.bf16.mxu0 0
      %5706 = vmatmul.mubr.bf16.gmra.mrb[0].mxu0 %v3213
      %v5707 = vpop.f32.mrb[0].mxu0
      %v5708 = vadd.f32 0.0, %v5707
      %v5709 = vpop.f32.mrb[0].mxu0
      %v5710 = vpop.f32.mrb[0].mxu0
      %v5711 = vadd.f32 0.0, %v5710
      %v5712 = vpop.f32.mrb[0].mxu0
      %5713 = vmatprep.mubr.bf16.mxu0 0
      %5714 = vmatmul.mubr.bf16.gmra.mrb[0].mxu0 %v3216
      %v5715 = vpop.f32.mrb[0].mxu0
      %v5716 = vadd.f32 0.0, %v5715
      %v5717 = vpop.f32.mrb[0].mxu0
      %v5718 = vpop.f32.mrb[0].mxu0
      %v5719 = vadd.f32 0.0, %v5718
      %v5720 = vpop.f32.mrb[0].mxu0
      %5721 = vmatprep.mubr.bf16.mxu0 0
      %5722 = vmatmul.mubr.bf16.gmra.mrb[0].mxu0 %v3219
      %v5723 = vpop.f32.mrb[0].mxu0
      %v5724 = vadd.f32 0.0, %v5723
      %v5725 = vpop.f32.mrb[0].mxu0
      %v5726 = vpop.f32.mrb[0].mxu0
      %v5727 = vadd.f32 0.0, %v5726
      %v5728 = vpop.f32.mrb[0].mxu0
      %5729 = vmatprep.mubr.bf16.mxu0 0
      %5730 = vmatmul.mubr.bf16.gmra.mrb[0].mxu0 %v3222
      %v5731 = vpop.f32.mrb[0].mxu0
      %v5732 = vadd.f32 0.0, %v5731
      %v5733 = vpop.f32.mrb[0].mxu0
      %v5734 = vpop.f32.mrb[0].mxu0
      %v5735 = vadd.f32 0.0, %v5734
      %v5736 = vpop.f32.mrb[0].mxu0
      %5737 = vmatprep.mubr.bf16.mxu0 0
      %5738 = vmatmul.mubr.bf16.gmra.mrb[0].mxu0 %v3225
      %v5739 = vpop.f32.mrb[0].mxu0
      %v5740 = vadd.f32 0.0, %v5739
      %v5741 = vpop.f32.mrb[0].mxu0
      %v5742 = vpop.f32.mrb[0].mxu0
      %v5743 = vadd.f32 0.0, %v5742
      %v5744 = vpop.f32.mrb[0].mxu0
      %5745 = vmatprep.mubr.bf16.mxu0 0
      %5746 = vmatmul.mubr.bf16.gmra.mrb[0].mxu0 %v3228
      %v5747 = vpop.f32.mrb[0].mxu0
      %v5748 = vadd.f32 0.0, %v5747
      %v5749 = vpop.f32.mrb[0].mxu0
      %v5750 = vpop.f32.mrb[0].mxu0
      %v5751 = vadd.f32 0.0, %v5750
      %v5752 = vpop.f32.mrb[0].mxu0
      %5753 = vmatprep.mubr.bf16.mxu0 0
      %5754 = vmatmul.mubr.bf16.gmra.mrb[0].mxu0 %v3231
      %v5755 = vpop.f32.mrb[0].mxu0
      %v5756 = vadd.f32 0.0, %v5755
      %v5757 = vpop.f32.mrb[0].mxu0
      %v5758 = vpop.f32.mrb[0].mxu0
      %v5759 = vadd.f32 0.0, %v5758
      %v5760 = vpop.f32.mrb[0].mxu0
      %5761 = vmatprep.mubr.bf16.mxu0 0
      %5762 = vmatmul.mubr.bf16.gmra.mrb[0].mxu0 %v3234
      %v5763 = vpop.f32.mrb[0].mxu0
      %v5764 = vadd.f32 0.0, %v5763
      %v5765 = vpop.f32.mrb[0].mxu0
      %v5766 = vpop.f32.mrb[0].mxu0
      %v5767 = vadd.f32 0.0, %v5766
      %v5768 = vpop.f32.mrb[0].mxu0
      %5769 = vmatprep.mubr.bf16.mxu0 0
      %5770 = vmatmul.mubr.bf16.gmra.mrb[0].mxu0 %v3237
      %v5771 = vpop.f32.mrb[0].mxu0
      %v5772 = vadd.f32 0.0, %v5771
      %v5773 = vpop.f32.mrb[0].mxu0
      %v5774 = vpop.f32.mrb[0].mxu0
      %v5775 = vadd.f32 0.0, %v5774
      %v5776 = vpop.f32.mrb[0].mxu0
      %5777 = vmatprep.mubr.bf16.mxu0 0
      %5778 = vmatmul.mubr.bf16.gmra.mrb[0].mxu0 %v3240
      %v5779 = vpop.f32.mrb[0].mxu0
      %v5780 = vadd.f32 0.0, %v5779
      %v5781 = vpop.f32.mrb[0].mxu0
      %v5782 = vpop.f32.mrb[0].mxu0
      %v5783 = vadd.f32 0.0, %v5782
      %v5784 = vpop.f32.mrb[0].mxu0
      %5785 = vmatprep.mubr.bf16.mxu0 0
      %5786 = vmatmul.mubr.bf16.gmra.mrb[0].mxu0 %v3243
      %v5787 = vpop.f32.mrb[0].mxu0
      %v5788 = vadd.f32 0.0, %v5787
      %v5789 = vpop.f32.mrb[0].mxu0
      %v5790 = vpop.f32.mrb[0].mxu0
      %v5791 = vadd.f32 0.0, %v5790
      %v5792 = vpop.f32.mrb[0].mxu0
      %5793 = vmatprep.mubr.bf16.mxu0 0
      %5794 = vmatmul.mubr.bf16.gmra.mrb[0].mxu0 %v3246
      %v5795 = vpop.f32.mrb[0].mxu0
      %v5796 = vadd.f32 0.0, %v5795
      %v5797 = vpop.f32.mrb[0].mxu0
      %v5798 = vpop.f32.mrb[0].mxu0
      %v5799 = vadd.f32 0.0, %v5798
      %v5800 = vpop.f32.mrb[0].mxu0
      %5801 = vmatprep.mubr.bf16.mxu0 0
      %5802 = vmatmul.mubr.bf16.gmra.mrb[0].mxu0 %v3249
      %v5803 = vpop.f32.mrb[0].mxu0
      %v5804 = vadd.f32 0.0, %v5803
      %v5805 = vpop.f32.mrb[0].mxu0
      %v5806 = vpop.f32.mrb[0].mxu0
      %v5807 = vadd.f32 0.0, %v5806
      %v5808 = vpop.f32.mrb[0].mxu0
      %5809 = vmatprep.mubr.bf16.mxu0 0
      %5810 = vmatmul.mubr.bf16.gmra.mrb[0].mxu0 %v3252
      %v5811 = vpop.f32.mrb[0].mxu0
      %v5812 = vadd.f32 0.0, %v5811
      %v5813 = vpop.f32.mrb[0].mxu0
      %v5814 = vpop.f32.mrb[0].mxu0
      %v5815 = vadd.f32 0.0, %v5814
      %v5816 = vpop.f32.mrb[0].mxu0
      %5817 = vmatprep.mubr.bf16.mxu0 0
      %5818 = vmatmul.mubr.bf16.gmra.mrb[0].mxu0 %v3255
      %v5819 = vpop.f32.mrb[0].mxu0
      %v5820 = vadd.f32 0.0, %v5819
      %v5821 = vpop.f32.mrb[0].mxu0
      %v5822 = vpop.f32.mrb[0].mxu0
      %v5823 = vadd.f32 0.0, %v5822
      %v5824 = vpop.f32.mrb[0].mxu0
      %5825 = vmatprep.mubr.bf16.mxu0 0
      %5826 = vmatmul.mubr.bf16.gmra.mrb[0].mxu0 %v3258
      %v5827 = vpop.f32.mrb[0].mxu0
      %v5828 = vadd.f32 0.0, %v5827
      %v5829 = vpop.f32.mrb[0].mxu0
      %v5830 = vpop.f32.mrb[0].mxu0
      %v5831 = vadd.f32 0.0, %v5830
      %v5832 = vpop.f32.mrb[0].mxu0
      %5833 = vmatprep.mubr.bf16.mxu0 0
      %5834 = vmatmul.mubr.bf16.gmra.mrb[0].mxu0 %v3069
      %v5835 = vpop.f32.mrb[0].mxu0
      %v5836 = vadd.f32 0.0, %v5835
      %v5837 = vpop.f32.mrb[0].mxu0
      %v5838 = vpop.f32.mrb[0].mxu0
      %v5839 = vadd.f32 0.0, %v5838
      %v5840 = vpop.f32.mrb[0].mxu0
      %5841 = vdwg.mxu0
      %v5842 = vadd.f32 %v5164, %v5332
      %v5843 = vadd.f32 %v5165, %v5335
      %v5844 = vadd.f32 %v5166, %v5340
      %v5845 = vadd.f32 %v5167, %v5343
      %v5846 = vadd.f32 %v5168, %v5348
      %v5847 = vadd.f32 %v5169, %v5351
      %v5848 = vadd.f32 %v5170, %v5356
      %v5849 = vadd.f32 %v5171, %v5359
      %v5850 = vadd.f32 %v5172, %v5364
      %v5851 = vadd.f32 %v5173, %v5367
      %v5852 = vadd.f32 %v5174, %v5372
      %v5853 = vadd.f32 %v5175, %v5375
      %v5854 = vadd.f32 %v5176, %v5380
      %v5855 = vadd.f32 %v5177, %v5383
      %v5856 = vadd.f32 %v5178, %v5388
      %v5857 = vadd.f32 %v5179, %v5391
      %v5858 = vadd.f32 %v5180, %v5396
      %v5859 = vadd.f32 %v5181, %v5399
      %v5860 = vadd.f32 %v5182, %v5404
      %v5861 = vadd.f32 %v5183, %v5407
      %v5862 = vadd.f32 %v5184, %v5412
      %v5863 = vadd.f32 %v5185, %v5415
      %v5864 = vadd.f32 %v5186, %v5420
      %v5865 = vadd.f32 %v5187, %v5423
      %v5866 = vadd.f32 %v5188, %v5428
      %v5867 = vadd.f32 %v5189, %v5431
      %v5868 = vadd.f32 %v5190, %v5436
      %v5869 = vadd.f32 %v5191, %v5439
      %v5870 = vadd.f32 %v5192, %v5444
      %v5871 = vadd.f32 %v5193, %v5447
      %v5872 = vadd.f32 %v5194, %v5452
      %v5873 = vadd.f32 %v5195, %v5455
      %v5874 = vadd.f32 %v5196, %v5460
      %v5875 = vadd.f32 %v5197, %v5463
      %v5876 = vadd.f32 %v5198, %v5468
      %v5877 = vadd.f32 %v5199, %v5471
      %v5878 = vadd.f32 %v5200, %v5476
      %v5879 = vadd.f32 %v5201, %v5479
      %v5880 = vadd.f32 %v5202, %v5484
      %v5881 = vadd.f32 %v5203, %v5487
      %v5882 = vadd.f32 %v5204, %v5492
      %v5883 = vadd.f32 %v5205, %v5495
      %v5884 = vadd.f32 %v5206, %v5500
      %v5885 = vadd.f32 %v5207, %v5503
      %v5886 = vadd.f32 %v5208, %v5508
      %v5887 = vadd.f32 %v5209, %v5511
      %v5888 = vadd.f32 %v5210, %v5516
      %v5889 = vadd.f32 %v5211, %v5519
      %v5890 = vadd.f32 %v5212, %v5524
      %v5891 = vadd.f32 %v5213, %v5527
      %v5892 = vadd.f32 %v5214, %v5532
      %v5893 = vadd.f32 %v5215, %v5535
      %v5894 = vadd.f32 %v5216, %v5540
      %v5895 = vadd.f32 %v5217, %v5543
      %v5896 = vadd.f32 %v5218, %v5548
      %v5897 = vadd.f32 %v5219, %v5551
      %v5898 = vadd.f32 %v5220, %v5556
      %v5899 = vadd.f32 %v5221, %v5559
      %v5900 = vadd.f32 %v5222, %v5564
      %v5901 = vadd.f32 %v5223, %v5567
      %v5902 = vadd.f32 %v5224, %v5572
      %v5903 = vadd.f32 %v5225, %v5575
      %v5904 = vadd.f32 %v5226, %v5580
      %v5905 = vadd.f32 %v5227, %v5583
      %v5906 = vadd.f32 %v5228, %v5588
      %v5907 = vadd.f32 %v5229, %v5591
      %v5908 = vadd.f32 %v5230, %v5596
      %v5909 = vadd.f32 %v5231, %v5599
      %v5910 = vadd.f32 %v5232, %v5604
      %v5911 = vadd.f32 %v5233, %v5607
      %v5912 = vadd.f32 %v5234, %v5612
      %v5913 = vadd.f32 %v5235, %v5615
      %v5914 = vadd.f32 %v5236, %v5620
      %v5915 = vadd.f32 %v5237, %v5623
      %v5916 = vadd.f32 %v5238, %v5628
      %v5917 = vadd.f32 %v5239, %v5631
      %v5918 = vadd.f32 %v5240, %v5636
      %v5919 = vadd.f32 %v5241, %v5639
      %v5920 = vadd.f32 %v5242, %v5644
      %v5921 = vadd.f32 %v5243, %v5647
      %v5922 = vadd.f32 %v5244, %v5652
      %v5923 = vadd.f32 %v5245, %v5655
      %v5924 = vadd.f32 %v5246, %v5660
      %v5925 = vadd.f32 %v5247, %v5663
      %v5926 = vadd.f32 %v5248, %v5668
      %v5927 = vadd.f32 %v5249, %v5671
      %v5928 = vadd.f32 %v5250, %v5676
      %v5929 = vadd.f32 %v5251, %v5679
      %v5930 = vadd.f32 %v5252, %v5684
      %v5931 = vadd.f32 %v5253, %v5687
      %v5932 = vadd.f32 %v5254, %v5692
      %v5933 = vadd.f32 %v5255, %v5695
      %v5934 = vadd.f32 %v5256, %v5700
      %v5935 = vadd.f32 %v5257, %v5703
      %v5936 = vadd.f32 %v5258, %v5708
      %v5937 = vadd.f32 %v5259, %v5711
      %v5938 = vadd.f32 %v5260, %v5716
      %v5939 = vadd.f32 %v5261, %v5719
      %v5940 = vadd.f32 %v5262, %v5724
      %v5941 = vadd.f32 %v5263, %v5727
      %v5942 = vadd.f32 %v5264, %v5732
      %v5943 = vadd.f32 %v5265, %v5735
      %v5944 = vadd.f32 %v5266, %v5740
      %v5945 = vadd.f32 %v5267, %v5743
      %v5946 = vadd.f32 %v5268, %v5748
      %v5947 = vadd.f32 %v5269, %v5751
      %v5948 = vadd.f32 %v5270, %v5756
      %v5949 = vadd.f32 %v5271, %v5759
      %v5950 = vadd.f32 %v5272, %v5764
      %v5951 = vadd.f32 %v5273, %v5767
      %v5952 = vadd.f32 %v5274, %v5772
      %v5953 = vadd.f32 %v5275, %v5775
      %v5954 = vadd.f32 %v5276, %v5780
      %v5955 = vadd.f32 %v5277, %v5783
      %v5956 = vadd.f32 %v5278, %v5788
      %v5957 = vadd.f32 %v5279, %v5791
      %v5958 = vadd.f32 %v5280, %v5796
      %v5959 = vadd.f32 %v5281, %v5799
      %v5960 = vadd.f32 %v5282, %v5804
      %v5961 = vadd.f32 %v5283, %v5807
      %v5962 = vadd.f32 %v5284, %v5812
      %v5963 = vadd.f32 %v5285, %v5815
      %v5964 = vadd.f32 %v5286, %v5820
      %v5965 = vadd.f32 %v5287, %v5823
      %v5966 = vadd.f32 %v5288, %v5828
      %v5967 = vadd.f32 %v5289, %v5831
      %v5968 = vadd.f32 %v5290, %v5836
      %v5969 = vadd.f32 %v5291, %v5839
      %s5970 = scalar_lea.vmem %s1, 24
      %v5971 = vld [vmem:[%s5970] sm:$0xf]
      %v5973 = vsel %vm1327, %v5971, 0
      %5975 = vmatprep.subr.bf16.mxu0 0
      %5976 = vmatpush1.bf16.msra.mxu0 %v5973
      %5977 = vmatprep.subr.bf16.mxu0 0
      %5978 = vmatpush1.bf16.msra.mxu0 0
      %5979 = vmatprep.subr.bf16.mxu0 0
      %5980 = vmatpush1.bf16.msra.mxu0 0
      %5981 = vmatprep.subr.bf16.mxu0 0
      %5982 = vmatpush1.bf16.msra.mxu0 0
      %5983 = vmatprep.subr.bf16.mxu0 0
      %5984 = vmatpush1.bf16.msra.mxu0 0
      %5985 = vmatprep.subr.bf16.mxu0 0
      %5986 = vmatpush1.bf16.msra.mxu0 0
      %5987 = vmatprep.subr.bf16.mxu0 0
      %5988 = vmatpush1.bf16.msra.mxu0 0
      %5989 = vmatprep.subr.bf16.mxu0 0
      %5990 = vmatpush1.bf16.msra.mxu0 0
      %5991 = vmatprep.subr.bf16.mxu0 0
      %5992 = vmatpush1.bf16.msra.mxu0 0
      %5993 = vmatprep.subr.bf16.mxu0 0
      %5994 = vmatpush1.bf16.msra.mxu0 0
      %5995 = vmatprep.subr.bf16.mxu0 0
      %5996 = vmatpush1.bf16.msra.mxu0 0
      %5997 = vmatprep.subr.bf16.mxu0 0
      %5998 = vmatpush1.bf16.msra.mxu0 0
      %5999 = vmatprep.subr.bf16.mxu0 0
      %6000 = vmatpush1.bf16.msra.mxu0 0
      %6001 = vmatprep.subr.bf16.mxu0 0
      %6002 = vmatpush1.bf16.msra.mxu0 0
      %6003 = vmatprep.subr.bf16.mxu0 0
      %6004 = vmatpush1.bf16.msra.mxu0 0
      %6005 = vmatprep.subr.bf16.mxu0 0
      %6006 = vmatpush1.bf16.msra.mxu0 0
      %6007 = vmatprep.mubr.bf16.mxu0 0
      %6008 = vmatmul.mubr.bf16.gmra.mrb[0].mxu0 %v1883
      %v6009 = vpop.f32.mrb[0].mxu0
      %v6010 = vadd.f32 0.0, %v6009
      %v6011 = vpop.f32.mrb[0].mxu0
      %v6012 = vpop.f32.mrb[0].mxu0
      %v6013 = vadd.f32 0.0, %v6012
      %v6014 = vpop.f32.mrb[0].mxu0
      %6015 = vmatprep.mubr.bf16.mxu0 0
      %6016 = vmatmul.mubr.bf16.gmra.mrb[0].mxu0 %v1886
      %v6017 = vpop.f32.mrb[0].mxu0
      %v6018 = vadd.f32 0.0, %v6017
      %v6019 = vpop.f32.mrb[0].mxu0
      %v6020 = vpop.f32.mrb[0].mxu0
      %v6021 = vadd.f32 0.0, %v6020
      %v6022 = vpop.f32.mrb[0].mxu0
      %6023 = vmatprep.mubr.bf16.mxu0 0
      %6024 = vmatmul.mubr.bf16.gmra.mrb[0].mxu0 %v1889
      %v6025 = vpop.f32.mrb[0].mxu0
      %v6026 = vadd.f32 0.0, %v6025
      %v6027 = vpop.f32.mrb[0].mxu0
      %v6028 = vpop.f32.mrb[0].mxu0
      %v6029 = vadd.f32 0.0, %v6028
      %v6030 = vpop.f32.mrb[0].mxu0
      %6031 = vmatprep.mubr.bf16.mxu0 0
      %6032 = vmatmul.mubr.bf16.gmra.mrb[0].mxu0 %v1892
      %v6033 = vpop.f32.mrb[0].mxu0
      %v6034 = vadd.f32 0.0, %v6033
      %v6035 = vpop.f32.mrb[0].mxu0
      %v6036 = vpop.f32.mrb[0].mxu0
      %v6037 = vadd.f32 0.0, %v6036
      %v6038 = vpop.f32.mrb[0].mxu0
      %6039 = vmatprep.mubr.bf16.mxu0 0
      %6040 = vmatmul.mubr.bf16.gmra.mrb[0].mxu0 %v1895
      %v6041 = vpop.f32.mrb[0].mxu0
      %v6042 = vadd.f32 0.0, %v6041
      %v6043 = vpop.f32.mrb[0].mxu0
      %v6044 = vpop.f32.mrb[0].mxu0
      %v6045 = vadd.f32 0.0, %v6044
      %v6046 = vpop.f32.mrb[0].mxu0
      %6047 = vmatprep.mubr.bf16.mxu0 0
      %6048 = vmatmul.mubr.bf16.gmra.mrb[0].mxu0 %v1898
      %v6049 = vpop.f32.mrb[0].mxu0
      %v6050 = vadd.f32 0.0, %v6049
      %v6051 = vpop.f32.mrb[0].mxu0
      %v6052 = vpop.f32.mrb[0].mxu0
      %v6053 = vadd.f32 0.0, %v6052
      %v6054 = vpop.f32.mrb[0].mxu0
      %6055 = vmatprep.mubr.bf16.mxu0 0
      %6056 = vmatmul.mubr.bf16.gmra.mrb[0].mxu0 %v1901
      %v6057 = vpop.f32.mrb[0].mxu0
      %v6058 = vadd.f32 0.0, %v6057
      %v6059 = vpop.f32.mrb[0].mxu0
      %v6060 = vpop.f32.mrb[0].mxu0
      %v6061 = vadd.f32 0.0, %v6060
      %v6062 = vpop.f32.mrb[0].mxu0
      %6063 = vmatprep.mubr.bf16.mxu0 0
      %6064 = vmatmul.mubr.bf16.gmra.mrb[0].mxu0 %v1904
      %v6065 = vpop.f32.mrb[0].mxu0
      %v6066 = vadd.f32 0.0, %v6065
      %v6067 = vpop.f32.mrb[0].mxu0
      %v6068 = vpop.f32.mrb[0].mxu0
      %v6069 = vadd.f32 0.0, %v6068
      %v6070 = vpop.f32.mrb[0].mxu0
      %6071 = vmatprep.mubr.bf16.mxu0 0
      %6072 = vmatmul.mubr.bf16.gmra.mrb[0].mxu0 %v1907
      %v6073 = vpop.f32.mrb[0].mxu0
      %v6074 = vadd.f32 0.0, %v6073
      %v6075 = vpop.f32.mrb[0].mxu0
      %v6076 = vpop.f32.mrb[0].mxu0
      %v6077 = vadd.f32 0.0, %v6076
      %v6078 = vpop.f32.mrb[0].mxu0
      %6079 = vmatprep.mubr.bf16.mxu0 0
      %6080 = vmatmul.mubr.bf16.gmra.mrb[0].mxu0 %v1910
      %v6081 = vpop.f32.mrb[0].mxu0
      %v6082 = vadd.f32 0.0, %v6081
      %v6083 = vpop.f32.mrb[0].mxu0
      %v6084 = vpop.f32.mrb[0].mxu0
      %v6085 = vadd.f32 0.0, %v6084
      %v6086 = vpop.f32.mrb[0].mxu0
      %6087 = vmatprep.mubr.bf16.mxu0 0
      %6088 = vmatmul.mubr.bf16.gmra.mrb[0].mxu0 %v1913
      %v6089 = vpop.f32.mrb[0].mxu0
      %v6090 = vadd.f32 0.0, %v6089
      %v6091 = vpop.f32.mrb[0].mxu0
      %v6092 = vpop.f32.mrb[0].mxu0
      %v6093 = vadd.f32 0.0, %v6092
      %v6094 = vpop.f32.mrb[0].mxu0
      %6095 = vmatprep.mubr.bf16.mxu0 0
      %6096 = vmatmul.mubr.bf16.gmra.mrb[0].mxu0 %v1916
      %v6097 = vpop.f32.mrb[0].mxu0
      %v6098 = vadd.f32 0.0, %v6097
      %v6099 = vpop.f32.mrb[0].mxu0
      %v6100 = vpop.f32.mrb[0].mxu0
      %v6101 = vadd.f32 0.0, %v6100
      %v6102 = vpop.f32.mrb[0].mxu0
      %6103 = vmatprep.mubr.bf16.mxu0 0
      %6104 = vmatmul.mubr.bf16.gmra.mrb[0].mxu0 %v1919
      %v6105 = vpop.f32.mrb[0].mxu0
      %v6106 = vadd.f32 0.0, %v6105
      %v6107 = vpop.f32.mrb[0].mxu0
      %v6108 = vpop.f32.mrb[0].mxu0
      %v6109 = vadd.f32 0.0, %v6108
      %v6110 = vpop.f32.mrb[0].mxu0
      %6111 = vmatprep.mubr.bf16.mxu0 0
      %6112 = vmatmul.mubr.bf16.gmra.mrb[0].mxu0 %v1922
      %v6113 = vpop.f32.mrb[0].mxu0
      %v6114 = vadd.f32 0.0, %v6113
      %v6115 = vpop.f32.mrb[0].mxu0
      %v6116 = vpop.f32.mrb[0].mxu0
      %v6117 = vadd.f32 0.0, %v6116
      %v6118 = vpop.f32.mrb[0].mxu0
      %6119 = vmatprep.mubr.bf16.mxu0 0
      %6120 = vmatmul.mubr.bf16.gmra.mrb[0].mxu0 %v1925
      %v6121 = vpop.f32.mrb[0].mxu0
      %v6122 = vadd.f32 0.0, %v6121
      %v6123 = vpop.f32.mrb[0].mxu0
      %v6124 = vpop.f32.mrb[0].mxu0
      %v6125 = vadd.f32 0.0, %v6124
      %v6126 = vpop.f32.mrb[0].mxu0
      %6127 = vmatprep.mubr.bf16.mxu0 0
      %6128 = vmatmul.mubr.bf16.gmra.mrb[0].mxu0 %v1928
      %v6129 = vpop.f32.mrb[0].mxu0
      %v6130 = vadd.f32 0.0, %v6129
      %v6131 = vpop.f32.mrb[0].mxu0
      %v6132 = vpop.f32.mrb[0].mxu0
      %v6133 = vadd.f32 0.0, %v6132
      %v6134 = vpop.f32.mrb[0].mxu0
      %6135 = vmatprep.mubr.bf16.mxu0 0
      %6136 = vmatmul.mubr.bf16.gmra.mrb[0].mxu0 %v1931
      %v6137 = vpop.f32.mrb[0].mxu0
      %v6138 = vadd.f32 0.0, %v6137
      %v6139 = vpop.f32.mrb[0].mxu0
      %v6140 = vpop.f32.mrb[0].mxu0
      %v6141 = vadd.f32 0.0, %v6140
      %v6142 = vpop.f32.mrb[0].mxu0
      %6143 = vmatprep.mubr.bf16.mxu0 0
      %6144 = vmatmul.mubr.bf16.gmra.mrb[0].mxu0 %v1934
      %v6145 = vpop.f32.mrb[0].mxu0
      %v6146 = vadd.f32 0.0, %v6145
      %v6147 = vpop.f32.mrb[0].mxu0
      %v6148 = vpop.f32.mrb[0].mxu0
      %v6149 = vadd.f32 0.0, %v6148
      %v6150 = vpop.f32.mrb[0].mxu0
      %6151 = vmatprep.mubr.bf16.mxu0 0
      %6152 = vmatmul.mubr.bf16.gmra.mrb[0].mxu0 %v1937
      %v6153 = vpop.f32.mrb[0].mxu0
      %v6154 = vadd.f32 0.0, %v6153
      %v6155 = vpop.f32.mrb[0].mxu0
      %v6156 = vpop.f32.mrb[0].mxu0
      %v6157 = vadd.f32 0.0, %v6156
      %v6158 = vpop.f32.mrb[0].mxu0
      %6159 = vmatprep.mubr.bf16.mxu0 0
      %6160 = vmatmul.mubr.bf16.gmra.mrb[0].mxu0 %v1940
      %v6161 = vpop.f32.mrb[0].mxu0
      %v6162 = vadd.f32 0.0, %v6161
      %v6163 = vpop.f32.mrb[0].mxu0
      %v6164 = vpop.f32.mrb[0].mxu0
      %v6165 = vadd.f32 0.0, %v6164
      %v6166 = vpop.f32.mrb[0].mxu0
      %6167 = vmatprep.mubr.bf16.mxu0 0
      %6168 = vmatmul.mubr.bf16.gmra.mrb[0].mxu0 %v1943
      %v6169 = vpop.f32.mrb[0].mxu0
      %v6170 = vadd.f32 0.0, %v6169
      %v6171 = vpop.f32.mrb[0].mxu0
      %v6172 = vpop.f32.mrb[0].mxu0
      %v6173 = vadd.f32 0.0, %v6172
      %v6174 = vpop.f32.mrb[0].mxu0
      %6175 = vmatprep.mubr.bf16.mxu0 0
      %6176 = vmatmul.mubr.bf16.gmra.mrb[0].mxu0 %v1946
      %v6177 = vpop.f32.mrb[0].mxu0
      %v6178 = vadd.f32 0.0, %v6177
      %v6179 = vpop.f32.mrb[0].mxu0
      %v6180 = vpop.f32.mrb[0].mxu0
      %v6181 = vadd.f32 0.0, %v6180
      %v6182 = vpop.f32.mrb[0].mxu0
      %6183 = vmatprep.mubr.bf16.mxu0 0
      %6184 = vmatmul.mubr.bf16.gmra.mrb[0].mxu0 %v1949
      %v6185 = vpop.f32.mrb[0].mxu0
      %v6186 = vadd.f32 0.0, %v6185
      %v6187 = vpop.f32.mrb[0].mxu0
      %v6188 = vpop.f32.mrb[0].mxu0
      %v6189 = vadd.f32 0.0, %v6188
      %v6190 = vpop.f32.mrb[0].mxu0
      %6191 = vmatprep.mubr.bf16.mxu0 0
      %6192 = vmatmul.mubr.bf16.gmra.mrb[0].mxu0 %v1952
      %v6193 = vpop.f32.mrb[0].mxu0
      %v6194 = vadd.f32 0.0, %v6193
      %v6195 = vpop.f32.mrb[0].mxu0
      %v6196 = vpop.f32.mrb[0].mxu0
      %v6197 = vadd.f32 0.0, %v6196
      %v6198 = vpop.f32.mrb[0].mxu0
      %6199 = vmatprep.mubr.bf16.mxu0 0
      %6200 = vmatmul.mubr.bf16.gmra.mrb[0].mxu0 %v1955
      %v6201 = vpop.f32.mrb[0].mxu0
      %v6202 = vadd.f32 0.0, %v6201
      %v6203 = vpop.f32.mrb[0].mxu0
      %v6204 = vpop.f32.mrb[0].mxu0
      %v6205 = vadd.f32 0.0, %v6204
      %v6206 = vpop.f32.mrb[0].mxu0
      %6207 = vmatprep.mubr.bf16.mxu0 0
      %6208 = vmatmul.mubr.bf16.gmra.mrb[0].mxu0 %v1958
      %v6209 = vpop.f32.mrb[0].mxu0
      %v6210 = vadd.f32 0.0, %v6209
      %v6211 = vpop.f32.mrb[0].mxu0
      %v6212 = vpop.f32.mrb[0].mxu0
      %v6213 = vadd.f32 0.0, %v6212
      %v6214 = vpop.f32.mrb[0].mxu0
      %6215 = vmatprep.mubr.bf16.mxu0 0
      %6216 = vmatmul.mubr.bf16.gmra.mrb[0].mxu0 %v1961
      %v6217 = vpop.f32.mrb[0].mxu0
      %v6218 = vadd.f32 0.0, %v6217
      %v6219 = vpop.f32.mrb[0].mxu0
      %v6220 = vpop.f32.mrb[0].mxu0
      %v6221 = vadd.f32 0.0, %v6220
      %v6222 = vpop.f32.mrb[0].mxu0
      %6223 = vmatprep.mubr.bf16.mxu0 0
      %6224 = vmatmul.mubr.bf16.gmra.mrb[0].mxu0 %v1964
      %v6225 = vpop.f32.mrb[0].mxu0
      %v6226 = vadd.f32 0.0, %v6225
      %v6227 = vpop.f32.mrb[0].mxu0
      %v6228 = vpop.f32.mrb[0].mxu0
      %v6229 = vadd.f32 0.0, %v6228
      %v6230 = vpop.f32.mrb[0].mxu0
      %6231 = vmatprep.mubr.bf16.mxu0 0
      %6232 = vmatmul.mubr.bf16.gmra.mrb[0].mxu0 %v1967
      %v6233 = vpop.f32.mrb[0].mxu0
      %v6234 = vadd.f32 0.0, %v6233
      %v6235 = vpop.f32.mrb[0].mxu0
      %v6236 = vpop.f32.mrb[0].mxu0
      %v6237 = vadd.f32 0.0, %v6236
      %v6238 = vpop.f32.mrb[0].mxu0
      %6239 = vmatprep.mubr.bf16.mxu0 0
      %6240 = vmatmul.mubr.bf16.gmra.mrb[0].mxu0 %v1970
      %v6241 = vpop.f32.mrb[0].mxu0
      %v6242 = vadd.f32 0.0, %v6241
      %v6243 = vpop.f32.mrb[0].mxu0
      %v6244 = vpop.f32.mrb[0].mxu0
      %v6245 = vadd.f32 0.0, %v6244
      %v6246 = vpop.f32.mrb[0].mxu0
      %6247 = vmatprep.mubr.bf16.mxu0 0
      %6248 = vmatmul.mubr.bf16.gmra.mrb[0].mxu0 %v1973
      %v6249 = vpop.f32.mrb[0].mxu0
      %v6250 = vadd.f32 0.0, %v6249
      %v6251 = vpop.f32.mrb[0].mxu0
      %v6252 = vpop.f32.mrb[0].mxu0
      %v6253 = vadd.f32 0.0, %v6252
      %v6254 = vpop.f32.mrb[0].mxu0
      %6255 = vmatprep.mubr.bf16.mxu0 0
      %6256 = vmatmul.mubr.bf16.gmra.mrb[0].mxu0 %v1976
      %v6257 = vpop.f32.mrb[0].mxu0
      %v6258 = vadd.f32 0.0, %v6257
      %v6259 = vpop.f32.mrb[0].mxu0
      %v6260 = vpop.f32.mrb[0].mxu0
      %v6261 = vadd.f32 0.0, %v6260
      %v6262 = vpop.f32.mrb[0].mxu0
      %6263 = vmatprep.mubr.bf16.mxu0 0
      %6264 = vmatmul.mubr.bf16.gmra.mrb[0].mxu0 %v1979
      %v6265 = vpop.f32.mrb[0].mxu0
      %v6266 = vadd.f32 0.0, %v6265
      %v6267 = vpop.f32.mrb[0].mxu0
      %v6268 = vpop.f32.mrb[0].mxu0
      %v6269 = vadd.f32 0.0, %v6268
      %v6270 = vpop.f32.mrb[0].mxu0
      %6271 = vmatprep.mubr.bf16.mxu0 0
      %6272 = vmatmul.mubr.bf16.gmra.mrb[0].mxu0 %v1982
      %v6273 = vpop.f32.mrb[0].mxu0
      %v6274 = vadd.f32 0.0, %v6273
      %v6275 = vpop.f32.mrb[0].mxu0
      %v6276 = vpop.f32.mrb[0].mxu0
      %v6277 = vadd.f32 0.0, %v6276
      %v6278 = vpop.f32.mrb[0].mxu0
      %6279 = vmatprep.mubr.bf16.mxu0 0
      %6280 = vmatmul.mubr.bf16.gmra.mrb[0].mxu0 %v1985
      %v6281 = vpop.f32.mrb[0].mxu0
      %v6282 = vadd.f32 0.0, %v6281
      %v6283 = vpop.f32.mrb[0].mxu0
      %v6284 = vpop.f32.mrb[0].mxu0
      %v6285 = vadd.f32 0.0, %v6284
      %v6286 = vpop.f32.mrb[0].mxu0
      %6287 = vmatprep.mubr.bf16.mxu0 0
      %6288 = vmatmul.mubr.bf16.gmra.mrb[0].mxu0 %v1988
      %v6289 = vpop.f32.mrb[0].mxu0
      %v6290 = vadd.f32 0.0, %v6289
      %v6291 = vpop.f32.mrb[0].mxu0
      %v6292 = vpop.f32.mrb[0].mxu0
      %v6293 = vadd.f32 0.0, %v6292
      %v6294 = vpop.f32.mrb[0].mxu0
      %6295 = vmatprep.mubr.bf16.mxu0 0
      %6296 = vmatmul.mubr.bf16.gmra.mrb[0].mxu0 %v1991
      %v6297 = vpop.f32.mrb[0].mxu0
      %v6298 = vadd.f32 0.0, %v6297
      %v6299 = vpop.f32.mrb[0].mxu0
      %v6300 = vpop.f32.mrb[0].mxu0
      %v6301 = vadd.f32 0.0, %v6300
      %v6302 = vpop.f32.mrb[0].mxu0
      %6303 = vmatprep.mubr.bf16.mxu0 0
      %6304 = vmatmul.mubr.bf16.gmra.mrb[0].mxu0 %v1994
      %v6305 = vpop.f32.mrb[0].mxu0
      %v6306 = vadd.f32 0.0, %v6305
      %v6307 = vpop.f32.mrb[0].mxu0
      %v6308 = vpop.f32.mrb[0].mxu0
      %v6309 = vadd.f32 0.0, %v6308
      %v6310 = vpop.f32.mrb[0].mxu0
      %6311 = vmatprep.mubr.bf16.mxu0 0
      %6312 = vmatmul.mubr.bf16.gmra.mrb[0].mxu0 %v1997
      %v6313 = vpop.f32.mrb[0].mxu0
      %v6314 = vadd.f32 0.0, %v6313
      %v6315 = vpop.f32.mrb[0].mxu0
      %v6316 = vpop.f32.mrb[0].mxu0
      %v6317 = vadd.f32 0.0, %v6316
      %v6318 = vpop.f32.mrb[0].mxu0
      %6319 = vmatprep.mubr.bf16.mxu0 0
      %6320 = vmatmul.mubr.bf16.gmra.mrb[0].mxu0 %v2000
      %v6321 = vpop.f32.mrb[0].mxu0
      %v6322 = vadd.f32 0.0, %v6321
      %v6323 = vpop.f32.mrb[0].mxu0
      %v6324 = vpop.f32.mrb[0].mxu0
      %v6325 = vadd.f32 0.0, %v6324
      %v6326 = vpop.f32.mrb[0].mxu0
      %6327 = vmatprep.mubr.bf16.mxu0 0
      %6328 = vmatmul.mubr.bf16.gmra.mrb[0].mxu0 %v2003
      %v6329 = vpop.f32.mrb[0].mxu0
      %v6330 = vadd.f32 0.0, %v6329
      %v6331 = vpop.f32.mrb[0].mxu0
      %v6332 = vpop.f32.mrb[0].mxu0
      %v6333 = vadd.f32 0.0, %v6332
      %v6334 = vpop.f32.mrb[0].mxu0
      %6335 = vmatprep.mubr.bf16.mxu0 0
      %6336 = vmatmul.mubr.bf16.gmra.mrb[0].mxu0 %v2006
      %v6337 = vpop.f32.mrb[0].mxu0
      %v6338 = vadd.f32 0.0, %v6337
      %v6339 = vpop.f32.mrb[0].mxu0
      %v6340 = vpop.f32.mrb[0].mxu0
      %v6341 = vadd.f32 0.0, %v6340
      %v6342 = vpop.f32.mrb[0].mxu0
      %6343 = vmatprep.mubr.bf16.mxu0 0
      %6344 = vmatmul.mubr.bf16.gmra.mrb[0].mxu0 %v2009
      %v6345 = vpop.f32.mrb[0].mxu0
      %v6346 = vadd.f32 0.0, %v6345
      %v6347 = vpop.f32.mrb[0].mxu0
      %v6348 = vpop.f32.mrb[0].mxu0
      %v6349 = vadd.f32 0.0, %v6348
      %v6350 = vpop.f32.mrb[0].mxu0
      %6351 = vmatprep.mubr.bf16.mxu0 0
      %6352 = vmatmul.mubr.bf16.gmra.mrb[0].mxu0 %v2012
      %v6353 = vpop.f32.mrb[0].mxu0
      %v6354 = vadd.f32 0.0, %v6353
      %v6355 = vpop.f32.mrb[0].mxu0
      %v6356 = vpop.f32.mrb[0].mxu0
      %v6357 = vadd.f32 0.0, %v6356
      %v6358 = vpop.f32.mrb[0].mxu0
      %6359 = vmatprep.mubr.bf16.mxu0 0
      %6360 = vmatmul.mubr.bf16.gmra.mrb[0].mxu0 %v2015
      %v6361 = vpop.f32.mrb[0].mxu0
      %v6362 = vadd.f32 0.0, %v6361
      %v6363 = vpop.f32.mrb[0].mxu0
      %v6364 = vpop.f32.mrb[0].mxu0
      %v6365 = vadd.f32 0.0, %v6364
      %v6366 = vpop.f32.mrb[0].mxu0
      %6367 = vmatprep.mubr.bf16.mxu0 0
      %6368 = vmatmul.mubr.bf16.gmra.mrb[0].mxu0 %v2018
      %v6369 = vpop.f32.mrb[0].mxu0
      %v6370 = vadd.f32 0.0, %v6369
      %v6371 = vpop.f32.mrb[0].mxu0
      %v6372 = vpop.f32.mrb[0].mxu0
      %v6373 = vadd.f32 0.0, %v6372
      %v6374 = vpop.f32.mrb[0].mxu0
      %6375 = vmatprep.mubr.bf16.mxu0 0
      %6376 = vmatmul.mubr.bf16.gmra.mrb[0].mxu0 %v2021
      %v6377 = vpop.f32.mrb[0].mxu0
      %v6378 = vadd.f32 0.0, %v6377
      %v6379 = vpop.f32.mrb[0].mxu0
      %v6380 = vpop.f32.mrb[0].mxu0
      %v6381 = vadd.f32 0.0, %v6380
      %v6382 = vpop.f32.mrb[0].mxu0
      %6383 = vmatprep.mubr.bf16.mxu0 0
      %6384 = vmatmul.mubr.bf16.gmra.mrb[0].mxu0 %v2024
      %v6385 = vpop.f32.mrb[0].mxu0
      %v6386 = vadd.f32 0.0, %v6385
      %v6387 = vpop.f32.mrb[0].mxu0
      %v6388 = vpop.f32.mrb[0].mxu0
      %v6389 = vadd.f32 0.0, %v6388
      %v6390 = vpop.f32.mrb[0].mxu0
      %6391 = vmatprep.mubr.bf16.mxu0 0
      %6392 = vmatmul.mubr.bf16.gmra.mrb[0].mxu0 %v2027
      %v6393 = vpop.f32.mrb[0].mxu0
      %v6394 = vadd.f32 0.0, %v6393
      %v6395 = vpop.f32.mrb[0].mxu0
      %v6396 = vpop.f32.mrb[0].mxu0
      %v6397 = vadd.f32 0.0, %v6396
      %v6398 = vpop.f32.mrb[0].mxu0
      %6399 = vmatprep.mubr.bf16.mxu0 0
      %6400 = vmatmul.mubr.bf16.gmra.mrb[0].mxu0 %v2030
      %v6401 = vpop.f32.mrb[0].mxu0
      %v6402 = vadd.f32 0.0, %v6401
      %v6403 = vpop.f32.mrb[0].mxu0
      %v6404 = vpop.f32.mrb[0].mxu0
      %v6405 = vadd.f32 0.0, %v6404
      %v6406 = vpop.f32.mrb[0].mxu0
      %6407 = vmatprep.mubr.bf16.mxu0 0
      %6408 = vmatmul.mubr.bf16.gmra.mrb[0].mxu0 %v2033
      %v6409 = vpop.f32.mrb[0].mxu0
      %v6410 = vadd.f32 0.0, %v6409
      %v6411 = vpop.f32.mrb[0].mxu0
      %v6412 = vpop.f32.mrb[0].mxu0
      %v6413 = vadd.f32 0.0, %v6412
      %v6414 = vpop.f32.mrb[0].mxu0
      %6415 = vmatprep.mubr.bf16.mxu0 0
      %6416 = vmatmul.mubr.bf16.gmra.mrb[0].mxu0 %v2036
      %v6417 = vpop.f32.mrb[0].mxu0
      %v6418 = vadd.f32 0.0, %v6417
      %v6419 = vpop.f32.mrb[0].mxu0
      %v6420 = vpop.f32.mrb[0].mxu0
      %v6421 = vadd.f32 0.0, %v6420
      %v6422 = vpop.f32.mrb[0].mxu0
      %6423 = vmatprep.mubr.bf16.mxu0 0
      %6424 = vmatmul.mubr.bf16.gmra.mrb[0].mxu0 %v2039
      %v6425 = vpop.f32.mrb[0].mxu0
      %v6426 = vadd.f32 0.0, %v6425
      %v6427 = vpop.f32.mrb[0].mxu0
      %v6428 = vpop.f32.mrb[0].mxu0
      %v6429 = vadd.f32 0.0, %v6428
      %v6430 = vpop.f32.mrb[0].mxu0
      %6431 = vmatprep.mubr.bf16.mxu0 0
      %6432 = vmatmul.mubr.bf16.gmra.mrb[0].mxu0 %v2042
      %v6433 = vpop.f32.mrb[0].mxu0
      %v6434 = vadd.f32 0.0, %v6433
      %v6435 = vpop.f32.mrb[0].mxu0
      %v6436 = vpop.f32.mrb[0].mxu0
      %v6437 = vadd.f32 0.0, %v6436
      %v6438 = vpop.f32.mrb[0].mxu0
      %6439 = vmatprep.mubr.bf16.mxu0 0
      %6440 = vmatmul.mubr.bf16.gmra.mrb[0].mxu0 %v2045
      %v6441 = vpop.f32.mrb[0].mxu0
      %v6442 = vadd.f32 0.0, %v6441
      %v6443 = vpop.f32.mrb[0].mxu0
      %v6444 = vpop.f32.mrb[0].mxu0
      %v6445 = vadd.f32 0.0, %v6444
      %v6446 = vpop.f32.mrb[0].mxu0
      %6447 = vmatprep.mubr.bf16.mxu0 0
      %6448 = vmatmul.mubr.bf16.gmra.mrb[0].mxu0 %v2048
      %v6449 = vpop.f32.mrb[0].mxu0
      %v6450 = vadd.f32 0.0, %v6449
      %v6451 = vpop.f32.mrb[0].mxu0
      %v6452 = vpop.f32.mrb[0].mxu0
      %v6453 = vadd.f32 0.0, %v6452
      %v6454 = vpop.f32.mrb[0].mxu0
      %6455 = vmatprep.mubr.bf16.mxu0 0
      %6456 = vmatmul.mubr.bf16.gmra.mrb[0].mxu0 %v2051
      %v6457 = vpop.f32.mrb[0].mxu0
      %v6458 = vadd.f32 0.0, %v6457
      %v6459 = vpop.f32.mrb[0].mxu0
      %v6460 = vpop.f32.mrb[0].mxu0
      %v6461 = vadd.f32 0.0, %v6460
      %v6462 = vpop.f32.mrb[0].mxu0
      %6463 = vmatprep.mubr.bf16.mxu0 0
      %6464 = vmatmul.mubr.bf16.gmra.mrb[0].mxu0 %v2054
      %v6465 = vpop.f32.mrb[0].mxu0
      %v6466 = vadd.f32 0.0, %v6465
      %v6467 = vpop.f32.mrb[0].mxu0
      %v6468 = vpop.f32.mrb[0].mxu0
      %v6469 = vadd.f32 0.0, %v6468
      %v6470 = vpop.f32.mrb[0].mxu0
      %6471 = vmatprep.mubr.bf16.mxu0 0
      %6472 = vmatmul.mubr.bf16.gmra.mrb[0].mxu0 %v2057
      %v6473 = vpop.f32.mrb[0].mxu0
      %v6474 = vadd.f32 0.0, %v6473
      %v6475 = vpop.f32.mrb[0].mxu0
      %v6476 = vpop.f32.mrb[0].mxu0
      %v6477 = vadd.f32 0.0, %v6476
      %v6478 = vpop.f32.mrb[0].mxu0
      %6479 = vmatprep.mubr.bf16.mxu0 0
      %6480 = vmatmul.mubr.bf16.gmra.mrb[0].mxu0 %v2060
      %v6481 = vpop.f32.mrb[0].mxu0
      %v6482 = vadd.f32 0.0, %v6481
      %v6483 = vpop.f32.mrb[0].mxu0
      %v6484 = vpop.f32.mrb[0].mxu0
      %v6485 = vadd.f32 0.0, %v6484
      %v6486 = vpop.f32.mrb[0].mxu0
      %6487 = vmatprep.mubr.bf16.mxu0 0
      %6488 = vmatmul.mubr.bf16.gmra.mrb[0].mxu0 %v2063
      %v6489 = vpop.f32.mrb[0].mxu0
      %v6490 = vadd.f32 0.0, %v6489
      %v6491 = vpop.f32.mrb[0].mxu0
      %v6492 = vpop.f32.mrb[0].mxu0
      %v6493 = vadd.f32 0.0, %v6492
      %v6494 = vpop.f32.mrb[0].mxu0
      %6495 = vmatprep.mubr.bf16.mxu0 0
      %6496 = vmatmul.mubr.bf16.gmra.mrb[0].mxu0 %v2066
      %v6497 = vpop.f32.mrb[0].mxu0
      %v6498 = vadd.f32 0.0, %v6497
      %v6499 = vpop.f32.mrb[0].mxu0
      %v6500 = vpop.f32.mrb[0].mxu0
      %v6501 = vadd.f32 0.0, %v6500
      %v6502 = vpop.f32.mrb[0].mxu0
      %6503 = vmatprep.mubr.bf16.mxu0 0
      %6504 = vmatmul.mubr.bf16.gmra.mrb[0].mxu0 %v1877
      %v6505 = vpop.f32.mrb[0].mxu0
      %v6506 = vadd.f32 0.0, %v6505
      %v6507 = vpop.f32.mrb[0].mxu0
      %v6508 = vpop.f32.mrb[0].mxu0
      %v6509 = vadd.f32 0.0, %v6508
      %v6510 = vpop.f32.mrb[0].mxu0
      %6511 = vmatprep.mubr.bf16.mxu0 0
      %6512 = vmatmul.mubr.bf16.gmra.mrb[0].mxu0 %v1880
      %v6513 = vpop.f32.mrb[0].mxu0
      %v6514 = vadd.f32 0.0, %v6513
      %v6515 = vpop.f32.mrb[0].mxu0
      %v6516 = vpop.f32.mrb[0].mxu0
      %v6517 = vadd.f32 0.0, %v6516
      %v6518 = vpop.f32.mrb[0].mxu0
      %6519 = vdwg.mxu0
      %v6520 = vadd.f32 %v5842, %v6010
      %v6521 = vadd.f32 %v5843, %v6013
      %v6522 = vadd.f32 %v5844, %v6018
      %v6523 = vadd.f32 %v5845, %v6021
      %v6524 = vadd.f32 %v5846, %v6026
      %v6525 = vadd.f32 %v5847, %v6029
      %v6526 = vadd.f32 %v5848, %v6034
      %v6527 = vadd.f32 %v5849, %v6037
      %v6528 = vadd.f32 %v5850, %v6042
      %v6529 = vadd.f32 %v5851, %v6045
      %v6530 = vadd.f32 %v5852, %v6050
      %v6531 = vadd.f32 %v5853, %v6053
      %v6532 = vadd.f32 %v5854, %v6058
      %v6533 = vadd.f32 %v5855, %v6061
      %v6534 = vadd.f32 %v5856, %v6066
      %v6535 = vadd.f32 %v5857, %v6069
      %v6536 = vadd.f32 %v5858, %v6074
      %v6537 = vadd.f32 %v5859, %v6077
      %v6538 = vadd.f32 %v5860, %v6082
      %v6539 = vadd.f32 %v5861, %v6085
      %v6540 = vadd.f32 %v5862, %v6090
      %v6541 = vadd.f32 %v5863, %v6093
      %v6542 = vadd.f32 %v5864, %v6098
      %v6543 = vadd.f32 %v5865, %v6101
      %v6544 = vadd.f32 %v5866, %v6106
      %v6545 = vadd.f32 %v5867, %v6109
      %v6546 = vadd.f32 %v5868, %v6114
      %v6547 = vadd.f32 %v5869, %v6117
      %v6548 = vadd.f32 %v5870, %v6122
      %v6549 = vadd.f32 %v5871, %v6125
      %v6550 = vadd.f32 %v5872, %v6130
      %v6551 = vadd.f32 %v5873, %v6133
      %v6552 = vadd.f32 %v5874, %v6138
      %v6553 = vadd.f32 %v5875, %v6141
      %v6554 = vadd.f32 %v5876, %v6146
      %v6555 = vadd.f32 %v5877, %v6149
      %v6556 = vadd.f32 %v5878, %v6154
      %v6557 = vadd.f32 %v5879, %v6157
      %v6558 = vadd.f32 %v5880, %v6162
      %v6559 = vadd.f32 %v5881, %v6165
      %v6560 = vadd.f32 %v5882, %v6170
      %v6561 = vadd.f32 %v5883, %v6173
      %v6562 = vadd.f32 %v5884, %v6178
      %v6563 = vadd.f32 %v5885, %v6181
      %v6564 = vadd.f32 %v5886, %v6186
      %v6565 = vadd.f32 %v5887, %v6189
      %v6566 = vadd.f32 %v5888, %v6194
      %v6567 = vadd.f32 %v5889, %v6197
      %v6568 = vadd.f32 %v5890, %v6202
      %v6569 = vadd.f32 %v5891, %v6205
      %v6570 = vadd.f32 %v5892, %v6210
      %v6571 = vadd.f32 %v5893, %v6213
      %v6572 = vadd.f32 %v5894, %v6218
      %v6573 = vadd.f32 %v5895, %v6221
      %v6574 = vadd.f32 %v5896, %v6226
      %v6575 = vadd.f32 %v5897, %v6229
      %v6576 = vadd.f32 %v5898, %v6234
      %v6577 = vadd.f32 %v5899, %v6237
      %v6578 = vadd.f32 %v5900, %v6242
      %v6579 = vadd.f32 %v5901, %v6245
      %v6580 = vadd.f32 %v5902, %v6250
      %v6581 = vadd.f32 %v5903, %v6253
      %v6582 = vadd.f32 %v5904, %v6258
      %v6583 = vadd.f32 %v5905, %v6261
      %v6584 = vadd.f32 %v5906, %v6266
      %v6585 = vadd.f32 %v5907, %v6269
      %v6586 = vadd.f32 %v5908, %v6274
      %v6587 = vadd.f32 %v5909, %v6277
      %v6588 = vadd.f32 %v5910, %v6282
      %v6589 = vadd.f32 %v5911, %v6285
      %v6590 = vadd.f32 %v5912, %v6290
      %v6591 = vadd.f32 %v5913, %v6293
      %v6592 = vadd.f32 %v5914, %v6298
      %v6593 = vadd.f32 %v5915, %v6301
      %v6594 = vadd.f32 %v5916, %v6306
      %v6595 = vadd.f32 %v5917, %v6309
      %v6596 = vadd.f32 %v5918, %v6314
      %v6597 = vadd.f32 %v5919, %v6317
      %v6598 = vadd.f32 %v5920, %v6322
      %v6599 = vadd.f32 %v5921, %v6325
      %v6600 = vadd.f32 %v5922, %v6330
      %v6601 = vadd.f32 %v5923, %v6333
      %v6602 = vadd.f32 %v5924, %v6338
      %v6603 = vadd.f32 %v5925, %v6341
      %v6604 = vadd.f32 %v5926, %v6346
      %v6605 = vadd.f32 %v5927, %v6349
      %v6606 = vadd.f32 %v5928, %v6354
      %v6607 = vadd.f32 %v5929, %v6357
      %v6608 = vadd.f32 %v5930, %v6362
      %v6609 = vadd.f32 %v5931, %v6365
      %v6610 = vadd.f32 %v5932, %v6370
      %v6611 = vadd.f32 %v5933, %v6373
      %v6612 = vadd.f32 %v5934, %v6378
      %v6613 = vadd.f32 %v5935, %v6381
      %v6614 = vadd.f32 %v5936, %v6386
      %v6615 = vadd.f32 %v5937, %v6389
      %v6616 = vadd.f32 %v5938, %v6394
      %v6617 = vadd.f32 %v5939, %v6397
      %v6618 = vadd.f32 %v5940, %v6402
      %v6619 = vadd.f32 %v5941, %v6405
      %v6620 = vadd.f32 %v5942, %v6410
      %v6621 = vadd.f32 %v5943, %v6413
      %v6622 = vadd.f32 %v5944, %v6418
      %v6623 = vadd.f32 %v5945, %v6421
      %v6624 = vadd.f32 %v5946, %v6426
      %v6625 = vadd.f32 %v5947, %v6429
      %v6626 = vadd.f32 %v5948, %v6434
      %v6627 = vadd.f32 %v5949, %v6437
      %v6628 = vadd.f32 %v5950, %v6442
      %v6629 = vadd.f32 %v5951, %v6445
      %v6630 = vadd.f32 %v5952, %v6450
      %v6631 = vadd.f32 %v5953, %v6453
      %v6632 = vadd.f32 %v5954, %v6458
      %v6633 = vadd.f32 %v5955, %v6461
      %v6634 = vadd.f32 %v5956, %v6466
      %v6635 = vadd.f32 %v5957, %v6469
      %v6636 = vadd.f32 %v5958, %v6474
      %v6637 = vadd.f32 %v5959, %v6477
      %v6638 = vadd.f32 %v5960, %v6482
      %v6639 = vadd.f32 %v5961, %v6485
      %v6640 = vadd.f32 %v5962, %v6490
      %v6641 = vadd.f32 %v5963, %v6493
      %v6642 = vadd.f32 %v5964, %v6498
      %v6643 = vadd.f32 %v5965, %v6501
      %v6644 = vadd.f32 %v5966, %v6506
      %v6645 = vadd.f32 %v5967, %v6509
      %v6646 = vadd.f32 %v5968, %v6514
      %v6647 = vadd.f32 %v5969, %v6517
      %s6648 = scalar_lea.vmem %s1, 28
      %v6649 = vld [vmem:[%s6648] sm:$0xf]
      %v6651 = vsel %vm1327, %v6649, 0
      %6653 = vmatprep.subr.bf16.mxu0 0
      %6654 = vmatpush1.bf16.msra.mxu0 %v6651
      %6655 = vmatprep.subr.bf16.mxu0 0
      %6656 = vmatpush1.bf16.msra.mxu0 0
      %6657 = vmatprep.subr.bf16.mxu0 0
      %6658 = vmatpush1.bf16.msra.mxu0 0
      %6659 = vmatprep.subr.bf16.mxu0 0
      %6660 = vmatpush1.bf16.msra.mxu0 0
      %6661 = vmatprep.subr.bf16.mxu0 0
      %6662 = vmatpush1.bf16.msra.mxu0 0
      %6663 = vmatprep.subr.bf16.mxu0 0
      %6664 = vmatpush1.bf16.msra.mxu0 0
      %6665 = vmatprep.subr.bf16.mxu0 0
      %6666 = vmatpush1.bf16.msra.mxu0 0
      %6667 = vmatprep.subr.bf16.mxu0 0
      %6668 = vmatpush1.bf16.msra.mxu0 0
      %6669 = vmatprep.subr.bf16.mxu0 0
      %6670 = vmatpush1.bf16.msra.mxu0 0
      %6671 = vmatprep.subr.bf16.mxu0 0
      %6672 = vmatpush1.bf16.msra.mxu0 0
      %6673 = vmatprep.subr.bf16.mxu0 0
      %6674 = vmatpush1.bf16.msra.mxu0 0
      %6675 = vmatprep.subr.bf16.mxu0 0
      %6676 = vmatpush1.bf16.msra.mxu0 0
      %6677 = vmatprep.subr.bf16.mxu0 0
      %6678 = vmatpush1.bf16.msra.mxu0 0
      %6679 = vmatprep.subr.bf16.mxu0 0
      %6680 = vmatpush1.bf16.msra.mxu0 0
      %6681 = vmatprep.subr.bf16.mxu0 0
      %6682 = vmatpush1.bf16.msra.mxu0 0
      %6683 = vmatprep.subr.bf16.mxu0 0
      %6684 = vmatpush1.bf16.msra.mxu0 0
      %6685 = vmatprep.mubr.bf16.mxu0 0
      %6686 = vmatmul.mubr.bf16.gmra.mrb[0].mxu0 %v1142
      %v6687 = vpop.f32.mrb[0].mxu0
      %v6688 = vadd.f32 0.0, %v6687
      %v6689 = vpop.f32.mrb[0].mxu0
      %v6690 = vpop.f32.mrb[0].mxu0
      %v6691 = vadd.f32 0.0, %v6690
      %v6692 = vpop.f32.mrb[0].mxu0
      %6693 = vmatprep.mubr.bf16.mxu0 0
      %6694 = vmatmul.mubr.bf16.gmra.mrb[0].mxu0 %v1145
      %v6695 = vpop.f32.mrb[0].mxu0
      %v6696 = vadd.f32 0.0, %v6695
      %v6697 = vpop.f32.mrb[0].mxu0
      %v6698 = vpop.f32.mrb[0].mxu0
      %v6699 = vadd.f32 0.0, %v6698
      %v6700 = vpop.f32.mrb[0].mxu0
      %6701 = vmatprep.mubr.bf16.mxu0 0
      %6702 = vmatmul.mubr.bf16.gmra.mrb[0].mxu0 %v1148
      %v6703 = vpop.f32.mrb[0].mxu0
      %v6704 = vadd.f32 0.0, %v6703
      %v6705 = vpop.f32.mrb[0].mxu0
      %v6706 = vpop.f32.mrb[0].mxu0
      %v6707 = vadd.f32 0.0, %v6706
      %v6708 = vpop.f32.mrb[0].mxu0
      %6709 = vmatprep.mubr.bf16.mxu0 0
      %6710 = vmatmul.mubr.bf16.gmra.mrb[0].mxu0 %v1151
      %v6711 = vpop.f32.mrb[0].mxu0
      %v6712 = vadd.f32 0.0, %v6711
      %v6713 = vpop.f32.mrb[0].mxu0
      %v6714 = vpop.f32.mrb[0].mxu0
      %v6715 = vadd.f32 0.0, %v6714
      %v6716 = vpop.f32.mrb[0].mxu0
      %6717 = vmatprep.mubr.bf16.mxu0 0
      %6718 = vmatmul.mubr.bf16.gmra.mrb[0].mxu0 %v1154
      %v6719 = vpop.f32.mrb[0].mxu0
      %v6720 = vadd.f32 0.0, %v6719
      %v6721 = vpop.f32.mrb[0].mxu0
      %v6722 = vpop.f32.mrb[0].mxu0
      %v6723 = vadd.f32 0.0, %v6722
      %v6724 = vpop.f32.mrb[0].mxu0
      %6725 = vmatprep.mubr.bf16.mxu0 0
      %6726 = vmatmul.mubr.bf16.gmra.mrb[0].mxu0 %v1157
      %v6727 = vpop.f32.mrb[0].mxu0
      %v6728 = vadd.f32 0.0, %v6727
      %v6729 = vpop.f32.mrb[0].mxu0
      %v6730 = vpop.f32.mrb[0].mxu0
      %v6731 = vadd.f32 0.0, %v6730
      %v6732 = vpop.f32.mrb[0].mxu0
      %6733 = vmatprep.mubr.bf16.mxu0 0
      %6734 = vmatmul.mubr.bf16.gmra.mrb[0].mxu0 %v1160
      %v6735 = vpop.f32.mrb[0].mxu0
      %v6736 = vadd.f32 0.0, %v6735
      %v6737 = vpop.f32.mrb[0].mxu0
      %v6738 = vpop.f32.mrb[0].mxu0
      %v6739 = vadd.f32 0.0, %v6738
      %v6740 = vpop.f32.mrb[0].mxu0
      %6741 = vmatprep.mubr.bf16.mxu0 0
      %6742 = vmatmul.mubr.bf16.gmra.mrb[0].mxu0 %v1163
      %v6743 = vpop.f32.mrb[0].mxu0
      %v6744 = vadd.f32 0.0, %v6743
      %v6745 = vpop.f32.mrb[0].mxu0
      %v6746 = vpop.f32.mrb[0].mxu0
      %v6747 = vadd.f32 0.0, %v6746
      %v6748 = vpop.f32.mrb[0].mxu0
      %6749 = vmatprep.mubr.bf16.mxu0 0
      %6750 = vmatmul.mubr.bf16.gmra.mrb[0].mxu0 %v1166
      %v6751 = vpop.f32.mrb[0].mxu0
      %v6752 = vadd.f32 0.0, %v6751
      %v6753 = vpop.f32.mrb[0].mxu0
      %v6754 = vpop.f32.mrb[0].mxu0
      %v6755 = vadd.f32 0.0, %v6754
      %v6756 = vpop.f32.mrb[0].mxu0
      %6757 = vmatprep.mubr.bf16.mxu0 0
      %6758 = vmatmul.mubr.bf16.gmra.mrb[0].mxu0 %v1169
      %v6759 = vpop.f32.mrb[0].mxu0
      %v6760 = vadd.f32 0.0, %v6759
      %v6761 = vpop.f32.mrb[0].mxu0
      %v6762 = vpop.f32.mrb[0].mxu0
      %v6763 = vadd.f32 0.0, %v6762
      %v6764 = vpop.f32.mrb[0].mxu0
      %6765 = vmatprep.mubr.bf16.mxu0 0
      %6766 = vmatmul.mubr.bf16.gmra.mrb[0].mxu0 %v1172
      %v6767 = vpop.f32.mrb[0].mxu0
      %v6768 = vadd.f32 0.0, %v6767
      %v6769 = vpop.f32.mrb[0].mxu0
      %v6770 = vpop.f32.mrb[0].mxu0
      %v6771 = vadd.f32 0.0, %v6770
      %v6772 = vpop.f32.mrb[0].mxu0
      %6773 = vmatprep.mubr.bf16.mxu0 0
      %6774 = vmatmul.mubr.bf16.gmra.mrb[0].mxu0 %v1175
      %v6775 = vpop.f32.mrb[0].mxu0
      %v6776 = vadd.f32 0.0, %v6775
      %v6777 = vpop.f32.mrb[0].mxu0
      %v6778 = vpop.f32.mrb[0].mxu0
      %v6779 = vadd.f32 0.0, %v6778
      %v6780 = vpop.f32.mrb[0].mxu0
      %6781 = vmatprep.mubr.bf16.mxu0 0
      %6782 = vmatmul.mubr.bf16.gmra.mrb[0].mxu0 %v1178
      %v6783 = vpop.f32.mrb[0].mxu0
      %v6784 = vadd.f32 0.0, %v6783
      %v6785 = vpop.f32.mrb[0].mxu0
      %v6786 = vpop.f32.mrb[0].mxu0
      %v6787 = vadd.f32 0.0, %v6786
      %v6788 = vpop.f32.mrb[0].mxu0
      %6789 = vmatprep.mubr.bf16.mxu0 0
      %6790 = vmatmul.mubr.bf16.gmra.mrb[0].mxu0 %v1181
      %v6791 = vpop.f32.mrb[0].mxu0
      %v6792 = vadd.f32 0.0, %v6791
      %v6793 = vpop.f32.mrb[0].mxu0
      %v6794 = vpop.f32.mrb[0].mxu0
      %v6795 = vadd.f32 0.0, %v6794
      %v6796 = vpop.f32.mrb[0].mxu0
      %6797 = vmatprep.mubr.bf16.mxu0 0
      %6798 = vmatmul.mubr.bf16.gmra.mrb[0].mxu0 %v1184
      %v6799 = vpop.f32.mrb[0].mxu0
      %v6800 = vadd.f32 0.0, %v6799
      %v6801 = vpop.f32.mrb[0].mxu0
      %v6802 = vpop.f32.mrb[0].mxu0
      %v6803 = vadd.f32 0.0, %v6802
      %v6804 = vpop.f32.mrb[0].mxu0
      %6805 = vmatprep.mubr.bf16.mxu0 0
      %6806 = vmatmul.mubr.bf16.gmra.mrb[0].mxu0 %v1187
      %v6807 = vpop.f32.mrb[0].mxu0
      %v6808 = vadd.f32 0.0, %v6807
      %v6809 = vpop.f32.mrb[0].mxu0
      %v6810 = vpop.f32.mrb[0].mxu0
      %v6811 = vadd.f32 0.0, %v6810
      %v6812 = vpop.f32.mrb[0].mxu0
      %6813 = vmatprep.mubr.bf16.mxu0 0
      %6814 = vmatmul.mubr.bf16.gmra.mrb[0].mxu0 %v1190
      %v6815 = vpop.f32.mrb[0].mxu0
      %v6816 = vadd.f32 0.0, %v6815
      %v6817 = vpop.f32.mrb[0].mxu0
      %v6818 = vpop.f32.mrb[0].mxu0
      %v6819 = vadd.f32 0.0, %v6818
      %v6820 = vpop.f32.mrb[0].mxu0
      %6821 = vmatprep.mubr.bf16.mxu0 0
      %6822 = vmatmul.mubr.bf16.gmra.mrb[0].mxu0 %v1193
      %v6823 = vpop.f32.mrb[0].mxu0
      %v6824 = vadd.f32 0.0, %v6823
      %v6825 = vpop.f32.mrb[0].mxu0
      %v6826 = vpop.f32.mrb[0].mxu0
      %v6827 = vadd.f32 0.0, %v6826
      %v6828 = vpop.f32.mrb[0].mxu0
      %6829 = vmatprep.mubr.bf16.mxu0 0
      %6830 = vmatmul.mubr.bf16.gmra.mrb[0].mxu0 %v1196
      %v6831 = vpop.f32.mrb[0].mxu0
      %v6832 = vadd.f32 0.0, %v6831
      %v6833 = vpop.f32.mrb[0].mxu0
      %v6834 = vpop.f32.mrb[0].mxu0
      %v6835 = vadd.f32 0.0, %v6834
      %v6836 = vpop.f32.mrb[0].mxu0
      %6837 = vmatprep.mubr.bf16.mxu0 0
      %6838 = vmatmul.mubr.bf16.gmra.mrb[0].mxu0 %v1199
      %v6839 = vpop.f32.mrb[0].mxu0
      %v6840 = vadd.f32 0.0, %v6839
      %v6841 = vpop.f32.mrb[0].mxu0
      %v6842 = vpop.f32.mrb[0].mxu0
      %v6843 = vadd.f32 0.0, %v6842
      %v6844 = vpop.f32.mrb[0].mxu0
      %6845 = vmatprep.mubr.bf16.mxu0 0
      %6846 = vmatmul.mubr.bf16.gmra.mrb[0].mxu0 %v1202
      %v6847 = vpop.f32.mrb[0].mxu0
      %v6848 = vadd.f32 0.0, %v6847
      %v6849 = vpop.f32.mrb[0].mxu0
      %v6850 = vpop.f32.mrb[0].mxu0
      %v6851 = vadd.f32 0.0, %v6850
      %v6852 = vpop.f32.mrb[0].mxu0
      %6853 = vmatprep.mubr.bf16.mxu0 0
      %6854 = vmatmul.mubr.bf16.gmra.mrb[0].mxu0 %v1205
      %v6855 = vpop.f32.mrb[0].mxu0
      %v6856 = vadd.f32 0.0, %v6855
      %v6857 = vpop.f32.mrb[0].mxu0
      %v6858 = vpop.f32.mrb[0].mxu0
      %v6859 = vadd.f32 0.0, %v6858
      %v6860 = vpop.f32.mrb[0].mxu0
      %6861 = vmatprep.mubr.bf16.mxu0 0
      %6862 = vmatmul.mubr.bf16.gmra.mrb[0].mxu0 %v1208
      %v6863 = vpop.f32.mrb[0].mxu0
      %v6864 = vadd.f32 0.0, %v6863
      %v6865 = vpop.f32.mrb[0].mxu0
      %v6866 = vpop.f32.mrb[0].mxu0
      %v6867 = vadd.f32 0.0, %v6866
      %v6868 = vpop.f32.mrb[0].mxu0
      %6869 = vmatprep.mubr.bf16.mxu0 0
      %6870 = vmatmul.mubr.bf16.gmra.mrb[0].mxu0 %v1211
      %v6871 = vpop.f32.mrb[0].mxu0
      %v6872 = vadd.f32 0.0, %v6871
      %v6873 = vpop.f32.mrb[0].mxu0
      %v6874 = vpop.f32.mrb[0].mxu0
      %v6875 = vadd.f32 0.0, %v6874
      %v6876 = vpop.f32.mrb[0].mxu0
      %6877 = vmatprep.mubr.bf16.mxu0 0
      %6878 = vmatmul.mubr.bf16.gmra.mrb[0].mxu0 %v1214
      %v6879 = vpop.f32.mrb[0].mxu0
      %v6880 = vadd.f32 0.0, %v6879
      %v6881 = vpop.f32.mrb[0].mxu0
      %v6882 = vpop.f32.mrb[0].mxu0
      %v6883 = vadd.f32 0.0, %v6882
      %v6884 = vpop.f32.mrb[0].mxu0
      %6885 = vmatprep.mubr.bf16.mxu0 0
      %6886 = vmatmul.mubr.bf16.gmra.mrb[0].mxu0 %v1217
      %v6887 = vpop.f32.mrb[0].mxu0
      %v6888 = vadd.f32 0.0, %v6887
      %v6889 = vpop.f32.mrb[0].mxu0
      %v6890 = vpop.f32.mrb[0].mxu0
      %v6891 = vadd.f32 0.0, %v6890
      %v6892 = vpop.f32.mrb[0].mxu0
      %6893 = vmatprep.mubr.bf16.mxu0 0
      %6894 = vmatmul.mubr.bf16.gmra.mrb[0].mxu0 %v1220
      %v6895 = vpop.f32.mrb[0].mxu0
      %v6896 = vadd.f32 0.0, %v6895
      %v6897 = vpop.f32.mrb[0].mxu0
      %v6898 = vpop.f32.mrb[0].mxu0
      %v6899 = vadd.f32 0.0, %v6898
      %v6900 = vpop.f32.mrb[0].mxu0
      %6901 = vmatprep.mubr.bf16.mxu0 0
      %6902 = vmatmul.mubr.bf16.gmra.mrb[0].mxu0 %v1223
      %v6903 = vpop.f32.mrb[0].mxu0
      %v6904 = vadd.f32 0.0, %v6903
      %v6905 = vpop.f32.mrb[0].mxu0
      %v6906 = vpop.f32.mrb[0].mxu0
      %v6907 = vadd.f32 0.0, %v6906
      %v6908 = vpop.f32.mrb[0].mxu0
      %6909 = vmatprep.mubr.bf16.mxu0 0
      %6910 = vmatmul.mubr.bf16.gmra.mrb[0].mxu0 %v1226
      %v6911 = vpop.f32.mrb[0].mxu0
      %v6912 = vadd.f32 0.0, %v6911
      %v6913 = vpop.f32.mrb[0].mxu0
      %v6914 = vpop.f32.mrb[0].mxu0
      %v6915 = vadd.f32 0.0, %v6914
      %v6916 = vpop.f32.mrb[0].mxu0
      %6917 = vmatprep.mubr.bf16.mxu0 0
      %6918 = vmatmul.mubr.bf16.gmra.mrb[0].mxu0 %v1229
      %v6919 = vpop.f32.mrb[0].mxu0
      %v6920 = vadd.f32 0.0, %v6919
      %v6921 = vpop.f32.mrb[0].mxu0
      %v6922 = vpop.f32.mrb[0].mxu0
      %v6923 = vadd.f32 0.0, %v6922
      %v6924 = vpop.f32.mrb[0].mxu0
      %6925 = vmatprep.mubr.bf16.mxu0 0
      %6926 = vmatmul.mubr.bf16.gmra.mrb[0].mxu0 %v1232
      %v6927 = vpop.f32.mrb[0].mxu0
      %v6928 = vadd.f32 0.0, %v6927
      %v6929 = vpop.f32.mrb[0].mxu0
      %v6930 = vpop.f32.mrb[0].mxu0
      %v6931 = vadd.f32 0.0, %v6930
      %v6932 = vpop.f32.mrb[0].mxu0
      %6933 = vmatprep.mubr.bf16.mxu0 0
      %6934 = vmatmul.mubr.bf16.gmra.mrb[0].mxu0 %v1235
      %v6935 = vpop.f32.mrb[0].mxu0
      %v6936 = vadd.f32 0.0, %v6935
      %v6937 = vpop.f32.mrb[0].mxu0
      %v6938 = vpop.f32.mrb[0].mxu0
      %v6939 = vadd.f32 0.0, %v6938
      %v6940 = vpop.f32.mrb[0].mxu0
      %6941 = vmatprep.mubr.bf16.mxu0 0
      %6942 = vmatmul.mubr.bf16.gmra.mrb[0].mxu0 %v1238
      %v6943 = vpop.f32.mrb[0].mxu0
      %v6944 = vadd.f32 0.0, %v6943
      %v6945 = vpop.f32.mrb[0].mxu0
      %v6946 = vpop.f32.mrb[0].mxu0
      %v6947 = vadd.f32 0.0, %v6946
      %v6948 = vpop.f32.mrb[0].mxu0
      %6949 = vmatprep.mubr.bf16.mxu0 0
      %6950 = vmatmul.mubr.bf16.gmra.mrb[0].mxu0 %v1241
      %v6951 = vpop.f32.mrb[0].mxu0
      %v6952 = vadd.f32 0.0, %v6951
      %v6953 = vpop.f32.mrb[0].mxu0
      %v6954 = vpop.f32.mrb[0].mxu0
      %v6955 = vadd.f32 0.0, %v6954
      %v6956 = vpop.f32.mrb[0].mxu0
      %6957 = vmatprep.mubr.bf16.mxu0 0
      %6958 = vmatmul.mubr.bf16.gmra.mrb[0].mxu0 %v1244
      %v6959 = vpop.f32.mrb[0].mxu0
      %v6960 = vadd.f32 0.0, %v6959
      %v6961 = vpop.f32.mrb[0].mxu0
      %v6962 = vpop.f32.mrb[0].mxu0
      %v6963 = vadd.f32 0.0, %v6962
      %v6964 = vpop.f32.mrb[0].mxu0
      %6965 = vmatprep.mubr.bf16.mxu0 0
      %6966 = vmatmul.mubr.bf16.gmra.mrb[0].mxu0 %v1247
      %v6967 = vpop.f32.mrb[0].mxu0
      %v6968 = vadd.f32 0.0, %v6967
      %v6969 = vpop.f32.mrb[0].mxu0
      %v6970 = vpop.f32.mrb[0].mxu0
      %v6971 = vadd.f32 0.0, %v6970
      %v6972 = vpop.f32.mrb[0].mxu0
      %6973 = vmatprep.mubr.bf16.mxu0 0
      %6974 = vmatmul.mubr.bf16.gmra.mrb[0].mxu0 %v1250
      %v6975 = vpop.f32.mrb[0].mxu0
      %v6976 = vadd.f32 0.0, %v6975
      %v6977 = vpop.f32.mrb[0].mxu0
      %v6978 = vpop.f32.mrb[0].mxu0
      %v6979 = vadd.f32 0.0, %v6978
      %v6980 = vpop.f32.mrb[0].mxu0
      %6981 = vmatprep.mubr.bf16.mxu0 0
      %6982 = vmatmul.mubr.bf16.gmra.mrb[0].mxu0 %v1253
      %v6983 = vpop.f32.mrb[0].mxu0
      %v6984 = vadd.f32 0.0, %v6983
      %v6985 = vpop.f32.mrb[0].mxu0
      %v6986 = vpop.f32.mrb[0].mxu0
      %v6987 = vadd.f32 0.0, %v6986
      %v6988 = vpop.f32.mrb[0].mxu0
      %6989 = vmatprep.mubr.bf16.mxu0 0
      %6990 = vmatmul.mubr.bf16.gmra.mrb[0].mxu0 %v1256
      %v6991 = vpop.f32.mrb[0].mxu0
      %v6992 = vadd.f32 0.0, %v6991
      %v6993 = vpop.f32.mrb[0].mxu0
      %v6994 = vpop.f32.mrb[0].mxu0
      %v6995 = vadd.f32 0.0, %v6994
      %v6996 = vpop.f32.mrb[0].mxu0
      %6997 = vmatprep.mubr.bf16.mxu0 0
      %6998 = vmatmul.mubr.bf16.gmra.mrb[0].mxu0 %v1259
      %v6999 = vpop.f32.mrb[0].mxu0
      %v7000 = vadd.f32 0.0, %v6999
      %v7001 = vpop.f32.mrb[0].mxu0
      %v7002 = vpop.f32.mrb[0].mxu0
      %v7003 = vadd.f32 0.0, %v7002
      %v7004 = vpop.f32.mrb[0].mxu0
      %7005 = vmatprep.mubr.bf16.mxu0 0
      %7006 = vmatmul.mubr.bf16.gmra.mrb[0].mxu0 %v1262
      %v7007 = vpop.f32.mrb[0].mxu0
      %v7008 = vadd.f32 0.0, %v7007
      %v7009 = vpop.f32.mrb[0].mxu0
      %v7010 = vpop.f32.mrb[0].mxu0
      %v7011 = vadd.f32 0.0, %v7010
      %v7012 = vpop.f32.mrb[0].mxu0
      %7013 = vmatprep.mubr.bf16.mxu0 0
      %7014 = vmatmul.mubr.bf16.gmra.mrb[0].mxu0 %v1265
      %v7015 = vpop.f32.mrb[0].mxu0
      %v7016 = vadd.f32 0.0, %v7015
      %v7017 = vpop.f32.mrb[0].mxu0
      %v7018 = vpop.f32.mrb[0].mxu0
      %v7019 = vadd.f32 0.0, %v7018
      %v7020 = vpop.f32.mrb[0].mxu0
      %7021 = vmatprep.mubr.bf16.mxu0 0
      %7022 = vmatmul.mubr.bf16.gmra.mrb[0].mxu0 %v1268
      %v7023 = vpop.f32.mrb[0].mxu0
      %v7024 = vadd.f32 0.0, %v7023
      %v7025 = vpop.f32.mrb[0].mxu0
      %v7026 = vpop.f32.mrb[0].mxu0
      %v7027 = vadd.f32 0.0, %v7026
      %v7028 = vpop.f32.mrb[0].mxu0
      %7029 = vmatprep.mubr.bf16.mxu0 0
      %7030 = vmatmul.mubr.bf16.gmra.mrb[0].mxu0 %v1271
      %v7031 = vpop.f32.mrb[0].mxu0
      %v7032 = vadd.f32 0.0, %v7031
      %v7033 = vpop.f32.mrb[0].mxu0
      %v7034 = vpop.f32.mrb[0].mxu0
      %v7035 = vadd.f32 0.0, %v7034
      %v7036 = vpop.f32.mrb[0].mxu0
      %7037 = vmatprep.mubr.bf16.mxu0 0
      %7038 = vmatmul.mubr.bf16.gmra.mrb[0].mxu0 %v1274
      %v7039 = vpop.f32.mrb[0].mxu0
      %v7040 = vadd.f32 0.0, %v7039
      %v7041 = vpop.f32.mrb[0].mxu0
      %v7042 = vpop.f32.mrb[0].mxu0
      %v7043 = vadd.f32 0.0, %v7042
      %v7044 = vpop.f32.mrb[0].mxu0
      %7045 = vmatprep.mubr.bf16.mxu0 0
      %7046 = vmatmul.mubr.bf16.gmra.mrb[0].mxu0 %v1277
      %v7047 = vpop.f32.mrb[0].mxu0
      %v7048 = vadd.f32 0.0, %v7047
      %v7049 = vpop.f32.mrb[0].mxu0
      %v7050 = vpop.f32.mrb[0].mxu0
      %v7051 = vadd.f32 0.0, %v7050
      %v7052 = vpop.f32.mrb[0].mxu0
      %7053 = vmatprep.mubr.bf16.mxu0 0
      %7054 = vmatmul.mubr.bf16.gmra.mrb[0].mxu0 %v1280
      %v7055 = vpop.f32.mrb[0].mxu0
      %v7056 = vadd.f32 0.0, %v7055
      %v7057 = vpop.f32.mrb[0].mxu0
      %v7058 = vpop.f32.mrb[0].mxu0
      %v7059 = vadd.f32 0.0, %v7058
      %v7060 = vpop.f32.mrb[0].mxu0
      %7061 = vmatprep.mubr.bf16.mxu0 0
      %7062 = vmatmul.mubr.bf16.gmra.mrb[0].mxu0 %v1283
      %v7063 = vpop.f32.mrb[0].mxu0
      %v7064 = vadd.f32 0.0, %v7063
      %v7065 = vpop.f32.mrb[0].mxu0
      %v7066 = vpop.f32.mrb[0].mxu0
      %v7067 = vadd.f32 0.0, %v7066
      %v7068 = vpop.f32.mrb[0].mxu0
      %7069 = vmatprep.mubr.bf16.mxu0 0
      %7070 = vmatmul.mubr.bf16.gmra.mrb[0].mxu0 %v1286
      %v7071 = vpop.f32.mrb[0].mxu0
      %v7072 = vadd.f32 0.0, %v7071
      %v7073 = vpop.f32.mrb[0].mxu0
      %v7074 = vpop.f32.mrb[0].mxu0
      %v7075 = vadd.f32 0.0, %v7074
      %v7076 = vpop.f32.mrb[0].mxu0
      %7077 = vmatprep.mubr.bf16.mxu0 0
      %7078 = vmatmul.mubr.bf16.gmra.mrb[0].mxu0 %v1289
      %v7079 = vpop.f32.mrb[0].mxu0
      %v7080 = vadd.f32 0.0, %v7079
      %v7081 = vpop.f32.mrb[0].mxu0
      %v7082 = vpop.f32.mrb[0].mxu0
      %v7083 = vadd.f32 0.0, %v7082
      %v7084 = vpop.f32.mrb[0].mxu0
      %7085 = vmatprep.mubr.bf16.mxu0 0
      %7086 = vmatmul.mubr.bf16.gmra.mrb[0].mxu0 %v1292
      %v7087 = vpop.f32.mrb[0].mxu0
      %v7088 = vadd.f32 0.0, %v7087
      %v7089 = vpop.f32.mrb[0].mxu0
      %v7090 = vpop.f32.mrb[0].mxu0
      %v7091 = vadd.f32 0.0, %v7090
      %v7092 = vpop.f32.mrb[0].mxu0
      %7093 = vmatprep.mubr.bf16.mxu0 0
      %7094 = vmatmul.mubr.bf16.gmra.mrb[0].mxu0 %v1295
      %v7095 = vpop.f32.mrb[0].mxu0
      %v7096 = vadd.f32 0.0, %v7095
      %v7097 = vpop.f32.mrb[0].mxu0
      %v7098 = vpop.f32.mrb[0].mxu0
      %v7099 = vadd.f32 0.0, %v7098
      %v7100 = vpop.f32.mrb[0].mxu0
      %7101 = vmatprep.mubr.bf16.mxu0 0
      %7102 = vmatmul.mubr.bf16.gmra.mrb[0].mxu0 %v1298
      %v7103 = vpop.f32.mrb[0].mxu0
      %v7104 = vadd.f32 0.0, %v7103
      %v7105 = vpop.f32.mrb[0].mxu0
      %v7106 = vpop.f32.mrb[0].mxu0
      %v7107 = vadd.f32 0.0, %v7106
      %v7108 = vpop.f32.mrb[0].mxu0
      %7109 = vmatprep.mubr.bf16.mxu0 0
      %7110 = vmatmul.mubr.bf16.gmra.mrb[0].mxu0 %v1301
      %v7111 = vpop.f32.mrb[0].mxu0
      %v7112 = vadd.f32 0.0, %v7111
      %v7113 = vpop.f32.mrb[0].mxu0
      %v7114 = vpop.f32.mrb[0].mxu0
      %v7115 = vadd.f32 0.0, %v7114
      %v7116 = vpop.f32.mrb[0].mxu0
      %7117 = vmatprep.mubr.bf16.mxu0 0
      %7118 = vmatmul.mubr.bf16.gmra.mrb[0].mxu0 %v1304
      %v7119 = vpop.f32.mrb[0].mxu0
      %v7120 = vadd.f32 0.0, %v7119
      %v7121 = vpop.f32.mrb[0].mxu0
      %v7122 = vpop.f32.mrb[0].mxu0
      %v7123 = vadd.f32 0.0, %v7122
      %v7124 = vpop.f32.mrb[0].mxu0
      %7125 = vmatprep.mubr.bf16.mxu0 0
      %7126 = vmatmul.mubr.bf16.gmra.mrb[0].mxu0 %v1307
      %v7127 = vpop.f32.mrb[0].mxu0
      %v7128 = vadd.f32 0.0, %v7127
      %v7129 = vpop.f32.mrb[0].mxu0
      %v7130 = vpop.f32.mrb[0].mxu0
      %v7131 = vadd.f32 0.0, %v7130
      %v7132 = vpop.f32.mrb[0].mxu0
      %7133 = vmatprep.mubr.bf16.mxu0 0
      %7134 = vmatmul.mubr.bf16.gmra.mrb[0].mxu0 %v1310
      %v7135 = vpop.f32.mrb[0].mxu0
      %v7136 = vadd.f32 0.0, %v7135
      %v7137 = vpop.f32.mrb[0].mxu0
      %v7138 = vpop.f32.mrb[0].mxu0
      %v7139 = vadd.f32 0.0, %v7138
      %v7140 = vpop.f32.mrb[0].mxu0
      %7141 = vmatprep.mubr.bf16.mxu0 0
      %7142 = vmatmul.mubr.bf16.gmra.mrb[0].mxu0 %v1313
      %v7143 = vpop.f32.mrb[0].mxu0
      %v7144 = vadd.f32 0.0, %v7143
      %v7145 = vpop.f32.mrb[0].mxu0
      %v7146 = vpop.f32.mrb[0].mxu0
      %v7147 = vadd.f32 0.0, %v7146
      %v7148 = vpop.f32.mrb[0].mxu0
      %7149 = vmatprep.mubr.bf16.mxu0 0
      %7150 = vmatmul.mubr.bf16.gmra.mrb[0].mxu0 %v1316
      %v7151 = vpop.f32.mrb[0].mxu0
      %v7152 = vadd.f32 0.0, %v7151
      %v7153 = vpop.f32.mrb[0].mxu0
      %v7154 = vpop.f32.mrb[0].mxu0
      %v7155 = vadd.f32 0.0, %v7154
      %v7156 = vpop.f32.mrb[0].mxu0
      %7157 = vmatprep.mubr.bf16.mxu0 0
      %7158 = vmatmul.mubr.bf16.gmra.mrb[0].mxu0 %v1319
      %v7159 = vpop.f32.mrb[0].mxu0
      %v7160 = vadd.f32 0.0, %v7159
      %v7161 = vpop.f32.mrb[0].mxu0
      %v7162 = vpop.f32.mrb[0].mxu0
      %v7163 = vadd.f32 0.0, %v7162
      %v7164 = vpop.f32.mrb[0].mxu0
      %7165 = vmatprep.mubr.bf16.mxu0 0
      %7166 = vmatmul.mubr.bf16.gmra.mrb[0].mxu0 %v1322
      %v7167 = vpop.f32.mrb[0].mxu0
      %v7168 = vadd.f32 0.0, %v7167
      %v7169 = vpop.f32.mrb[0].mxu0
      %v7170 = vpop.f32.mrb[0].mxu0
      %v7171 = vadd.f32 0.0, %v7170
      %v7172 = vpop.f32.mrb[0].mxu0
      %7173 = vmatprep.mubr.bf16.mxu0 0
      %7174 = vmatmul.mubr.bf16.gmra.mrb[0].mxu0 %v1325
      %v7175 = vpop.f32.mrb[0].mxu0
      %v7176 = vadd.f32 0.0, %v7175
      %v7177 = vpop.f32.mrb[0].mxu0
      %v7178 = vpop.f32.mrb[0].mxu0
      %v7179 = vadd.f32 0.0, %v7178
      %v7180 = vpop.f32.mrb[0].mxu0
      %7181 = vmatprep.mubr.bf16.mxu0 0
      %7182 = vmatmul.mubr.bf16.gmra.mrb[0].mxu0 %v1136
      %v7183 = vpop.f32.mrb[0].mxu0
      %v7184 = vadd.f32 0.0, %v7183
      %v7185 = vpop.f32.mrb[0].mxu0
      %v7186 = vpop.f32.mrb[0].mxu0
      %v7187 = vadd.f32 0.0, %v7186
      %v7188 = vpop.f32.mrb[0].mxu0
      %7189 = vmatprep.mubr.bf16.mxu0 0
      %7190 = vmatmul.mubr.bf16.gmra.mrb[0].mxu0 %v1139
      %v7191 = vpop.f32.mrb[0].mxu0
      %v7192 = vadd.f32 0.0, %v7191
      %v7193 = vpop.f32.mrb[0].mxu0
      %v7194 = vpop.f32.mrb[0].mxu0
      %v7195 = vadd.f32 0.0, %v7194
      %v7196 = vpop.f32.mrb[0].mxu0
      %7197 = vdwg.mxu0
      %v7198 = vadd.f32 %v6520, %v6688
      %v7199 = vadd.f32 %v6521, %v6691
      %v7200 = vadd.f32 %v6522, %v6696
      %v7201 = vadd.f32 %v6523, %v6699
      %v7202 = vadd.f32 %v6524, %v6704
      %v7203 = vadd.f32 %v6525, %v6707
      %v7204 = vadd.f32 %v6526, %v6712
      %v7205 = vadd.f32 %v6527, %v6715
      %v7206 = vadd.f32 %v6528, %v6720
      %v7207 = vadd.f32 %v6529, %v6723
      %v7208 = vadd.f32 %v6530, %v6728
      %v7209 = vadd.f32 %v6531, %v6731
      %v7210 = vadd.f32 %v6532, %v6736
      %v7211 = vadd.f32 %v6533, %v6739
      %v7212 = vadd.f32 %v6534, %v6744
      %v7213 = vadd.f32 %v6535, %v6747
      %v7214 = vadd.f32 %v6536, %v6752
      %v7215 = vadd.f32 %v6537, %v6755
      %v7216 = vadd.f32 %v6538, %v6760
      %v7217 = vadd.f32 %v6539, %v6763
      %v7218 = vadd.f32 %v6540, %v6768
      %v7219 = vadd.f32 %v6541, %v6771
      %v7220 = vadd.f32 %v6542, %v6776
      %v7221 = vadd.f32 %v6543, %v6779
      %v7222 = vadd.f32 %v6544, %v6784
      %v7223 = vadd.f32 %v6545, %v6787
      %v7224 = vadd.f32 %v6546, %v6792
      %v7225 = vadd.f32 %v6547, %v6795
      %v7226 = vadd.f32 %v6548, %v6800
      %v7227 = vadd.f32 %v6549, %v6803
      %v7228 = vadd.f32 %v6550, %v6808
      %v7229 = vadd.f32 %v6551, %v6811
      %v7230 = vadd.f32 %v6552, %v6816
      %v7231 = vadd.f32 %v6553, %v6819
      %v7232 = vadd.f32 %v6554, %v6824
      %v7233 = vadd.f32 %v6555, %v6827
      %v7234 = vadd.f32 %v6556, %v6832
      %v7235 = vadd.f32 %v6557, %v6835
      %v7236 = vadd.f32 %v6558, %v6840
      %v7237 = vadd.f32 %v6559, %v6843
      %v7238 = vadd.f32 %v6560, %v6848
      %v7239 = vadd.f32 %v6561, %v6851
      %v7240 = vadd.f32 %v6562, %v6856
      %v7241 = vadd.f32 %v6563, %v6859
      %v7242 = vadd.f32 %v6564, %v6864
      %v7243 = vadd.f32 %v6565, %v6867
      %v7244 = vadd.f32 %v6566, %v6872
      %v7245 = vadd.f32 %v6567, %v6875
      %v7246 = vadd.f32 %v6568, %v6880
      %v7247 = vadd.f32 %v6569, %v6883
      %v7248 = vadd.f32 %v6570, %v6888
      %v7249 = vadd.f32 %v6571, %v6891
      %v7250 = vadd.f32 %v6572, %v6896
      %v7251 = vadd.f32 %v6573, %v6899
      %v7252 = vadd.f32 %v6574, %v6904
      %v7253 = vadd.f32 %v6575, %v6907
      %v7254 = vadd.f32 %v6576, %v6912
      %v7255 = vadd.f32 %v6577, %v6915
      %v7256 = vadd.f32 %v6578, %v6920
      %v7257 = vadd.f32 %v6579, %v6923
      %v7258 = vadd.f32 %v6580, %v6928
      %v7259 = vadd.f32 %v6581, %v6931
      %v7260 = vadd.f32 %v6582, %v6936
      %v7261 = vadd.f32 %v6583, %v6939
      %v7262 = vadd.f32 %v6584, %v6944
      %v7263 = vadd.f32 %v6585, %v6947
      %v7264 = vadd.f32 %v6586, %v6952
      %v7265 = vadd.f32 %v6587, %v6955
      %v7266 = vadd.f32 %v6588, %v6960
      %v7267 = vadd.f32 %v6589, %v6963
      %v7268 = vadd.f32 %v6590, %v6968
      %v7269 = vadd.f32 %v6591, %v6971
      %v7270 = vadd.f32 %v6592, %v6976
      %v7271 = vadd.f32 %v6593, %v6979
      %v7272 = vadd.f32 %v6594, %v6984
      %v7273 = vadd.f32 %v6595, %v6987
      %v7274 = vadd.f32 %v6596, %v6992
      %v7275 = vadd.f32 %v6597, %v6995
      %v7276 = vadd.f32 %v6598, %v7000
      %v7277 = vadd.f32 %v6599, %v7003
      %v7278 = vadd.f32 %v6600, %v7008
      %v7279 = vadd.f32 %v6601, %v7011
      %v7280 = vadd.f32 %v6602, %v7016
      %v7281 = vadd.f32 %v6603, %v7019
      %v7282 = vadd.f32 %v6604, %v7024
      %v7283 = vadd.f32 %v6605, %v7027
      %v7284 = vadd.f32 %v6606, %v7032
      %v7285 = vadd.f32 %v6607, %v7035
      %v7286 = vadd.f32 %v6608, %v7040
      %v7287 = vadd.f32 %v6609, %v7043
      %v7288 = vadd.f32 %v6610, %v7048
      %v7289 = vadd.f32 %v6611, %v7051
      %v7290 = vadd.f32 %v6612, %v7056
      %v7291 = vadd.f32 %v6613, %v7059
      %v7292 = vadd.f32 %v6614, %v7064
      %v7293 = vadd.f32 %v6615, %v7067
      %v7294 = vadd.f32 %v6616, %v7072
      %v7295 = vadd.f32 %v6617, %v7075
      %v7296 = vadd.f32 %v6618, %v7080
      %v7297 = vadd.f32 %v6619, %v7083
      %v7298 = vadd.f32 %v6620, %v7088
      %v7299 = vadd.f32 %v6621, %v7091
      %v7300 = vadd.f32 %v6622, %v7096
      %v7301 = vadd.f32 %v6623, %v7099
      %v7302 = vadd.f32 %v6624, %v7104
      %v7303 = vadd.f32 %v6625, %v7107
      %v7304 = vadd.f32 %v6626, %v7112
      %v7305 = vadd.f32 %v6627, %v7115
      %v7306 = vadd.f32 %v6628, %v7120
      %v7307 = vadd.f32 %v6629, %v7123
      %v7308 = vadd.f32 %v6630, %v7128
      %v7309 = vadd.f32 %v6631, %v7131
      %v7310 = vadd.f32 %v6632, %v7136
      %v7311 = vadd.f32 %v6633, %v7139
      %v7312 = vadd.f32 %v6634, %v7144
      %v7313 = vadd.f32 %v6635, %v7147
      %v7314 = vadd.f32 %v6636, %v7152
      %v7315 = vadd.f32 %v6637, %v7155
      %v7316 = vadd.f32 %v6638, %v7160
      %v7317 = vadd.f32 %v6639, %v7163
      %v7318 = vadd.f32 %v6640, %v7168
      %v7319 = vadd.f32 %v6641, %v7171
      %v7320 = vadd.f32 %v6642, %v7176
      %v7321 = vadd.f32 %v6643, %v7179
      %v7322 = vadd.f32 %v6644, %v7184
      %v7323 = vadd.f32 %v6645, %v7187
      %v7324 = vadd.f32 %v6646, %v7192
      %v7325 = vadd.f32 %v6647, %v7195
      %s7326 = scalar_lea.vmem %s1, 32
      %v7327 = vld [vmem:[%s7326] sm:$0xf]
      %v7329 = vsel %vm1327, %v7327, 0
      %7331 = vmatprep.subr.bf16.mxu0 0
      %7332 = vmatpush1.bf16.msra.mxu0 %v7329
      %7333 = vmatprep.subr.bf16.mxu0 0
      %7334 = vmatpush1.bf16.msra.mxu0 0
      %7335 = vmatprep.subr.bf16.mxu0 0
      %7336 = vmatpush1.bf16.msra.mxu0 0
      %7337 = vmatprep.subr.bf16.mxu0 0
      %7338 = vmatpush1.bf16.msra.mxu0 0
      %7339 = vmatprep.subr.bf16.mxu0 0
      %7340 = vmatpush1.bf16.msra.mxu0 0
      %7341 = vmatprep.subr.bf16.mxu0 0
      %7342 = vmatpush1.bf16.msra.mxu0 0
      %7343 = vmatprep.subr.bf16.mxu0 0
      %7344 = vmatpush1.bf16.msra.mxu0 0
      %7345 = vmatprep.subr.bf16.mxu0 0
      %7346 = vmatpush1.bf16.msra.mxu0 0
      %7347 = vmatprep.subr.bf16.mxu0 0
      %7348 = vmatpush1.bf16.msra.mxu0 0
      %7349 = vmatprep.subr.bf16.mxu0 0
      %7350 = vmatpush1.bf16.msra.mxu0 0
      %7351 = vmatprep.subr.bf16.mxu0 0
      %7352 = vmatpush1.bf16.msra.mxu0 0
      %7353 = vmatprep.subr.bf16.mxu0 0
      %7354 = vmatpush1.bf16.msra.mxu0 0
      %7355 = vmatprep.subr.bf16.mxu0 0
      %7356 = vmatpush1.bf16.msra.mxu0 0
      %7357 = vmatprep.subr.bf16.mxu0 0
      %7358 = vmatpush1.bf16.msra.mxu0 0
      %7359 = vmatprep.subr.bf16.mxu0 0
      %7360 = vmatpush1.bf16.msra.mxu0 0
      %7361 = vmatprep.subr.bf16.mxu0 0
      %7362 = vmatpush1.bf16.msra.mxu0 0
      %7363 = vmatprep.mubr.bf16.mxu0 0
      %7364 = vmatmul.mubr.bf16.gmra.mrb[0].mxu0 %v3075
      %v7365 = vpop.f32.mrb[0].mxu0
      %v7366 = vadd.f32 0.0, %v7365
      %v7367 = vpop.f32.mrb[0].mxu0
      %v7368 = vpop.f32.mrb[0].mxu0
      %v7369 = vadd.f32 0.0, %v7368
      %v7370 = vpop.f32.mrb[0].mxu0
      %7371 = vmatprep.mubr.bf16.mxu0 0
      %7372 = vmatmul.mubr.bf16.gmra.mrb[0].mxu0 %v3078
      %v7373 = vpop.f32.mrb[0].mxu0
      %v7374 = vadd.f32 0.0, %v7373
      %v7375 = vpop.f32.mrb[0].mxu0
      %v7376 = vpop.f32.mrb[0].mxu0
      %v7377 = vadd.f32 0.0, %v7376
      %v7378 = vpop.f32.mrb[0].mxu0
      %7379 = vmatprep.mubr.bf16.mxu0 0
      %7380 = vmatmul.mubr.bf16.gmra.mrb[0].mxu0 %v3081
      %v7381 = vpop.f32.mrb[0].mxu0
      %v7382 = vadd.f32 0.0, %v7381
      %v7383 = vpop.f32.mrb[0].mxu0
      %v7384 = vpop.f32.mrb[0].mxu0
      %v7385 = vadd.f32 0.0, %v7384
      %v7386 = vpop.f32.mrb[0].mxu0
      %7387 = vmatprep.mubr.bf16.mxu0 0
      %7388 = vmatmul.mubr.bf16.gmra.mrb[0].mxu0 %v3084
      %v7389 = vpop.f32.mrb[0].mxu0
      %v7390 = vadd.f32 0.0, %v7389
      %v7391 = vpop.f32.mrb[0].mxu0
      %v7392 = vpop.f32.mrb[0].mxu0
      %v7393 = vadd.f32 0.0, %v7392
      %v7394 = vpop.f32.mrb[0].mxu0
      %7395 = vmatprep.mubr.bf16.mxu0 0
      %7396 = vmatmul.mubr.bf16.gmra.mrb[0].mxu0 %v3087
      %v7397 = vpop.f32.mrb[0].mxu0
      %v7398 = vadd.f32 0.0, %v7397
      %v7399 = vpop.f32.mrb[0].mxu0
      %v7400 = vpop.f32.mrb[0].mxu0
      %v7401 = vadd.f32 0.0, %v7400
      %v7402 = vpop.f32.mrb[0].mxu0
      %7403 = vmatprep.mubr.bf16.mxu0 0
      %7404 = vmatmul.mubr.bf16.gmra.mrb[0].mxu0 %v3090
      %v7405 = vpop.f32.mrb[0].mxu0
      %v7406 = vadd.f32 0.0, %v7405
      %v7407 = vpop.f32.mrb[0].mxu0
      %v7408 = vpop.f32.mrb[0].mxu0
      %v7409 = vadd.f32 0.0, %v7408
      %v7410 = vpop.f32.mrb[0].mxu0
      %7411 = vmatprep.mubr.bf16.mxu0 0
      %7412 = vmatmul.mubr.bf16.gmra.mrb[0].mxu0 %v3093
      %v7413 = vpop.f32.mrb[0].mxu0
      %v7414 = vadd.f32 0.0, %v7413
      %v7415 = vpop.f32.mrb[0].mxu0
      %v7416 = vpop.f32.mrb[0].mxu0
      %v7417 = vadd.f32 0.0, %v7416
      %v7418 = vpop.f32.mrb[0].mxu0
      %7419 = vmatprep.mubr.bf16.mxu0 0
      %7420 = vmatmul.mubr.bf16.gmra.mrb[0].mxu0 %v3096
      %v7421 = vpop.f32.mrb[0].mxu0
      %v7422 = vadd.f32 0.0, %v7421
      %v7423 = vpop.f32.mrb[0].mxu0
      %v7424 = vpop.f32.mrb[0].mxu0
      %v7425 = vadd.f32 0.0, %v7424
      %v7426 = vpop.f32.mrb[0].mxu0
      %7427 = vmatprep.mubr.bf16.mxu0 0
      %7428 = vmatmul.mubr.bf16.gmra.mrb[0].mxu0 %v3099
      %v7429 = vpop.f32.mrb[0].mxu0
      %v7430 = vadd.f32 0.0, %v7429
      %v7431 = vpop.f32.mrb[0].mxu0
      %v7432 = vpop.f32.mrb[0].mxu0
      %v7433 = vadd.f32 0.0, %v7432
      %v7434 = vpop.f32.mrb[0].mxu0
      %7435 = vmatprep.mubr.bf16.mxu0 0
      %7436 = vmatmul.mubr.bf16.gmra.mrb[0].mxu0 %v3102
      %v7437 = vpop.f32.mrb[0].mxu0
      %v7438 = vadd.f32 0.0, %v7437
      %v7439 = vpop.f32.mrb[0].mxu0
      %v7440 = vpop.f32.mrb[0].mxu0
      %v7441 = vadd.f32 0.0, %v7440
      %v7442 = vpop.f32.mrb[0].mxu0
      %7443 = vmatprep.mubr.bf16.mxu0 0
      %7444 = vmatmul.mubr.bf16.gmra.mrb[0].mxu0 %v3105
      %v7445 = vpop.f32.mrb[0].mxu0
      %v7446 = vadd.f32 0.0, %v7445
      %v7447 = vpop.f32.mrb[0].mxu0
      %v7448 = vpop.f32.mrb[0].mxu0
      %v7449 = vadd.f32 0.0, %v7448
      %v7450 = vpop.f32.mrb[0].mxu0
      %7451 = vmatprep.mubr.bf16.mxu0 0
      %7452 = vmatmul.mubr.bf16.gmra.mrb[0].mxu0 %v3108
      %v7453 = vpop.f32.mrb[0].mxu0
      %v7454 = vadd.f32 0.0, %v7453
      %v7455 = vpop.f32.mrb[0].mxu0
      %v7456 = vpop.f32.mrb[0].mxu0
      %v7457 = vadd.f32 0.0, %v7456
      %v7458 = vpop.f32.mrb[0].mxu0
      %7459 = vmatprep.mubr.bf16.mxu0 0
      %7460 = vmatmul.mubr.bf16.gmra.mrb[0].mxu0 %v3111
      %v7461 = vpop.f32.mrb[0].mxu0
      %v7462 = vadd.f32 0.0, %v7461
      %v7463 = vpop.f32.mrb[0].mxu0
      %v7464 = vpop.f32.mrb[0].mxu0
      %v7465 = vadd.f32 0.0, %v7464
      %v7466 = vpop.f32.mrb[0].mxu0
      %7467 = vmatprep.mubr.bf16.mxu0 0
      %7468 = vmatmul.mubr.bf16.gmra.mrb[0].mxu0 %v3114
      %v7469 = vpop.f32.mrb[0].mxu0
      %v7470 = vadd.f32 0.0, %v7469
      %v7471 = vpop.f32.mrb[0].mxu0
      %v7472 = vpop.f32.mrb[0].mxu0
      %v7473 = vadd.f32 0.0, %v7472
      %v7474 = vpop.f32.mrb[0].mxu0
      %7475 = vmatprep.mubr.bf16.mxu0 0
      %7476 = vmatmul.mubr.bf16.gmra.mrb[0].mxu0 %v3117
      %v7477 = vpop.f32.mrb[0].mxu0
      %v7478 = vadd.f32 0.0, %v7477
      %v7479 = vpop.f32.mrb[0].mxu0
      %v7480 = vpop.f32.mrb[0].mxu0
      %v7481 = vadd.f32 0.0, %v7480
      %v7482 = vpop.f32.mrb[0].mxu0
      %7483 = vmatprep.mubr.bf16.mxu0 0
      %7484 = vmatmul.mubr.bf16.gmra.mrb[0].mxu0 %v3120
      %v7485 = vpop.f32.mrb[0].mxu0
      %v7486 = vadd.f32 0.0, %v7485
      %v7487 = vpop.f32.mrb[0].mxu0
      %v7488 = vpop.f32.mrb[0].mxu0
      %v7489 = vadd.f32 0.0, %v7488
      %v7490 = vpop.f32.mrb[0].mxu0
      %7491 = vmatprep.mubr.bf16.mxu0 0
      %7492 = vmatmul.mubr.bf16.gmra.mrb[0].mxu0 %v3123
      %v7493 = vpop.f32.mrb[0].mxu0
      %v7494 = vadd.f32 0.0, %v7493
      %v7495 = vpop.f32.mrb[0].mxu0
      %v7496 = vpop.f32.mrb[0].mxu0
      %v7497 = vadd.f32 0.0, %v7496
      %v7498 = vpop.f32.mrb[0].mxu0
      %7499 = vmatprep.mubr.bf16.mxu0 0
      %7500 = vmatmul.mubr.bf16.gmra.mrb[0].mxu0 %v3126
      %v7501 = vpop.f32.mrb[0].mxu0
      %v7502 = vadd.f32 0.0, %v7501
      %v7503 = vpop.f32.mrb[0].mxu0
      %v7504 = vpop.f32.mrb[0].mxu0
      %v7505 = vadd.f32 0.0, %v7504
      %v7506 = vpop.f32.mrb[0].mxu0
      %7507 = vmatprep.mubr.bf16.mxu0 0
      %7508 = vmatmul.mubr.bf16.gmra.mrb[0].mxu0 %v3129
      %v7509 = vpop.f32.mrb[0].mxu0
      %v7510 = vadd.f32 0.0, %v7509
      %v7511 = vpop.f32.mrb[0].mxu0
      %v7512 = vpop.f32.mrb[0].mxu0
      %v7513 = vadd.f32 0.0, %v7512
      %v7514 = vpop.f32.mrb[0].mxu0
      %7515 = vmatprep.mubr.bf16.mxu0 0
      %7516 = vmatmul.mubr.bf16.gmra.mrb[0].mxu0 %v3132
      %v7517 = vpop.f32.mrb[0].mxu0
      %v7518 = vadd.f32 0.0, %v7517
      %v7519 = vpop.f32.mrb[0].mxu0
      %v7520 = vpop.f32.mrb[0].mxu0
      %v7521 = vadd.f32 0.0, %v7520
      %v7522 = vpop.f32.mrb[0].mxu0
      %7523 = vmatprep.mubr.bf16.mxu0 0
      %7524 = vmatmul.mubr.bf16.gmra.mrb[0].mxu0 %v3135
      %v7525 = vpop.f32.mrb[0].mxu0
      %v7526 = vadd.f32 0.0, %v7525
      %v7527 = vpop.f32.mrb[0].mxu0
      %v7528 = vpop.f32.mrb[0].mxu0
      %v7529 = vadd.f32 0.0, %v7528
      %v7530 = vpop.f32.mrb[0].mxu0
      %7531 = vmatprep.mubr.bf16.mxu0 0
      %7532 = vmatmul.mubr.bf16.gmra.mrb[0].mxu0 %v3138
      %v7533 = vpop.f32.mrb[0].mxu0
      %v7534 = vadd.f32 0.0, %v7533
      %v7535 = vpop.f32.mrb[0].mxu0
      %v7536 = vpop.f32.mrb[0].mxu0
      %v7537 = vadd.f32 0.0, %v7536
      %v7538 = vpop.f32.mrb[0].mxu0
      %7539 = vmatprep.mubr.bf16.mxu0 0
      %7540 = vmatmul.mubr.bf16.gmra.mrb[0].mxu0 %v3141
      %v7541 = vpop.f32.mrb[0].mxu0
      %v7542 = vadd.f32 0.0, %v7541
      %v7543 = vpop.f32.mrb[0].mxu0
      %v7544 = vpop.f32.mrb[0].mxu0
      %v7545 = vadd.f32 0.0, %v7544
      %v7546 = vpop.f32.mrb[0].mxu0
      %7547 = vmatprep.mubr.bf16.mxu0 0
      %7548 = vmatmul.mubr.bf16.gmra.mrb[0].mxu0 %v3144
      %v7549 = vpop.f32.mrb[0].mxu0
      %v7550 = vadd.f32 0.0, %v7549
      %v7551 = vpop.f32.mrb[0].mxu0
      %v7552 = vpop.f32.mrb[0].mxu0
      %v7553 = vadd.f32 0.0, %v7552
      %v7554 = vpop.f32.mrb[0].mxu0
      %7555 = vmatprep.mubr.bf16.mxu0 0
      %7556 = vmatmul.mubr.bf16.gmra.mrb[0].mxu0 %v3147
      %v7557 = vpop.f32.mrb[0].mxu0
      %v7558 = vadd.f32 0.0, %v7557
      %v7559 = vpop.f32.mrb[0].mxu0
      %v7560 = vpop.f32.mrb[0].mxu0
      %v7561 = vadd.f32 0.0, %v7560
      %v7562 = vpop.f32.mrb[0].mxu0
      %7563 = vmatprep.mubr.bf16.mxu0 0
      %7564 = vmatmul.mubr.bf16.gmra.mrb[0].mxu0 %v3150
      %v7565 = vpop.f32.mrb[0].mxu0
      %v7566 = vadd.f32 0.0, %v7565
      %v7567 = vpop.f32.mrb[0].mxu0
      %v7568 = vpop.f32.mrb[0].mxu0
      %v7569 = vadd.f32 0.0, %v7568
      %v7570 = vpop.f32.mrb[0].mxu0
      %7571 = vmatprep.mubr.bf16.mxu0 0
      %7572 = vmatmul.mubr.bf16.gmra.mrb[0].mxu0 %v3153
      %v7573 = vpop.f32.mrb[0].mxu0
      %v7574 = vadd.f32 0.0, %v7573
      %v7575 = vpop.f32.mrb[0].mxu0
      %v7576 = vpop.f32.mrb[0].mxu0
      %v7577 = vadd.f32 0.0, %v7576
      %v7578 = vpop.f32.mrb[0].mxu0
      %7579 = vmatprep.mubr.bf16.mxu0 0
      %7580 = vmatmul.mubr.bf16.gmra.mrb[0].mxu0 %v3156
      %v7581 = vpop.f32.mrb[0].mxu0
      %v7582 = vadd.f32 0.0, %v7581
      %v7583 = vpop.f32.mrb[0].mxu0
      %v7584 = vpop.f32.mrb[0].mxu0
      %v7585 = vadd.f32 0.0, %v7584
      %v7586 = vpop.f32.mrb[0].mxu0
      %7587 = vmatprep.mubr.bf16.mxu0 0
      %7588 = vmatmul.mubr.bf16.gmra.mrb[0].mxu0 %v3159
      %v7589 = vpop.f32.mrb[0].mxu0
      %v7590 = vadd.f32 0.0, %v7589
      %v7591 = vpop.f32.mrb[0].mxu0
      %v7592 = vpop.f32.mrb[0].mxu0
      %v7593 = vadd.f32 0.0, %v7592
      %v7594 = vpop.f32.mrb[0].mxu0
      %7595 = vmatprep.mubr.bf16.mxu0 0
      %7596 = vmatmul.mubr.bf16.gmra.mrb[0].mxu0 %v3162
      %v7597 = vpop.f32.mrb[0].mxu0
      %v7598 = vadd.f32 0.0, %v7597
      %v7599 = vpop.f32.mrb[0].mxu0
      %v7600 = vpop.f32.mrb[0].mxu0
      %v7601 = vadd.f32 0.0, %v7600
      %v7602 = vpop.f32.mrb[0].mxu0
      %7603 = vmatprep.mubr.bf16.mxu0 0
      %7604 = vmatmul.mubr.bf16.gmra.mrb[0].mxu0 %v3165
      %v7605 = vpop.f32.mrb[0].mxu0
      %v7606 = vadd.f32 0.0, %v7605
      %v7607 = vpop.f32.mrb[0].mxu0
      %v7608 = vpop.f32.mrb[0].mxu0
      %v7609 = vadd.f32 0.0, %v7608
      %v7610 = vpop.f32.mrb[0].mxu0
      %7611 = vmatprep.mubr.bf16.mxu0 0
      %7612 = vmatmul.mubr.bf16.gmra.mrb[0].mxu0 %v3168
      %v7613 = vpop.f32.mrb[0].mxu0
      %v7614 = vadd.f32 0.0, %v7613
      %v7615 = vpop.f32.mrb[0].mxu0
      %v7616 = vpop.f32.mrb[0].mxu0
      %v7617 = vadd.f32 0.0, %v7616
      %v7618 = vpop.f32.mrb[0].mxu0
      %7619 = vmatprep.mubr.bf16.mxu0 0
      %7620 = vmatmul.mubr.bf16.gmra.mrb[0].mxu0 %v3171
      %v7621 = vpop.f32.mrb[0].mxu0
      %v7622 = vadd.f32 0.0, %v7621
      %v7623 = vpop.f32.mrb[0].mxu0
      %v7624 = vpop.f32.mrb[0].mxu0
      %v7625 = vadd.f32 0.0, %v7624
      %v7626 = vpop.f32.mrb[0].mxu0
      %7627 = vmatprep.mubr.bf16.mxu0 0
      %7628 = vmatmul.mubr.bf16.gmra.mrb[0].mxu0 %v3174
      %v7629 = vpop.f32.mrb[0].mxu0
      %v7630 = vadd.f32 0.0, %v7629
      %v7631 = vpop.f32.mrb[0].mxu0
      %v7632 = vpop.f32.mrb[0].mxu0
      %v7633 = vadd.f32 0.0, %v7632
      %v7634 = vpop.f32.mrb[0].mxu0
      %7635 = vmatprep.mubr.bf16.mxu0 0
      %7636 = vmatmul.mubr.bf16.gmra.mrb[0].mxu0 %v3177
      %v7637 = vpop.f32.mrb[0].mxu0
      %v7638 = vadd.f32 0.0, %v7637
      %v7639 = vpop.f32.mrb[0].mxu0
      %v7640 = vpop.f32.mrb[0].mxu0
      %v7641 = vadd.f32 0.0, %v7640
      %v7642 = vpop.f32.mrb[0].mxu0
      %7643 = vmatprep.mubr.bf16.mxu0 0
      %7644 = vmatmul.mubr.bf16.gmra.mrb[0].mxu0 %v3180
      %v7645 = vpop.f32.mrb[0].mxu0
      %v7646 = vadd.f32 0.0, %v7645
      %v7647 = vpop.f32.mrb[0].mxu0
      %v7648 = vpop.f32.mrb[0].mxu0
      %v7649 = vadd.f32 0.0, %v7648
      %v7650 = vpop.f32.mrb[0].mxu0
      %7651 = vmatprep.mubr.bf16.mxu0 0
      %7652 = vmatmul.mubr.bf16.gmra.mrb[0].mxu0 %v3183
      %v7653 = vpop.f32.mrb[0].mxu0
      %v7654 = vadd.f32 0.0, %v7653
      %v7655 = vpop.f32.mrb[0].mxu0
      %v7656 = vpop.f32.mrb[0].mxu0
      %v7657 = vadd.f32 0.0, %v7656
      %v7658 = vpop.f32.mrb[0].mxu0
      %7659 = vmatprep.mubr.bf16.mxu0 0
      %7660 = vmatmul.mubr.bf16.gmra.mrb[0].mxu0 %v3186
      %v7661 = vpop.f32.mrb[0].mxu0
      %v7662 = vadd.f32 0.0, %v7661
      %v7663 = vpop.f32.mrb[0].mxu0
      %v7664 = vpop.f32.mrb[0].mxu0
      %v7665 = vadd.f32 0.0, %v7664
      %v7666 = vpop.f32.mrb[0].mxu0
      %7667 = vmatprep.mubr.bf16.mxu0 0
      %7668 = vmatmul.mubr.bf16.gmra.mrb[0].mxu0 %v3189
      %v7669 = vpop.f32.mrb[0].mxu0
      %v7670 = vadd.f32 0.0, %v7669
      %v7671 = vpop.f32.mrb[0].mxu0
      %v7672 = vpop.f32.mrb[0].mxu0
      %v7673 = vadd.f32 0.0, %v7672
      %v7674 = vpop.f32.mrb[0].mxu0
      %7675 = vmatprep.mubr.bf16.mxu0 0
      %7676 = vmatmul.mubr.bf16.gmra.mrb[0].mxu0 %v3192
      %v7677 = vpop.f32.mrb[0].mxu0
      %v7678 = vadd.f32 0.0, %v7677
      %v7679 = vpop.f32.mrb[0].mxu0
      %v7680 = vpop.f32.mrb[0].mxu0
      %v7681 = vadd.f32 0.0, %v7680
      %v7682 = vpop.f32.mrb[0].mxu0
      %7683 = vmatprep.mubr.bf16.mxu0 0
      %7684 = vmatmul.mubr.bf16.gmra.mrb[0].mxu0 %v3195
      %v7685 = vpop.f32.mrb[0].mxu0
      %v7686 = vadd.f32 0.0, %v7685
      %v7687 = vpop.f32.mrb[0].mxu0
      %v7688 = vpop.f32.mrb[0].mxu0
      %v7689 = vadd.f32 0.0, %v7688
      %v7690 = vpop.f32.mrb[0].mxu0
      %7691 = vmatprep.mubr.bf16.mxu0 0
      %7692 = vmatmul.mubr.bf16.gmra.mrb[0].mxu0 %v3198
      %v7693 = vpop.f32.mrb[0].mxu0
      %v7694 = vadd.f32 0.0, %v7693
      %v7695 = vpop.f32.mrb[0].mxu0
      %v7696 = vpop.f32.mrb[0].mxu0
      %v7697 = vadd.f32 0.0, %v7696
      %v7698 = vpop.f32.mrb[0].mxu0
      %7699 = vmatprep.mubr.bf16.mxu0 0
      %7700 = vmatmul.mubr.bf16.gmra.mrb[0].mxu0 %v3201
      %v7701 = vpop.f32.mrb[0].mxu0
      %v7702 = vadd.f32 0.0, %v7701
      %v7703 = vpop.f32.mrb[0].mxu0
      %v7704 = vpop.f32.mrb[0].mxu0
      %v7705 = vadd.f32 0.0, %v7704
      %v7706 = vpop.f32.mrb[0].mxu0
      %7707 = vmatprep.mubr.bf16.mxu0 0
      %7708 = vmatmul.mubr.bf16.gmra.mrb[0].mxu0 %v3204
      %v7709 = vpop.f32.mrb[0].mxu0
      %v7710 = vadd.f32 0.0, %v7709
      %v7711 = vpop.f32.mrb[0].mxu0
      %v7712 = vpop.f32.mrb[0].mxu0
      %v7713 = vadd.f32 0.0, %v7712
      %v7714 = vpop.f32.mrb[0].mxu0
      %7715 = vmatprep.mubr.bf16.mxu0 0
      %7716 = vmatmul.mubr.bf16.gmra.mrb[0].mxu0 %v3207
      %v7717 = vpop.f32.mrb[0].mxu0
      %v7718 = vadd.f32 0.0, %v7717
      %v7719 = vpop.f32.mrb[0].mxu0
      %v7720 = vpop.f32.mrb[0].mxu0
      %v7721 = vadd.f32 0.0, %v7720
      %v7722 = vpop.f32.mrb[0].mxu0
      %7723 = vmatprep.mubr.bf16.mxu0 0
      %7724 = vmatmul.mubr.bf16.gmra.mrb[0].mxu0 %v3210
      %v7725 = vpop.f32.mrb[0].mxu0
      %v7726 = vadd.f32 0.0, %v7725
      %v7727 = vpop.f32.mrb[0].mxu0
      %v7728 = vpop.f32.mrb[0].mxu0
      %v7729 = vadd.f32 0.0, %v7728
      %v7730 = vpop.f32.mrb[0].mxu0
      %7731 = vmatprep.mubr.bf16.mxu0 0
      %7732 = vmatmul.mubr.bf16.gmra.mrb[0].mxu0 %v3213
      %v7733 = vpop.f32.mrb[0].mxu0
      %v7734 = vadd.f32 0.0, %v7733
      %v7735 = vpop.f32.mrb[0].mxu0
      %v7736 = vpop.f32.mrb[0].mxu0
      %v7737 = vadd.f32 0.0, %v7736
      %v7738 = vpop.f32.mrb[0].mxu0
      %7739 = vmatprep.mubr.bf16.mxu0 0
      %7740 = vmatmul.mubr.bf16.gmra.mrb[0].mxu0 %v3216
      %v7741 = vpop.f32.mrb[0].mxu0
      %v7742 = vadd.f32 0.0, %v7741
      %v7743 = vpop.f32.mrb[0].mxu0
      %v7744 = vpop.f32.mrb[0].mxu0
      %v7745 = vadd.f32 0.0, %v7744
      %v7746 = vpop.f32.mrb[0].mxu0
      %7747 = vmatprep.mubr.bf16.mxu0 0
      %7748 = vmatmul.mubr.bf16.gmra.mrb[0].mxu0 %v3219
      %v7749 = vpop.f32.mrb[0].mxu0
      %v7750 = vadd.f32 0.0, %v7749
      %v7751 = vpop.f32.mrb[0].mxu0
      %v7752 = vpop.f32.mrb[0].mxu0
      %v7753 = vadd.f32 0.0, %v7752
      %v7754 = vpop.f32.mrb[0].mxu0
      %7755 = vmatprep.mubr.bf16.mxu0 0
      %7756 = vmatmul.mubr.bf16.gmra.mrb[0].mxu0 %v3222
      %v7757 = vpop.f32.mrb[0].mxu0
      %v7758 = vadd.f32 0.0, %v7757
      %v7759 = vpop.f32.mrb[0].mxu0
      %v7760 = vpop.f32.mrb[0].mxu0
      %v7761 = vadd.f32 0.0, %v7760
      %v7762 = vpop.f32.mrb[0].mxu0
      %7763 = vmatprep.mubr.bf16.mxu0 0
      %7764 = vmatmul.mubr.bf16.gmra.mrb[0].mxu0 %v3225
      %v7765 = vpop.f32.mrb[0].mxu0
      %v7766 = vadd.f32 0.0, %v7765
      %v7767 = vpop.f32.mrb[0].mxu0
      %v7768 = vpop.f32.mrb[0].mxu0
      %v7769 = vadd.f32 0.0, %v7768
      %v7770 = vpop.f32.mrb[0].mxu0
      %7771 = vmatprep.mubr.bf16.mxu0 0
      %7772 = vmatmul.mubr.bf16.gmra.mrb[0].mxu0 %v3228
      %v7773 = vpop.f32.mrb[0].mxu0
      %v7774 = vadd.f32 0.0, %v7773
      %v7775 = vpop.f32.mrb[0].mxu0
      %v7776 = vpop.f32.mrb[0].mxu0
      %v7777 = vadd.f32 0.0, %v7776
      %v7778 = vpop.f32.mrb[0].mxu0
      %7779 = vmatprep.mubr.bf16.mxu0 0
      %7780 = vmatmul.mubr.bf16.gmra.mrb[0].mxu0 %v3231
      %v7781 = vpop.f32.mrb[0].mxu0
      %v7782 = vadd.f32 0.0, %v7781
      %v7783 = vpop.f32.mrb[0].mxu0
      %v7784 = vpop.f32.mrb[0].mxu0
      %v7785 = vadd.f32 0.0, %v7784
      %v7786 = vpop.f32.mrb[0].mxu0
      %7787 = vmatprep.mubr.bf16.mxu0 0
      %7788 = vmatmul.mubr.bf16.gmra.mrb[0].mxu0 %v3234
      %v7789 = vpop.f32.mrb[0].mxu0
      %v7790 = vadd.f32 0.0, %v7789
      %v7791 = vpop.f32.mrb[0].mxu0
      %v7792 = vpop.f32.mrb[0].mxu0
      %v7793 = vadd.f32 0.0, %v7792
      %v7794 = vpop.f32.mrb[0].mxu0
      %7795 = vmatprep.mubr.bf16.mxu0 0
      %7796 = vmatmul.mubr.bf16.gmra.mrb[0].mxu0 %v3237
      %v7797 = vpop.f32.mrb[0].mxu0
      %v7798 = vadd.f32 0.0, %v7797
      %v7799 = vpop.f32.mrb[0].mxu0
      %v7800 = vpop.f32.mrb[0].mxu0
      %v7801 = vadd.f32 0.0, %v7800
      %v7802 = vpop.f32.mrb[0].mxu0
      %7803 = vmatprep.mubr.bf16.mxu0 0
      %7804 = vmatmul.mubr.bf16.gmra.mrb[0].mxu0 %v3240
      %v7805 = vpop.f32.mrb[0].mxu0
      %v7806 = vadd.f32 0.0, %v7805
      %v7807 = vpop.f32.mrb[0].mxu0
      %v7808 = vpop.f32.mrb[0].mxu0
      %v7809 = vadd.f32 0.0, %v7808
      %v7810 = vpop.f32.mrb[0].mxu0
      %7811 = vmatprep.mubr.bf16.mxu0 0
      %7812 = vmatmul.mubr.bf16.gmra.mrb[0].mxu0 %v3243
      %v7813 = vpop.f32.mrb[0].mxu0
      %v7814 = vadd.f32 0.0, %v7813
      %v7815 = vpop.f32.mrb[0].mxu0
      %v7816 = vpop.f32.mrb[0].mxu0
      %v7817 = vadd.f32 0.0, %v7816
      %v7818 = vpop.f32.mrb[0].mxu0
      %7819 = vmatprep.mubr.bf16.mxu0 0
      %7820 = vmatmul.mubr.bf16.gmra.mrb[0].mxu0 %v3246
      %v7821 = vpop.f32.mrb[0].mxu0
      %v7822 = vadd.f32 0.0, %v7821
      %v7823 = vpop.f32.mrb[0].mxu0
      %v7824 = vpop.f32.mrb[0].mxu0
      %v7825 = vadd.f32 0.0, %v7824
      %v7826 = vpop.f32.mrb[0].mxu0
      %7827 = vmatprep.mubr.bf16.mxu0 0
      %7828 = vmatmul.mubr.bf16.gmra.mrb[0].mxu0 %v3249
      %v7829 = vpop.f32.mrb[0].mxu0
      %v7830 = vadd.f32 0.0, %v7829
      %v7831 = vpop.f32.mrb[0].mxu0
      %v7832 = vpop.f32.mrb[0].mxu0
      %v7833 = vadd.f32 0.0, %v7832
      %v7834 = vpop.f32.mrb[0].mxu0
      %7835 = vmatprep.mubr.bf16.mxu0 0
      %7836 = vmatmul.mubr.bf16.gmra.mrb[0].mxu0 %v3252
      %v7837 = vpop.f32.mrb[0].mxu0
      %v7838 = vadd.f32 0.0, %v7837
      %v7839 = vpop.f32.mrb[0].mxu0
      %v7840 = vpop.f32.mrb[0].mxu0
      %v7841 = vadd.f32 0.0, %v7840
      %v7842 = vpop.f32.mrb[0].mxu0
      %7843 = vmatprep.mubr.bf16.mxu0 0
      %7844 = vmatmul.mubr.bf16.gmra.mrb[0].mxu0 %v3255
      %v7845 = vpop.f32.mrb[0].mxu0
      %v7846 = vadd.f32 0.0, %v7845
      %v7847 = vpop.f32.mrb[0].mxu0
      %v7848 = vpop.f32.mrb[0].mxu0
      %v7849 = vadd.f32 0.0, %v7848
      %v7850 = vpop.f32.mrb[0].mxu0
      %7851 = vmatprep.mubr.bf16.mxu0 0
      %7852 = vmatmul.mubr.bf16.gmra.mrb[0].mxu0 %v3258
      %v7853 = vpop.f32.mrb[0].mxu0
      %v7854 = vadd.f32 0.0, %v7853
      %v7855 = vpop.f32.mrb[0].mxu0
      %v7856 = vpop.f32.mrb[0].mxu0
      %v7857 = vadd.f32 0.0, %v7856
      %v7858 = vpop.f32.mrb[0].mxu0
      %7859 = vmatprep.mubr.bf16.mxu0 0
      %7860 = vmatmul.mubr.bf16.gmra.mrb[0].mxu0 %v3069
      %v7861 = vpop.f32.mrb[0].mxu0
      %v7862 = vadd.f32 0.0, %v7861
      %v7863 = vpop.f32.mrb[0].mxu0
      %v7864 = vpop.f32.mrb[0].mxu0
      %v7865 = vadd.f32 0.0, %v7864
      %v7866 = vpop.f32.mrb[0].mxu0
      %7867 = vmatprep.mubr.bf16.mxu0 0
      %7868 = vmatmul.mubr.bf16.gmra.mrb[0].mxu0 %v3072
      %v7869 = vpop.f32.mrb[0].mxu0
      %v7870 = vadd.f32 0.0, %v7869
      %v7871 = vpop.f32.mrb[0].mxu0
      %v7872 = vpop.f32.mrb[0].mxu0
      %v7873 = vadd.f32 0.0, %v7872
      %v7874 = vpop.f32.mrb[0].mxu0
      %7875 = vdwg.mxu0
      %v7876 = vadd.f32 %v7198, %v7366
      %v7877 = vadd.f32 %v7199, %v7369
      %v7878 = vadd.f32 %v7200, %v7374
      %v7879 = vadd.f32 %v7201, %v7377
      %v7880 = vadd.f32 %v7202, %v7382
      %v7881 = vadd.f32 %v7203, %v7385
      %v7882 = vadd.f32 %v7204, %v7390
      %v7883 = vadd.f32 %v7205, %v7393
      %v7884 = vadd.f32 %v7206, %v7398
      %v7885 = vadd.f32 %v7207, %v7401
      %v7886 = vadd.f32 %v7208, %v7406
      %v7887 = vadd.f32 %v7209, %v7409
      %v7888 = vadd.f32 %v7210, %v7414
      %v7889 = vadd.f32 %v7211, %v7417
      %v7890 = vadd.f32 %v7212, %v7422
      %v7891 = vadd.f32 %v7213, %v7425
      %v7892 = vadd.f32 %v7214, %v7430
      %v7893 = vadd.f32 %v7215, %v7433
      %v7894 = vadd.f32 %v7216, %v7438
      %v7895 = vadd.f32 %v7217, %v7441
      %v7896 = vadd.f32 %v7218, %v7446
      %v7897 = vadd.f32 %v7219, %v7449
      %v7898 = vadd.f32 %v7220, %v7454
      %v7899 = vadd.f32 %v7221, %v7457
      %v7900 = vadd.f32 %v7222, %v7462
      %v7901 = vadd.f32 %v7223, %v7465
      %v7902 = vadd.f32 %v7224, %v7470
      %v7903 = vadd.f32 %v7225, %v7473
      %v7904 = vadd.f32 %v7226, %v7478
      %v7905 = vadd.f32 %v7227, %v7481
      %v7906 = vadd.f32 %v7228, %v7486
      %v7907 = vadd.f32 %v7229, %v7489
      %v7908 = vadd.f32 %v7230, %v7494
      %v7909 = vadd.f32 %v7231, %v7497
      %v7910 = vadd.f32 %v7232, %v7502
      %v7911 = vadd.f32 %v7233, %v7505
      %v7912 = vadd.f32 %v7234, %v7510
      %v7913 = vadd.f32 %v7235, %v7513
      %v7914 = vadd.f32 %v7236, %v7518
      %v7915 = vadd.f32 %v7237, %v7521
      %v7916 = vadd.f32 %v7238, %v7526
      %v7917 = vadd.f32 %v7239, %v7529
      %v7918 = vadd.f32 %v7240, %v7534
      %v7919 = vadd.f32 %v7241, %v7537
      %v7920 = vadd.f32 %v7242, %v7542
      %v7921 = vadd.f32 %v7243, %v7545
      %v7922 = vadd.f32 %v7244, %v7550
      %v7923 = vadd.f32 %v7245, %v7553
      %v7924 = vadd.f32 %v7246, %v7558
      %v7925 = vadd.f32 %v7247, %v7561
      %v7926 = vadd.f32 %v7248, %v7566
      %v7927 = vadd.f32 %v7249, %v7569
      %v7928 = vadd.f32 %v7250, %v7574
      %v7929 = vadd.f32 %v7251, %v7577
      %v7930 = vadd.f32 %v7252, %v7582
      %v7931 = vadd.f32 %v7253, %v7585
      %v7932 = vadd.f32 %v7254, %v7590
      %v7933 = vadd.f32 %v7255, %v7593
      %v7934 = vadd.f32 %v7256, %v7598
      %v7935 = vadd.f32 %v7257, %v7601
      %v7936 = vadd.f32 %v7258, %v7606
      %v7937 = vadd.f32 %v7259, %v7609
      %v7938 = vadd.f32 %v7260, %v7614
      %v7939 = vadd.f32 %v7261, %v7617
      %v7940 = vadd.f32 %v7262, %v7622
      %v7941 = vadd.f32 %v7263, %v7625
      %v7942 = vadd.f32 %v7264, %v7630
      %v7943 = vadd.f32 %v7265, %v7633
      %v7944 = vadd.f32 %v7266, %v7638
      %v7945 = vadd.f32 %v7267, %v7641
      %v7946 = vadd.f32 %v7268, %v7646
      %v7947 = vadd.f32 %v7269, %v7649
      %v7948 = vadd.f32 %v7270, %v7654
      %v7949 = vadd.f32 %v7271, %v7657
      %v7950 = vadd.f32 %v7272, %v7662
      %v7951 = vadd.f32 %v7273, %v7665
      %v7952 = vadd.f32 %v7274, %v7670
      %v7953 = vadd.f32 %v7275, %v7673
      %v7954 = vadd.f32 %v7276, %v7678
      %v7955 = vadd.f32 %v7277, %v7681
      %v7956 = vadd.f32 %v7278, %v7686
      %v7957 = vadd.f32 %v7279, %v7689
      %v7958 = vadd.f32 %v7280, %v7694
      %v7959 = vadd.f32 %v7281, %v7697
      %v7960 = vadd.f32 %v7282, %v7702
      %v7961 = vadd.f32 %v7283, %v7705
      %v7962 = vadd.f32 %v7284, %v7710
      %v7963 = vadd.f32 %v7285, %v7713
      %v7964 = vadd.f32 %v7286, %v7718
      %v7965 = vadd.f32 %v7287, %v7721
      %v7966 = vadd.f32 %v7288, %v7726
      %v7967 = vadd.f32 %v7289, %v7729
      %v7968 = vadd.f32 %v7290, %v7734
      %v7969 = vadd.f32 %v7291, %v7737
      %v7970 = vadd.f32 %v7292, %v7742
      %v7971 = vadd.f32 %v7293, %v7745
      %v7972 = vadd.f32 %v7294, %v7750
      %v7973 = vadd.f32 %v7295, %v7753
      %v7974 = vadd.f32 %v7296, %v7758
      %v7975 = vadd.f32 %v7297, %v7761
      %v7976 = vadd.f32 %v7298, %v7766
      %v7977 = vadd.f32 %v7299, %v7769
      %v7978 = vadd.f32 %v7300, %v7774
      %v7979 = vadd.f32 %v7301, %v7777
      %v7980 = vadd.f32 %v7302, %v7782
      %v7981 = vadd.f32 %v7303, %v7785
      %v7982 = vadd.f32 %v7304, %v7790
      %v7983 = vadd.f32 %v7305, %v7793
      %v7984 = vadd.f32 %v7306, %v7798
      %v7985 = vadd.f32 %v7307, %v7801
      %v7986 = vadd.f32 %v7308, %v7806
      %v7987 = vadd.f32 %v7309, %v7809
      %v7988 = vadd.f32 %v7310, %v7814
      %v7989 = vadd.f32 %v7311, %v7817
      %v7990 = vadd.f32 %v7312, %v7822
      %v7991 = vadd.f32 %v7313, %v7825
      %v7992 = vadd.f32 %v7314, %v7830
      %v7993 = vadd.f32 %v7315, %v7833
      %v7994 = vadd.f32 %v7316, %v7838
      %v7995 = vadd.f32 %v7317, %v7841
      %v7996 = vadd.f32 %v7318, %v7846
      %v7997 = vadd.f32 %v7319, %v7849
      %v7998 = vadd.f32 %v7320, %v7854
      %v7999 = vadd.f32 %v7321, %v7857
      %v8000 = vadd.f32 %v7322, %v7862
      %v8001 = vadd.f32 %v7323, %v7865
      %v8002 = vadd.f32 %v7324, %v7870
      %v8003 = vadd.f32 %v7325, %v7873
      %v8004 = vld [vmem:[%s2] sm:$0x1]
      %v8006 = vlaneseq
      %v8007 = vshrl.u32 %v8006, 7
      %v8008 = vsub.s32 0, %v8007
      %v8009 = vrot.slane %v8004, %v8008
      %v8011 = vadd.f32 %v7876, %v8009
      %v8012 = vadd.f32 %v7877, %v8009
      %v8013 = vadd.f32 %v7878, %v8009
      %v8014 = vadd.f32 %v7879, %v8009
      %v8015 = vadd.f32 %v7880, %v8009
      %v8016 = vadd.f32 %v7881, %v8009
      %v8017 = vadd.f32 %v7882, %v8009
      %v8018 = vadd.f32 %v7883, %v8009
      %v8019 = vadd.f32 %v7884, %v8009
      %v8020 = vadd.f32 %v7885, %v8009
      %v8021 = vadd.f32 %v7886, %v8009
      %v8022 = vadd.f32 %v7887, %v8009
      %v8023 = vadd.f32 %v7888, %v8009
      %v8024 = vadd.f32 %v7889, %v8009
      %v8025 = vadd.f32 %v7890, %v8009
      %v8026 = vadd.f32 %v7891, %v8009
      %v8027 = vadd.f32 %v7892, %v8009
      %v8028 = vadd.f32 %v7893, %v8009
      %v8029 = vadd.f32 %v7894, %v8009
      %v8030 = vadd.f32 %v7895, %v8009
      %v8031 = vadd.f32 %v7896, %v8009
      %v8032 = vadd.f32 %v7897, %v8009
      %v8033 = vadd.f32 %v7898, %v8009
      %v8034 = vadd.f32 %v7899, %v8009
      %v8035 = vadd.f32 %v7900, %v8009
      %v8036 = vadd.f32 %v7901, %v8009
      %v8037 = vadd.f32 %v7902, %v8009
      %v8038 = vadd.f32 %v7903, %v8009
      %v8039 = vadd.f32 %v7904, %v8009
      %v8040 = vadd.f32 %v7905, %v8009
      %v8041 = vadd.f32 %v7906, %v8009
      %v8042 = vadd.f32 %v7907, %v8009
      %v8043 = vadd.f32 %v7908, %v8009
      %v8044 = vadd.f32 %v7909, %v8009
      %v8045 = vadd.f32 %v7910, %v8009
      %v8046 = vadd.f32 %v7911, %v8009
      %v8047 = vadd.f32 %v7912, %v8009
      %v8048 = vadd.f32 %v7913, %v8009
      %v8049 = vadd.f32 %v7914, %v8009
      %v8050 = vadd.f32 %v7915, %v8009
      %v8051 = vadd.f32 %v7916, %v8009
      %v8052 = vadd.f32 %v7917, %v8009
      %v8053 = vadd.f32 %v7918, %v8009
      %v8054 = vadd.f32 %v7919, %v8009
      %v8055 = vadd.f32 %v7920, %v8009
      %v8056 = vadd.f32 %v7921, %v8009
      %v8057 = vadd.f32 %v7922, %v8009
      %v8058 = vadd.f32 %v7923, %v8009
      %v8059 = vadd.f32 %v7924, %v8009
      %v8060 = vadd.f32 %v7925, %v8009
      %v8061 = vadd.f32 %v7926, %v8009
      %v8062 = vadd.f32 %v7927, %v8009
      %v8063 = vadd.f32 %v7928, %v8009
      %v8064 = vadd.f32 %v7929, %v8009
      %v8065 = vadd.f32 %v7930, %v8009
      %v8066 = vadd.f32 %v7931, %v8009
      %v8067 = vadd.f32 %v7932, %v8009
      %v8068 = vadd.f32 %v7933, %v8009
      %v8069 = vadd.f32 %v7934, %v8009
      %v8070 = vadd.f32 %v7935, %v8009
      %v8071 = vadd.f32 %v7936, %v8009
      %v8072 = vadd.f32 %v7937, %v8009
      %v8073 = vadd.f32 %v7938, %v8009
      %v8074 = vadd.f32 %v7939, %v8009
      %v8075 = vadd.f32 %v7940, %v8009
      %v8076 = vadd.f32 %v7941, %v8009
      %v8077 = vadd.f32 %v7942, %v8009
      %v8078 = vadd.f32 %v7943, %v8009
      %v8079 = vadd.f32 %v7944, %v8009
      %v8080 = vadd.f32 %v7945, %v8009
      %v8081 = vadd.f32 %v7946, %v8009
      %v8082 = vadd.f32 %v7947, %v8009
      %v8083 = vadd.f32 %v7948, %v8009
      %v8084 = vadd.f32 %v7949, %v8009
      %v8085 = vadd.f32 %v7950, %v8009
      %v8086 = vadd.f32 %v7951, %v8009
      %v8087 = vadd.f32 %v7952, %v8009
      %v8088 = vadd.f32 %v7953, %v8009
      %v8089 = vadd.f32 %v7954, %v8009
      %v8090 = vadd.f32 %v7955, %v8009
      %v8091 = vadd.f32 %v7956, %v8009
      %v8092 = vadd.f32 %v7957, %v8009
      %v8093 = vadd.f32 %v7958, %v8009
      %v8094 = vadd.f32 %v7959, %v8009
      %v8095 = vadd.f32 %v7960, %v8009
      %v8096 = vadd.f32 %v7961, %v8009
      %v8097 = vadd.f32 %v7962, %v8009
      %v8098 = vadd.f32 %v7963, %v8009
      %v8099 = vadd.f32 %v7964, %v8009
      %v8100 = vadd.f32 %v7965, %v8009
      %v8101 = vadd.f32 %v7966, %v8009
      %v8102 = vadd.f32 %v7967, %v8009
      %v8103 = vadd.f32 %v7968, %v8009
      %v8104 = vadd.f32 %v7969, %v8009
      %v8105 = vadd.f32 %v7970, %v8009
      %v8106 = vadd.f32 %v7971, %v8009
      %v8107 = vadd.f32 %v7972, %v8009
      %v8108 = vadd.f32 %v7973, %v8009
      %v8109 = vadd.f32 %v7974, %v8009
      %v8110 = vadd.f32 %v7975, %v8009
      %v8111 = vadd.f32 %v7976, %v8009
      %v8112 = vadd.f32 %v7977, %v8009
      %v8113 = vadd.f32 %v7978, %v8009
      %v8114 = vadd.f32 %v7979, %v8009
      %v8115 = vadd.f32 %v7980, %v8009
      %v8116 = vadd.f32 %v7981, %v8009
      %v8117 = vadd.f32 %v7982, %v8009
      %v8118 = vadd.f32 %v7983, %v8009
      %v8119 = vadd.f32 %v7984, %v8009
      %v8120 = vadd.f32 %v7985, %v8009
      %v8121 = vadd.f32 %v7986, %v8009
      %v8122 = vadd.f32 %v7987, %v8009
      %v8123 = vadd.f32 %v7988, %v8009
      %v8124 = vadd.f32 %v7989, %v8009
      %v8125 = vadd.f32 %v7990, %v8009
      %v8126 = vadd.f32 %v7991, %v8009
      %v8127 = vadd.f32 %v7992, %v8009
      %v8128 = vadd.f32 %v7993, %v8009
      %v8129 = vadd.f32 %v7994, %v8009
      %v8130 = vadd.f32 %v7995, %v8009
      %v8131 = vadd.f32 %v7996, %v8009
      %v8132 = vadd.f32 %v7997, %v8009
      %v8133 = vadd.f32 %v7998, %v8009
      %v8134 = vadd.f32 %v7999, %v8009
      %v8135 = vadd.f32 %v8000, %v8009
      %v8136 = vadd.f32 %v8001, %v8009
      %v8137 = vadd.f32 %v8002, %v8009
      %v8138 = vadd.f32 %v8003, %v8009
      %v8139 = vmax.f32 %v8011, 0.0
      %v8140 = vmax.f32 %v8012, 0.0
      %v8141 = vmax.f32 %v8013, 0.0
      %v8142 = vmax.f32 %v8014, 0.0
      %v8143 = vmax.f32 %v8015, 0.0
      %v8144 = vmax.f32 %v8016, 0.0
      %v8145 = vmax.f32 %v8017, 0.0
      %v8146 = vmax.f32 %v8018, 0.0
      %v8147 = vmax.f32 %v8019, 0.0
      %v8148 = vmax.f32 %v8020, 0.0
      %v8149 = vmax.f32 %v8021, 0.0
      %v8150 = vmax.f32 %v8022, 0.0
      %v8151 = vmax.f32 %v8023, 0.0
      %v8152 = vmax.f32 %v8024, 0.0
      %v8153 = vmax.f32 %v8025, 0.0
      %v8154 = vmax.f32 %v8026, 0.0
      %v8155 = vmax.f32 %v8027, 0.0
      %v8156 = vmax.f32 %v8028, 0.0
      %v8157 = vmax.f32 %v8029, 0.0
      %v8158 = vmax.f32 %v8030, 0.0
      %v8159 = vmax.f32 %v8031, 0.0
      %v8160 = vmax.f32 %v8032, 0.0
      %v8161 = vmax.f32 %v8033, 0.0
      %v8162 = vmax.f32 %v8034, 0.0
      %v8163 = vmax.f32 %v8035, 0.0
      %v8164 = vmax.f32 %v8036, 0.0
      %v8165 = vmax.f32 %v8037, 0.0
      %v8166 = vmax.f32 %v8038, 0.0
      %v8167 = vmax.f32 %v8039, 0.0
      %v8168 = vmax.f32 %v8040, 0.0
      %v8169 = vmax.f32 %v8041, 0.0
      %v8170 = vmax.f32 %v8042, 0.0
      %v8171 = vmax.f32 %v8043, 0.0
      %v8172 = vmax.f32 %v8044, 0.0
      %v8173 = vmax.f32 %v8045, 0.0
      %v8174 = vmax.f32 %v8046, 0.0
      %v8175 = vmax.f32 %v8047, 0.0
      %v8176 = vmax.f32 %v8048, 0.0
      %v8177 = vmax.f32 %v8049, 0.0
      %v8178 = vmax.f32 %v8050, 0.0
      %v8179 = vmax.f32 %v8051, 0.0
      %v8180 = vmax.f32 %v8052, 0.0
      %v8181 = vmax.f32 %v8053, 0.0
      %v8182 = vmax.f32 %v8054, 0.0
      %v8183 = vmax.f32 %v8055, 0.0
      %v8184 = vmax.f32 %v8056, 0.0
      %v8185 = vmax.f32 %v8057, 0.0
      %v8186 = vmax.f32 %v8058, 0.0
      %v8187 = vmax.f32 %v8059, 0.0
      %v8188 = vmax.f32 %v8060, 0.0
      %v8189 = vmax.f32 %v8061, 0.0
      %v8190 = vmax.f32 %v8062, 0.0
      %v8191 = vmax.f32 %v8063, 0.0
      %v8192 = vmax.f32 %v8064, 0.0
      %v8193 = vmax.f32 %v8065, 0.0
      %v8194 = vmax.f32 %v8066, 0.0
      %v8195 = vmax.f32 %v8067, 0.0
      %v8196 = vmax.f32 %v8068, 0.0
      %v8197 = vmax.f32 %v8069, 0.0
      %v8198 = vmax.f32 %v8070, 0.0
      %v8199 = vmax.f32 %v8071, 0.0
      %v8200 = vmax.f32 %v8072, 0.0
      %v8201 = vmax.f32 %v8073, 0.0
      %v8202 = vmax.f32 %v8074, 0.0
      %v8203 = vmax.f32 %v8075, 0.0
      %v8204 = vmax.f32 %v8076, 0.0
      %v8205 = vmax.f32 %v8077, 0.0
      %v8206 = vmax.f32 %v8078, 0.0
      %v8207 = vmax.f32 %v8079, 0.0
      %v8208 = vmax.f32 %v8080, 0.0
      %v8209 = vmax.f32 %v8081, 0.0
      %v8210 = vmax.f32 %v8082, 0.0
      %v8211 = vmax.f32 %v8083, 0.0
      %v8212 = vmax.f32 %v8084, 0.0
      %v8213 = vmax.f32 %v8085, 0.0
      %v8214 = vmax.f32 %v8086, 0.0
      %v8215 = vmax.f32 %v8087, 0.0
      %v8216 = vmax.f32 %v8088, 0.0
      %v8217 = vmax.f32 %v8089, 0.0
      %v8218 = vmax.f32 %v8090, 0.0
      %v8219 = vmax.f32 %v8091, 0.0
      %v8220 = vmax.f32 %v8092, 0.0
      %v8221 = vmax.f32 %v8093, 0.0
      %v8222 = vmax.f32 %v8094, 0.0
      %v8223 = vmax.f32 %v8095, 0.0
      %v8224 = vmax.f32 %v8096, 0.0
      %v8225 = vmax.f32 %v8097, 0.0
      %v8226 = vmax.f32 %v8098, 0.0
      %v8227 = vmax.f32 %v8099, 0.0
      %v8228 = vmax.f32 %v8100, 0.0
      %v8229 = vmax.f32 %v8101, 0.0
      %v8230 = vmax.f32 %v8102, 0.0
      %v8231 = vmax.f32 %v8103, 0.0
      %v8232 = vmax.f32 %v8104, 0.0
      %v8233 = vmax.f32 %v8105, 0.0
      %v8234 = vmax.f32 %v8106, 0.0
      %v8235 = vmax.f32 %v8107, 0.0
      %v8236 = vmax.f32 %v8108, 0.0
      %v8237 = vmax.f32 %v8109, 0.0
      %v8238 = vmax.f32 %v8110, 0.0
      %v8239 = vmax.f32 %v8111, 0.0
      %v8240 = vmax.f32 %v8112, 0.0
      %v8241 = vmax.f32 %v8113, 0.0
      %v8242 = vmax.f32 %v8114, 0.0
      %v8243 = vmax.f32 %v8115, 0.0
      %v8244 = vmax.f32 %v8116, 0.0
      %v8245 = vmax.f32 %v8117, 0.0
      %v8246 = vmax.f32 %v8118, 0.0
      %v8247 = vmax.f32 %v8119, 0.0
      %v8248 = vmax.f32 %v8120, 0.0
      %v8249 = vmax.f32 %v8121, 0.0
      %v8250 = vmax.f32 %v8122, 0.0
      %v8251 = vmax.f32 %v8123, 0.0
      %v8252 = vmax.f32 %v8124, 0.0
      %v8253 = vmax.f32 %v8125, 0.0
      %v8254 = vmax.f32 %v8126, 0.0
      %v8255 = vmax.f32 %v8127, 0.0
      %v8256 = vmax.f32 %v8128, 0.0
      %v8257 = vmax.f32 %v8129, 0.0
      %v8258 = vmax.f32 %v8130, 0.0
      %v8259 = vmax.f32 %v8131, 0.0
      %v8260 = vmax.f32 %v8132, 0.0
      %v8261 = vmax.f32 %v8133, 0.0
      %v8262 = vmax.f32 %v8134, 0.0
      %v8263 = vmax.f32 %v8135, 0.0
      %v8264 = vmax.f32 %v8136, 0.0
      %v8265 = vmax.f32 %v8137, 0.0
      %v8266 = vmax.f32 %v8138, 0.0
      %v8267 = vpack.c.bf16 %v8140, %v8139
      %v8268 = vpack.c.bf16 %v8142, %v8141
      %v8269 = vpack.c.bf16 %v8144, %v8143
      %v8270 = vpack.c.bf16 %v8146, %v8145
      %v8271 = vpack.c.bf16 %v8148, %v8147
      %v8272 = vpack.c.bf16 %v8150, %v8149
      %v8273 = vpack.c.bf16 %v8152, %v8151
      %v8274 = vpack.c.bf16 %v8154, %v8153
      %v8275 = vpack.c.bf16 %v8156, %v8155
      %v8276 = vpack.c.bf16 %v8158, %v8157
      %v8277 = vpack.c.bf16 %v8160, %v8159
      %v8278 = vpack.c.bf16 %v8162, %v8161
      %v8279 = vpack.c.bf16 %v8164, %v8163
      %v8280 = vpack.c.bf16 %v8166, %v8165
      %v8281 = vpack.c.bf16 %v8168, %v8167
      %v8282 = vpack.c.bf16 %v8170, %v8169
      %v8283 = vpack.c.bf16 %v8172, %v8171
      %v8284 = vpack.c.bf16 %v8174, %v8173
      %v8285 = vpack.c.bf16 %v8176, %v8175
      %v8286 = vpack.c.bf16 %v8178, %v8177
      %v8287 = vpack.c.bf16 %v8180, %v8179
      %v8288 = vpack.c.bf16 %v8182, %v8181
      %v8289 = vpack.c.bf16 %v8184, %v8183
      %v8290 = vpack.c.bf16 %v8186, %v8185
      %v8291 = vpack.c.bf16 %v8188, %v8187
      %v8292 = vpack.c.bf16 %v8190, %v8189
      %v8293 = vpack.c.bf16 %v8192, %v8191
      %v8294 = vpack.c.bf16 %v8194, %v8193
      %v8295 = vpack.c.bf16 %v8196, %v8195
      %v8296 = vpack.c.bf16 %v8198, %v8197
      %v8297 = vpack.c.bf16 %v8200, %v8199
      %v8298 = vpack.c.bf16 %v8202, %v8201
      %v8299 = vpack.c.bf16 %v8204, %v8203
      %v8300 = vpack.c.bf16 %v8206, %v8205
      %v8301 = vpack.c.bf16 %v8208, %v8207
      %v8302 = vpack.c.bf16 %v8210, %v8209
      %v8303 = vpack.c.bf16 %v8212, %v8211
      %v8304 = vpack.c.bf16 %v8214, %v8213
      %v8305 = vpack.c.bf16 %v8216, %v8215
      %v8306 = vpack.c.bf16 %v8218, %v8217
      %v8307 = vpack.c.bf16 %v8220, %v8219
      %v8308 = vpack.c.bf16 %v8222, %v8221
      %v8309 = vpack.c.bf16 %v8224, %v8223
      %v8310 = vpack.c.bf16 %v8226, %v8225
      %v8311 = vpack.c.bf16 %v8228, %v8227
      %v8312 = vpack.c.bf16 %v8230, %v8229
      %v8313 = vpack.c.bf16 %v8232, %v8231
      %v8314 = vpack.c.bf16 %v8234, %v8233
      %v8315 = vpack.c.bf16 %v8236, %v8235
      %v8316 = vpack.c.bf16 %v8238, %v8237
      %v8317 = vpack.c.bf16 %v8240, %v8239
      %v8318 = vpack.c.bf16 %v8242, %v8241
      %v8319 = vpack.c.bf16 %v8244, %v8243
      %v8320 = vpack.c.bf16 %v8246, %v8245
      %v8321 = vpack.c.bf16 %v8248, %v8247
      %v8322 = vpack.c.bf16 %v8250, %v8249
      %v8323 = vpack.c.bf16 %v8252, %v8251
      %v8324 = vpack.c.bf16 %v8254, %v8253
      %v8325 = vpack.c.bf16 %v8256, %v8255
      %v8326 = vpack.c.bf16 %v8258, %v8257
      %v8327 = vpack.c.bf16 %v8260, %v8259
      %v8328 = vpack.c.bf16 %v8262, %v8261
      %v8329 = vpack.c.bf16 %v8264, %v8263
      %v8330 = vpack.c.bf16 %v8266, %v8265
      %v8331 = vld [vmem:[%s3] sm:$0xf]
      %v8332 = vld [vmem:[%s3 + $0x4] sm:$0xf]
      %v8333 = vld [vmem:[%s3 + $0x8] sm:$0xf]
      %v8334 = vld [vmem:[%s3 + $0xc] sm:$0xf]
      %v8335 = vld [vmem:[%s3 + $0x10] sm:$0xf]
      %v8336 = vld [vmem:[%s3 + $0x14] sm:$0xf]
      %v8337 = vld [vmem:[%s3 + $0x18] sm:$0xf]
      %v8338 = vld [vmem:[%s3 + $0x1c] sm:$0xf]
      %v8339 = vld [vmem:[%s3 + $0x20] sm:$0xf]
      %v8340 = vld [vmem:[%s3 + $0x24] sm:$0xf]
      %v8341 = vld [vmem:[%s3 + $0x28] sm:$0xf]
      %v8342 = vld [vmem:[%s3 + $0x2c] sm:$0xf]
      %v8343 = vld [vmem:[%s3 + $0x30] sm:$0xf]
      %v8344 = vld [vmem:[%s3 + $0x34] sm:$0xf]
      %v8345 = vld [vmem:[%s3 + $0x38] sm:$0xf]
      %v8346 = vld [vmem:[%s3 + $0x3c] sm:$0xf]
      %v8347 = vld [vmem:[%s4] sm:$0x1]
      %v8349 = vlaneseq
      %v8350 = vshrl.u32 %v8349, 7
      %v8351 = vsub.s32 0, %v8350
      %v8352 = vrot.slane %v8347, %v8351
      %v8370 = vunpack.c.l.b16 %v8331
      %v8371 = vunpack.c.l.b16 %v8332
      %v8372 = vunpack.c.l.b16 %v8333
      %v8373 = vunpack.c.l.b16 %v8334
      %v8374 = vunpack.c.l.b16 %v8335
      %v8375 = vunpack.c.l.b16 %v8336
      %v8376 = vunpack.c.l.b16 %v8337
      %v8377 = vunpack.c.l.b16 %v8338
      %v8378 = vunpack.c.l.b16 %v8339
      %v8379 = vunpack.c.l.b16 %v8340
      %v8380 = vunpack.c.l.b16 %v8341
      %v8381 = vunpack.c.l.b16 %v8342
      %v8382 = vunpack.c.l.b16 %v8343
      %v8383 = vunpack.c.l.b16 %v8344
      %v8384 = vunpack.c.l.b16 %v8345
      %v8385 = vunpack.c.l.b16 %v8346
      %v8386 = vpack.c.b16 %v8371, %v8370
      %v8387 = vpack.c.b16 %v8373, %v8372
      %v8388 = vpack.c.b16 %v8375, %v8374
      %v8389 = vpack.c.b16 %v8377, %v8376
      %v8390 = vpack.c.b16 %v8379, %v8378
      %v8391 = vpack.c.b16 %v8381, %v8380
      %v8392 = vpack.c.b16 %v8383, %v8382
      %v8393 = vpack.c.b16 %v8385, %v8384
      %8402 = vmatprep.subr.bf16.mxu0 0
      %8403 = vmatpush1.bf16.msra.mxu0 %v8386
      %8404 = vmatprep.subr.bf16.mxu0 0
      %8405 = vmatpush1.bf16.msra.mxu0 %v8387
      %8406 = vmatprep.subr.bf16.mxu0 0
      %8407 = vmatpush1.bf16.msra.mxu0 %v8388
      %8408 = vmatprep.subr.bf16.mxu0 0
      %8409 = vmatpush1.bf16.msra.mxu0 %v8389
      %8410 = vmatprep.subr.bf16.mxu0 0
      %8411 = vmatpush1.bf16.msra.mxu0 %v8390
      %8412 = vmatprep.subr.bf16.mxu0 0
      %8413 = vmatpush1.bf16.msra.mxu0 %v8391
      %8414 = vmatprep.subr.bf16.mxu0 0
      %8415 = vmatpush1.bf16.msra.mxu0 %v8392
      %8416 = vmatprep.subr.bf16.mxu0 0
      %8417 = vmatpush1.bf16.msra.mxu0 %v8393
      %8418 = vmatprep.subr.bf16.mxu0 0
      %8419 = vmatpush1.bf16.msra.mxu0 0
      %8420 = vmatprep.subr.bf16.mxu0 0
      %8421 = vmatpush1.bf16.msra.mxu0 0
      %8422 = vmatprep.subr.bf16.mxu0 0
      %8423 = vmatpush1.bf16.msra.mxu0 0
      %8424 = vmatprep.subr.bf16.mxu0 0
      %8425 = vmatpush1.bf16.msra.mxu0 0
      %8426 = vmatprep.subr.bf16.mxu0 0
      %8427 = vmatpush1.bf16.msra.mxu0 0
      %8428 = vmatprep.subr.bf16.mxu0 0
      %8429 = vmatpush1.bf16.msra.mxu0 0
      %8430 = vmatprep.subr.bf16.mxu0 0
      %8431 = vmatpush1.bf16.msra.mxu0 0
      %8432 = vmatprep.subr.bf16.mxu0 0
      %8433 = vmatpush1.bf16.msra.mxu0 0
      %8434 = vmatprep.mubr.bf16.mxu0 0
      %8435 = vmatmul.mubr.bf16.gmra.mrb[0].mxu0 %v8267
      %v8436 = vpop.f32.mrb[0].mxu0
      %v8437 = vadd.f32 %v8352, %v8436
      %v8438 = vpop.f32.mrb[0].mxu0
      %v8439 = vpop.f32.mrb[0].mxu0
      %v8440 = vadd.f32 %v8352, %v8439
      %v8441 = vpop.f32.mrb[0].mxu0
      %8442 = vmatprep.mubr.bf16.mxu0 0
      %8443 = vmatmul.mubr.bf16.gmra.mrb[0].mxu0 %v8268
      %v8444 = vpop.f32.mrb[0].mxu0
      %v8445 = vadd.f32 %v8352, %v8444
      %v8446 = vpop.f32.mrb[0].mxu0
      %v8447 = vpop.f32.mrb[0].mxu0
      %v8448 = vadd.f32 %v8352, %v8447
      %v8449 = vpop.f32.mrb[0].mxu0
      %8450 = vmatprep.mubr.bf16.mxu0 0
      %8451 = vmatmul.mubr.bf16.gmra.mrb[0].mxu0 %v8269
      %v8452 = vpop.f32.mrb[0].mxu0
      %v8453 = vadd.f32 %v8352, %v8452
      %v8454 = vpop.f32.mrb[0].mxu0
      %v8455 = vpop.f32.mrb[0].mxu0
      %v8456 = vadd.f32 %v8352, %v8455
      %v8457 = vpop.f32.mrb[0].mxu0
      %8458 = vmatprep.mubr.bf16.mxu0 0
      %8459 = vmatmul.mubr.bf16.gmra.mrb[0].mxu0 %v8270
      %v8460 = vpop.f32.mrb[0].mxu0
      %v8461 = vadd.f32 %v8352, %v8460
      %v8462 = vpop.f32.mrb[0].mxu0
      %v8463 = vpop.f32.mrb[0].mxu0
      %v8464 = vadd.f32 %v8352, %v8463
      %v8465 = vpop.f32.mrb[0].mxu0
      %8466 = vmatprep.mubr.bf16.mxu0 0
      %8467 = vmatmul.mubr.bf16.gmra.mrb[0].mxu0 %v8271
      %v8468 = vpop.f32.mrb[0].mxu0
      %v8469 = vadd.f32 %v8352, %v8468
      %v8470 = vpop.f32.mrb[0].mxu0
      %v8471 = vpop.f32.mrb[0].mxu0
      %v8472 = vadd.f32 %v8352, %v8471
      %v8473 = vpop.f32.mrb[0].mxu0
      %8474 = vmatprep.mubr.bf16.mxu0 0
      %8475 = vmatmul.mubr.bf16.gmra.mrb[0].mxu0 %v8272
      %v8476 = vpop.f32.mrb[0].mxu0
      %v8477 = vadd.f32 %v8352, %v8476
      %v8478 = vpop.f32.mrb[0].mxu0
      %v8479 = vpop.f32.mrb[0].mxu0
      %v8480 = vadd.f32 %v8352, %v8479
      %v8481 = vpop.f32.mrb[0].mxu0
      %8482 = vmatprep.mubr.bf16.mxu0 0
      %8483 = vmatmul.mubr.bf16.gmra.mrb[0].mxu0 %v8273
      %v8484 = vpop.f32.mrb[0].mxu0
      %v8485 = vadd.f32 %v8352, %v8484
      %v8486 = vpop.f32.mrb[0].mxu0
      %v8487 = vpop.f32.mrb[0].mxu0
      %v8488 = vadd.f32 %v8352, %v8487
      %v8489 = vpop.f32.mrb[0].mxu0
      %8490 = vmatprep.mubr.bf16.mxu0 0
      %8491 = vmatmul.mubr.bf16.gmra.mrb[0].mxu0 %v8274
      %v8492 = vpop.f32.mrb[0].mxu0
      %v8493 = vadd.f32 %v8352, %v8492
      %v8494 = vpop.f32.mrb[0].mxu0
      %v8495 = vpop.f32.mrb[0].mxu0
      %v8496 = vadd.f32 %v8352, %v8495
      %v8497 = vpop.f32.mrb[0].mxu0
      %8498 = vmatprep.mubr.bf16.mxu0 0
      %8499 = vmatmul.mubr.bf16.gmra.mrb[0].mxu0 %v8275
      %v8500 = vpop.f32.mrb[0].mxu0
      %v8501 = vadd.f32 %v8352, %v8500
      %v8502 = vpop.f32.mrb[0].mxu0
      %v8503 = vpop.f32.mrb[0].mxu0
      %v8504 = vadd.f32 %v8352, %v8503
      %v8505 = vpop.f32.mrb[0].mxu0
      %8506 = vmatprep.mubr.bf16.mxu0 0
      %8507 = vmatmul.mubr.bf16.gmra.mrb[0].mxu0 %v8276
      %v8508 = vpop.f32.mrb[0].mxu0
      %v8509 = vadd.f32 %v8352, %v8508
      %v8510 = vpop.f32.mrb[0].mxu0
      %v8511 = vpop.f32.mrb[0].mxu0
      %v8512 = vadd.f32 %v8352, %v8511
      %v8513 = vpop.f32.mrb[0].mxu0
      %8514 = vmatprep.mubr.bf16.mxu0 0
      %8515 = vmatmul.mubr.bf16.gmra.mrb[0].mxu0 %v8277
      %v8516 = vpop.f32.mrb[0].mxu0
      %v8517 = vadd.f32 %v8352, %v8516
      %v8518 = vpop.f32.mrb[0].mxu0
      %v8519 = vpop.f32.mrb[0].mxu0
      %v8520 = vadd.f32 %v8352, %v8519
      %v8521 = vpop.f32.mrb[0].mxu0
      %8522 = vmatprep.mubr.bf16.mxu0 0
      %8523 = vmatmul.mubr.bf16.gmra.mrb[0].mxu0 %v8278
      %v8524 = vpop.f32.mrb[0].mxu0
      %v8525 = vadd.f32 %v8352, %v8524
      %v8526 = vpop.f32.mrb[0].mxu0
      %v8527 = vpop.f32.mrb[0].mxu0
      %v8528 = vadd.f32 %v8352, %v8527
      %v8529 = vpop.f32.mrb[0].mxu0
      %8530 = vmatprep.mubr.bf16.mxu0 0
      %8531 = vmatmul.mubr.bf16.gmra.mrb[0].mxu0 %v8279
      %v8532 = vpop.f32.mrb[0].mxu0
      %v8533 = vadd.f32 %v8352, %v8532
      %v8534 = vpop.f32.mrb[0].mxu0
      %v8535 = vpop.f32.mrb[0].mxu0
      %v8536 = vadd.f32 %v8352, %v8535
      %v8537 = vpop.f32.mrb[0].mxu0
      %8538 = vmatprep.mubr.bf16.mxu0 0
      %8539 = vmatmul.mubr.bf16.gmra.mrb[0].mxu0 %v8280
      %v8540 = vpop.f32.mrb[0].mxu0
      %v8541 = vadd.f32 %v8352, %v8540
      %v8542 = vpop.f32.mrb[0].mxu0
      %v8543 = vpop.f32.mrb[0].mxu0
      %v8544 = vadd.f32 %v8352, %v8543
      %v8545 = vpop.f32.mrb[0].mxu0
      %8546 = vmatprep.mubr.bf16.mxu0 0
      %8547 = vmatmul.mubr.bf16.gmra.mrb[0].mxu0 %v8281
      %v8548 = vpop.f32.mrb[0].mxu0
      %v8549 = vadd.f32 %v8352, %v8548
      %v8550 = vpop.f32.mrb[0].mxu0
      %v8551 = vpop.f32.mrb[0].mxu0
      %v8552 = vadd.f32 %v8352, %v8551
      %v8553 = vpop.f32.mrb[0].mxu0
      %8554 = vmatprep.mubr.bf16.mxu0 0
      %8555 = vmatmul.mubr.bf16.gmra.mrb[0].mxu0 %v8282
      %v8556 = vpop.f32.mrb[0].mxu0
      %v8557 = vadd.f32 %v8352, %v8556
      %v8558 = vpop.f32.mrb[0].mxu0
      %v8559 = vpop.f32.mrb[0].mxu0
      %v8560 = vadd.f32 %v8352, %v8559
      %v8561 = vpop.f32.mrb[0].mxu0
      %8562 = vmatprep.mubr.bf16.mxu0 0
      %8563 = vmatmul.mubr.bf16.gmra.mrb[0].mxu0 %v8283
      %v8564 = vpop.f32.mrb[0].mxu0
      %v8565 = vadd.f32 %v8352, %v8564
      %v8566 = vpop.f32.mrb[0].mxu0
      %v8567 = vpop.f32.mrb[0].mxu0
      %v8568 = vadd.f32 %v8352, %v8567
      %v8569 = vpop.f32.mrb[0].mxu0
      %8570 = vmatprep.mubr.bf16.mxu0 0
      %8571 = vmatmul.mubr.bf16.gmra.mrb[0].mxu0 %v8284
      %v8572 = vpop.f32.mrb[0].mxu0
      %v8573 = vadd.f32 %v8352, %v8572
      %v8574 = vpop.f32.mrb[0].mxu0
      %v8575 = vpop.f32.mrb[0].mxu0
      %v8576 = vadd.f32 %v8352, %v8575
      %v8577 = vpop.f32.mrb[0].mxu0
      %8578 = vmatprep.mubr.bf16.mxu0 0
      %8579 = vmatmul.mubr.bf16.gmra.mrb[0].mxu0 %v8285
      %v8580 = vpop.f32.mrb[0].mxu0
      %v8581 = vadd.f32 %v8352, %v8580
      %v8582 = vpop.f32.mrb[0].mxu0
      %v8583 = vpop.f32.mrb[0].mxu0
      %v8584 = vadd.f32 %v8352, %v8583
      %v8585 = vpop.f32.mrb[0].mxu0
      %8586 = vmatprep.mubr.bf16.mxu0 0
      %8587 = vmatmul.mubr.bf16.gmra.mrb[0].mxu0 %v8286
      %v8588 = vpop.f32.mrb[0].mxu0
      %v8589 = vadd.f32 %v8352, %v8588
      %v8590 = vpop.f32.mrb[0].mxu0
      %v8591 = vpop.f32.mrb[0].mxu0
      %v8592 = vadd.f32 %v8352, %v8591
      %v8593 = vpop.f32.mrb[0].mxu0
      %8594 = vmatprep.mubr.bf16.mxu0 0
      %8595 = vmatmul.mubr.bf16.gmra.mrb[0].mxu0 %v8287
      %v8596 = vpop.f32.mrb[0].mxu0
      %v8597 = vadd.f32 %v8352, %v8596
      %v8598 = vpop.f32.mrb[0].mxu0
      %v8599 = vpop.f32.mrb[0].mxu0
      %v8600 = vadd.f32 %v8352, %v8599
      %v8601 = vpop.f32.mrb[0].mxu0
      %8602 = vmatprep.mubr.bf16.mxu0 0
      %8603 = vmatmul.mubr.bf16.gmra.mrb[0].mxu0 %v8288
      %v8604 = vpop.f32.mrb[0].mxu0
      %v8605 = vadd.f32 %v8352, %v8604
      %v8606 = vpop.f32.mrb[0].mxu0
      %v8607 = vpop.f32.mrb[0].mxu0
      %v8608 = vadd.f32 %v8352, %v8607
      %v8609 = vpop.f32.mrb[0].mxu0
      %8610 = vmatprep.mubr.bf16.mxu0 0
      %8611 = vmatmul.mubr.bf16.gmra.mrb[0].mxu0 %v8289
      %v8612 = vpop.f32.mrb[0].mxu0
      %v8613 = vadd.f32 %v8352, %v8612
      %v8614 = vpop.f32.mrb[0].mxu0
      %v8615 = vpop.f32.mrb[0].mxu0
      %v8616 = vadd.f32 %v8352, %v8615
      %v8617 = vpop.f32.mrb[0].mxu0
      %8618 = vmatprep.mubr.bf16.mxu0 0
      %8619 = vmatmul.mubr.bf16.gmra.mrb[0].mxu0 %v8290
      %v8620 = vpop.f32.mrb[0].mxu0
      %v8621 = vadd.f32 %v8352, %v8620
      %v8622 = vpop.f32.mrb[0].mxu0
      %v8623 = vpop.f32.mrb[0].mxu0
      %v8624 = vadd.f32 %v8352, %v8623
      %v8625 = vpop.f32.mrb[0].mxu0
      %8626 = vmatprep.mubr.bf16.mxu0 0
      %8627 = vmatmul.mubr.bf16.gmra.mrb[0].mxu0 %v8291
      %v8628 = vpop.f32.mrb[0].mxu0
      %v8629 = vadd.f32 %v8352, %v8628
      %v8630 = vpop.f32.mrb[0].mxu0
      %v8631 = vpop.f32.mrb[0].mxu0
      %v8632 = vadd.f32 %v8352, %v8631
      %v8633 = vpop.f32.mrb[0].mxu0
      %8634 = vmatprep.mubr.bf16.mxu0 0
      %8635 = vmatmul.mubr.bf16.gmra.mrb[0].mxu0 %v8292
      %v8636 = vpop.f32.mrb[0].mxu0
      %v8637 = vadd.f32 %v8352, %v8636
      %v8638 = vpop.f32.mrb[0].mxu0
      %v8639 = vpop.f32.mrb[0].mxu0
      %v8640 = vadd.f32 %v8352, %v8639
      %v8641 = vpop.f32.mrb[0].mxu0
      %8642 = vmatprep.mubr.bf16.mxu0 0
      %8643 = vmatmul.mubr.bf16.gmra.mrb[0].mxu0 %v8293
      %v8644 = vpop.f32.mrb[0].mxu0
      %v8645 = vadd.f32 %v8352, %v8644
      %v8646 = vpop.f32.mrb[0].mxu0
      %v8647 = vpop.f32.mrb[0].mxu0
      %v8648 = vadd.f32 %v8352, %v8647
      %v8649 = vpop.f32.mrb[0].mxu0
      %8650 = vmatprep.mubr.bf16.mxu0 0
      %8651 = vmatmul.mubr.bf16.gmra.mrb[0].mxu0 %v8294
      %v8652 = vpop.f32.mrb[0].mxu0
      %v8653 = vadd.f32 %v8352, %v8652
      %v8654 = vpop.f32.mrb[0].mxu0
      %v8655 = vpop.f32.mrb[0].mxu0
      %v8656 = vadd.f32 %v8352, %v8655
      %v8657 = vpop.f32.mrb[0].mxu0
      %8658 = vmatprep.mubr.bf16.mxu0 0
      %8659 = vmatmul.mubr.bf16.gmra.mrb[0].mxu0 %v8295
      %v8660 = vpop.f32.mrb[0].mxu0
      %v8661 = vadd.f32 %v8352, %v8660
      %v8662 = vpop.f32.mrb[0].mxu0
      %v8663 = vpop.f32.mrb[0].mxu0
      %v8664 = vadd.f32 %v8352, %v8663
      %v8665 = vpop.f32.mrb[0].mxu0
      %8666 = vmatprep.mubr.bf16.mxu0 0
      %8667 = vmatmul.mubr.bf16.gmra.mrb[0].mxu0 %v8296
      %v8668 = vpop.f32.mrb[0].mxu0
      %v8669 = vadd.f32 %v8352, %v8668
      %v8670 = vpop.f32.mrb[0].mxu0
      %v8671 = vpop.f32.mrb[0].mxu0
      %v8672 = vadd.f32 %v8352, %v8671
      %v8673 = vpop.f32.mrb[0].mxu0
      %8674 = vmatprep.mubr.bf16.mxu0 0
      %8675 = vmatmul.mubr.bf16.gmra.mrb[0].mxu0 %v8297
      %v8676 = vpop.f32.mrb[0].mxu0
      %v8677 = vadd.f32 %v8352, %v8676
      %v8678 = vpop.f32.mrb[0].mxu0
      %v8679 = vpop.f32.mrb[0].mxu0
      %v8680 = vadd.f32 %v8352, %v8679
      %v8681 = vpop.f32.mrb[0].mxu0
      %8682 = vmatprep.mubr.bf16.mxu0 0
      %8683 = vmatmul.mubr.bf16.gmra.mrb[0].mxu0 %v8298
      %v8684 = vpop.f32.mrb[0].mxu0
      %v8685 = vadd.f32 %v8352, %v8684
      %v8686 = vpop.f32.mrb[0].mxu0
      %v8687 = vpop.f32.mrb[0].mxu0
      %v8688 = vadd.f32 %v8352, %v8687
      %v8689 = vpop.f32.mrb[0].mxu0
      %8690 = vmatprep.mubr.bf16.mxu0 0
      %8691 = vmatmul.mubr.bf16.gmra.mrb[0].mxu0 %v8299
      %v8692 = vpop.f32.mrb[0].mxu0
      %v8693 = vadd.f32 %v8352, %v8692
      %v8694 = vpop.f32.mrb[0].mxu0
      %v8695 = vpop.f32.mrb[0].mxu0
      %v8696 = vadd.f32 %v8352, %v8695
      %v8697 = vpop.f32.mrb[0].mxu0
      %8698 = vmatprep.mubr.bf16.mxu0 0
      %8699 = vmatmul.mubr.bf16.gmra.mrb[0].mxu0 %v8300
      %v8700 = vpop.f32.mrb[0].mxu0
      %v8701 = vadd.f32 %v8352, %v8700
      %v8702 = vpop.f32.mrb[0].mxu0
      %v8703 = vpop.f32.mrb[0].mxu0
      %v8704 = vadd.f32 %v8352, %v8703
      %v8705 = vpop.f32.mrb[0].mxu0
      %8706 = vmatprep.mubr.bf16.mxu0 0
      %8707 = vmatmul.mubr.bf16.gmra.mrb[0].mxu0 %v8301
      %v8708 = vpop.f32.mrb[0].mxu0
      %v8709 = vadd.f32 %v8352, %v8708
      %v8710 = vpop.f32.mrb[0].mxu0
      %v8711 = vpop.f32.mrb[0].mxu0
      %v8712 = vadd.f32 %v8352, %v8711
      %v8713 = vpop.f32.mrb[0].mxu0
      %8714 = vmatprep.mubr.bf16.mxu0 0
      %8715 = vmatmul.mubr.bf16.gmra.mrb[0].mxu0 %v8302
      %v8716 = vpop.f32.mrb[0].mxu0
      %v8717 = vadd.f32 %v8352, %v8716
      %v8718 = vpop.f32.mrb[0].mxu0
      %v8719 = vpop.f32.mrb[0].mxu0
      %v8720 = vadd.f32 %v8352, %v8719
      %v8721 = vpop.f32.mrb[0].mxu0
      %8722 = vmatprep.mubr.bf16.mxu0 0
      %8723 = vmatmul.mubr.bf16.gmra.mrb[0].mxu0 %v8303
      %v8724 = vpop.f32.mrb[0].mxu0
      %v8725 = vadd.f32 %v8352, %v8724
      %v8726 = vpop.f32.mrb[0].mxu0
      %v8727 = vpop.f32.mrb[0].mxu0
      %v8728 = vadd.f32 %v8352, %v8727
      %v8729 = vpop.f32.mrb[0].mxu0
      %8730 = vmatprep.mubr.bf16.mxu0 0
      %8731 = vmatmul.mubr.bf16.gmra.mrb[0].mxu0 %v8304
      %v8732 = vpop.f32.mrb[0].mxu0
      %v8733 = vadd.f32 %v8352, %v8732
      %v8734 = vpop.f32.mrb[0].mxu0
      %v8735 = vpop.f32.mrb[0].mxu0
      %v8736 = vadd.f32 %v8352, %v8735
      %v8737 = vpop.f32.mrb[0].mxu0
      %8738 = vmatprep.mubr.bf16.mxu0 0
      %8739 = vmatmul.mubr.bf16.gmra.mrb[0].mxu0 %v8305
      %v8740 = vpop.f32.mrb[0].mxu0
      %v8741 = vadd.f32 %v8352, %v8740
      %v8742 = vpop.f32.mrb[0].mxu0
      %v8743 = vpop.f32.mrb[0].mxu0
      %v8744 = vadd.f32 %v8352, %v8743
      %v8745 = vpop.f32.mrb[0].mxu0
      %8746 = vmatprep.mubr.bf16.mxu0 0
      %8747 = vmatmul.mubr.bf16.gmra.mrb[0].mxu0 %v8306
      %v8748 = vpop.f32.mrb[0].mxu0
      %v8749 = vadd.f32 %v8352, %v8748
      %v8750 = vpop.f32.mrb[0].mxu0
      %v8751 = vpop.f32.mrb[0].mxu0
      %v8752 = vadd.f32 %v8352, %v8751
      %v8753 = vpop.f32.mrb[0].mxu0
      %8754 = vmatprep.mubr.bf16.mxu0 0
      %8755 = vmatmul.mubr.bf16.gmra.mrb[0].mxu0 %v8307
      %v8756 = vpop.f32.mrb[0].mxu0
      %v8757 = vadd.f32 %v8352, %v8756
      %v8758 = vpop.f32.mrb[0].mxu0
      %v8759 = vpop.f32.mrb[0].mxu0
      %v8760 = vadd.f32 %v8352, %v8759
      %v8761 = vpop.f32.mrb[0].mxu0
      %8762 = vmatprep.mubr.bf16.mxu0 0
      %8763 = vmatmul.mubr.bf16.gmra.mrb[0].mxu0 %v8308
      %v8764 = vpop.f32.mrb[0].mxu0
      %v8765 = vadd.f32 %v8352, %v8764
      %v8766 = vpop.f32.mrb[0].mxu0
      %v8767 = vpop.f32.mrb[0].mxu0
      %v8768 = vadd.f32 %v8352, %v8767
      %v8769 = vpop.f32.mrb[0].mxu0
      %8770 = vmatprep.mubr.bf16.mxu0 0
      %8771 = vmatmul.mubr.bf16.gmra.mrb[0].mxu0 %v8309
      %v8772 = vpop.f32.mrb[0].mxu0
      %v8773 = vadd.f32 %v8352, %v8772
      %v8774 = vpop.f32.mrb[0].mxu0
      %v8775 = vpop.f32.mrb[0].mxu0
      %v8776 = vadd.f32 %v8352, %v8775
      %v8777 = vpop.f32.mrb[0].mxu0
      %8778 = vmatprep.mubr.bf16.mxu0 0
      %8779 = vmatmul.mubr.bf16.gmra.mrb[0].mxu0 %v8310
      %v8780 = vpop.f32.mrb[0].mxu0
      %v8781 = vadd.f32 %v8352, %v8780
      %v8782 = vpop.f32.mrb[0].mxu0
      %v8783 = vpop.f32.mrb[0].mxu0
      %v8784 = vadd.f32 %v8352, %v8783
      %v8785 = vpop.f32.mrb[0].mxu0
      %8786 = vmatprep.mubr.bf16.mxu0 0
      %8787 = vmatmul.mubr.bf16.gmra.mrb[0].mxu0 %v8311
      %v8788 = vpop.f32.mrb[0].mxu0
      %v8789 = vadd.f32 %v8352, %v8788
      %v8790 = vpop.f32.mrb[0].mxu0
      %v8791 = vpop.f32.mrb[0].mxu0
      %v8792 = vadd.f32 %v8352, %v8791
      %v8793 = vpop.f32.mrb[0].mxu0
      %8794 = vmatprep.mubr.bf16.mxu0 0
      %8795 = vmatmul.mubr.bf16.gmra.mrb[0].mxu0 %v8312
      %v8796 = vpop.f32.mrb[0].mxu0
      %v8797 = vadd.f32 %v8352, %v8796
      %v8798 = vpop.f32.mrb[0].mxu0
      %v8799 = vpop.f32.mrb[0].mxu0
      %v8800 = vadd.f32 %v8352, %v8799
      %v8801 = vpop.f32.mrb[0].mxu0
      %8802 = vmatprep.mubr.bf16.mxu0 0
      %8803 = vmatmul.mubr.bf16.gmra.mrb[0].mxu0 %v8313
      %v8804 = vpop.f32.mrb[0].mxu0
      %v8805 = vadd.f32 %v8352, %v8804
      %v8806 = vpop.f32.mrb[0].mxu0
      %v8807 = vpop.f32.mrb[0].mxu0
      %v8808 = vadd.f32 %v8352, %v8807
      %v8809 = vpop.f32.mrb[0].mxu0
      %8810 = vmatprep.mubr.bf16.mxu0 0
      %8811 = vmatmul.mubr.bf16.gmra.mrb[0].mxu0 %v8314
      %v8812 = vpop.f32.mrb[0].mxu0
      %v8813 = vadd.f32 %v8352, %v8812
      %v8814 = vpop.f32.mrb[0].mxu0
      %v8815 = vpop.f32.mrb[0].mxu0
      %v8816 = vadd.f32 %v8352, %v8815
      %v8817 = vpop.f32.mrb[0].mxu0
      %8818 = vmatprep.mubr.bf16.mxu0 0
      %8819 = vmatmul.mubr.bf16.gmra.mrb[0].mxu0 %v8315
      %v8820 = vpop.f32.mrb[0].mxu0
      %v8821 = vadd.f32 %v8352, %v8820
      %v8822 = vpop.f32.mrb[0].mxu0
      %v8823 = vpop.f32.mrb[0].mxu0
      %v8824 = vadd.f32 %v8352, %v8823
      %v8825 = vpop.f32.mrb[0].mxu0
      %8826 = vmatprep.mubr.bf16.mxu0 0
      %8827 = vmatmul.mubr.bf16.gmra.mrb[0].mxu0 %v8316
      %v8828 = vpop.f32.mrb[0].mxu0
      %v8829 = vadd.f32 %v8352, %v8828
      %v8830 = vpop.f32.mrb[0].mxu0
      %v8831 = vpop.f32.mrb[0].mxu0
      %v8832 = vadd.f32 %v8352, %v8831
      %v8833 = vpop.f32.mrb[0].mxu0
      %8834 = vmatprep.mubr.bf16.mxu0 0
      %8835 = vmatmul.mubr.bf16.gmra.mrb[0].mxu0 %v8317
      %v8836 = vpop.f32.mrb[0].mxu0
      %v8837 = vadd.f32 %v8352, %v8836
      %v8838 = vpop.f32.mrb[0].mxu0
      %v8839 = vpop.f32.mrb[0].mxu0
      %v8840 = vadd.f32 %v8352, %v8839
      %v8841 = vpop.f32.mrb[0].mxu0
      %8842 = vmatprep.mubr.bf16.mxu0 0
      %8843 = vmatmul.mubr.bf16.gmra.mrb[0].mxu0 %v8318
      %v8844 = vpop.f32.mrb[0].mxu0
      %v8845 = vadd.f32 %v8352, %v8844
      %v8846 = vpop.f32.mrb[0].mxu0
      %v8847 = vpop.f32.mrb[0].mxu0
      %v8848 = vadd.f32 %v8352, %v8847
      %v8849 = vpop.f32.mrb[0].mxu0
      %8850 = vmatprep.mubr.bf16.mxu0 0
      %8851 = vmatmul.mubr.bf16.gmra.mrb[0].mxu0 %v8319
      %v8852 = vpop.f32.mrb[0].mxu0
      %v8853 = vadd.f32 %v8352, %v8852
      %v8854 = vpop.f32.mrb[0].mxu0
      %v8855 = vpop.f32.mrb[0].mxu0
      %v8856 = vadd.f32 %v8352, %v8855
      %v8857 = vpop.f32.mrb[0].mxu0
      %8858 = vmatprep.mubr.bf16.mxu0 0
      %8859 = vmatmul.mubr.bf16.gmra.mrb[0].mxu0 %v8320
      %v8860 = vpop.f32.mrb[0].mxu0
      %v8861 = vadd.f32 %v8352, %v8860
      %v8862 = vpop.f32.mrb[0].mxu0
      %v8863 = vpop.f32.mrb[0].mxu0
      %v8864 = vadd.f32 %v8352, %v8863
      %v8865 = vpop.f32.mrb[0].mxu0
      %8866 = vmatprep.mubr.bf16.mxu0 0
      %8867 = vmatmul.mubr.bf16.gmra.mrb[0].mxu0 %v8321
      %v8868 = vpop.f32.mrb[0].mxu0
      %v8869 = vadd.f32 %v8352, %v8868
      %v8870 = vpop.f32.mrb[0].mxu0
      %v8871 = vpop.f32.mrb[0].mxu0
      %v8872 = vadd.f32 %v8352, %v8871
      %v8873 = vpop.f32.mrb[0].mxu0
      %8874 = vmatprep.mubr.bf16.mxu0 0
      %8875 = vmatmul.mubr.bf16.gmra.mrb[0].mxu0 %v8322
      %v8876 = vpop.f32.mrb[0].mxu0
      %v8877 = vadd.f32 %v8352, %v8876
      %v8878 = vpop.f32.mrb[0].mxu0
      %v8879 = vpop.f32.mrb[0].mxu0
      %v8880 = vadd.f32 %v8352, %v8879
      %v8881 = vpop.f32.mrb[0].mxu0
      %8882 = vmatprep.mubr.bf16.mxu0 0
      %8883 = vmatmul.mubr.bf16.gmra.mrb[0].mxu0 %v8323
      %v8884 = vpop.f32.mrb[0].mxu0
      %v8885 = vadd.f32 %v8352, %v8884
      %v8886 = vpop.f32.mrb[0].mxu0
      %v8887 = vpop.f32.mrb[0].mxu0
      %v8888 = vadd.f32 %v8352, %v8887
      %v8889 = vpop.f32.mrb[0].mxu0
      %8890 = vmatprep.mubr.bf16.mxu0 0
      %8891 = vmatmul.mubr.bf16.gmra.mrb[0].mxu0 %v8324
      %v8892 = vpop.f32.mrb[0].mxu0
      %v8893 = vadd.f32 %v8352, %v8892
      %v8894 = vpop.f32.mrb[0].mxu0
      %v8895 = vpop.f32.mrb[0].mxu0
      %v8896 = vadd.f32 %v8352, %v8895
      %v8897 = vpop.f32.mrb[0].mxu0
      %8898 = vmatprep.mubr.bf16.mxu0 0
      %8899 = vmatmul.mubr.bf16.gmra.mrb[0].mxu0 %v8325
      %v8900 = vpop.f32.mrb[0].mxu0
      %v8901 = vadd.f32 %v8352, %v8900
      %v8902 = vpop.f32.mrb[0].mxu0
      %v8903 = vpop.f32.mrb[0].mxu0
      %v8904 = vadd.f32 %v8352, %v8903
      %v8905 = vpop.f32.mrb[0].mxu0
      %8906 = vmatprep.mubr.bf16.mxu0 0
      %8907 = vmatmul.mubr.bf16.gmra.mrb[0].mxu0 %v8326
      %v8908 = vpop.f32.mrb[0].mxu0
      %v8909 = vadd.f32 %v8352, %v8908
      %v8910 = vpop.f32.mrb[0].mxu0
      %v8911 = vpop.f32.mrb[0].mxu0
      %v8912 = vadd.f32 %v8352, %v8911
      %v8913 = vpop.f32.mrb[0].mxu0
      %8914 = vmatprep.mubr.bf16.mxu0 0
      %8915 = vmatmul.mubr.bf16.gmra.mrb[0].mxu0 %v8327
      %v8916 = vpop.f32.mrb[0].mxu0
      %v8917 = vadd.f32 %v8352, %v8916
      %v8918 = vpop.f32.mrb[0].mxu0
      %v8919 = vpop.f32.mrb[0].mxu0
      %v8920 = vadd.f32 %v8352, %v8919
      %v8921 = vpop.f32.mrb[0].mxu0
      %8922 = vmatprep.mubr.bf16.mxu0 0
      %8923 = vmatmul.mubr.bf16.gmra.mrb[0].mxu0 %v8328
      %v8924 = vpop.f32.mrb[0].mxu0
      %v8925 = vadd.f32 %v8352, %v8924
      %v8926 = vpop.f32.mrb[0].mxu0
      %v8927 = vpop.f32.mrb[0].mxu0
      %v8928 = vadd.f32 %v8352, %v8927
      %v8929 = vpop.f32.mrb[0].mxu0
      %8930 = vmatprep.mubr.bf16.mxu0 0
      %8931 = vmatmul.mubr.bf16.gmra.mrb[0].mxu0 %v8329
      %v8932 = vpop.f32.mrb[0].mxu0
      %v8933 = vadd.f32 %v8352, %v8932
      %v8934 = vpop.f32.mrb[0].mxu0
      %v8935 = vpop.f32.mrb[0].mxu0
      %v8936 = vadd.f32 %v8352, %v8935
      %v8937 = vpop.f32.mrb[0].mxu0
      %8938 = vmatprep.mubr.bf16.mxu0 0
      %8939 = vmatmul.mubr.bf16.gmra.mrb[0].mxu0 %v8330
      %v8940 = vpop.f32.mrb[0].mxu0
      %v8941 = vadd.f32 %v8352, %v8940
      %v8942 = vpop.f32.mrb[0].mxu0
      %v8943 = vpop.f32.mrb[0].mxu0
      %v8944 = vadd.f32 %v8352, %v8943
      %v8945 = vpop.f32.mrb[0].mxu0
      %8946 = vdwg.mxu0
      %v8947 = vmax.f32 %v8437, 0.0
      %v8948 = vmax.f32 %v8440, 0.0
      %v8949 = vmax.f32 %v8445, 0.0
      %v8950 = vmax.f32 %v8448, 0.0
      %v8951 = vmax.f32 %v8453, 0.0
      %v8952 = vmax.f32 %v8456, 0.0
      %v8953 = vmax.f32 %v8461, 0.0
      %v8954 = vmax.f32 %v8464, 0.0
      %v8955 = vmax.f32 %v8469, 0.0
      %v8956 = vmax.f32 %v8472, 0.0
      %v8957 = vmax.f32 %v8477, 0.0
      %v8958 = vmax.f32 %v8480, 0.0
      %v8959 = vmax.f32 %v8485, 0.0
      %v8960 = vmax.f32 %v8488, 0.0
      %v8961 = vmax.f32 %v8493, 0.0
      %v8962 = vmax.f32 %v8496, 0.0
      %v8963 = vmax.f32 %v8501, 0.0
      %v8964 = vmax.f32 %v8504, 0.0
      %v8965 = vmax.f32 %v8509, 0.0
      %v8966 = vmax.f32 %v8512, 0.0
      %v8967 = vmax.f32 %v8517, 0.0
      %v8968 = vmax.f32 %v8520, 0.0
      %v8969 = vmax.f32 %v8525, 0.0
      %v8970 = vmax.f32 %v8528, 0.0
      %v8971 = vmax.f32 %v8533, 0.0
      %v8972 = vmax.f32 %v8536, 0.0
      %v8973 = vmax.f32 %v8541, 0.0
      %v8974 = vmax.f32 %v8544, 0.0
      %v8975 = vmax.f32 %v8549, 0.0
      %v8976 = vmax.f32 %v8552, 0.0
      %v8977 = vmax.f32 %v8557, 0.0
      %v8978 = vmax.f32 %v8560, 0.0
      %v8979 = vmax.f32 %v8565, 0.0
      %v8980 = vmax.f32 %v8568, 0.0
      %v8981 = vmax.f32 %v8573, 0.0
      %v8982 = vmax.f32 %v8576, 0.0
      %v8983 = vmax.f32 %v8581, 0.0
      %v8984 = vmax.f32 %v8584, 0.0
      %v8985 = vmax.f32 %v8589, 0.0
      %v8986 = vmax.f32 %v8592, 0.0
      %v8987 = vmax.f32 %v8597, 0.0
      %v8988 = vmax.f32 %v8600, 0.0
      %v8989 = vmax.f32 %v8605, 0.0
      %v8990 = vmax.f32 %v8608, 0.0
      %v8991 = vmax.f32 %v8613, 0.0
      %v8992 = vmax.f32 %v8616, 0.0
      %v8993 = vmax.f32 %v8621, 0.0
      %v8994 = vmax.f32 %v8624, 0.0
      %v8995 = vmax.f32 %v8629, 0.0
      %v8996 = vmax.f32 %v8632, 0.0
      %v8997 = vmax.f32 %v8637, 0.0
      %v8998 = vmax.f32 %v8640, 0.0
      %v8999 = vmax.f32 %v8645, 0.0
      %v9000 = vmax.f32 %v8648, 0.0
      %v9001 = vmax.f32 %v8653, 0.0
      %v9002 = vmax.f32 %v8656, 0.0
      %v9003 = vmax.f32 %v8661, 0.0
      %v9004 = vmax.f32 %v8664, 0.0
      %v9005 = vmax.f32 %v8669, 0.0
      %v9006 = vmax.f32 %v8672, 0.0
      %v9007 = vmax.f32 %v8677, 0.0
      %v9008 = vmax.f32 %v8680, 0.0
      %v9009 = vmax.f32 %v8685, 0.0
      %v9010 = vmax.f32 %v8688, 0.0
      %v9011 = vmax.f32 %v8693, 0.0
      %v9012 = vmax.f32 %v8696, 0.0
      %v9013 = vmax.f32 %v8701, 0.0
      %v9014 = vmax.f32 %v8704, 0.0
      %v9015 = vmax.f32 %v8709, 0.0
      %v9016 = vmax.f32 %v8712, 0.0
      %v9017 = vmax.f32 %v8717, 0.0
      %v9018 = vmax.f32 %v8720, 0.0
      %v9019 = vmax.f32 %v8725, 0.0
      %v9020 = vmax.f32 %v8728, 0.0
      %v9021 = vmax.f32 %v8733, 0.0
      %v9022 = vmax.f32 %v8736, 0.0
      %v9023 = vmax.f32 %v8741, 0.0
      %v9024 = vmax.f32 %v8744, 0.0
      %v9025 = vmax.f32 %v8749, 0.0
      %v9026 = vmax.f32 %v8752, 0.0
      %v9027 = vmax.f32 %v8757, 0.0
      %v9028 = vmax.f32 %v8760, 0.0
      %v9029 = vmax.f32 %v8765, 0.0
      %v9030 = vmax.f32 %v8768, 0.0
      %v9031 = vmax.f32 %v8773, 0.0
      %v9032 = vmax.f32 %v8776, 0.0
      %v9033 = vmax.f32 %v8781, 0.0
      %v9034 = vmax.f32 %v8784, 0.0
      %v9035 = vmax.f32 %v8789, 0.0
      %v9036 = vmax.f32 %v8792, 0.0
      %v9037 = vmax.f32 %v8797, 0.0
      %v9038 = vmax.f32 %v8800, 0.0
      %v9039 = vmax.f32 %v8805, 0.0
      %v9040 = vmax.f32 %v8808, 0.0
      %v9041 = vmax.f32 %v8813, 0.0
      %v9042 = vmax.f32 %v8816, 0.0
      %v9043 = vmax.f32 %v8821, 0.0
      %v9044 = vmax.f32 %v8824, 0.0
      %v9045 = vmax.f32 %v8829, 0.0
      %v9046 = vmax.f32 %v8832, 0.0
      %v9047 = vmax.f32 %v8837, 0.0
      %v9048 = vmax.f32 %v8840, 0.0
      %v9049 = vmax.f32 %v8845, 0.0
      %v9050 = vmax.f32 %v8848, 0.0
      %v9051 = vmax.f32 %v8853, 0.0
      %v9052 = vmax.f32 %v8856, 0.0
      %v9053 = vmax.f32 %v8861, 0.0
      %v9054 = vmax.f32 %v8864, 0.0
      %v9055 = vmax.f32 %v8869, 0.0
      %v9056 = vmax.f32 %v8872, 0.0
      %v9057 = vmax.f32 %v8877, 0.0
      %v9058 = vmax.f32 %v8880, 0.0
      %v9059 = vmax.f32 %v8885, 0.0
      %v9060 = vmax.f32 %v8888, 0.0
      %v9061 = vmax.f32 %v8893, 0.0
      %v9062 = vmax.f32 %v8896, 0.0
      %v9063 = vmax.f32 %v8901, 0.0
      %v9064 = vmax.f32 %v8904, 0.0
      %v9065 = vmax.f32 %v8909, 0.0
      %v9066 = vmax.f32 %v8912, 0.0
      %v9067 = vmax.f32 %v8917, 0.0
      %v9068 = vmax.f32 %v8920, 0.0
      %v9069 = vmax.f32 %v8925, 0.0
      %v9070 = vmax.f32 %v8928, 0.0
      %v9071 = vmax.f32 %v8933, 0.0
      %v9072 = vmax.f32 %v8936, 0.0
      %v9073 = vmax.f32 %v8941, 0.0
      %v9074 = vmax.f32 %v8944, 0.0
      %v9075 = vpack.c.bf16 %v8948, %v8947
      %v9076 = vpack.c.bf16 %v8950, %v8949
      %v9077 = vpack.c.bf16 %v8952, %v8951
      %v9078 = vpack.c.bf16 %v8954, %v8953
      %v9079 = vpack.c.bf16 %v8956, %v8955
      %v9080 = vpack.c.bf16 %v8958, %v8957
      %v9081 = vpack.c.bf16 %v8960, %v8959
      %v9082 = vpack.c.bf16 %v8962, %v8961
      %v9083 = vpack.c.bf16 %v8964, %v8963
      %v9084 = vpack.c.bf16 %v8966, %v8965
      %v9085 = vpack.c.bf16 %v8968, %v8967
      %v9086 = vpack.c.bf16 %v8970, %v8969
      %v9087 = vpack.c.bf16 %v8972, %v8971
      %v9088 = vpack.c.bf16 %v8974, %v8973
      %v9089 = vpack.c.bf16 %v8976, %v8975
      %v9090 = vpack.c.bf16 %v8978, %v8977
      %v9091 = vpack.c.bf16 %v8980, %v8979
      %v9092 = vpack.c.bf16 %v8982, %v8981
      %v9093 = vpack.c.bf16 %v8984, %v8983
      %v9094 = vpack.c.bf16 %v8986, %v8985
      %v9095 = vpack.c.bf16 %v8988, %v8987
      %v9096 = vpack.c.bf16 %v8990, %v8989
      %v9097 = vpack.c.bf16 %v8992, %v8991
      %v9098 = vpack.c.bf16 %v8994, %v8993
      %v9099 = vpack.c.bf16 %v8996, %v8995
      %v9100 = vpack.c.bf16 %v8998, %v8997
      %v9101 = vpack.c.bf16 %v9000, %v8999
      %v9102 = vpack.c.bf16 %v9002, %v9001
      %v9103 = vpack.c.bf16 %v9004, %v9003
      %v9104 = vpack.c.bf16 %v9006, %v9005
      %v9105 = vpack.c.bf16 %v9008, %v9007
      %v9106 = vpack.c.bf16 %v9010, %v9009
      %v9107 = vpack.c.bf16 %v9012, %v9011
      %v9108 = vpack.c.bf16 %v9014, %v9013
      %v9109 = vpack.c.bf16 %v9016, %v9015
      %v9110 = vpack.c.bf16 %v9018, %v9017
      %v9111 = vpack.c.bf16 %v9020, %v9019
      %v9112 = vpack.c.bf16 %v9022, %v9021
      %v9113 = vpack.c.bf16 %v9024, %v9023
      %v9114 = vpack.c.bf16 %v9026, %v9025
      %v9115 = vpack.c.bf16 %v9028, %v9027
      %v9116 = vpack.c.bf16 %v9030, %v9029
      %v9117 = vpack.c.bf16 %v9032, %v9031
      %v9118 = vpack.c.bf16 %v9034, %v9033
      %v9119 = vpack.c.bf16 %v9036, %v9035
      %v9120 = vpack.c.bf16 %v9038, %v9037
      %v9121 = vpack.c.bf16 %v9040, %v9039
      %v9122 = vpack.c.bf16 %v9042, %v9041
      %v9123 = vpack.c.bf16 %v9044, %v9043
      %v9124 = vpack.c.bf16 %v9046, %v9045
      %v9125 = vpack.c.bf16 %v9048, %v9047
      %v9126 = vpack.c.bf16 %v9050, %v9049
      %v9127 = vpack.c.bf16 %v9052, %v9051
      %v9128 = vpack.c.bf16 %v9054, %v9053
      %v9129 = vpack.c.bf16 %v9056, %v9055
      %v9130 = vpack.c.bf16 %v9058, %v9057
      %v9131 = vpack.c.bf16 %v9060, %v9059
      %v9132 = vpack.c.bf16 %v9062, %v9061
      %v9133 = vpack.c.bf16 %v9064, %v9063
      %v9134 = vpack.c.bf16 %v9066, %v9065
      %v9135 = vpack.c.bf16 %v9068, %v9067
      %v9136 = vpack.c.bf16 %v9070, %v9069
      %v9137 = vpack.c.bf16 %v9072, %v9071
      %v9138 = vpack.c.bf16 %v9074, %v9073
      %v9139 = vld [vmem:[%s5] sm:$0xf]
      %v9140 = vld [vmem:[%s5 + $0x4] sm:$0xf]
      %v9141 = vld [vmem:[%s5 + $0x8] sm:$0xf]
      %v9142 = vld [vmem:[%s5 + $0xc] sm:$0xf]
      %v9143 = vld [vmem:[%s5 + $0x10] sm:$0xf]
      %v9144 = vld [vmem:[%s5 + $0x14] sm:$0xf]
      %v9145 = vld [vmem:[%s5 + $0x18] sm:$0xf]
      %v9146 = vld [vmem:[%s5 + $0x1c] sm:$0xf]
      %v9147 = vld [vmem:[%s5 + $0x20] sm:$0xf]
      %v9148 = vld [vmem:[%s5 + $0x24] sm:$0xf]
      %v9149 = vld [vmem:[%s5 + $0x28] sm:$0xf]
      %v9150 = vld [vmem:[%s5 + $0x2c] sm:$0xf]
      %v9151 = vld [vmem:[%s5 + $0x30] sm:$0xf]
      %v9152 = vld [vmem:[%s5 + $0x34] sm:$0xf]
      %v9153 = vld [vmem:[%s5 + $0x38] sm:$0xf]
      %v9154 = vld [vmem:[%s5 + $0x3c] sm:$0xf]
      %v9171 = vunpack.c.l.b16 %v9139
      %v9172 = vunpack.c.l.b16 %v9140
      %v9173 = vunpack.c.l.b16 %v9141
      %v9174 = vunpack.c.l.b16 %v9142
      %v9175 = vunpack.c.l.b16 %v9143
      %v9176 = vunpack.c.l.b16 %v9144
      %v9177 = vunpack.c.l.b16 %v9145
      %v9178 = vunpack.c.l.b16 %v9146
      %v9179 = vunpack.c.l.b16 %v9147
      %v9180 = vunpack.c.l.b16 %v9148
      %v9181 = vunpack.c.l.b16 %v9149
      %v9182 = vunpack.c.l.b16 %v9150
      %v9183 = vunpack.c.l.b16 %v9151
      %v9184 = vunpack.c.l.b16 %v9152
      %v9185 = vunpack.c.l.b16 %v9153
      %v9186 = vunpack.c.l.b16 %v9154
      %v9187 = vpack.c.b16 %v9172, %v9171
      %v9188 = vpack.c.b16 %v9174, %v9173
      %v9189 = vpack.c.b16 %v9176, %v9175
      %v9190 = vpack.c.b16 %v9178, %v9177
      %v9191 = vpack.c.b16 %v9180, %v9179
      %v9192 = vpack.c.b16 %v9182, %v9181
      %v9193 = vpack.c.b16 %v9184, %v9183
      %v9194 = vpack.c.b16 %v9186, %v9185
      %9203 = vmatprep.subr.bf16.mxu0 0
      %9204 = vmatpush1.bf16.msra.mxu0 %v9187
      %9205 = vmatprep.subr.bf16.mxu0 0
      %9206 = vmatpush1.bf16.msra.mxu0 %v9188
      %9207 = vmatprep.subr.bf16.mxu0 0
      %9208 = vmatpush1.bf16.msra.mxu0 %v9189
      %9209 = vmatprep.subr.bf16.mxu0 0
      %9210 = vmatpush1.bf16.msra.mxu0 %v9190
      %9211 = vmatprep.subr.bf16.mxu0 0
      %9212 = vmatpush1.bf16.msra.mxu0 %v9191
      %9213 = vmatprep.subr.bf16.mxu0 0
      %9214 = vmatpush1.bf16.msra.mxu0 %v9192
      %9215 = vmatprep.subr.bf16.mxu0 0
      %9216 = vmatpush1.bf16.msra.mxu0 %v9193
      %9217 = vmatprep.subr.bf16.mxu0 0
      %9218 = vmatpush1.bf16.msra.mxu0 %v9194
      %9219 = vmatprep.subr.bf16.mxu0 0
      %9220 = vmatpush1.bf16.msra.mxu0 0
      %9221 = vmatprep.subr.bf16.mxu0 0
      %9222 = vmatpush1.bf16.msra.mxu0 0
      %9223 = vmatprep.subr.bf16.mxu0 0
      %9224 = vmatpush1.bf16.msra.mxu0 0
      %9225 = vmatprep.subr.bf16.mxu0 0
      %9226 = vmatpush1.bf16.msra.mxu0 0
      %9227 = vmatprep.subr.bf16.mxu0 0
      %9228 = vmatpush1.bf16.msra.mxu0 0
      %9229 = vmatprep.subr.bf16.mxu0 0
      %9230 = vmatpush1.bf16.msra.mxu0 0
      %9231 = vmatprep.subr.bf16.mxu0 0
      %9232 = vmatpush1.bf16.msra.mxu0 0
      %9233 = vmatprep.subr.bf16.mxu0 0
      %9234 = vmatpush1.bf16.msra.mxu0 0
      %9235 = vmatprep.mubr.bf16.mxu0 0
      %9236 = vmatmul.mubr.bf16.gmra.mrb[0].mxu0 %v9075
      %v9237 = vpop.f32.mrb[0].mxu0
      %v9238 = vadd.f32 0.0, %v9237
      %v9239 = vpop.f32.mrb[0].mxu0
      %v9240 = vpop.f32.mrb[0].mxu0
      %v9241 = vadd.f32 0.0, %v9240
      %v9242 = vpop.f32.mrb[0].mxu0
      %9243 = vmatprep.mubr.bf16.mxu0 0
      %9244 = vmatmul.mubr.bf16.gmra.mrb[0].mxu0 %v9076
      %v9245 = vpop.f32.mrb[0].mxu0
      %v9246 = vadd.f32 0.0, %v9245
      %v9247 = vpop.f32.mrb[0].mxu0
      %v9248 = vpop.f32.mrb[0].mxu0
      %v9249 = vadd.f32 0.0, %v9248
      %v9250 = vpop.f32.mrb[0].mxu0
      %9251 = vmatprep.mubr.bf16.mxu0 0
      %9252 = vmatmul.mubr.bf16.gmra.mrb[0].mxu0 %v9077
      %v9253 = vpop.f32.mrb[0].mxu0
      %v9254 = vadd.f32 0.0, %v9253
      %v9255 = vpop.f32.mrb[0].mxu0
      %v9256 = vpop.f32.mrb[0].mxu0
      %v9257 = vadd.f32 0.0, %v9256
      %v9258 = vpop.f32.mrb[0].mxu0
      %9259 = vmatprep.mubr.bf16.mxu0 0
      %9260 = vmatmul.mubr.bf16.gmra.mrb[0].mxu0 %v9078
      %v9261 = vpop.f32.mrb[0].mxu0
      %v9262 = vadd.f32 0.0, %v9261
      %v9263 = vpop.f32.mrb[0].mxu0
      %v9264 = vpop.f32.mrb[0].mxu0
      %v9265 = vadd.f32 0.0, %v9264
      %v9266 = vpop.f32.mrb[0].mxu0
      %9267 = vmatprep.mubr.bf16.mxu0 0
      %9268 = vmatmul.mubr.bf16.gmra.mrb[0].mxu0 %v9079
      %v9269 = vpop.f32.mrb[0].mxu0
      %v9270 = vadd.f32 0.0, %v9269
      %v9271 = vpop.f32.mrb[0].mxu0
      %v9272 = vpop.f32.mrb[0].mxu0
      %v9273 = vadd.f32 0.0, %v9272
      %v9274 = vpop.f32.mrb[0].mxu0
      %9275 = vmatprep.mubr.bf16.mxu0 0
      %9276 = vmatmul.mubr.bf16.gmra.mrb[0].mxu0 %v9080
      %v9277 = vpop.f32.mrb[0].mxu0
      %v9278 = vadd.f32 0.0, %v9277
      %v9279 = vpop.f32.mrb[0].mxu0
      %v9280 = vpop.f32.mrb[0].mxu0
      %v9281 = vadd.f32 0.0, %v9280
      %v9282 = vpop.f32.mrb[0].mxu0
      %9283 = vmatprep.mubr.bf16.mxu0 0
      %9284 = vmatmul.mubr.bf16.gmra.mrb[0].mxu0 %v9081
      %v9285 = vpop.f32.mrb[0].mxu0
      %v9286 = vadd.f32 0.0, %v9285
      %v9287 = vpop.f32.mrb[0].mxu0
      %v9288 = vpop.f32.mrb[0].mxu0
      %v9289 = vadd.f32 0.0, %v9288
      %v9290 = vpop.f32.mrb[0].mxu0
      %9291 = vmatprep.mubr.bf16.mxu0 0
      %9292 = vmatmul.mubr.bf16.gmra.mrb[0].mxu0 %v9082
      %v9293 = vpop.f32.mrb[0].mxu0
      %v9294 = vadd.f32 0.0, %v9293
      %v9295 = vpop.f32.mrb[0].mxu0
      %v9296 = vpop.f32.mrb[0].mxu0
      %v9297 = vadd.f32 0.0, %v9296
      %v9298 = vpop.f32.mrb[0].mxu0
      %9299 = vmatprep.mubr.bf16.mxu0 0
      %9300 = vmatmul.mubr.bf16.gmra.mrb[0].mxu0 %v9083
      %v9301 = vpop.f32.mrb[0].mxu0
      %v9302 = vadd.f32 0.0, %v9301
      %v9303 = vpop.f32.mrb[0].mxu0
      %v9304 = vpop.f32.mrb[0].mxu0
      %v9305 = vadd.f32 0.0, %v9304
      %v9306 = vpop.f32.mrb[0].mxu0
      %9307 = vmatprep.mubr.bf16.mxu0 0
      %9308 = vmatmul.mubr.bf16.gmra.mrb[0].mxu0 %v9084
      %v9309 = vpop.f32.mrb[0].mxu0
      %v9310 = vadd.f32 0.0, %v9309
      %v9311 = vpop.f32.mrb[0].mxu0
      %v9312 = vpop.f32.mrb[0].mxu0
      %v9313 = vadd.f32 0.0, %v9312
      %v9314 = vpop.f32.mrb[0].mxu0
      %9315 = vmatprep.mubr.bf16.mxu0 0
      %9316 = vmatmul.mubr.bf16.gmra.mrb[0].mxu0 %v9085
      %v9317 = vpop.f32.mrb[0].mxu0
      %v9318 = vadd.f32 0.0, %v9317
      %v9319 = vpop.f32.mrb[0].mxu0
      %v9320 = vpop.f32.mrb[0].mxu0
      %v9321 = vadd.f32 0.0, %v9320
      %v9322 = vpop.f32.mrb[0].mxu0
      %9323 = vmatprep.mubr.bf16.mxu0 0
      %9324 = vmatmul.mubr.bf16.gmra.mrb[0].mxu0 %v9086
      %v9325 = vpop.f32.mrb[0].mxu0
      %v9326 = vadd.f32 0.0, %v9325
      %v9327 = vpop.f32.mrb[0].mxu0
      %v9328 = vpop.f32.mrb[0].mxu0
      %v9329 = vadd.f32 0.0, %v9328
      %v9330 = vpop.f32.mrb[0].mxu0
      %9331 = vmatprep.mubr.bf16.mxu0 0
      %9332 = vmatmul.mubr.bf16.gmra.mrb[0].mxu0 %v9087
      %v9333 = vpop.f32.mrb[0].mxu0
      %v9334 = vadd.f32 0.0, %v9333
      %v9335 = vpop.f32.mrb[0].mxu0
      %v9336 = vpop.f32.mrb[0].mxu0
      %v9337 = vadd.f32 0.0, %v9336
      %v9338 = vpop.f32.mrb[0].mxu0
      %9339 = vmatprep.mubr.bf16.mxu0 0
      %9340 = vmatmul.mubr.bf16.gmra.mrb[0].mxu0 %v9088
      %v9341 = vpop.f32.mrb[0].mxu0
      %v9342 = vadd.f32 0.0, %v9341
      %v9343 = vpop.f32.mrb[0].mxu0
      %v9344 = vpop.f32.mrb[0].mxu0
      %v9345 = vadd.f32 0.0, %v9344
      %v9346 = vpop.f32.mrb[0].mxu0
      %9347 = vmatprep.mubr.bf16.mxu0 0
      %9348 = vmatmul.mubr.bf16.gmra.mrb[0].mxu0 %v9089
      %v9349 = vpop.f32.mrb[0].mxu0
      %v9350 = vadd.f32 0.0, %v9349
      %v9351 = vpop.f32.mrb[0].mxu0
      %v9352 = vpop.f32.mrb[0].mxu0
      %v9353 = vadd.f32 0.0, %v9352
      %v9354 = vpop.f32.mrb[0].mxu0
      %9355 = vmatprep.mubr.bf16.mxu0 0
      %9356 = vmatmul.mubr.bf16.gmra.mrb[0].mxu0 %v9090
      %v9357 = vpop.f32.mrb[0].mxu0
      %v9358 = vadd.f32 0.0, %v9357
      %v9359 = vpop.f32.mrb[0].mxu0
      %v9360 = vpop.f32.mrb[0].mxu0
      %v9361 = vadd.f32 0.0, %v9360
      %v9362 = vpop.f32.mrb[0].mxu0
      %9363 = vmatprep.mubr.bf16.mxu0 0
      %9364 = vmatmul.mubr.bf16.gmra.mrb[0].mxu0 %v9091
      %v9365 = vpop.f32.mrb[0].mxu0
      %v9366 = vadd.f32 0.0, %v9365
      %v9367 = vpop.f32.mrb[0].mxu0
      %v9368 = vpop.f32.mrb[0].mxu0
      %v9369 = vadd.f32 0.0, %v9368
      %v9370 = vpop.f32.mrb[0].mxu0
      %9371 = vmatprep.mubr.bf16.mxu0 0
      %9372 = vmatmul.mubr.bf16.gmra.mrb[0].mxu0 %v9092
      %v9373 = vpop.f32.mrb[0].mxu0
      %v9374 = vadd.f32 0.0, %v9373
      %v9375 = vpop.f32.mrb[0].mxu0
      %v9376 = vpop.f32.mrb[0].mxu0
      %v9377 = vadd.f32 0.0, %v9376
      %v9378 = vpop.f32.mrb[0].mxu0
      %9379 = vmatprep.mubr.bf16.mxu0 0
      %9380 = vmatmul.mubr.bf16.gmra.mrb[0].mxu0 %v9093
      %v9381 = vpop.f32.mrb[0].mxu0
      %v9382 = vadd.f32 0.0, %v9381
      %v9383 = vpop.f32.mrb[0].mxu0
      %v9384 = vpop.f32.mrb[0].mxu0
      %v9385 = vadd.f32 0.0, %v9384
      %v9386 = vpop.f32.mrb[0].mxu0
      %9387 = vmatprep.mubr.bf16.mxu0 0
      %9388 = vmatmul.mubr.bf16.gmra.mrb[0].mxu0 %v9094
      %v9389 = vpop.f32.mrb[0].mxu0
      %v9390 = vadd.f32 0.0, %v9389
      %v9391 = vpop.f32.mrb[0].mxu0
      %v9392 = vpop.f32.mrb[0].mxu0
      %v9393 = vadd.f32 0.0, %v9392
      %v9394 = vpop.f32.mrb[0].mxu0
      %9395 = vmatprep.mubr.bf16.mxu0 0
      %9396 = vmatmul.mubr.bf16.gmra.mrb[0].mxu0 %v9095
      %v9397 = vpop.f32.mrb[0].mxu0
      %v9398 = vadd.f32 0.0, %v9397
      %v9399 = vpop.f32.mrb[0].mxu0
      %v9400 = vpop.f32.mrb[0].mxu0
      %v9401 = vadd.f32 0.0, %v9400
      %v9402 = vpop.f32.mrb[0].mxu0
      %9403 = vmatprep.mubr.bf16.mxu0 0
      %9404 = vmatmul.mubr.bf16.gmra.mrb[0].mxu0 %v9096
      %v9405 = vpop.f32.mrb[0].mxu0
      %v9406 = vadd.f32 0.0, %v9405
      %v9407 = vpop.f32.mrb[0].mxu0
      %v9408 = vpop.f32.mrb[0].mxu0
      %v9409 = vadd.f32 0.0, %v9408
      %v9410 = vpop.f32.mrb[0].mxu0
      %9411 = vmatprep.mubr.bf16.mxu0 0
      %9412 = vmatmul.mubr.bf16.gmra.mrb[0].mxu0 %v9097
      %v9413 = vpop.f32.mrb[0].mxu0
      %v9414 = vadd.f32 0.0, %v9413
      %v9415 = vpop.f32.mrb[0].mxu0
      %v9416 = vpop.f32.mrb[0].mxu0
      %v9417 = vadd.f32 0.0, %v9416
      %v9418 = vpop.f32.mrb[0].mxu0
      %9419 = vmatprep.mubr.bf16.mxu0 0
      %9420 = vmatmul.mubr.bf16.gmra.mrb[0].mxu0 %v9098
      %v9421 = vpop.f32.mrb[0].mxu0
      %v9422 = vadd.f32 0.0, %v9421
      %v9423 = vpop.f32.mrb[0].mxu0
      %v9424 = vpop.f32.mrb[0].mxu0
      %v9425 = vadd.f32 0.0, %v9424
      %v9426 = vpop.f32.mrb[0].mxu0
      %9427 = vmatprep.mubr.bf16.mxu0 0
      %9428 = vmatmul.mubr.bf16.gmra.mrb[0].mxu0 %v9099
      %v9429 = vpop.f32.mrb[0].mxu0
      %v9430 = vadd.f32 0.0, %v9429
      %v9431 = vpop.f32.mrb[0].mxu0
      %v9432 = vpop.f32.mrb[0].mxu0
      %v9433 = vadd.f32 0.0, %v9432
      %v9434 = vpop.f32.mrb[0].mxu0
      %9435 = vmatprep.mubr.bf16.mxu0 0
      %9436 = vmatmul.mubr.bf16.gmra.mrb[0].mxu0 %v9100
      %v9437 = vpop.f32.mrb[0].mxu0
      %v9438 = vadd.f32 0.0, %v9437
      %v9439 = vpop.f32.mrb[0].mxu0
      %v9440 = vpop.f32.mrb[0].mxu0
      %v9441 = vadd.f32 0.0, %v9440
      %v9442 = vpop.f32.mrb[0].mxu0
      %9443 = vmatprep.mubr.bf16.mxu0 0
      %9444 = vmatmul.mubr.bf16.gmra.mrb[0].mxu0 %v9101
      %v9445 = vpop.f32.mrb[0].mxu0
      %v9446 = vadd.f32 0.0, %v9445
      %v9447 = vpop.f32.mrb[0].mxu0
      %v9448 = vpop.f32.mrb[0].mxu0
      %v9449 = vadd.f32 0.0, %v9448
      %v9450 = vpop.f32.mrb[0].mxu0
      %9451 = vmatprep.mubr.bf16.mxu0 0
      %9452 = vmatmul.mubr.bf16.gmra.mrb[0].mxu0 %v9102
      %v9453 = vpop.f32.mrb[0].mxu0
      %v9454 = vadd.f32 0.0, %v9453
      %v9455 = vpop.f32.mrb[0].mxu0
      %v9456 = vpop.f32.mrb[0].mxu0
      %v9457 = vadd.f32 0.0, %v9456
      %v9458 = vpop.f32.mrb[0].mxu0
      %9459 = vmatprep.mubr.bf16.mxu0 0
      %9460 = vmatmul.mubr.bf16.gmra.mrb[0].mxu0 %v9103
      %v9461 = vpop.f32.mrb[0].mxu0
      %v9462 = vadd.f32 0.0, %v9461
      %v9463 = vpop.f32.mrb[0].mxu0
      %v9464 = vpop.f32.mrb[0].mxu0
      %v9465 = vadd.f32 0.0, %v9464
      %v9466 = vpop.f32.mrb[0].mxu0
      %9467 = vmatprep.mubr.bf16.mxu0 0
      %9468 = vmatmul.mubr.bf16.gmra.mrb[0].mxu0 %v9104
      %v9469 = vpop.f32.mrb[0].mxu0
      %v9470 = vadd.f32 0.0, %v9469
      %v9471 = vpop.f32.mrb[0].mxu0
      %v9472 = vpop.f32.mrb[0].mxu0
      %v9473 = vadd.f32 0.0, %v9472
      %v9474 = vpop.f32.mrb[0].mxu0
      %9475 = vmatprep.mubr.bf16.mxu0 0
      %9476 = vmatmul.mubr.bf16.gmra.mrb[0].mxu0 %v9105
      %v9477 = vpop.f32.mrb[0].mxu0
      %v9478 = vadd.f32 0.0, %v9477
      %v9479 = vpop.f32.mrb[0].mxu0
      %v9480 = vpop.f32.mrb[0].mxu0
      %v9481 = vadd.f32 0.0, %v9480
      %v9482 = vpop.f32.mrb[0].mxu0
      %9483 = vmatprep.mubr.bf16.mxu0 0
      %9484 = vmatmul.mubr.bf16.gmra.mrb[0].mxu0 %v9106
      %v9485 = vpop.f32.mrb[0].mxu0
      %v9486 = vadd.f32 0.0, %v9485
      %v9487 = vpop.f32.mrb[0].mxu0
      %v9488 = vpop.f32.mrb[0].mxu0
      %v9489 = vadd.f32 0.0, %v9488
      %v9490 = vpop.f32.mrb[0].mxu0
      %9491 = vmatprep.mubr.bf16.mxu0 0
      %9492 = vmatmul.mubr.bf16.gmra.mrb[0].mxu0 %v9107
      %v9493 = vpop.f32.mrb[0].mxu0
      %v9494 = vadd.f32 0.0, %v9493
      %v9495 = vpop.f32.mrb[0].mxu0
      %v9496 = vpop.f32.mrb[0].mxu0
      %v9497 = vadd.f32 0.0, %v9496
      %v9498 = vpop.f32.mrb[0].mxu0
      %9499 = vmatprep.mubr.bf16.mxu0 0
      %9500 = vmatmul.mubr.bf16.gmra.mrb[0].mxu0 %v9108
      %v9501 = vpop.f32.mrb[0].mxu0
      %v9502 = vadd.f32 0.0, %v9501
      %v9503 = vpop.f32.mrb[0].mxu0
      %v9504 = vpop.f32.mrb[0].mxu0
      %v9505 = vadd.f32 0.0, %v9504
      %v9506 = vpop.f32.mrb[0].mxu0
      %9507 = vmatprep.mubr.bf16.mxu0 0
      %9508 = vmatmul.mubr.bf16.gmra.mrb[0].mxu0 %v9109
      %v9509 = vpop.f32.mrb[0].mxu0
      %v9510 = vadd.f32 0.0, %v9509
      %v9511 = vpop.f32.mrb[0].mxu0
      %v9512 = vpop.f32.mrb[0].mxu0
      %v9513 = vadd.f32 0.0, %v9512
      %v9514 = vpop.f32.mrb[0].mxu0
      %9515 = vmatprep.mubr.bf16.mxu0 0
      %9516 = vmatmul.mubr.bf16.gmra.mrb[0].mxu0 %v9110
      %v9517 = vpop.f32.mrb[0].mxu0
      %v9518 = vadd.f32 0.0, %v9517
      %v9519 = vpop.f32.mrb[0].mxu0
      %v9520 = vpop.f32.mrb[0].mxu0
      %v9521 = vadd.f32 0.0, %v9520
      %v9522 = vpop.f32.mrb[0].mxu0
      %9523 = vmatprep.mubr.bf16.mxu0 0
      %9524 = vmatmul.mubr.bf16.gmra.mrb[0].mxu0 %v9111
      %v9525 = vpop.f32.mrb[0].mxu0
      %v9526 = vadd.f32 0.0, %v9525
      %v9527 = vpop.f32.mrb[0].mxu0
      %v9528 = vpop.f32.mrb[0].mxu0
      %v9529 = vadd.f32 0.0, %v9528
      %v9530 = vpop.f32.mrb[0].mxu0
      %9531 = vmatprep.mubr.bf16.mxu0 0
      %9532 = vmatmul.mubr.bf16.gmra.mrb[0].mxu0 %v9112
      %v9533 = vpop.f32.mrb[0].mxu0
      %v9534 = vadd.f32 0.0, %v9533
      %v9535 = vpop.f32.mrb[0].mxu0
      %v9536 = vpop.f32.mrb[0].mxu0
      %v9537 = vadd.f32 0.0, %v9536
      %v9538 = vpop.f32.mrb[0].mxu0
      %9539 = vmatprep.mubr.bf16.mxu0 0
      %9540 = vmatmul.mubr.bf16.gmra.mrb[0].mxu0 %v9113
      %v9541 = vpop.f32.mrb[0].mxu0
      %v9542 = vadd.f32 0.0, %v9541
      %v9543 = vpop.f32.mrb[0].mxu0
      %v9544 = vpop.f32.mrb[0].mxu0
      %v9545 = vadd.f32 0.0, %v9544
      %v9546 = vpop.f32.mrb[0].mxu0
      %9547 = vmatprep.mubr.bf16.mxu0 0
      %9548 = vmatmul.mubr.bf16.gmra.mrb[0].mxu0 %v9114
      %v9549 = vpop.f32.mrb[0].mxu0
      %v9550 = vadd.f32 0.0, %v9549
      %v9551 = vpop.f32.mrb[0].mxu0
      %v9552 = vpop.f32.mrb[0].mxu0
      %v9553 = vadd.f32 0.0, %v9552
      %v9554 = vpop.f32.mrb[0].mxu0
      %9555 = vmatprep.mubr.bf16.mxu0 0
      %9556 = vmatmul.mubr.bf16.gmra.mrb[0].mxu0 %v9115
      %v9557 = vpop.f32.mrb[0].mxu0
      %v9558 = vadd.f32 0.0, %v9557
      %v9559 = vpop.f32.mrb[0].mxu0
      %v9560 = vpop.f32.mrb[0].mxu0
      %v9561 = vadd.f32 0.0, %v9560
      %v9562 = vpop.f32.mrb[0].mxu0
      %9563 = vmatprep.mubr.bf16.mxu0 0
      %9564 = vmatmul.mubr.bf16.gmra.mrb[0].mxu0 %v9116
      %v9565 = vpop.f32.mrb[0].mxu0
      %v9566 = vadd.f32 0.0, %v9565
      %v9567 = vpop.f32.mrb[0].mxu0
      %v9568 = vpop.f32.mrb[0].mxu0
      %v9569 = vadd.f32 0.0, %v9568
      %v9570 = vpop.f32.mrb[0].mxu0
      %9571 = vmatprep.mubr.bf16.mxu0 0
      %9572 = vmatmul.mubr.bf16.gmra.mrb[0].mxu0 %v9117
      %v9573 = vpop.f32.mrb[0].mxu0
      %v9574 = vadd.f32 0.0, %v9573
      %v9575 = vpop.f32.mrb[0].mxu0
      %v9576 = vpop.f32.mrb[0].mxu0
      %v9577 = vadd.f32 0.0, %v9576
      %v9578 = vpop.f32.mrb[0].mxu0
      %9579 = vmatprep.mubr.bf16.mxu0 0
      %9580 = vmatmul.mubr.bf16.gmra.mrb[0].mxu0 %v9118
      %v9581 = vpop.f32.mrb[0].mxu0
      %v9582 = vadd.f32 0.0, %v9581
      %v9583 = vpop.f32.mrb[0].mxu0
      %v9584 = vpop.f32.mrb[0].mxu0
      %v9585 = vadd.f32 0.0, %v9584
      %v9586 = vpop.f32.mrb[0].mxu0
      %9587 = vmatprep.mubr.bf16.mxu0 0
      %9588 = vmatmul.mubr.bf16.gmra.mrb[0].mxu0 %v9119
      %v9589 = vpop.f32.mrb[0].mxu0
      %v9590 = vadd.f32 0.0, %v9589
      %v9591 = vpop.f32.mrb[0].mxu0
      %v9592 = vpop.f32.mrb[0].mxu0
      %v9593 = vadd.f32 0.0, %v9592
      %v9594 = vpop.f32.mrb[0].mxu0
      %9595 = vmatprep.mubr.bf16.mxu0 0
      %9596 = vmatmul.mubr.bf16.gmra.mrb[0].mxu0 %v9120
      %v9597 = vpop.f32.mrb[0].mxu0
      %v9598 = vadd.f32 0.0, %v9597
      %v9599 = vpop.f32.mrb[0].mxu0
      %v9600 = vpop.f32.mrb[0].mxu0
      %v9601 = vadd.f32 0.0, %v9600
      %v9602 = vpop.f32.mrb[0].mxu0
      %9603 = vmatprep.mubr.bf16.mxu0 0
      %9604 = vmatmul.mubr.bf16.gmra.mrb[0].mxu0 %v9121
      %v9605 = vpop.f32.mrb[0].mxu0
      %v9606 = vadd.f32 0.0, %v9605
      %v9607 = vpop.f32.mrb[0].mxu0
      %v9608 = vpop.f32.mrb[0].mxu0
      %v9609 = vadd.f32 0.0, %v9608
      %v9610 = vpop.f32.mrb[0].mxu0
      %9611 = vmatprep.mubr.bf16.mxu0 0
      %9612 = vmatmul.mubr.bf16.gmra.mrb[0].mxu0 %v9122
      %v9613 = vpop.f32.mrb[0].mxu0
      %v9614 = vadd.f32 0.0, %v9613
      %v9615 = vpop.f32.mrb[0].mxu0
      %v9616 = vpop.f32.mrb[0].mxu0
      %v9617 = vadd.f32 0.0, %v9616
      %v9618 = vpop.f32.mrb[0].mxu0
      %9619 = vmatprep.mubr.bf16.mxu0 0
      %9620 = vmatmul.mubr.bf16.gmra.mrb[0].mxu0 %v9123
      %v9621 = vpop.f32.mrb[0].mxu0
      %v9622 = vadd.f32 0.0, %v9621
      %v9623 = vpop.f32.mrb[0].mxu0
      %v9624 = vpop.f32.mrb[0].mxu0
      %v9625 = vadd.f32 0.0, %v9624
      %v9626 = vpop.f32.mrb[0].mxu0
      %9627 = vmatprep.mubr.bf16.mxu0 0
      %9628 = vmatmul.mubr.bf16.gmra.mrb[0].mxu0 %v9124
      %v9629 = vpop.f32.mrb[0].mxu0
      %v9630 = vadd.f32 0.0, %v9629
      %v9631 = vpop.f32.mrb[0].mxu0
      %v9632 = vpop.f32.mrb[0].mxu0
      %v9633 = vadd.f32 0.0, %v9632
      %v9634 = vpop.f32.mrb[0].mxu0
      %9635 = vmatprep.mubr.bf16.mxu0 0
      %9636 = vmatmul.mubr.bf16.gmra.mrb[0].mxu0 %v9125
      %v9637 = vpop.f32.mrb[0].mxu0
      %v9638 = vadd.f32 0.0, %v9637
      %v9639 = vpop.f32.mrb[0].mxu0
      %v9640 = vpop.f32.mrb[0].mxu0
      %v9641 = vadd.f32 0.0, %v9640
      %v9642 = vpop.f32.mrb[0].mxu0
      %9643 = vmatprep.mubr.bf16.mxu0 0
      %9644 = vmatmul.mubr.bf16.gmra.mrb[0].mxu0 %v9126
      %v9645 = vpop.f32.mrb[0].mxu0
      %v9646 = vadd.f32 0.0, %v9645
      %v9647 = vpop.f32.mrb[0].mxu0
      %v9648 = vpop.f32.mrb[0].mxu0
      %v9649 = vadd.f32 0.0, %v9648
      %v9650 = vpop.f32.mrb[0].mxu0
      %9651 = vmatprep.mubr.bf16.mxu0 0
      %9652 = vmatmul.mubr.bf16.gmra.mrb[0].mxu0 %v9127
      %v9653 = vpop.f32.mrb[0].mxu0
      %v9654 = vadd.f32 0.0, %v9653
      %v9655 = vpop.f32.mrb[0].mxu0
      %v9656 = vpop.f32.mrb[0].mxu0
      %v9657 = vadd.f32 0.0, %v9656
      %v9658 = vpop.f32.mrb[0].mxu0
      %9659 = vmatprep.mubr.bf16.mxu0 0
      %9660 = vmatmul.mubr.bf16.gmra.mrb[0].mxu0 %v9128
      %v9661 = vpop.f32.mrb[0].mxu0
      %v9662 = vadd.f32 0.0, %v9661
      %v9663 = vpop.f32.mrb[0].mxu0
      %v9664 = vpop.f32.mrb[0].mxu0
      %v9665 = vadd.f32 0.0, %v9664
      %v9666 = vpop.f32.mrb[0].mxu0
      %9667 = vmatprep.mubr.bf16.mxu0 0
      %9668 = vmatmul.mubr.bf16.gmra.mrb[0].mxu0 %v9129
      %v9669 = vpop.f32.mrb[0].mxu0
      %v9670 = vadd.f32 0.0, %v9669
      %v9671 = vpop.f32.mrb[0].mxu0
      %v9672 = vpop.f32.mrb[0].mxu0
      %v9673 = vadd.f32 0.0, %v9672
      %v9674 = vpop.f32.mrb[0].mxu0
      %9675 = vmatprep.mubr.bf16.mxu0 0
      %9676 = vmatmul.mubr.bf16.gmra.mrb[0].mxu0 %v9130
      %v9677 = vpop.f32.mrb[0].mxu0
      %v9678 = vadd.f32 0.0, %v9677
      %v9679 = vpop.f32.mrb[0].mxu0
      %v9680 = vpop.f32.mrb[0].mxu0
      %v9681 = vadd.f32 0.0, %v9680
      %v9682 = vpop.f32.mrb[0].mxu0
      %9683 = vmatprep.mubr.bf16.mxu0 0
      %9684 = vmatmul.mubr.bf16.gmra.mrb[0].mxu0 %v9131
      %v9685 = vpop.f32.mrb[0].mxu0
      %v9686 = vadd.f32 0.0, %v9685
      %v9687 = vpop.f32.mrb[0].mxu0
      %v9688 = vpop.f32.mrb[0].mxu0
      %v9689 = vadd.f32 0.0, %v9688
      %v9690 = vpop.f32.mrb[0].mxu0
      %9691 = vmatprep.mubr.bf16.mxu0 0
      %9692 = vmatmul.mubr.bf16.gmra.mrb[0].mxu0 %v9132
      %v9693 = vpop.f32.mrb[0].mxu0
      %v9694 = vadd.f32 0.0, %v9693
      %v9695 = vpop.f32.mrb[0].mxu0
      %v9696 = vpop.f32.mrb[0].mxu0
      %v9697 = vadd.f32 0.0, %v9696
      %v9698 = vpop.f32.mrb[0].mxu0
      %9699 = vmatprep.mubr.bf16.mxu0 0
      %9700 = vmatmul.mubr.bf16.gmra.mrb[0].mxu0 %v9133
      %v9701 = vpop.f32.mrb[0].mxu0
      %v9702 = vadd.f32 0.0, %v9701
      %v9703 = vpop.f32.mrb[0].mxu0
      %v9704 = vpop.f32.mrb[0].mxu0
      %v9705 = vadd.f32 0.0, %v9704
      %v9706 = vpop.f32.mrb[0].mxu0
      %9707 = vmatprep.mubr.bf16.mxu0 0
      %9708 = vmatmul.mubr.bf16.gmra.mrb[0].mxu0 %v9134
      %v9709 = vpop.f32.mrb[0].mxu0
      %v9710 = vadd.f32 0.0, %v9709
      %v9711 = vpop.f32.mrb[0].mxu0
      %v9712 = vpop.f32.mrb[0].mxu0
      %v9713 = vadd.f32 0.0, %v9712
      %v9714 = vpop.f32.mrb[0].mxu0
      %9715 = vmatprep.mubr.bf16.mxu0 0
      %9716 = vmatmul.mubr.bf16.gmra.mrb[0].mxu0 %v9135
      %v9717 = vpop.f32.mrb[0].mxu0
      %v9718 = vadd.f32 0.0, %v9717
      %v9719 = vpop.f32.mrb[0].mxu0
      %v9720 = vpop.f32.mrb[0].mxu0
      %v9721 = vadd.f32 0.0, %v9720
      %v9722 = vpop.f32.mrb[0].mxu0
      %9723 = vmatprep.mubr.bf16.mxu0 0
      %9724 = vmatmul.mubr.bf16.gmra.mrb[0].mxu0 %v9136
      %v9725 = vpop.f32.mrb[0].mxu0
      %v9726 = vadd.f32 0.0, %v9725
      %v9727 = vpop.f32.mrb[0].mxu0
      %v9728 = vpop.f32.mrb[0].mxu0
      %v9729 = vadd.f32 0.0, %v9728
      %v9730 = vpop.f32.mrb[0].mxu0
      %9731 = vmatprep.mubr.bf16.mxu0 0
      %9732 = vmatmul.mubr.bf16.gmra.mrb[0].mxu0 %v9137
      %v9733 = vpop.f32.mrb[0].mxu0
      %v9734 = vadd.f32 0.0, %v9733
      %v9735 = vpop.f32.mrb[0].mxu0
      %v9736 = vpop.f32.mrb[0].mxu0
      %v9737 = vadd.f32 0.0, %v9736
      %v9738 = vpop.f32.mrb[0].mxu0
      %9739 = vmatprep.mubr.bf16.mxu0 0
      %9740 = vmatmul.mubr.bf16.gmra.mrb[0].mxu0 %v9138
      %v9741 = vpop.f32.mrb[0].mxu0
      %v9742 = vadd.f32 0.0, %v9741
      %v9743 = vpop.f32.mrb[0].mxu0
      %v9744 = vpop.f32.mrb[0].mxu0
      %v9745 = vadd.f32 0.0, %v9744
      %v9746 = vpop.f32.mrb[0].mxu0
      %9747 = vdwg.mxu0
      %v9748 = vld [vmem:[%s6] sm:$0xff]
      %v9749 = vld [vmem:[%s6 + $0x8] sm:$0xff]
      %v9750 = vld [vmem:[%s6 + $0x10] sm:$0xff]
      %v9751 = vld [vmem:[%s6 + $0x18] sm:$0xff]
      %v9752 = vld [vmem:[%s6 + $0x20] sm:$0xff]
      %v9753 = vld [vmem:[%s6 + $0x28] sm:$0xff]
      %v9754 = vld [vmem:[%s6 + $0x30] sm:$0xff]
      %v9755 = vld [vmem:[%s6 + $0x38] sm:$0xff]
      %v9756 = vld [vmem:[%s6 + $0x40] sm:$0xff]
      %v9757 = vld [vmem:[%s6 + $0x48] sm:$0xff]
      %v9758 = vld [vmem:[%s6 + $0x50] sm:$0xff]
      %v9759 = vld [vmem:[%s6 + $0x58] sm:$0xff]
      %v9760 = vld [vmem:[%s6 + $0x60] sm:$0xff]
      %v9761 = vld [vmem:[%s6 + $0x68] sm:$0xff]
      %v9762 = vld [vmem:[%s6 + $0x70] sm:$0xff]
      %v9763 = vld [vmem:[%s6 + $0x78] sm:$0xff]
      %v9764 = vld [vmem:[%s6 + $0x80] sm:$0xff]
      %v9765 = vld [vmem:[%s6 + $0x88] sm:$0xff]
      %v9766 = vld [vmem:[%s6 + $0x90] sm:$0xff]
      %v9767 = vld [vmem:[%s6 + $0x98] sm:$0xff]
      %v9768 = vld [vmem:[%s6 + $0xa0] sm:$0xff]
      %v9769 = vld [vmem:[%s6 + $0xa8] sm:$0xff]
      %v9770 = vld [vmem:[%s6 + $0xb0] sm:$0xff]
      %v9771 = vld [vmem:[%s6 + $0xb8] sm:$0xff]
      %v9772 = vld [vmem:[%s6 + $0xc0] sm:$0xff]
      %v9773 = vld [vmem:[%s6 + $0xc8] sm:$0xff]
      %v9774 = vld [vmem:[%s6 + $0xd0] sm:$0xff]
      %v9775 = vld [vmem:[%s6 + $0xd8] sm:$0xff]
      %v9776 = vld [vmem:[%s6 + $0xe0] sm:$0xff]
      %v9777 = vld [vmem:[%s6 + $0xe8] sm:$0xff]
      %v9778 = vld [vmem:[%s6 + $0xf0] sm:$0xff]
      %v9779 = vld [vmem:[%s6 + $0xf8] sm:$0xff]
      %v9780 = vmul.f32 %v9238, %v9748
      %v9781 = vmul.f32 %v9241, %v9749
      %v9782 = vmul.f32 %v9246, %v9750
      %v9783 = vmul.f32 %v9249, %v9751
      %v9784 = vmul.f32 %v9254, %v9752
      %v9785 = vmul.f32 %v9257, %v9753
      %v9786 = vmul.f32 %v9262, %v9754
      %v9787 = vmul.f32 %v9265, %v9755
      %v9788 = vmul.f32 %v9270, %v9756
      %v9789 = vmul.f32 %v9273, %v9757
      %v9790 = vmul.f32 %v9278, %v9758
      %v9791 = vmul.f32 %v9281, %v9759
      %v9792 = vmul.f32 %v9286, %v9760
      %v9793 = vmul.f32 %v9289, %v9761
      %v9794 = vmul.f32 %v9294, %v9762
      %v9795 = vmul.f32 %v9297, %v9763
      %v9796 = vmul.f32 %v9302, %v9764
      %v9797 = vmul.f32 %v9305, %v9765
      %v9798 = vmul.f32 %v9310, %v9766
      %v9799 = vmul.f32 %v9313, %v9767
      %v9800 = vmul.f32 %v9318, %v9768
      %v9801 = vmul.f32 %v9321, %v9769
      %v9802 = vmul.f32 %v9326, %v9770
      %v9803 = vmul.f32 %v9329, %v9771
      %v9804 = vmul.f32 %v9334, %v9772
      %v9805 = vmul.f32 %v9337, %v9773
      %v9806 = vmul.f32 %v9342, %v9774
      %v9807 = vmul.f32 %v9345, %v9775
      %v9808 = vmul.f32 %v9350, %v9776
      %v9809 = vmul.f32 %v9353, %v9777
      %v9810 = vmul.f32 %v9358, %v9778
      %v9811 = vmul.f32 %v9361, %v9779
      %v9812 = vmul.f32 %v9366, %v9748
      %v9813 = vmul.f32 %v9369, %v9749
      %v9814 = vmul.f32 %v9374, %v9750
      %v9815 = vmul.f32 %v9377, %v9751
      %v9816 = vmul.f32 %v9382, %v9752
      %v9817 = vmul.f32 %v9385, %v9753
      %v9818 = vmul.f32 %v9390, %v9754
      %v9819 = vmul.f32 %v9393, %v9755
      %v9820 = vmul.f32 %v9398, %v9756
      %v9821 = vmul.f32 %v9401, %v9757
      %v9822 = vmul.f32 %v9406, %v9758
      %v9823 = vmul.f32 %v9409, %v9759
      %v9824 = vmul.f32 %v9414, %v9760
      %v9825 = vmul.f32 %v9417, %v9761
      %v9826 = vmul.f32 %v9422, %v9762
      %v9827 = vmul.f32 %v9425, %v9763
      %v9828 = vmul.f32 %v9430, %v9764
      %v9829 = vmul.f32 %v9433, %v9765
      %v9830 = vmul.f32 %v9438, %v9766
      %v9831 = vmul.f32 %v9441, %v9767
      %v9832 = vmul.f32 %v9446, %v9768
      %v9833 = vmul.f32 %v9449, %v9769
      %v9834 = vmul.f32 %v9454, %v9770
      %v9835 = vmul.f32 %v9457, %v9771
      %v9836 = vmul.f32 %v9462, %v9772
      %v9837 = vmul.f32 %v9465, %v9773
      %v9838 = vmul.f32 %v9470, %v9774
      %v9839 = vmul.f32 %v9473, %v9775
      %v9840 = vmul.f32 %v9478, %v9776
      %v9841 = vmul.f32 %v9481, %v9777
      %v9842 = vmul.f32 %v9486, %v9778
      %v9843 = vmul.f32 %v9489, %v9779
      %v9844 = vmul.f32 %v9494, %v9748
      %v9845 = vmul.f32 %v9497, %v9749
      %v9846 = vmul.f32 %v9502, %v9750
      %v9847 = vmul.f32 %v9505, %v9751
      %v9848 = vmul.f32 %v9510, %v9752
      %v9849 = vmul.f32 %v9513, %v9753
      %v9850 = vmul.f32 %v9518, %v9754
      %v9851 = vmul.f32 %v9521, %v9755
      %v9852 = vmul.f32 %v9526, %v9756
      %v9853 = vmul.f32 %v9529, %v9757
      %v9854 = vmul.f32 %v9534, %v9758
      %v9855 = vmul.f32 %v9537, %v9759
      %v9856 = vmul.f32 %v9542, %v9760
      %v9857 = vmul.f32 %v9545, %v9761
      %v9858 = vmul.f32 %v9550, %v9762
      %v9859 = vmul.f32 %v9553, %v9763
      %v9860 = vmul.f32 %v9558, %v9764
      %v9861 = vmul.f32 %v9561, %v9765
      %v9862 = vmul.f32 %v9566, %v9766
      %v9863 = vmul.f32 %v9569, %v9767
      %v9864 = vmul.f32 %v9574, %v9768
      %v9865 = vmul.f32 %v9577, %v9769
      %v9866 = vmul.f32 %v9582, %v9770
      %v9867 = vmul.f32 %v9585, %v9771
      %v9868 = vmul.f32 %v9590, %v9772
      %v9869 = vmul.f32 %v9593, %v9773
      %v9870 = vmul.f32 %v9598, %v9774
      %v9871 = vmul.f32 %v9601, %v9775
      %v9872 = vmul.f32 %v9606, %v9776
      %v9873 = vmul.f32 %v9609, %v9777
      %v9874 = vmul.f32 %v9614, %v9778
      %v9875 = vmul.f32 %v9617, %v9779
      %v9876 = vmul.f32 %v9622, %v9748
      %v9877 = vmul.f32 %v9625, %v9749
      %v9878 = vmul.f32 %v9630, %v9750
      %v9879 = vmul.f32 %v9633, %v9751
      %v9880 = vmul.f32 %v9638, %v9752
      %v9881 = vmul.f32 %v9641, %v9753
      %v9882 = vmul.f32 %v9646, %v9754
      %v9883 = vmul.f32 %v9649, %v9755
      %v9884 = vmul.f32 %v9654, %v9756
      %v9885 = vmul.f32 %v9657, %v9757
      %v9886 = vmul.f32 %v9662, %v9758
      %v9887 = vmul.f32 %v9665, %v9759
      %v9888 = vmul.f32 %v9670, %v9760
      %v9889 = vmul.f32 %v9673, %v9761
      %v9890 = vmul.f32 %v9678, %v9762
      %v9891 = vmul.f32 %v9681, %v9763
      %v9892 = vmul.f32 %v9686, %v9764
      %v9893 = vmul.f32 %v9689, %v9765
      %v9894 = vmul.f32 %v9694, %v9766
      %v9895 = vmul.f32 %v9697, %v9767
      %v9896 = vmul.f32 %v9702, %v9768
      %v9897 = vmul.f32 %v9705, %v9769
      %v9898 = vmul.f32 %v9710, %v9770
      %v9899 = vmul.f32 %v9713, %v9771
      %v9900 = vmul.f32 %v9718, %v9772
      %v9901 = vmul.f32 %v9721, %v9773
      %v9902 = vmul.f32 %v9726, %v9774
      %v9903 = vmul.f32 %v9729, %v9775
      %v9904 = vmul.f32 %v9734, %v9776
      %v9905 = vmul.f32 %v9737, %v9777
      %v9906 = vmul.f32 %v9742, %v9778
      %v9907 = vmul.f32 %v9745, %v9779
      %v9908 = vpack.c.bf16 %v9781, %v9780
      %v9909 = vpack.c.bf16 %v9783, %v9782
      %v9910 = vpack.c.bf16 %v9785, %v9784
      %v9911 = vpack.c.bf16 %v9787, %v9786
      %v9912 = vpack.c.bf16 %v9789, %v9788
      %v9913 = vpack.c.bf16 %v9791, %v9790
      %v9914 = vpack.c.bf16 %v9793, %v9792
      %v9915 = vpack.c.bf16 %v9795, %v9794
      %v9916 = vpack.c.bf16 %v9797, %v9796
      %v9917 = vpack.c.bf16 %v9799, %v9798
      %v9918 = vpack.c.bf16 %v9801, %v9800
      %v9919 = vpack.c.bf16 %v9803, %v9802
      %v9920 = vpack.c.bf16 %v9805, %v9804
      %v9921 = vpack.c.bf16 %v9807, %v9806
      %v9922 = vpack.c.bf16 %v9809, %v9808
      %v9923 = vpack.c.bf16 %v9811, %v9810
      %v9924 = vpack.c.bf16 %v9813, %v9812
      %v9925 = vpack.c.bf16 %v9815, %v9814
      %v9926 = vpack.c.bf16 %v9817, %v9816
      %v9927 = vpack.c.bf16 %v9819, %v9818
      %v9928 = vpack.c.bf16 %v9821, %v9820
      %v9929 = vpack.c.bf16 %v9823, %v9822
      %v9930 = vpack.c.bf16 %v9825, %v9824
      %v9931 = vpack.c.bf16 %v9827, %v9826
      %v9932 = vpack.c.bf16 %v9829, %v9828
      %v9933 = vpack.c.bf16 %v9831, %v9830
      %v9934 = vpack.c.bf16 %v9833, %v9832
      %v9935 = vpack.c.bf16 %v9835, %v9834
      %v9936 = vpack.c.bf16 %v9837, %v9836
      %v9937 = vpack.c.bf16 %v9839, %v9838
      %v9938 = vpack.c.bf16 %v9841, %v9840
      %v9939 = vpack.c.bf16 %v9843, %v9842
      %v9940 = vpack.c.bf16 %v9845, %v9844
      %v9941 = vpack.c.bf16 %v9847, %v9846
      %v9942 = vpack.c.bf16 %v9849, %v9848
      %v9943 = vpack.c.bf16 %v9851, %v9850
      %v9944 = vpack.c.bf16 %v9853, %v9852
      %v9945 = vpack.c.bf16 %v9855, %v9854
      %v9946 = vpack.c.bf16 %v9857, %v9856
      %v9947 = vpack.c.bf16 %v9859, %v9858
      %v9948 = vpack.c.bf16 %v9861, %v9860
      %v9949 = vpack.c.bf16 %v9863, %v9862
      %v9950 = vpack.c.bf16 %v9865, %v9864
      %v9951 = vpack.c.bf16 %v9867, %v9866
      %v9952 = vpack.c.bf16 %v9869, %v9868
      %v9953 = vpack.c.bf16 %v9871, %v9870
      %v9954 = vpack.c.bf16 %v9873, %v9872
      %v9955 = vpack.c.bf16 %v9875, %v9874
      %v9956 = vpack.c.bf16 %v9877, %v9876
      %v9957 = vpack.c.bf16 %v9879, %v9878
      %v9958 = vpack.c.bf16 %v9881, %v9880
      %v9959 = vpack.c.bf16 %v9883, %v9882
      %v9960 = vpack.c.bf16 %v9885, %v9884
      %v9961 = vpack.c.bf16 %v9887, %v9886
      %v9962 = vpack.c.bf16 %v9889, %v9888
      %v9963 = vpack.c.bf16 %v9891, %v9890
      %v9964 = vpack.c.bf16 %v9893, %v9892
      %v9965 = vpack.c.bf16 %v9895, %v9894
      %v9966 = vpack.c.bf16 %v9897, %v9896
      %v9967 = vpack.c.bf16 %v9899, %v9898
      %v9968 = vpack.c.bf16 %v9901, %v9900
      %v9969 = vpack.c.bf16 %v9903, %v9902
      %v9970 = vpack.c.bf16 %v9905, %v9904
      %v9971 = vpack.c.bf16 %v9907, %v9906
      %v9972 = vld [vmem:[%s7] sm:$0xff]
      %v9973 = vld [vmem:[%s7 + $0x8] sm:$0xff]
      %v9976 = vcombine.high %v9972, %v9972
      %v9978 = vunpack.c.l.s4 1983009808
      %v9979 = vunpack.c.0.s8 %v9978
      %v9980 = vlaneseq
      %v9981 = vshrl.u32 %v9980, 7
      %v9982 = vsub.s32 %v9979, %v9981
      %v9983 = vrot.slane %v9972, %v9982
      %v9985 = vunpack.c.l.s4 1983009808
      %v9986 = vunpack.c.0.s8 %v9985
      %v9987 = vlaneseq
      %v9988 = vshrl.u32 %v9987, 7
      %v9989 = vsub.s32 %v9986, %v9988
      %v9990 = vrot.slane %v9976, %v9989
      %v9991 = vcombine.high %v9983, %v9983
      %v9992 = vcombine.high %v9990, %v9990
      %v9993 = vcombine.high %v9973, %v9973
      %v9995 = vunpack.c.l.s4 1983009808
      %v9996 = vunpack.c.0.s8 %v9995
      %v9997 = vlaneseq
      %v9998 = vshrl.u32 %v9997, 7
      %v9999 = vsub.s32 %v9996, %v9998
      %v10000 = vrot.slane %v9973, %v9999
      %v10002 = vunpack.c.l.s4 1983009808
      %v10003 = vunpack.c.0.s8 %v10002
      %v10004 = vlaneseq
      %v10005 = vshrl.u32 %v10004, 7
      %v10006 = vsub.s32 %v10003, %v10005
      %v10007 = vrot.slane %v9993, %v10006
      %v10008 = vcombine.high %v10000, %v10000
      %v10009 = vcombine.high %v10007, %v10007
      %10018 = vmatprep.subr.bf16.mxu0 0
      %10019 = vmatpush1.bf16.msra.mxu0 %v9908
      %10020 = vmatprep.subr.bf16.mxu0 0
      %10021 = vmatpush1.bf16.msra.mxu0 %v9909
      %10022 = vmatprep.subr.bf16.mxu0 0
      %10023 = vmatpush1.bf16.msra.mxu0 %v9910
      %10024 = vmatprep.subr.bf16.mxu0 0
      %10025 = vmatpush1.bf16.msra.mxu0 %v9911
      %10026 = vmatprep.subr.bf16.mxu0 0
      %10027 = vmatpush1.bf16.msra.mxu0 %v9912
      %10028 = vmatprep.subr.bf16.mxu0 0
      %10029 = vmatpush1.bf16.msra.mxu0 %v9913
      %10030 = vmatprep.subr.bf16.mxu0 0
      %10031 = vmatpush1.bf16.msra.mxu0 %v9914
      %10032 = vmatprep.subr.bf16.mxu0 0
      %10033 = vmatpush1.bf16.msra.mxu0 %v9915
      %10034 = vmatprep.subr.bf16.mxu0 0
      %10035 = vmatpush1.bf16.msra.mxu0 %v9916
      %10036 = vmatprep.subr.bf16.mxu0 0
      %10037 = vmatpush1.bf16.msra.mxu0 %v9917
      %10038 = vmatprep.subr.bf16.mxu0 0
      %10039 = vmatpush1.bf16.msra.mxu0 %v9918
      %10040 = vmatprep.subr.bf16.mxu0 0
      %10041 = vmatpush1.bf16.msra.mxu0 %v9919
      %10042 = vmatprep.subr.bf16.mxu0 0
      %10043 = vmatpush1.bf16.msra.mxu0 %v9920
      %10044 = vmatprep.subr.bf16.mxu0 0
      %10045 = vmatpush1.bf16.msra.mxu0 %v9921
      %10046 = vmatprep.subr.bf16.mxu0 0
      %10047 = vmatpush1.bf16.msra.mxu0 %v9922
      %10048 = vmatprep.subr.bf16.mxu0 0
      %10049 = vmatpush1.bf16.msra.mxu0 %v9923
      %10050 = vmatprep.mubr.bf16.mxu0 %v9991
      %10051 = vmatmul.mubr.bf16.gmra.mrb[0].mxu0 %v9983
      %v10052 = vpop.f32.mrb[0].mxu0
      %v10053 = vadd.f32 0.0, %v10052
      %v10054 = vpop.f32.mrb[0].mxu0
      %v10055 = vpop.f32.mrb[0].mxu0
      %v10056 = vpop.f32.mrb[0].mxu0
      %10057 = vdwg.mxu0
      %10058 = vmatprep.subr.bf16.mxu0 0
      %10059 = vmatpush1.bf16.msra.mxu0 %v9924
      %10060 = vmatprep.subr.bf16.mxu0 0
      %10061 = vmatpush1.bf16.msra.mxu0 %v9925
      %10062 = vmatprep.subr.bf16.mxu0 0
      %10063 = vmatpush1.bf16.msra.mxu0 %v9926
      %10064 = vmatprep.subr.bf16.mxu0 0
      %10065 = vmatpush1.bf16.msra.mxu0 %v9927
      %10066 = vmatprep.subr.bf16.mxu0 0
      %10067 = vmatpush1.bf16.msra.mxu0 %v9928
      %10068 = vmatprep.subr.bf16.mxu0 0
      %10069 = vmatpush1.bf16.msra.mxu0 %v9929
      %10070 = vmatprep.subr.bf16.mxu0 0
      %10071 = vmatpush1.bf16.msra.mxu0 %v9930
      %10072 = vmatprep.subr.bf16.mxu0 0
      %10073 = vmatpush1.bf16.msra.mxu0 %v9931
      %10074 = vmatprep.subr.bf16.mxu0 0
      %10075 = vmatpush1.bf16.msra.mxu0 %v9932
      %10076 = vmatprep.subr.bf16.mxu0 0
      %10077 = vmatpush1.bf16.msra.mxu0 %v9933
      %10078 = vmatprep.subr.bf16.mxu0 0
      %10079 = vmatpush1.bf16.msra.mxu0 %v9934
      %10080 = vmatprep.subr.bf16.mxu0 0
      %10081 = vmatpush1.bf16.msra.mxu0 %v9935
      %10082 = vmatprep.subr.bf16.mxu0 0
      %10083 = vmatpush1.bf16.msra.mxu0 %v9936
      %10084 = vmatprep.subr.bf16.mxu0 0
      %10085 = vmatpush1.bf16.msra.mxu0 %v9937
      %10086 = vmatprep.subr.bf16.mxu0 0
      %10087 = vmatpush1.bf16.msra.mxu0 %v9938
      %10088 = vmatprep.subr.bf16.mxu0 0
      %10089 = vmatpush1.bf16.msra.mxu0 %v9939
      %10090 = vmatprep.mubr.bf16.mxu0 %v9992
      %10091 = vmatmul.mubr.bf16.gmra.mrb[0].mxu0 %v9990
      %v10092 = vpop.f32.mrb[0].mxu0
      %v10093 = vadd.f32 %v10053, %v10092
      %v10094 = vpop.f32.mrb[0].mxu0
      %v10095 = vpop.f32.mrb[0].mxu0
      %v10096 = vpop.f32.mrb[0].mxu0
      %10097 = vdwg.mxu0
      %10098 = vmatprep.subr.bf16.mxu0 0
      %10099 = vmatpush1.bf16.msra.mxu0 %v9940
      %10100 = vmatprep.subr.bf16.mxu0 0
      %10101 = vmatpush1.bf16.msra.mxu0 %v9941
      %10102 = vmatprep.subr.bf16.mxu0 0
      %10103 = vmatpush1.bf16.msra.mxu0 %v9942
      %10104 = vmatprep.subr.bf16.mxu0 0
      %10105 = vmatpush1.bf16.msra.mxu0 %v9943
      %10106 = vmatprep.subr.bf16.mxu0 0
      %10107 = vmatpush1.bf16.msra.mxu0 %v9944
      %10108 = vmatprep.subr.bf16.mxu0 0
      %10109 = vmatpush1.bf16.msra.mxu0 %v9945
      %10110 = vmatprep.subr.bf16.mxu0 0
      %10111 = vmatpush1.bf16.msra.mxu0 %v9946
      %10112 = vmatprep.subr.bf16.mxu0 0
      %10113 = vmatpush1.bf16.msra.mxu0 %v9947
      %10114 = vmatprep.subr.bf16.mxu0 0
      %10115 = vmatpush1.bf16.msra.mxu0 %v9948
      %10116 = vmatprep.subr.bf16.mxu0 0
      %10117 = vmatpush1.bf16.msra.mxu0 %v9949
      %10118 = vmatprep.subr.bf16.mxu0 0
      %10119 = vmatpush1.bf16.msra.mxu0 %v9950
      %10120 = vmatprep.subr.bf16.mxu0 0
      %10121 = vmatpush1.bf16.msra.mxu0 %v9951
      %10122 = vmatprep.subr.bf16.mxu0 0
      %10123 = vmatpush1.bf16.msra.mxu0 %v9952
      %10124 = vmatprep.subr.bf16.mxu0 0
      %10125 = vmatpush1.bf16.msra.mxu0 %v9953
      %10126 = vmatprep.subr.bf16.mxu0 0
      %10127 = vmatpush1.bf16.msra.mxu0 %v9954
      %10128 = vmatprep.subr.bf16.mxu0 0
      %10129 = vmatpush1.bf16.msra.mxu0 %v9955
      %10130 = vmatprep.mubr.bf16.mxu0 %v10008
      %10131 = vmatmul.mubr.bf16.gmra.mrb[0].mxu0 %v10000
      %v10132 = vpop.f32.mrb[0].mxu0
      %v10133 = vadd.f32 %v10093, %v10132
      %v10134 = vpop.f32.mrb[0].mxu0
      %v10135 = vpop.f32.mrb[0].mxu0
      %v10136 = vpop.f32.mrb[0].mxu0
      %10137 = vdwg.mxu0
      %10138 = vmatprep.subr.bf16.mxu0 0
      %10139 = vmatpush1.bf16.msra.mxu0 %v9956
      %10140 = vmatprep.subr.bf16.mxu0 0
      %10141 = vmatpush1.bf16.msra.mxu0 %v9957
      %10142 = vmatprep.subr.bf16.mxu0 0
      %10143 = vmatpush1.bf16.msra.mxu0 %v9958
      %10144 = vmatprep.subr.bf16.mxu0 0
      %10145 = vmatpush1.bf16.msra.mxu0 %v9959
      %10146 = vmatprep.subr.bf16.mxu0 0
      %10147 = vmatpush1.bf16.msra.mxu0 %v9960
      %10148 = vmatprep.subr.bf16.mxu0 0
      %10149 = vmatpush1.bf16.msra.mxu0 %v9961
      %10150 = vmatprep.subr.bf16.mxu0 0
      %10151 = vmatpush1.bf16.msra.mxu0 %v9962
      %10152 = vmatprep.subr.bf16.mxu0 0
      %10153 = vmatpush1.bf16.msra.mxu0 %v9963
      %10154 = vmatprep.subr.bf16.mxu0 0
      %10155 = vmatpush1.bf16.msra.mxu0 %v9964
      %10156 = vmatprep.subr.bf16.mxu0 0
      %10157 = vmatpush1.bf16.msra.mxu0 %v9965
      %10158 = vmatprep.subr.bf16.mxu0 0
      %10159 = vmatpush1.bf16.msra.mxu0 %v9966
      %10160 = vmatprep.subr.bf16.mxu0 0
      %10161 = vmatpush1.bf16.msra.mxu0 %v9967
      %10162 = vmatprep.subr.bf16.mxu0 0
      %10163 = vmatpush1.bf16.msra.mxu0 %v9968
      %10164 = vmatprep.subr.bf16.mxu0 0
      %10165 = vmatpush1.bf16.msra.mxu0 %v9969
      %10166 = vmatprep.subr.bf16.mxu0 0
      %10167 = vmatpush1.bf16.msra.mxu0 %v9970
      %10168 = vmatprep.subr.bf16.mxu0 0
      %10169 = vmatpush1.bf16.msra.mxu0 %v9971
      %10170 = vmatprep.mubr.bf16.mxu0 %v10009
      %10171 = vmatmul.mubr.bf16.gmra.mrb[0].mxu0 %v10007
      %v10172 = vpop.f32.mrb[0].mxu0
      %v10173 = vadd.f32 %v10133, %v10172
      %v10174 = vpop.f32.mrb[0].mxu0
      %v10175 = vpop.f32.mrb[0].mxu0
      %v10176 = vpop.f32.mrb[0].mxu0
      %10177 = vdwg.mxu0
      %v10178 = vld [vmem:[%s8] sm:$0xff]
      %v10179 = vld [vmem:[%s8 + $0x8] sm:$0xff]
      %v10180 = vld [vmem:[%s8 + $0x10] sm:$0xff]
      %v10181 = vld [vmem:[%s8 + $0x18] sm:$0xff]
      %v10182 = vld [vmem:[%s8 + $0x20] sm:$0xff]
      %v10183 = vld [vmem:[%s8 + $0x28] sm:$0xff]
      %v10184 = vld [vmem:[%s8 + $0x30] sm:$0xff]
      %v10185 = vld [vmem:[%s8 + $0x38] sm:$0xff]
      %v10186 = vld [vmem:[%s9] sm:$0x1]
      %v10188 = vlaneseq
      %v10189 = vshrl.u32 %v10188, 7
      %v10190 = vsub.s32 0, %v10189
      %v10191 = vrot.slane %v10186, %v10190
      %vm10193 = vcmask 523264
      %v10195 = vsel %vm10193, %v10173, 0
      %10197 = vmatprep.subr.mxu0 0.0
      %10198 = vmatpush1.msra.mxu0 %v10178
      %10199 = vmatprep.subr.mxu0 0.0
      %10200 = vmatpush1.msra.mxu0 %v10179
      %10201 = vmatprep.subr.mxu0 0.0
      %10202 = vmatpush1.msra.mxu0 %v10180
      %10203 = vmatprep.subr.mxu0 0.0
      %10204 = vmatpush1.msra.mxu0 %v10181
      %10205 = vmatprep.subr.mxu0 0.0
      %10206 = vmatpush1.msra.mxu0 %v10182
      %10207 = vmatprep.subr.mxu0 0.0
      %10208 = vmatpush1.msra.mxu0 %v10183
      %10209 = vmatprep.subr.mxu0 0.0
      %10210 = vmatpush1.msra.mxu0 %v10184
      %10211 = vmatprep.subr.mxu0 0.0
      %10212 = vmatpush1.msra.mxu0 %v10185
      %10213 = vmatprep.subr.mxu0 0.0
      %10214 = vmatpush1.msra.mxu0 0.0
      %10215 = vmatprep.subr.mxu0 0.0
      %10216 = vmatpush1.msra.mxu0 0.0
      %10217 = vmatprep.subr.mxu0 0.0
      %10218 = vmatpush1.msra.mxu0 0.0
      %10219 = vmatprep.subr.mxu0 0.0
      %10220 = vmatpush1.msra.mxu0 0.0
      %10221 = vmatprep.subr.mxu0 0.0
      %10222 = vmatpush1.msra.mxu0 0.0
      %10223 = vmatprep.subr.mxu0 0.0
      %10224 = vmatpush1.msra.mxu0 0.0
      %10225 = vmatprep.subr.mxu0 0.0
      %10226 = vmatpush1.msra.mxu0 0.0
      %10227 = vmatprep.subr.mxu0 0.0
      %10228 = vmatpush1.msra.mxu0 0.0
      %10229 = vmatprep.subr.mxu0 0.0
      %10230 = vmatpush1.msra.mxu0 0.0
      %10231 = vmatprep.subr.mxu0 0.0
      %10232 = vmatpush1.msra.mxu0 0.0
      %10233 = vmatprep.subr.mxu0 0.0
      %10234 = vmatpush1.msra.mxu0 0.0
      %10235 = vmatprep.subr.mxu0 0.0
      %10236 = vmatpush1.msra.mxu0 0.0
      %10237 = vmatprep.subr.mxu0 0.0
      %10238 = vmatpush1.msra.mxu0 0.0
      %10239 = vmatprep.subr.mxu0 0.0
      %10240 = vmatpush1.msra.mxu0 0.0
      %10241 = vmatprep.subr.mxu0 0.0
      %10242 = vmatpush1.msra.mxu0 0.0
      %10243 = vmatprep.subr.mxu0 0.0
      %10244 = vmatpush1.msra.mxu0 0.0
      %10245 = vmatprep.subr.mxu0 0.0
      %10246 = vmatpush1.msra.mxu0 0.0
      %10247 = vmatprep.subr.mxu0 0.0
      %10248 = vmatpush1.msra.mxu0 0.0
      %10249 = vmatprep.subr.mxu0 0.0
      %10250 = vmatpush1.msra.mxu0 0.0
      %10251 = vmatprep.subr.mxu0 0.0
      %10252 = vmatpush1.msra.mxu0 0.0
      %10253 = vmatprep.subr.mxu0 0.0
      %10254 = vmatpush1.msra.mxu0 0.0
      %10255 = vmatprep.subr.mxu0 0.0
      %10256 = vmatpush1.msra.mxu0 0.0
      %10257 = vmatprep.subr.mxu0 0.0
      %10258 = vmatpush1.msra.mxu0 0.0
      %10259 = vmatprep.subr.mxu0 0.0
      %10260 = vmatpush1.msra.mxu0 0.0
      %10261 = vmatprep.mubr.f32.mxu0 0.0
      %10262 = vmatmul.mubr.f32.gmra.mrb[0].mxu0 %v10195
      %v10263 = vpop.f32.mrb[0].mxu0
      %v10264 = vadd.f32 %v10191, %v10263
      %v10265 = vpop.f32.mrb[0].mxu0
      %10266 = vdwg.mxu0
      %10267 = vst [vmem:[%s359] sm:$0xf] %v10264
      %p10268 = scmp.lt.s32.totalorder %s21, 1
      %s10269 = scalar_select %p10268, %s21, 1
      %s10270 = smul.addr %s10269, 4
      %s10271 = scalar_lea.vmem %s10, %s10270
      // Predicated region
      $region61: #{boxhead_forward.1} parent=59 // pred_check
        %p10272 = pneg %p254
      $region62: #{boxhead_forward.1} parent=59 // pred_check_branch
        %10274 = sbr.rel (%p10272) target = $region64
      $region63: #{boxhead_forward.1} parent=59 // pred_region
        _
      $region64: #{boxhead_forward.1} parent=59 // pred_fallthru
        _
    $region60: #{boxhead_forward.1} parent=5 // pred_fallthru
      _
    %p10275 = scmp.le.s32.totalorder 2, %s16
    // Predicated region
    $region65: #{boxhead_forward.1} parent=5 // pred_check
      %p10276 = pneg %p10275
    $region66: #{boxhead_forward.1} parent=5 // pred_check_branch
      %10278 = sbr.rel (%p10276) target = $region68
    $region67: #{boxhead_forward.1} parent=5 // pred_region
      %s10279 = ssub.s32 %s16, 2
      // Predicated region
      $region69: #{boxhead_forward.1} parent=67 // pred_check
        %p10280 = pneg %p260
      $region70: #{boxhead_forward.1} parent=67 // pred_check_branch
        %10282 = sbr.rel (%p10280) target = $region72
      $region71: #{boxhead_forward.1} parent=67 // pred_region
        %p10283 = scmp.lt.s32.totalorder %s22, 1
        %s10284 = scalar_select %p10283, %s22, 1
        %s10285 = smul.addr %s10284, 4
        %s10286 = scalar_lea.vmem %s10, %s10285
      $region72: #{boxhead_forward.1} parent=67 // pred_fallthru
        _
    $region68: #{boxhead_forward.1} parent=5 // pred_fallthru
      _
  $region6: #{boxhead_forward.1} parent=0 // loop_footer
    %s20 = sadd.s32 1, %s16
  $region7: #{boxhead_forward.1} parent=0 // loop_footer_branch
    %15 = sbr.rel target = $region3
  $region8: #{boxhead_forward.1} parent=0 // loop_exit
    _

</llo_original>
